<compile_context>
chip_gen: v7x
topology: tpu7x:2x2x1
jax: 0.10.0
libtpu: 0.0.40
codegen_flags: <defaults>
</compile_context>

<pallas_src>
import numpy as np
import jax
import jax.numpy as jnp
from jax import lax
from jax.experimental import pallas as pl
from jax.experimental.pallas import tpu as pltpu


def tinyblock2_kernel(mprev_ref, mnext_ref,              # SMEM scalar-prefetch masks
                      x_ref, xprev_ref, xnext_ref,       # frame blocks (VMEM)
                      pool_ref, w_ref, bias_ref,         # constants (resident)
                      a1t_ref, b1_ref, a2t_ref, b2_ref,
                      o_ref):
    # mprev_ref/mnext_ref: (T,) int32   0 at segment starts / ends, else 1
    # x_ref:     (TB, Cin, H*W) f32     current frame block, channel-major
    # xprev_ref: (1, Cin, H*W)  f32     frame i*TB-1 (clamped)
    # xnext_ref: (1, Cin, H*W)  f32     frame (i+1)*TB (clamped)
    # pool_ref:  (H*W, hw) f32          constant 2x2 average-pool matrix (0.25 entries)
    # w_ref:     (3, Cout, Cin) bf16    conv taps [t-1, t, t+1]
    # bias_ref:  (Cout, 1) f32
    # a1t_ref/a2t_ref: (Cout, Cout) f32 SE FC weights (transposed -> column form)
    # b1_ref/b2_ref:   (Cout, 1) f32
    # o_ref:     (TB, Cout, hw) f32
    i = pl.program_id(0)
    tb, cin, _ = x_ref.shape
    pool = pool_ref[...]

    def pool_frame(x_cs):  # (Cin, HW) f32 -> (Cin, hw) bf16
        return jnp.dot(x_cs, pool,
                       preferred_element_type=jnp.float32).astype(jnp.bfloat16)

    # ---- 2x2 average pool on the MXU (f32 accumulate), bf16 for the conv ----
    p = [pool_frame(x_ref[t]) for t in range(tb)]
    p_prev_halo = pool_frame(xprev_ref[0])
    p_next_halo = pool_frame(xnext_ref[0])

    w_prev, w_mid, w_next = w_ref[0], w_ref[1], w_ref[2]

    for t in range(tb):                      # static unroll; tb is small
        f = i * tb + t                       # global frame index
        p_t = p[t]
        p_tm1 = p_prev_halo if t == 0 else p[t - 1]
        p_tp1 = p_next_halo if t == tb - 1 else p[t + 1]
        mp = mprev_ref[f].astype(jnp.float32)    # 0 at segment starts
        mn = mnext_ref[f].astype(jnp.float32)    # 0 at segment ends

        # Conv1d(k=3, pad=1) over time: three accumulating dots into f32.
        y = jnp.dot(w_mid, p_t, preferred_element_type=jnp.float32)
        y = y + mp * jnp.dot(w_prev, p_tm1, preferred_element_type=jnp.float32)
        y = y + mn * jnp.dot(w_next, p_tp1, preferred_element_type=jnp.float32)
        y = y + bias_ref[...]                                     # (Cout, hw)

        # SE gate (assumed MultiSE), f32 column form.
        s = jnp.mean(y, axis=-1, keepdims=True)                   # (Cout, 1)
        z = jnp.maximum(
            jnp.dot(a1t_ref[...], s, preferred_element_type=jnp.float32)
            + b1_ref[...], 0.0)
        u = jnp.dot(a2t_ref[...], z, preferred_element_type=jnp.float32) + b2_ref[...]
        g = pl.reciprocal(1.0 + jnp.exp(-u), approx=True)         # sigmoid (EUP)

        o_ref[t] = (y * g).astype(o_ref.dtype)


def tinyblock2_pallas(x_nchw, vid_lens, w_conv, b_conv, a1, b1, a2, b2, tb=None):
    """x_nchw: (T, Cin, H, W) f32 stacked frames; vid_lens: static python ints.
    Returns ((T, Cout, H//2, W//2) f32, new_vid_lens)."""
    T, Cin, H, W = x_nchw.shape
    assert H % 2 == 0 and W % 2 == 0, "even spatial dims assumed (2x2 pool)"
    assert sum(vid_lens) == T
    h, w = H // 2, W // 2
    hw, HW = h * w, H * W
    Cout = w_conv.shape[0]

    if tb is None:                       # frames per grid step (must divide T)
        tb = next(d for d in (4, 8, 2, 1) if T % d == 0)
    assert T % tb == 0
    n_t = T // tb

    # Channel-major throughout: both reshapes are free row-major reshapes, so
    # there is NO transpose HBM pass around the kernel.
    x_flat = x_nchw.reshape(T, Cin, HW)

    # Constant 2x2 average-pool matrix (HW, hw), f32 (0.25 is exact).
    ii, jj = np.meshgrid(np.arange(H), np.arange(W), indexing="ij")
    pool_np = np.zeros((HW, hw), np.float32)
    pool_np[(ii * W + jj).ravel(), ((ii // 2) * w + (jj // 2)).ravel()] = 0.25
    pool_mat = jnp.asarray(pool_np)

    # Conv1d weight (Cout, Cin, 3) -> tap-major (3, Cout, Cin), bf16 in HBM.
    w_taps = jnp.transpose(w_conv, (2, 0, 1)).astype(jnp.bfloat16)
    bias_col = b_conv.reshape(Cout, 1).astype(jnp.float32)
    # SE weights in column form (kernel computes A^T @ s_col).
    a1t = jnp.transpose(a1).astype(jnp.float32)
    a2t = jnp.transpose(a2).astype(jnp.float32)
    b1c = b1.reshape(Cout, 1).astype(jnp.float32)
    b2c = b2.reshape(Cout, 1).astype(jnp.float32)

    # Segment-boundary tap masks (vid_lens are static ints, as in the module),
    # int32 scalars prefetched into SMEM.
    offs = np.cumsum([0] + list(vid_lens))
    mprev_np = np.ones((T,), np.int32)
    mnext_np = np.ones((T,), np.int32)
    mprev_np[offs[:-1]] = 0          # first frame of each segment: no t-1 tap
    mnext_np[offs[1:] - 1] = 0       # last  frame of each segment: no t+1 tap
    mprev = jnp.asarray(mprev_np)
    mnext = jnp.asarray(mnext_np)

    grid_spec = pltpu.PrefetchScalarGridSpec(
        num_scalar_prefetch=2,
        grid=(n_t,),
        in_specs=[
            # current TB-frame block
            pl.BlockSpec((tb, Cin, HW), lambda i, mp, mn: (i, 0, 0)),
            # 1-frame halos (block size 1 along T => block index == frame index),
            # clamped at the ends; boundary contributions are masked anyway.
            pl.BlockSpec((1, Cin, HW),
                         lambda i, mp, mn: (jnp.maximum(i * tb - 1, 0), 0, 0)),
            pl.BlockSpec((1, Cin, HW),
                         lambda i, mp, mn: (jnp.minimum((i + 1) * tb, T - 1), 0, 0)),
            # constants: index maps never change -> DMA'd once, stay resident.
            pl.BlockSpec((HW, hw), lambda i, mp, mn: (0, 0)),
            pl.BlockSpec((3, Cout, Cin), lambda i, mp, mn: (0, 0, 0)),
            pl.BlockSpec((Cout, 1), lambda i, mp, mn: (0, 0)),
            pl.BlockSpec((Cout, Cout), lambda i, mp, mn: (0, 0)),
            pl.BlockSpec((Cout, 1), lambda i, mp, mn: (0, 0)),
            pl.BlockSpec((Cout, Cout), lambda i, mp, mn: (0, 0)),
            pl.BlockSpec((Cout, 1), lambda i, mp, mn: (0, 0)),
        ],
        out_specs=pl.BlockSpec((tb, Cout, hw), lambda i, mp, mn: (i, 0, 0)),
    )

    flops = T * (2 * Cin * HW * hw + 3 * 2 * Cout * Cin * hw + 2 * 2 * Cout * Cout)
    bytes_accessed = ((T + 2 * n_t) * Cin * HW * 4 + T * Cout * hw * 4
                      + HW * hw * 4 + 3 * Cout * Cin * 2
                      + 2 * Cout * Cout * 4 + 3 * Cout * 4 + 2 * T * 4)
    cost = pl.CostEstimate(flops=flops, transcendentals=2 * T * Cout,
                           bytes_accessed=bytes_accessed)

    out = pl.pallas_call(
        tinyblock2_kernel,
        out_shape=jax.ShapeDtypeStruct((T, Cout, hw), jnp.float32),
        grid_spec=grid_spec,
        compiler_params=pltpu.CompilerParams(
            dimension_semantics=("parallel",),      # independent steps: megacore-able
            vmem_limit_bytes=32 * 1024 * 1024),     # explicit; safe for v7x (64 MiB)
        cost_estimate=cost,
    )(mprev, mnext, x_flat, x_flat, x_flat, pool_mat, w_taps, bias_col,
      a1t, b1c, a2t, b2c)

    out_nchw = out.reshape(T, Cout, h, w)           # free row-major reshape
    return out_nchw, list(vid_lens)


def reference_jax(x_nchw, vid_lens, w_conv, b_conv, a1, b1, a2, b2):
    """Pure-JAX f32 reference mirroring the PyTorch forward."""
    T, Cin, H, W = x_nchw.shape
    h, w = H // 2, W // 2
    Cout = w_conv.shape[0]
    # AdaptiveAvgPool2d((H//2, W//2)) for even H, W == 2x2 mean pool.
    xp = x_nchw.reshape(T, Cin, h, 2, w, 2).mean(axis=(3, 5))   # (T, Cin, h, w)

    outs, idx = [], 0
    for L in vid_lens:
        part = xp[idx:idx + L].reshape(L, Cin, h * w)
        y = jnp.transpose(part, (2, 1, 0))                      # (hw, Cin, L)
        y4 = y[:, :, None, :]                                   # (hw, Cin, 1, L)
        w4 = w_conv[:, :, None, :]                              # (Cout, Cin, 1, 3)
        yo = lax.conv_general_dilated(
            y4, w4, window_strides=(1, 1), padding=((0, 0), (1, 1)),
            dimension_numbers=("NCHW", "OIHW", "NCHW"))[:, :, 0, :]
        yo = yo + b_conv[None, :, None]                         # (hw, Cout, L)
        yo = jnp.transpose(yo, (2, 1, 0)).reshape(L, Cout, h, w)
        outs.append(yo)
        idx += L
    y = jnp.concatenate(outs, axis=0)                           # (T, Cout, h, w)

    # Assumed MultiSE: canonical squeeze-and-excitation.
    s = y.mean(axis=(2, 3))                                     # (T, Cout)
    z = jnp.maximum(s @ a1 + b1, 0.0)
    g = jax.nn.sigmoid(z @ a2 + b2)
    return y * g[:, :, None, None], list(vid_lens)


if __name__ == "__main__":
    # Small shapes consistent with the module defaults (in=64, out=128 channels).
    vid_lens = [3, 5]                 # two video segments, T = 8 frames total
    T = sum(vid_lens)
    Cin, Cout = 64, 128
    H = W = 16

    key = jax.random.PRNGKey(0)
    kx, kw, kb, k1, k2, k3, k4 = jax.random.split(key, 7)
    x = jax.random.normal(kx, (T, Cin, H, W), dtype=jnp.float32)
    w_conv = 0.05 * jax.random.normal(kw, (Cout, Cin, 3), dtype=jnp.float32)
    b_conv = 0.10 * jax.random.normal(kb, (Cout,), dtype=jnp.float32)
    a1 = 0.10 * jax.random.normal(k1, (Cout, Cout), dtype=jnp.float32)
    b1 = 0.10 * jax.random.normal(k2, (Cout,), dtype=jnp.float32)
    a2 = 0.10 * jax.random.normal(k3, (Cout, Cout), dtype=jnp.float32)
    b2 = 0.10 * jax.random.normal(k4, (Cout,), dtype=jnp.float32)

    out, new_lens = tinyblock2_pallas(x, vid_lens, w_conv, b_conv, a1, b1, a2, b2)
    out = jax.block_until_ready(out)

    ref, _ = reference_jax(x, vid_lens, w_conv, b_conv, a1, b1, a2, b2)
    ref = jax.block_until_ready(ref)

    assert out.shape == (T, Cout, H // 2, W // 2)
    assert new_lens == vid_lens
    # bf16 matmul operands with f32 accumulation -> compare with a loose bound.
    rel_err = float(jnp.max(jnp.abs(out - ref)) / (jnp.max(jnp.abs(ref)) + 1e-8))
    assert rel_err < 2e-2, f"mismatch vs reference: rel err {rel_err}"

    print("KERNEL_OK")
</pallas_src>

<mosaic_0001>
module attributes {stable_mosaic.version = 11 : i64} {
  func.func @tinyblock2_kernel(%arg0: i32, %arg1: memref<8xi32, #tpu.memory_space<smem>>, %arg2: memref<8xi32, #tpu.memory_space<smem>>, %arg3: memref<4x64x256xf32, #tpu.memory_space<vmem>>, %arg4: memref<1x64x256xf32, #tpu.memory_space<vmem>>, %arg5: memref<1x64x256xf32, #tpu.memory_space<vmem>>, %arg6: memref<256x64xf32, #tpu.memory_space<vmem>>, %arg7: memref<3x128x64xbf16, #tpu.memory_space<vmem>>, %arg8: memref<128x1xf32, #tpu.memory_space<vmem>>, %arg9: memref<128x128xf32, #tpu.memory_space<vmem>>, %arg10: memref<128x1xf32, #tpu.memory_space<vmem>>, %arg11: memref<128x128xf32, #tpu.memory_space<vmem>>, %arg12: memref<128x1xf32, #tpu.memory_space<vmem>>, %arg13: memref<4x128x64xf32, #tpu.memory_space<vmem>>) attributes {dimension_semantics = [#tpu.dimension_semantics<parallel>], iteration_bounds = array<i64: 2>, scalar_prefetch = 2 : i64, scratch_operands = 0 : i64, tpu.core_type = #tpu.core_type<tc>, window_params = [{transform_indices = @transform_0, window_bounds = array<i64: 4, 64, 256>}, {transform_indices = @transform_1, window_bounds = array<i64: 1, 64, 256>}, {transform_indices = @transform_2, window_bounds = array<i64: 1, 64, 256>}, {pipeline_mode = #tpu.pipeline_mode<synchronous>, transform_indices = @transform_3, window_bounds = array<i64: 256, 64>}, {pipeline_mode = #tpu.pipeline_mode<synchronous>, transform_indices = @transform_4, window_bounds = array<i64: 3, 128, 64>}, {pipeline_mode = #tpu.pipeline_mode<synchronous>, transform_indices = @transform_5, window_bounds = array<i64: 128, 1>}, {pipeline_mode = #tpu.pipeline_mode<synchronous>, transform_indices = @transform_6, window_bounds = array<i64: 128, 128>}, {pipeline_mode = #tpu.pipeline_mode<synchronous>, transform_indices = @transform_7, window_bounds = array<i64: 128, 1>}, {pipeline_mode = #tpu.pipeline_mode<synchronous>, transform_indices = @transform_8, window_bounds = array<i64: 128, 128>}, {pipeline_mode = #tpu.pipeline_mode<synchronous>, transform_indices = @transform_9, window_bounds = array<i64: 128, 1>}, {transform_indices = @transform_10, window_bounds = array<i64: 4, 128, 64>}]} {
    %c0 = arith.constant 0 : index
    %c0_0 = arith.constant 0 : index
    %0 = vector.load %arg6[%c0, %c0_0] : memref<256x64xf32, #tpu.memory_space<vmem>>, vector<256x64xf32>
    %c0_1 = arith.constant 0 : index
    %c0_2 = arith.constant 0 : index
    %c0_3 = arith.constant 0 : index
    %1 = vector.load %arg3[%c0_1, %c0_2, %c0_3] : memref<4x64x256xf32, #tpu.memory_space<vmem>>, vector<1x64x256xf32>
    %2 = vector.shape_cast %1 : vector<1x64x256xf32> to vector<64x256xf32>
    %cst = arith.constant dense<0.000000e+00> : vector<64x64xf32>
    %3 = tpu.matmul %2, %0, %cst {dimension_numbers = #tpu.dot_dimension_numbers<[1], [0], [0], [1], [0, 0, 1, 1], [], []>} : vector<64x256xf32>, vector<256x64xf32>, vector<64x64xf32> -> vector<64x64xf32>
    %4 = arith.truncf %3 : vector<64x64xf32> to vector<64x64xbf16>
    %c1 = arith.constant 1 : index
    %c0_4 = arith.constant 0 : index
    %c0_5 = arith.constant 0 : index
    %5 = vector.load %arg3[%c1, %c0_4, %c0_5] : memref<4x64x256xf32, #tpu.memory_space<vmem>>, vector<1x64x256xf32>
    %6 = vector.shape_cast %5 : vector<1x64x256xf32> to vector<64x256xf32>
    %cst_6 = arith.constant dense<0.000000e+00> : vector<64x64xf32>
    %7 = tpu.matmul %6, %0, %cst_6 {dimension_numbers = #tpu.dot_dimension_numbers<[1], [0], [0], [1], [0, 0, 1, 1], [], []>} : vector<64x256xf32>, vector<256x64xf32>, vector<64x64xf32> -> vector<64x64xf32>
    %8 = arith.truncf %7 : vector<64x64xf32> to vector<64x64xbf16>
    %c2 = arith.constant 2 : index
    %c0_7 = arith.constant 0 : index
    %c0_8 = arith.constant 0 : index
    %9 = vector.load %arg3[%c2, %c0_7, %c0_8] : memref<4x64x256xf32, #tpu.memory_space<vmem>>, vector<1x64x256xf32>
    %10 = vector.shape_cast %9 : vector<1x64x256xf32> to vector<64x256xf32>
    %cst_9 = arith.constant dense<0.000000e+00> : vector<64x64xf32>
    %11 = tpu.matmul %10, %0, %cst_9 {dimension_numbers = #tpu.dot_dimension_numbers<[1], [0], [0], [1], [0, 0, 1, 1], [], []>} : vector<64x256xf32>, vector<256x64xf32>, vector<64x64xf32> -> vector<64x64xf32>
    %12 = arith.truncf %11 : vector<64x64xf32> to vector<64x64xbf16>
    %c3 = arith.constant 3 : index
    %c0_10 = arith.constant 0 : index
    %c0_11 = arith.constant 0 : index
    %13 = vector.load %arg3[%c3, %c0_10, %c0_11] : memref<4x64x256xf32, #tpu.memory_space<vmem>>, vector<1x64x256xf32>
    %14 = vector.shape_cast %13 : vector<1x64x256xf32> to vector<64x256xf32>
    %cst_12 = arith.constant dense<0.000000e+00> : vector<64x64xf32>
    %15 = tpu.matmul %14, %0, %cst_12 {dimension_numbers = #tpu.dot_dimension_numbers<[1], [0], [0], [1], [0, 0, 1, 1], [], []>} : vector<64x256xf32>, vector<256x64xf32>, vector<64x64xf32> -> vector<64x64xf32>
    %16 = arith.truncf %15 : vector<64x64xf32> to vector<64x64xbf16>
    %c0_13 = arith.constant 0 : index
    %c0_14 = arith.constant 0 : index
    %c0_15 = arith.constant 0 : index
    %17 = vector.load %arg4[%c0_13, %c0_14, %c0_15] : memref<1x64x256xf32, #tpu.memory_space<vmem>>, vector<1x64x256xf32>
    %18 = vector.shape_cast %17 : vector<1x64x256xf32> to vector<64x256xf32>
    %cst_16 = arith.constant dense<0.000000e+00> : vector<64x64xf32>
    %19 = tpu.matmul %18, %0, %cst_16 {dimension_numbers = #tpu.dot_dimension_numbers<[1], [0], [0], [1], [0, 0, 1, 1], [], []>} : vector<64x256xf32>, vector<256x64xf32>, vector<64x64xf32> -> vector<64x64xf32>
    %20 = arith.truncf %19 : vector<64x64xf32> to vector<64x64xbf16>
    %c0_17 = arith.constant 0 : index
    %c0_18 = arith.constant 0 : index
    %c0_19 = arith.constant 0 : index
    %21 = vector.load %arg5[%c0_17, %c0_18, %c0_19] : memref<1x64x256xf32, #tpu.memory_space<vmem>>, vector<1x64x256xf32>
    %22 = vector.shape_cast %21 : vector<1x64x256xf32> to vector<64x256xf32>
    %cst_20 = arith.constant dense<0.000000e+00> : vector<64x64xf32>
    %23 = tpu.matmul %22, %0, %cst_20 {dimension_numbers = #tpu.dot_dimension_numbers<[1], [0], [0], [1], [0, 0, 1, 1], [], []>} : vector<64x256xf32>, vector<256x64xf32>, vector<64x64xf32> -> vector<64x64xf32>
    %24 = arith.truncf %23 : vector<64x64xf32> to vector<64x64xbf16>
    %c0_21 = arith.constant 0 : index
    %c0_22 = arith.constant 0 : index
    %c0_23 = arith.constant 0 : index
    %25 = vector.load %arg7[%c0_21, %c0_22, %c0_23] : memref<3x128x64xbf16, #tpu.memory_space<vmem>>, vector<1x128x64xbf16>
    %26 = vector.shape_cast %25 : vector<1x128x64xbf16> to vector<128x64xbf16>
    %c1_24 = arith.constant 1 : index
    %c0_25 = arith.constant 0 : index
    %c0_26 = arith.constant 0 : index
    %27 = vector.load %arg7[%c1_24, %c0_25, %c0_26] : memref<3x128x64xbf16, #tpu.memory_space<vmem>>, vector<1x128x64xbf16>
    %28 = vector.shape_cast %27 : vector<1x128x64xbf16> to vector<128x64xbf16>
    %c2_27 = arith.constant 2 : index
    %c0_28 = arith.constant 0 : index
    %c0_29 = arith.constant 0 : index
    %29 = vector.load %arg7[%c2_27, %c0_28, %c0_29] : memref<3x128x64xbf16, #tpu.memory_space<vmem>>, vector<1x128x64xbf16>
    %30 = vector.shape_cast %29 : vector<1x128x64xbf16> to vector<128x64xbf16>
    %c4_i32 = arith.constant 4 : i32
    %31 = arith.muli %arg0, %c4_i32 : i32
    %c0_i32 = arith.constant 0 : i32
    %32 = arith.addi %31, %c0_i32 : i32
    %33 = arith.index_cast %32 : i32 to index
    %34 = memref.load %arg1[%33] : memref<8xi32, #tpu.memory_space<smem>>
    %35 = arith.sitofp %34 : i32 to f32
    %36 = arith.index_cast %32 : i32 to index
    %37 = memref.load %arg2[%36] : memref<8xi32, #tpu.memory_space<smem>>
    %38 = arith.sitofp %37 : i32 to f32
    %cst_30 = arith.constant dense<0.000000e+00> : vector<128x64xf32>
    %39 = tpu.matmul %28, %4, %cst_30 {dimension_numbers = #tpu.dot_dimension_numbers<[1], [0], [0], [1], [0, 0, 1, 1], [], []>} : vector<128x64xbf16>, vector<64x64xbf16>, vector<128x64xf32> -> vector<128x64xf32>
    %cst_31 = arith.constant dense<0.000000e+00> : vector<128x64xf32>
    %40 = tpu.matmul %26, %20, %cst_31 {dimension_numbers = #tpu.dot_dimension_numbers<[1], [0], [0], [1], [0, 0, 1, 1], [], []>} : vector<128x64xbf16>, vector<64x64xbf16>, vector<128x64xf32> -> vector<128x64xf32>
    %41 = vector.broadcast %35 : f32 to vector<128x64xf32>
    %42 = arith.mulf %41, %40 : vector<128x64xf32>
    %43 = arith.addf %39, %42 : vector<128x64xf32>
    %cst_32 = arith.constant dense<0.000000e+00> : vector<128x64xf32>
    %44 = tpu.matmul %30, %8, %cst_32 {dimension_numbers = #tpu.dot_dimension_numbers<[1], [0], [0], [1], [0, 0, 1, 1], [], []>} : vector<128x64xbf16>, vector<64x64xbf16>, vector<128x64xf32> -> vector<128x64xf32>
    %45 = vector.broadcast %38 : f32 to vector<128x64xf32>
    %46 = arith.mulf %45, %44 : vector<128x64xf32>
    %47 = arith.addf %43, %46 : vector<128x64xf32>
    %c0_33 = arith.constant 0 : index
    %c0_34 = arith.constant 0 : index
    %48 = vector.load %arg8[%c0_33, %c0_34] : memref<128x1xf32, #tpu.memory_space<vmem>>, vector<128x1xf32>
    %49 = vector.broadcast %48 : vector<128x1xf32> to vector<128x64xf32>
    %50 = arith.addf %47, %49 : vector<128x64xf32>
    %cst_35 = arith.constant dense<0.000000e+00> : vector<128xf32>
    %51 = vector.multi_reduction <add>, %50, %cst_35 [1] : vector<128x64xf32> to vector<128xf32>
    %52 = vector.shape_cast %51 : vector<128xf32> to vector<128x1xf32>
    %cst_36 = arith.constant 6.400000e+01 : f32
    %53 = vector.broadcast %cst_36 : f32 to vector<128x1xf32>
    %54 = arith.divf %52, %53 : vector<128x1xf32>
    %c0_37 = arith.constant 0 : index
    %c0_38 = arith.constant 0 : index
    %55 = vector.load %arg9[%c0_37, %c0_38] : memref<128x128xf32, #tpu.memory_space<vmem>>, vector<128x128xf32>
    %cst_39 = arith.constant dense<0.000000e+00> : vector<128x1xf32>
    %56 = tpu.matmul %55, %54, %cst_39 {dimension_numbers = #tpu.dot_dimension_numbers<[1], [0], [0], [1], [0, 0, 1, 1], [], []>} : vector<128x128xf32>, vector<128x1xf32>, vector<128x1xf32> -> vector<128x1xf32>
    %c0_40 = arith.constant 0 : index
    %c0_41 = arith.constant 0 : index
    %57 = vector.load %arg10[%c0_40, %c0_41] : memref<128x1xf32, #tpu.memory_space<vmem>>, vector<128x1xf32>
    %58 = arith.addf %56, %57 : vector<128x1xf32>
    %cst_42 = arith.constant 0.000000e+00 : f32
    %59 = vector.broadcast %cst_42 : f32 to vector<128x1xf32>
    %60 = arith.maximumf %58, %59 : vector<128x1xf32>
    %c0_43 = arith.constant 0 : index
    %c0_44 = arith.constant 0 : index
    %61 = vector.load %arg11[%c0_43, %c0_44] : memref<128x128xf32, #tpu.memory_space<vmem>>, vector<128x128xf32>
    %cst_45 = arith.constant dense<0.000000e+00> : vector<128x1xf32>
    %62 = tpu.matmul %61, %60, %cst_45 {dimension_numbers = #tpu.dot_dimension_numbers<[1], [0], [0], [1], [0, 0, 1, 1], [], []>} : vector<128x128xf32>, vector<128x1xf32>, vector<128x1xf32> -> vector<128x1xf32>
    %c0_46 = arith.constant 0 : index
    %c0_47 = arith.constant 0 : index
    %63 = vector.load %arg12[%c0_46, %c0_47] : memref<128x1xf32, #tpu.memory_space<vmem>>, vector<128x1xf32>
    %64 = arith.addf %62, %63 : vector<128x1xf32>
    %cst_48 = arith.constant 0.000000e+00 : f32
    %65 = vector.broadcast %cst_48 : f32 to vector<128x1xf32>
    %66 = arith.subf %65, %64 : vector<128x1xf32>
    %67 = math.exp %66 : vector<128x1xf32>
    %cst_49 = arith.constant 1.000000e+00 : f32
    %68 = vector.broadcast %cst_49 : f32 to vector<128x1xf32>
    %69 = arith.addf %68, %67 : vector<128x1xf32>
    %70 = tpu.reciprocal %69 {approx = true} : vector<128x1xf32> -> vector<128x1xf32>
    %71 = vector.broadcast %70 : vector<128x1xf32> to vector<128x64xf32>
    %72 = arith.mulf %50, %71 : vector<128x64xf32>
    %c0_50 = arith.constant 0 : index
    %c0_51 = arith.constant 0 : index
    %c0_52 = arith.constant 0 : index
    %73 = vector.load %arg13[%c0_50, %c0_51, %c0_52] : memref<4x128x64xf32, #tpu.memory_space<vmem>>, vector<1x128x64xf32>
    %74 = vector.shape_cast %73 : vector<1x128x64xf32> to vector<128x64xf32>
    %75 = vector.shape_cast %72 : vector<128x64xf32> to vector<1x128x64xf32>
    tpu.vector_store %arg13[%c0_50, %c0_51, %c0_52], %75 {strides = array<i32>} : memref<4x128x64xf32, #tpu.memory_space<vmem>>, vector<1x128x64xf32>,
    %c4_i32_53 = arith.constant 4 : i32
    %76 = arith.muli %arg0, %c4_i32_53 : i32
    %c1_i32 = arith.constant 1 : i32
    %77 = arith.addi %76, %c1_i32 : i32
    %78 = arith.index_cast %77 : i32 to index
    %79 = memref.load %arg1[%78] : memref<8xi32, #tpu.memory_space<smem>>
    %80 = arith.sitofp %79 : i32 to f32
    %81 = arith.index_cast %77 : i32 to index
    %82 = memref.load %arg2[%81] : memref<8xi32, #tpu.memory_space<smem>>
    %83 = arith.sitofp %82 : i32 to f32
    %cst_54 = arith.constant dense<0.000000e+00> : vector<128x64xf32>
    %84 = tpu.matmul %28, %8, %cst_54 {dimension_numbers = #tpu.dot_dimension_numbers<[1], [0], [0], [1], [0, 0, 1, 1], [], []>} : vector<128x64xbf16>, vector<64x64xbf16>, vector<128x64xf32> -> vector<128x64xf32>
    %cst_55 = arith.constant dense<0.000000e+00> : vector<128x64xf32>
    %85 = tpu.matmul %26, %4, %cst_55 {dimension_numbers = #tpu.dot_dimension_numbers<[1], [0], [0], [1], [0, 0, 1, 1], [], []>} : vector<128x64xbf16>, vector<64x64xbf16>, vector<128x64xf32> -> vector<128x64xf32>
    %86 = vector.broadcast %80 : f32 to vector<128x64xf32>
    %87 = arith.mulf %86, %85 : vector<128x64xf32>
    %88 = arith.addf %84, %87 : vector<128x64xf32>
    %cst_56 = arith.constant dense<0.000000e+00> : vector<128x64xf32>
    %89 = tpu.matmul %30, %12, %cst_56 {dimension_numbers = #tpu.dot_dimension_numbers<[1], [0], [0], [1], [0, 0, 1, 1], [], []>} : vector<128x64xbf16>, vector<64x64xbf16>, vector<128x64xf32> -> vector<128x64xf32>
    %90 = vector.broadcast %83 : f32 to vector<128x64xf32>
    %91 = arith.mulf %90, %89 : vector<128x64xf32>
    %92 = arith.addf %88, %91 : vector<128x64xf32>
    %c0_57 = arith.constant 0 : index
    %c0_58 = arith.constant 0 : index
    %93 = vector.load %arg8[%c0_57, %c0_58] : memref<128x1xf32, #tpu.memory_space<vmem>>, vector<128x1xf32>
    %94 = vector.broadcast %93 : vector<128x1xf32> to vector<128x64xf32>
    %95 = arith.addf %92, %94 : vector<128x64xf32>
    %cst_59 = arith.constant dense<0.000000e+00> : vector<128xf32>
    %96 = vector.multi_reduction <add>, %95, %cst_59 [1] : vector<128x64xf32> to vector<128xf32>
    %97 = vector.shape_cast %96 : vector<128xf32> to vector<128x1xf32>
    %cst_60 = arith.constant 6.400000e+01 : f32
    %98 = vector.broadcast %cst_60 : f32 to vector<128x1xf32>
    %99 = arith.divf %97, %98 : vector<128x1xf32>
    %c0_61 = arith.constant 0 : index
    %c0_62 = arith.constant 0 : index
    %100 = vector.load %arg9[%c0_61, %c0_62] : memref<128x128xf32, #tpu.memory_space<vmem>>, vector<128x128xf32>
    %cst_63 = arith.constant dense<0.000000e+00> : vector<128x1xf32>
    %101 = tpu.matmul %100, %99, %cst_63 {dimension_numbers = #tpu.dot_dimension_numbers<[1], [0], [0], [1], [0, 0, 1, 1], [], []>} : vector<128x128xf32>, vector<128x1xf32>, vector<128x1xf32> -> vector<128x1xf32>
    %c0_64 = arith.constant 0 : index
    %c0_65 = arith.constant 0 : index
    %102 = vector.load %arg10[%c0_64, %c0_65] : memref<128x1xf32, #tpu.memory_space<vmem>>, vector<128x1xf32>
    %103 = arith.addf %101, %102 : vector<128x1xf32>
    %cst_66 = arith.constant 0.000000e+00 : f32
    %104 = vector.broadcast %cst_66 : f32 to vector<128x1xf32>
    %105 = arith.maximumf %103, %104 : vector<128x1xf32>
    %c0_67 = arith.constant 0 : index
    %c0_68 = arith.constant 0 : index
    %106 = vector.load %arg11[%c0_67, %c0_68] : memref<128x128xf32, #tpu.memory_space<vmem>>, vector<128x128xf32>
    %cst_69 = arith.constant dense<0.000000e+00> : vector<128x1xf32>
    %107 = tpu.matmul %106, %105, %cst_69 {dimension_numbers = #tpu.dot_dimension_numbers<[1], [0], [0], [1], [0, 0, 1, 1], [], []>} : vector<128x128xf32>, vector<128x1xf32>, vector<128x1xf32> -> vector<128x1xf32>
    %c0_70 = arith.constant 0 : index
    %c0_71 = arith.constant 0 : index
    %108 = vector.load %arg12[%c0_70, %c0_71] : memref<128x1xf32, #tpu.memory_space<vmem>>, vector<128x1xf32>
    %109 = arith.addf %107, %108 : vector<128x1xf32>
    %cst_72 = arith.constant 0.000000e+00 : f32
    %110 = vector.broadcast %cst_72 : f32 to vector<128x1xf32>
    %111 = arith.subf %110, %109 : vector<128x1xf32>
    %112 = math.exp %111 : vector<128x1xf32>
    %cst_73 = arith.constant 1.000000e+00 : f32
    %113 = vector.broadcast %cst_73 : f32 to vector<128x1xf32>
    %114 = arith.addf %113, %112 : vector<128x1xf32>
    %115 = tpu.reciprocal %114 {approx = true} : vector<128x1xf32> -> vector<128x1xf32>
    %116 = vector.broadcast %115 : vector<128x1xf32> to vector<128x64xf32>
    %117 = arith.mulf %95, %116 : vector<128x64xf32>
    %c1_74 = arith.constant 1 : index
    %c0_75 = arith.constant 0 : index
    %c0_76 = arith.constant 0 : index
    %118 = vector.load %arg13[%c1_74, %c0_75, %c0_76] : memref<4x128x64xf32, #tpu.memory_space<vmem>>, vector<1x128x64xf32>
    %119 = vector.shape_cast %118 : vector<1x128x64xf32> to vector<128x64xf32>
    %120 = vector.shape_cast %117 : vector<128x64xf32> to vector<1x128x64xf32>
    tpu.vector_store %arg13[%c1_74, %c0_75, %c0_76], %120 {strides = array<i32>} : memref<4x128x64xf32, #tpu.memory_space<vmem>>, vector<1x128x64xf32>,
    %c4_i32_77 = arith.constant 4 : i32
    %121 = arith.muli %arg0, %c4_i32_77 : i32
    %c2_i32 = arith.constant 2 : i32
    %122 = arith.addi %121, %c2_i32 : i32
    %123 = arith.index_cast %122 : i32 to index
    %124 = memref.load %arg1[%123] : memref<8xi32, #tpu.memory_space<smem>>
    %125 = arith.sitofp %124 : i32 to f32
    %126 = arith.index_cast %122 : i32 to index
    %127 = memref.load %arg2[%126] : memref<8xi32, #tpu.memory_space<smem>>
    %128 = arith.sitofp %127 : i32 to f32
    %cst_78 = arith.constant dense<0.000000e+00> : vector<128x64xf32>
    %129 = tpu.matmul %28, %12, %cst_78 {dimension_numbers = #tpu.dot_dimension_numbers<[1], [0], [0], [1], [0, 0, 1, 1], [], []>} : vector<128x64xbf16>, vector<64x64xbf16>, vector<128x64xf32> -> vector<128x64xf32>
    %cst_79 = arith.constant dense<0.000000e+00> : vector<128x64xf32>
    %130 = tpu.matmul %26, %8, %cst_79 {dimension_numbers = #tpu.dot_dimension_numbers<[1], [0], [0], [1], [0, 0, 1, 1], [], []>} : vector<128x64xbf16>, vector<64x64xbf16>, vector<128x64xf32> -> vector<128x64xf32>
    %131 = vector.broadcast %125 : f32 to vector<128x64xf32>
    %132 = arith.mulf %131, %130 : vector<128x64xf32>
    %133 = arith.addf %129, %132 : vector<128x64xf32>
    %cst_80 = arith.constant dense<0.000000e+00> : vector<128x64xf32>
    %134 = tpu.matmul %30, %16, %cst_80 {dimension_numbers = #tpu.dot_dimension_numbers<[1], [0], [0], [1], [0, 0, 1, 1], [], []>} : vector<128x64xbf16>, vector<64x64xbf16>, vector<128x64xf32> -> vector<128x64xf32>
    %135 = vector.broadcast %128 : f32 to vector<128x64xf32>
    %136 = arith.mulf %135, %134 : vector<128x64xf32>
    %137 = arith.addf %133, %136 : vector<128x64xf32>
    %c0_81 = arith.constant 0 : index
    %c0_82 = arith.constant 0 : index
    %138 = vector.load %arg8[%c0_81, %c0_82] : memref<128x1xf32, #tpu.memory_space<vmem>>, vector<128x1xf32>
    %139 = vector.broadcast %138 : vector<128x1xf32> to vector<128x64xf32>
    %140 = arith.addf %137, %139 : vector<128x64xf32>
    %cst_83 = arith.constant dense<0.000000e+00> : vector<128xf32>
    %141 = vector.multi_reduction <add>, %140, %cst_83 [1] : vector<128x64xf32> to vector<128xf32>
    %142 = vector.shape_cast %141 : vector<128xf32> to vector<128x1xf32>
    %cst_84 = arith.constant 6.400000e+01 : f32
    %143 = vector.broadcast %cst_84 : f32 to vector<128x1xf32>
    %144 = arith.divf %142, %143 : vector<128x1xf32>
    %c0_85 = arith.constant 0 : index
    %c0_86 = arith.constant 0 : index
    %145 = vector.load %arg9[%c0_85, %c0_86] : memref<128x128xf32, #tpu.memory_space<vmem>>, vector<128x128xf32>
    %cst_87 = arith.constant dense<0.000000e+00> : vector<128x1xf32>
    %146 = tpu.matmul %145, %144, %cst_87 {dimension_numbers = #tpu.dot_dimension_numbers<[1], [0], [0], [1], [0, 0, 1, 1], [], []>} : vector<128x128xf32>, vector<128x1xf32>, vector<128x1xf32> -> vector<128x1xf32>
    %c0_88 = arith.constant 0 : index
    %c0_89 = arith.constant 0 : index
    %147 = vector.load %arg10[%c0_88, %c0_89] : memref<128x1xf32, #tpu.memory_space<vmem>>, vector<128x1xf32>
    %148 = arith.addf %146, %147 : vector<128x1xf32>
    %cst_90 = arith.constant 0.000000e+00 : f32
    %149 = vector.broadcast %cst_90 : f32 to vector<128x1xf32>
    %150 = arith.maximumf %148, %149 : vector<128x1xf32>
    %c0_91 = arith.constant 0 : index
    %c0_92 = arith.constant 0 : index
    %151 = vector.load %arg11[%c0_91, %c0_92] : memref<128x128xf32, #tpu.memory_space<vmem>>, vector<128x128xf32>
    %cst_93 = arith.constant dense<0.000000e+00> : vector<128x1xf32>
    %152 = tpu.matmul %151, %150, %cst_93 {dimension_numbers = #tpu.dot_dimension_numbers<[1], [0], [0], [1], [0, 0, 1, 1], [], []>} : vector<128x128xf32>, vector<128x1xf32>, vector<128x1xf32> -> vector<128x1xf32>
    %c0_94 = arith.constant 0 : index
    %c0_95 = arith.constant 0 : index
    %153 = vector.load %arg12[%c0_94, %c0_95] : memref<128x1xf32, #tpu.memory_space<vmem>>, vector<128x1xf32>
    %154 = arith.addf %152, %153 : vector<128x1xf32>
    %cst_96 = arith.constant 0.000000e+00 : f32
    %155 = vector.broadcast %cst_96 : f32 to vector<128x1xf32>
    %156 = arith.subf %155, %154 : vector<128x1xf32>
    %157 = math.exp %156 : vector<128x1xf32>
    %cst_97 = arith.constant 1.000000e+00 : f32
    %158 = vector.broadcast %cst_97 : f32 to vector<128x1xf32>
    %159 = arith.addf %158, %157 : vector<128x1xf32>
    %160 = tpu.reciprocal %159 {approx = true} : vector<128x1xf32> -> vector<128x1xf32>
    %161 = vector.broadcast %160 : vector<128x1xf32> to vector<128x64xf32>
    %162 = arith.mulf %140, %161 : vector<128x64xf32>
    %c2_98 = arith.constant 2 : index
    %c0_99 = arith.constant 0 : index
    %c0_100 = arith.constant 0 : index
    %163 = vector.load %arg13[%c2_98, %c0_99, %c0_100] : memref<4x128x64xf32, #tpu.memory_space<vmem>>, vector<1x128x64xf32>
    %164 = vector.shape_cast %163 : vector<1x128x64xf32> to vector<128x64xf32>
    %165 = vector.shape_cast %162 : vector<128x64xf32> to vector<1x128x64xf32>
    tpu.vector_store %arg13[%c2_98, %c0_99, %c0_100], %165 {strides = array<i32>} : memref<4x128x64xf32, #tpu.memory_space<vmem>>, vector<1x128x64xf32>,
    %c4_i32_101 = arith.constant 4 : i32
    %166 = arith.muli %arg0, %c4_i32_101 : i32
    %c3_i32 = arith.constant 3 : i32
    %167 = arith.addi %166, %c3_i32 : i32
    %168 = arith.index_cast %167 : i32 to index
    %169 = memref.load %arg1[%168] : memref<8xi32, #tpu.memory_space<smem>>
    %170 = arith.sitofp %169 : i32 to f32
    %171 = arith.index_cast %167 : i32 to index
    %172 = memref.load %arg2[%171] : memref<8xi32, #tpu.memory_space<smem>>
    %173 = arith.sitofp %172 : i32 to f32
    %cst_102 = arith.constant dense<0.000000e+00> : vector<128x64xf32>
    %174 = tpu.matmul %28, %16, %cst_102 {dimension_numbers = #tpu.dot_dimension_numbers<[1], [0], [0], [1], [0, 0, 1, 1], [], []>} : vector<128x64xbf16>, vector<64x64xbf16>, vector<128x64xf32> -> vector<128x64xf32>
    %cst_103 = arith.constant dense<0.000000e+00> : vector<128x64xf32>
    %175 = tpu.matmul %26, %12, %cst_103 {dimension_numbers = #tpu.dot_dimension_numbers<[1], [0], [0], [1], [0, 0, 1, 1], [], []>} : vector<128x64xbf16>, vector<64x64xbf16>, vector<128x64xf32> -> vector<128x64xf32>
    %176 = vector.broadcast %170 : f32 to vector<128x64xf32>
    %177 = arith.mulf %176, %175 : vector<128x64xf32>
    %178 = arith.addf %174, %177 : vector<128x64xf32>
    %cst_104 = arith.constant dense<0.000000e+00> : vector<128x64xf32>
    %179 = tpu.matmul %30, %24, %cst_104 {dimension_numbers = #tpu.dot_dimension_numbers<[1], [0], [0], [1], [0, 0, 1, 1], [], []>} : vector<128x64xbf16>, vector<64x64xbf16>, vector<128x64xf32> -> vector<128x64xf32>
    %180 = vector.broadcast %173 : f32 to vector<128x64xf32>
    %181 = arith.mulf %180, %179 : vector<128x64xf32>
    %182 = arith.addf %178, %181 : vector<128x64xf32>
    %c0_105 = arith.constant 0 : index
    %c0_106 = arith.constant 0 : index
    %183 = vector.load %arg8[%c0_105, %c0_106] : memref<128x1xf32, #tpu.memory_space<vmem>>, vector<128x1xf32>
    %184 = vector.broadcast %183 : vector<128x1xf32> to vector<128x64xf32>
    %185 = arith.addf %182, %184 : vector<128x64xf32>
    %cst_107 = arith.constant dense<0.000000e+00> : vector<128xf32>
    %186 = vector.multi_reduction <add>, %185, %cst_107 [1] : vector<128x64xf32> to vector<128xf32>
    %187 = vector.shape_cast %186 : vector<128xf32> to vector<128x1xf32>
    %cst_108 = arith.constant 6.400000e+01 : f32
    %188 = vector.broadcast %cst_108 : f32 to vector<128x1xf32>
    %189 = arith.divf %187, %188 : vector<128x1xf32>
    %c0_109 = arith.constant 0 : index
    %c0_110 = arith.constant 0 : index
    %190 = vector.load %arg9[%c0_109, %c0_110] : memref<128x128xf32, #tpu.memory_space<vmem>>, vector<128x128xf32>
    %cst_111 = arith.constant dense<0.000000e+00> : vector<128x1xf32>
    %191 = tpu.matmul %190, %189, %cst_111 {dimension_numbers = #tpu.dot_dimension_numbers<[1], [0], [0], [1], [0, 0, 1, 1], [], []>} : vector<128x128xf32>, vector<128x1xf32>, vector<128x1xf32> -> vector<128x1xf32>
    %c0_112 = arith.constant 0 : index
    %c0_113 = arith.constant 0 : index
    %192 = vector.load %arg10[%c0_112, %c0_113] : memref<128x1xf32, #tpu.memory_space<vmem>>, vector<128x1xf32>
    %193 = arith.addf %191, %192 : vector<128x1xf32>
    %cst_114 = arith.constant 0.000000e+00 : f32
    %194 = vector.broadcast %cst_114 : f32 to vector<128x1xf32>
    %195 = arith.maximumf %193, %194 : vector<128x1xf32>
    %c0_115 = arith.constant 0 : index
    %c0_116 = arith.constant 0 : index
    %196 = vector.load %arg11[%c0_115, %c0_116] : memref<128x128xf32, #tpu.memory_space<vmem>>, vector<128x128xf32>
    %cst_117 = arith.constant dense<0.000000e+00> : vector<128x1xf32>
    %197 = tpu.matmul %196, %195, %cst_117 {dimension_numbers = #tpu.dot_dimension_numbers<[1], [0], [0], [1], [0, 0, 1, 1], [], []>} : vector<128x128xf32>, vector<128x1xf32>, vector<128x1xf32> -> vector<128x1xf32>
    %c0_118 = arith.constant 0 : index
    %c0_119 = arith.constant 0 : index
    %198 = vector.load %arg12[%c0_118, %c0_119] : memref<128x1xf32, #tpu.memory_space<vmem>>, vector<128x1xf32>
    %199 = arith.addf %197, %198 : vector<128x1xf32>
    %cst_120 = arith.constant 0.000000e+00 : f32
    %200 = vector.broadcast %cst_120 : f32 to vector<128x1xf32>
    %201 = arith.subf %200, %199 : vector<128x1xf32>
    %202 = math.exp %201 : vector<128x1xf32>
    %cst_121 = arith.constant 1.000000e+00 : f32
    %203 = vector.broadcast %cst_121 : f32 to vector<128x1xf32>
    %204 = arith.addf %203, %202 : vector<128x1xf32>
    %205 = tpu.reciprocal %204 {approx = true} : vector<128x1xf32> -> vector<128x1xf32>
    %206 = vector.broadcast %205 : vector<128x1xf32> to vector<128x64xf32>
    %207 = arith.mulf %185, %206 : vector<128x64xf32>
    %c3_122 = arith.constant 3 : index
    %c0_123 = arith.constant 0 : index
    %c0_124 = arith.constant 0 : index
    %208 = vector.load %arg13[%c3_122, %c0_123, %c0_124] : memref<4x128x64xf32, #tpu.memory_space<vmem>>, vector<1x128x64xf32>
    %209 = vector.shape_cast %208 : vector<1x128x64xf32> to vector<128x64xf32>
    %210 = vector.shape_cast %207 : vector<128x64xf32> to vector<1x128x64xf32>
    tpu.vector_store %arg13[%c3_122, %c0_123, %c0_124], %210 {strides = array<i32>} : memref<4x128x64xf32, #tpu.memory_space<vmem>>, vector<1x128x64xf32>,
    return
  }
  func.func @transform_0(%arg0: i32, %arg1: memref<8xi32, #tpu.memory_space<smem>>, %arg2: memref<8xi32, #tpu.memory_space<smem>>) -> (i32, i32, i32) {
    %c0_i32 = arith.constant 0 : i32
    %c0_i32_0 = arith.constant 0 : i32
    %c0_i32_1 = arith.constant 0 : i32
    return %arg0, %c0_i32, %c0_i32_0 : i32, i32, i32
  }
  func.func @transform_1(%arg0: i32, %arg1: memref<8xi32, #tpu.memory_space<smem>>, %arg2: memref<8xi32, #tpu.memory_space<smem>>) -> (i32, i32, i32) {
    %c4_i32 = arith.constant 4 : i32
    %0 = arith.muli %arg0, %c4_i32 : i32
    %c1_i32 = arith.constant 1 : i32
    %1 = arith.subi %0, %c1_i32 : i32
    %c0_i32 = arith.constant 0 : i32
    %2 = arith.maxsi %1, %c0_i32 : i32
    %c0_i32_0 = arith.constant 0 : i32
    %c0_i32_1 = arith.constant 0 : i32
    %c0_i32_2 = arith.constant 0 : i32
    return %2, %c0_i32_0, %c0_i32_1 : i32, i32, i32
  }
  func.func @transform_2(%arg0: i32, %arg1: memref<8xi32, #tpu.memory_space<smem>>, %arg2: memref<8xi32, #tpu.memory_space<smem>>) -> (i32, i32, i32) {
    %c1_i32 = arith.constant 1 : i32
    %0 = arith.addi %arg0, %c1_i32 : i32
    %c4_i32 = arith.constant 4 : i32
    %1 = arith.muli %0, %c4_i32 : i32
    %c7_i32 = arith.constant 7 : i32
    %2 = arith.minsi %1, %c7_i32 : i32
    %c0_i32 = arith.constant 0 : i32
    %c0_i32_0 = arith.constant 0 : i32
    %c0_i32_1 = arith.constant 0 : i32
    return %2, %c0_i32, %c0_i32_0 : i32, i32, i32
  }
  func.func @transform_3(%arg0: i32, %arg1: memref<8xi32, #tpu.memory_space<smem>>, %arg2: memref<8xi32, #tpu.memory_space<smem>>) -> (i32, i32) {
    %c0_i32 = arith.constant 0 : i32
    %c0_i32_0 = arith.constant 0 : i32
    %c0_i32_1 = arith.constant 0 : i32
    return %c0_i32, %c0_i32_0 : i32, i32
  }
  func.func @transform_4(%arg0: i32, %arg1: memref<8xi32, #tpu.memory_space<smem>>, %arg2: memref<8xi32, #tpu.memory_space<smem>>) -> (i32, i32, i32) {
    %c0_i32 = arith.constant 0 : i32
    %c0_i32_0 = arith.constant 0 : i32
    %c0_i32_1 = arith.constant 0 : i32
    %c0_i32_2 = arith.constant 0 : i32
    return %c0_i32, %c0_i32_0, %c0_i32_1 : i32, i32, i32
  }
  func.func @transform_5(%arg0: i32, %arg1: memref<8xi32, #tpu.memory_space<smem>>, %arg2: memref<8xi32, #tpu.memory_space<smem>>) -> (i32, i32) {
    %c0_i32 = arith.constant 0 : i32
    %c0_i32_0 = arith.constant 0 : i32
    %c0_i32_1 = arith.constant 0 : i32
    return %c0_i32, %c0_i32_0 : i32, i32
  }
  func.func @transform_6(%arg0: i32, %arg1: memref<8xi32, #tpu.memory_space<smem>>, %arg2: memref<8xi32, #tpu.memory_space<smem>>) -> (i32, i32) {
    %c0_i32 = arith.constant 0 : i32
    %c0_i32_0 = arith.constant 0 : i32
    %c0_i32_1 = arith.constant 0 : i32
    return %c0_i32, %c0_i32_0 : i32, i32
  }
  func.func @transform_7(%arg0: i32, %arg1: memref<8xi32, #tpu.memory_space<smem>>, %arg2: memref<8xi32, #tpu.memory_space<smem>>) -> (i32, i32) {
    %c0_i32 = arith.constant 0 : i32
    %c0_i32_0 = arith.constant 0 : i32
    %c0_i32_1 = arith.constant 0 : i32
    return %c0_i32, %c0_i32_0 : i32, i32
  }
  func.func @transform_8(%arg0: i32, %arg1: memref<8xi32, #tpu.memory_space<smem>>, %arg2: memref<8xi32, #tpu.memory_space<smem>>) -> (i32, i32) {
    %c0_i32 = arith.constant 0 : i32
    %c0_i32_0 = arith.constant 0 : i32
    %c0_i32_1 = arith.constant 0 : i32
    return %c0_i32, %c0_i32_0 : i32, i32
  }
  func.func @transform_9(%arg0: i32, %arg1: memref<8xi32, #tpu.memory_space<smem>>, %arg2: memref<8xi32, #tpu.memory_space<smem>>) -> (i32, i32) {
    %c0_i32 = arith.constant 0 : i32
    %c0_i32_0 = arith.constant 0 : i32
    %c0_i32_1 = arith.constant 0 : i32
    return %c0_i32, %c0_i32_0 : i32, i32
  }
  func.func @transform_10(%arg0: i32, %arg1: memref<8xi32, #tpu.memory_space<smem>>, %arg2: memref<8xi32, #tpu.memory_space<smem>>) -> (i32, i32, i32) {
    %c0_i32 = arith.constant 0 : i32
    %c0_i32_0 = arith.constant 0 : i32
    %c0_i32_1 = arith.constant 0 : i32
    return %arg0, %c0_i32, %c0_i32_0 : i32, i32, i32
  }
}

</mosaic_0001>

<llo_original>
// kernel: tpu_custom_call.1
$region0: #{tpu_custom_call.1}
  #allocation0 [shape = 'u32[]', space=smem, size = 0x4, offset = 0x4, fixed_abs, tag = 'smem constant byte address 0x4 - core index']
  #allocation1 [shape = 'u32[144,128]{1,0:T(1,128)}', space=vmem, size = 0x12000, scoped, tag = 'internal scratch']
  #allocation2 [shape = 's32[1]{0}', space=sflag, size = 0x4, scoped, tag = 'scoped memory for tpu_custom_call.1']
  #allocation3 [shape = 'u8[512]{0}', space=smem, size = 0x200, scoped, tag = 'prefetched SMEM operand 0']
  #allocation4 [shape = 'u8[512]{0}', space=smem, size = 0x200, scoped, tag = 'prefetched SMEM operand 1']
  %s0 = inlined_call_operand.vmem [shape: s32[8], index: 0, kind: input, shape index: {}]
  %s1 = inlined_call_operand.vmem [shape: s32[8], index: 1, kind: input, shape index: {}]
  %s2 = inlined_call_operand.vmem [shape: f32[8,64,256], index: 2, kind: input, shape index: {}]
  %s3 = inlined_call_operand.hbm [shape: f32[8,64,256], index: 3, kind: input, shape index: {}]
  %s4 = inlined_call_operand.hbm [shape: f32[8,64,256], index: 4, kind: input, shape index: {}]
  %s5 = inlined_call_operand.vmem [shape: f32[256,64], index: 5, kind: input, shape index: {}]
  %s6 = inlined_call_operand.vmem [shape: bf16[3,128,64], index: 6, kind: input, shape index: {}]
  %s7 = inlined_call_operand.vmem [shape: f32[128,1], index: 7, kind: input, shape index: {}]
  %s8 = inlined_call_operand.hbm [shape: f32[128,128], index: 8, kind: input, shape index: {}]
  %s9 = inlined_call_operand.vmem [shape: f32[128,1], index: 9, kind: input, shape index: {}]
  %s10 = inlined_call_operand.hbm [shape: f32[128,128], index: 10, kind: input, shape index: {}]
  %s11 = inlined_call_operand.vmem [shape: f32[128,1], index: 11, kind: input, shape index: {}]
  %s12 = inlined_call_operand.vmem [shape: f32[8,128,64], index: 12, kind: output, shape index: {}]
  %s13 = sld [smem:[#allocation0]]
  $region89: #{tpu_custom_call.1} parent=0
    _
  %s15 = ssub.s32 1, %s13
  %s16 = scalar_select 0, %s15, %s13
  %s17 = sshll.u32 %s0, 4
  %s18 = int_to_ptr.vmem [resolvable:$true] %s17
  %20 = dma.vmem_to_smem %s18, 16, [#allocation3], [#allocation2]
  %s21 = sshll.u32 %s1, 4
  %s22 = int_to_ptr.vmem [resolvable:$true] %s21
  %24 = dma.vmem_to_smem %s22, 16, [#allocation4], [#allocation2]
  %25 = dma.done [#allocation2], 32
  %26 = sfence
  $region1: #{tpu_custom_call.1} parent=0
    #allocation5 [shape = 'u8[131072]{0}', space=vmem, size = 0x20000, scoped, tag = 'input window, operand 3']
    #allocation6 [shape = 's32[2]{0}', space=sflag, size = 0x8, scoped, tag = 'scoped memory for tpu_custom_call.1']
    #allocation7 [shape = 'u8[131072]{0}', space=vmem, size = 0x20000, scoped, tag = 'input window, operand 4']
    #allocation8 [shape = 's32[2]{0}', space=sflag, size = 0x8, scoped, tag = 'scoped memory for tpu_custom_call.1']
    #allocation9 [shape = 'u8[65536]{0}', space=vmem, size = 0x10000, scoped, tag = 'input window, operand 8, single buffered']
    #allocation10 [shape = 'u8[65536]{0}', space=vmem, size = 0x10000, scoped, tag = 'input window, operand 10, single buffered']
    #allocation11 [shape = 's32[1]{0}', space=sflag, size = 0x4, scoped, tag = 'scoped memory for tpu_custom_call.1']
    %27 = vsyncpa [#allocation6], 0
    %s28 = scalar_lea.sflag [#allocation6], 1
    %29 = vsyncpa %s28, 0
    %30 = vsyncpa [#allocation8], 0
    %s31 = scalar_lea.sflag [#allocation8], 1
    %32 = vsyncpa %s31, 0
    %33 = vsyncpa [#allocation11], 0
    loop: start=0, step=1, limit=4
    $region2: #{tpu_custom_call.1} parent=1 // loop_pre_header
      _
    $region3: #{tpu_custom_call.1} parent=1 // loop_header
      %s35 = sphi 0, %s39
      %p36 = scmp.ge.s32.totalorder %s35, 4
      %s45 = sphi 0, %s47
      %s48 = sphi 0, %s45
      %s49 = sphi 0, %s48
      %s65 = sphi 0, %s49
      %s79 = sphi 0, %s81
      %s82 = sphi 0, %s79
      %s83 = sphi 0, %s82
      %s99 = sphi 0, %s83
      %s113 = sphi 0, %s115
      %s116 = sphi 0, %s113
      %s117 = sphi 0, %s116
      %s133 = sphi 0, %s117
      %s137 = sphi 0, %s137
      %s139 = sphi 0, %s137
      %s140 = sphi 0, %s139
      %s154 = sphi 0, %s140
      %s158 = sphi 0, %s158
      %s160 = sphi 0, %s158
      %s161 = sphi 0, %s160
      %s175 = sphi 0, %s161
      %s179 = sphi 0, %s179
      %s181 = sphi 0, %s179
      %s182 = sphi 0, %s181
      %s196 = sphi 0, %s182
      %s200 = sphi 0, %s200
      %s202 = sphi 0, %s200
      %s203 = sphi 0, %s202
      %s217 = sphi 0, %s203
      %s221 = sphi 0, %s221
      %s223 = sphi 0, %s221
      %s224 = sphi 0, %s223
      %s238 = sphi 0, %s224
      %s242 = sphi 0, %s242
      %s244 = sphi 0, %s242
      %s245 = sphi 0, %s244
      %s259 = sphi 0, %s245
      %s263 = sphi 0, %s263
      %s265 = sphi 0, %s263
      %s266 = sphi 0, %s265
      %s280 = sphi 0, %s266
      %s286 = sphi 0, %s288
      %s289 = sphi 0, %s286
      %s290 = sphi 0, %s289
      %s306 = sphi 0, %s290
    $region4: #{tpu_custom_call.1} parent=1 // loop_header_branch
      %38 = sbr.rel (%p36) target = $region8
    $region5: #{tpu_custom_call.1} parent=1 // loop_body
      %s40 = ssub.s32 %s35, 1
      %s41 = ssub.s32 %s35, 2
      %s42 = sadd.s32 %s35, 1
      %s43 = ssub.s32 %s35, %s42
      %p44 = scmp.eq.s32.totalorder %s43, 0
      %s46 = sadd.s32 %s45, 1
      %s47 = scalar_select %p44, %s45, %s46
      %p50 = pneg %p44
      %p51 = scmp.eq.s32.totalorder %s35, 1
      %p52 = por %p50, %p51
      %p53 = scmp.ne.s32.totalorder %s45, %s48
      %p54 = scmp.eq.s32.totalorder %s35, 0
      %p55 = por %p53, %p54
      %p56 = scmp.ne.s32.totalorder %s45, %s48
      %p57 = scmp.eq.s32.totalorder %s40, 1
      %p58 = por %p56, %p57
      %p59 = scmp.ne.s32.totalorder %s48, %s49
      %p60 = scmp.eq.s32.totalorder %s40, 0
      %p61 = por %p59, %p60
      %p62 = scmp.ne.s32.totalorder %s48, %s49
      %p63 = scmp.eq.s32.totalorder %s41, 1
      %p64 = por %p62, %p63
      %p66 = scmp.ne.s32.totalorder %s49, %s65
      %p67 = scmp.eq.s32.totalorder %s41, 0
      %p68 = por %p66, %p67
      %s69 = smul.u32 %s35, 4
      %s70 = ssub.s32 %s69, 1
      %p71 = scmp.gt.s32.totalorder %s70, 0
      %s72 = scalar_select %p71, %s70, 0
      %s73 = smul.u32 %s42, 4
      %s74 = ssub.s32 %s73, 1
      %p75 = scmp.gt.s32.totalorder %s74, 0
      %s76 = scalar_select %p75, %s74, 0
      %s77 = ssub.s32 %s72, %s76
      %p78 = scmp.eq.s32.totalorder %s77, 0
      %s80 = sadd.s32 %s79, 1
      %s81 = scalar_select %p78, %s79, %s80
      %p84 = pneg %p78
      %p85 = scmp.eq.s32.totalorder %s35, 1
      %p86 = por %p84, %p85
      %p87 = scmp.ne.s32.totalorder %s79, %s82
      %p88 = scmp.eq.s32.totalorder %s35, 0
      %p89 = por %p87, %p88
      %p90 = scmp.ne.s32.totalorder %s79, %s82
      %p91 = scmp.eq.s32.totalorder %s40, 1
      %p92 = por %p90, %p91
      %p93 = scmp.ne.s32.totalorder %s82, %s83
      %p94 = scmp.eq.s32.totalorder %s40, 0
      %p95 = por %p93, %p94
      %p96 = scmp.ne.s32.totalorder %s82, %s83
      %p97 = scmp.eq.s32.totalorder %s41, 1
      %p98 = por %p96, %p97
      %p100 = scmp.ne.s32.totalorder %s83, %s99
      %p101 = scmp.eq.s32.totalorder %s41, 0
      %p102 = por %p100, %p101
      %s103 = sadd.s32 %s35, 1
      %s104 = smul.u32 %s103, 4
      %p105 = scmp.lt.s32.totalorder %s104, 7
      %s106 = scalar_select %p105, %s104, 7
      %s107 = sadd.s32 %s42, 1
      %s108 = smul.u32 %s107, 4
      %p109 = scmp.lt.s32.totalorder %s108, 7
      %s110 = scalar_select %p109, %s108, 7
      %s111 = ssub.s32 %s106, %s110
      %p112 = scmp.eq.s32.totalorder %s111, 0
      %s114 = sadd.s32 %s113, 1
      %s115 = scalar_select %p112, %s113, %s114
      %p118 = pneg %p112
      %p119 = scmp.eq.s32.totalorder %s35, 1
      %p120 = por %p118, %p119
      %p121 = scmp.ne.s32.totalorder %s113, %s116
      %p122 = scmp.eq.s32.totalorder %s35, 0
      %p123 = por %p121, %p122
      %p124 = scmp.ne.s32.totalorder %s113, %s116
      %p125 = scmp.eq.s32.totalorder %s40, 1
      %p126 = por %p124, %p125
      %p127 = scmp.ne.s32.totalorder %s116, %s117
      %p128 = scmp.eq.s32.totalorder %s40, 0
      %p129 = por %p127, %p128
      %p130 = scmp.ne.s32.totalorder %s116, %s117
      %p131 = scmp.eq.s32.totalorder %s41, 1
      %p132 = por %p130, %p131
      %p134 = scmp.ne.s32.totalorder %s117, %s133
      %p135 = scmp.eq.s32.totalorder %s41, 0
      %p136 = por %p134, %p135
      %s138 = sadd.s32 %s137, 1
      %p141 = scmp.eq.s32.totalorder %s35, 1
      %p142 = scmp.ne.s32.totalorder %s137, %s139
      %p143 = scmp.eq.s32.totalorder %s35, 0
      %p144 = por %p142, %p143
      %p145 = scmp.ne.s32.totalorder %s137, %s139
      %p146 = scmp.eq.s32.totalorder %s40, 1
      %p147 = por %p145, %p146
      %p148 = scmp.ne.s32.totalorder %s139, %s140
      %p149 = scmp.eq.s32.totalorder %s40, 0
      %p150 = por %p148, %p149
      %p151 = scmp.ne.s32.totalorder %s139, %s140
      %p152 = scmp.eq.s32.totalorder %s41, 1
      %p153 = por %p151, %p152
      %p155 = scmp.ne.s32.totalorder %s140, %s154
      %p156 = scmp.eq.s32.totalorder %s41, 0
      %p157 = por %p155, %p156
      %s159 = sadd.s32 %s158, 1
      %p162 = scmp.eq.s32.totalorder %s35, 1
      %p163 = scmp.ne.s32.totalorder %s158, %s160
      %p164 = scmp.eq.s32.totalorder %s35, 0
      %p165 = por %p163, %p164
      %p166 = scmp.ne.s32.totalorder %s158, %s160
      %p167 = scmp.eq.s32.totalorder %s40, 1
      %p168 = por %p166, %p167
      %p169 = scmp.ne.s32.totalorder %s160, %s161
      %p170 = scmp.eq.s32.totalorder %s40, 0
      %p171 = por %p169, %p170
      %p172 = scmp.ne.s32.totalorder %s160, %s161
      %p173 = scmp.eq.s32.totalorder %s41, 1
      %p174 = por %p172, %p173
      %p176 = scmp.ne.s32.totalorder %s161, %s175
      %p177 = scmp.eq.s32.totalorder %s41, 0
      %p178 = por %p176, %p177
      %s180 = sadd.s32 %s179, 1
      %p183 = scmp.eq.s32.totalorder %s35, 1
      %p184 = scmp.ne.s32.totalorder %s179, %s181
      %p185 = scmp.eq.s32.totalorder %s35, 0
      %p186 = por %p184, %p185
      %p187 = scmp.ne.s32.totalorder %s179, %s181
      %p188 = scmp.eq.s32.totalorder %s40, 1
      %p189 = por %p187, %p188
      %p190 = scmp.ne.s32.totalorder %s181, %s182
      %p191 = scmp.eq.s32.totalorder %s40, 0
      %p192 = por %p190, %p191
      %p193 = scmp.ne.s32.totalorder %s181, %s182
      %p194 = scmp.eq.s32.totalorder %s41, 1
      %p195 = por %p193, %p194
      %p197 = scmp.ne.s32.totalorder %s182, %s196
      %p198 = scmp.eq.s32.totalorder %s41, 0
      %p199 = por %p197, %p198
      %s201 = sadd.s32 %s200, 1
      %p204 = scmp.eq.s32.totalorder %s35, 1
      %p205 = scmp.ne.s32.totalorder %s200, %s202
      %p206 = scmp.eq.s32.totalorder %s35, 0
      %p207 = por %p205, %p206
      %p208 = scmp.ne.s32.totalorder %s200, %s202
      %p209 = scmp.eq.s32.totalorder %s40, 1
      %p210 = por %p208, %p209
      %p211 = scmp.ne.s32.totalorder %s202, %s203
      %p212 = scmp.eq.s32.totalorder %s40, 0
      %p213 = por %p211, %p212
      %p214 = scmp.ne.s32.totalorder %s202, %s203
      %p215 = scmp.eq.s32.totalorder %s41, 1
      %p216 = por %p214, %p215
      %p218 = scmp.ne.s32.totalorder %s203, %s217
      %p219 = scmp.eq.s32.totalorder %s41, 0
      %p220 = por %p218, %p219
      %s222 = sadd.s32 %s221, 1
      %p225 = scmp.eq.s32.totalorder %s35, 1
      %p226 = scmp.ne.s32.totalorder %s221, %s223
      %p227 = scmp.eq.s32.totalorder %s35, 0
      %p228 = por %p226, %p227
      %p229 = scmp.ne.s32.totalorder %s221, %s223
      %p230 = scmp.eq.s32.totalorder %s40, 1
      %p231 = por %p229, %p230
      %p232 = scmp.ne.s32.totalorder %s223, %s224
      %p233 = scmp.eq.s32.totalorder %s40, 0
      %p234 = por %p232, %p233
      %p235 = scmp.ne.s32.totalorder %s223, %s224
      %p236 = scmp.eq.s32.totalorder %s41, 1
      %p237 = por %p235, %p236
      %p239 = scmp.ne.s32.totalorder %s224, %s238
      %p240 = scmp.eq.s32.totalorder %s41, 0
      %p241 = por %p239, %p240
      %s243 = sadd.s32 %s242, 1
      %p246 = scmp.eq.s32.totalorder %s35, 1
      %p247 = scmp.ne.s32.totalorder %s242, %s244
      %p248 = scmp.eq.s32.totalorder %s35, 0
      %p249 = por %p247, %p248
      %p250 = scmp.ne.s32.totalorder %s242, %s244
      %p251 = scmp.eq.s32.totalorder %s40, 1
      %p252 = por %p250, %p251
      %p253 = scmp.ne.s32.totalorder %s244, %s245
      %p254 = scmp.eq.s32.totalorder %s40, 0
      %p255 = por %p253, %p254
      %p256 = scmp.ne.s32.totalorder %s244, %s245
      %p257 = scmp.eq.s32.totalorder %s41, 1
      %p258 = por %p256, %p257
      %p260 = scmp.ne.s32.totalorder %s245, %s259
      %p261 = scmp.eq.s32.totalorder %s41, 0
      %p262 = por %p260, %p261
      %s264 = sadd.s32 %s263, 1
      %p267 = scmp.eq.s32.totalorder %s35, 1
      %p268 = scmp.ne.s32.totalorder %s263, %s265
      %p269 = scmp.eq.s32.totalorder %s35, 0
      %p270 = por %p268, %p269
      %p271 = scmp.ne.s32.totalorder %s263, %s265
      %p272 = scmp.eq.s32.totalorder %s40, 1
      %p273 = por %p271, %p272
      %p274 = scmp.ne.s32.totalorder %s265, %s266
      %p275 = scmp.eq.s32.totalorder %s40, 0
      %p276 = por %p274, %p275
      %p277 = scmp.ne.s32.totalorder %s265, %s266
      %p278 = scmp.eq.s32.totalorder %s41, 1
      %p279 = por %p277, %p278
      %p281 = scmp.ne.s32.totalorder %s266, %s280
      %p282 = scmp.eq.s32.totalorder %s41, 0
      %p283 = por %p281, %p282
      %s284 = ssub.s32 %s35, %s42
      %p285 = scmp.eq.s32.totalorder %s284, 0
      %s287 = sadd.s32 %s286, 1
      %s288 = scalar_select %p285, %s286, %s287
      %p291 = pneg %p285
      %p292 = scmp.eq.s32.totalorder %s35, 1
      %p293 = por %p291, %p292
      %p294 = scmp.ne.s32.totalorder %s286, %s289
      %p295 = scmp.eq.s32.totalorder %s35, 0
      %p296 = por %p294, %p295
      %p297 = scmp.ne.s32.totalorder %s286, %s289
      %p298 = scmp.eq.s32.totalorder %s40, 1
      %p299 = por %p297, %p298
      %p300 = scmp.ne.s32.totalorder %s289, %s290
      %p301 = scmp.eq.s32.totalorder %s40, 0
      %p302 = por %p300, %p301
      %p303 = scmp.ne.s32.totalorder %s289, %s290
      %p304 = scmp.eq.s32.totalorder %s41, 1
      %p305 = por %p303, %p304
      %p307 = scmp.ne.s32.totalorder %s290, %s306
      %p308 = scmp.eq.s32.totalorder %s41, 0
      %p309 = por %p307, %p308
      %p310 = scmp.le.s32.totalorder 1, %s35
      %p311 = scmp.lt.s32.totalorder %s35, 3
      %p312 = pnand %p310, %p311
      %p313 = pneg %p312
      // Predicated region
      $region9: #{tpu_custom_call.1} parent=5 // pred_check
        _
      $region10: #{tpu_custom_call.1} parent=5 // pred_check_branch
        %315 = sbr.rel (%p312) target = $region12
      $region11: #{tpu_custom_call.1} parent=5 // pred_region
        %s316 = ssub.s32 %s35, 1
        // Predicated region
        $region13: #{tpu_custom_call.1} parent=11 // pred_check
          %p317 = pneg %p150
        $region14: #{tpu_custom_call.1} parent=11 // pred_check_branch
          %319 = sbr.rel (%p317) target = $region16
        $region15: #{tpu_custom_call.1} parent=11 // pred_region
          _
        $region16: #{tpu_custom_call.1} parent=11 // pred_fallthru
          _
        // Predicated region
        $region17: #{tpu_custom_call.1} parent=11 // pred_check
          %p320 = pneg %p171
        $region18: #{tpu_custom_call.1} parent=11 // pred_check_branch
          %322 = sbr.rel (%p320) target = $region20
        $region19: #{tpu_custom_call.1} parent=11 // pred_region
          _
        $region20: #{tpu_custom_call.1} parent=11 // pred_fallthru
          _
        // Predicated region
        $region21: #{tpu_custom_call.1} parent=11 // pred_check
          %p323 = pneg %p192
        $region22: #{tpu_custom_call.1} parent=11 // pred_check_branch
          %325 = sbr.rel (%p323) target = $region24
        $region23: #{tpu_custom_call.1} parent=11 // pred_region
          _
        $region24: #{tpu_custom_call.1} parent=11 // pred_fallthru
          _
        // Predicated region
        $region25: #{tpu_custom_call.1} parent=11 // pred_check
          %p326 = pneg %p213
        $region26: #{tpu_custom_call.1} parent=11 // pred_check_branch
          %328 = sbr.rel (%p326) target = $region28
        $region27: #{tpu_custom_call.1} parent=11 // pred_region
          %s330 = ssub.s32 2048, 2048
          %331 = vsyncadd [#allocation8], %s330
          %s332 = sshll.u32 [#allocation9], 4
          %s333 = int_to_ptr.vmem [resolvable:$true] %s332
          %338 = dma.hbm_to_vmem [thread:$0]  %s8, 2048, %s333, [#allocation8], 128, 128, 8
        $region28: #{tpu_custom_call.1} parent=11 // pred_fallthru
          _
        // Predicated region
        $region29: #{tpu_custom_call.1} parent=11 // pred_check
          %p339 = pneg %p234
        $region30: #{tpu_custom_call.1} parent=11 // pred_check_branch
          %341 = sbr.rel (%p339) target = $region32
        $region31: #{tpu_custom_call.1} parent=11 // pred_region
          _
        $region32: #{tpu_custom_call.1} parent=11 // pred_fallthru
          _
        // Predicated region
        $region33: #{tpu_custom_call.1} parent=11 // pred_check
          %p342 = pneg %p255
        $region34: #{tpu_custom_call.1} parent=11 // pred_check_branch
          %344 = sbr.rel (%p342) target = $region36
        $region35: #{tpu_custom_call.1} parent=11 // pred_region
          %s346 = ssub.s32 2048, 2048
          %347 = vsyncadd [#allocation11], %s346
          %s348 = sshll.u32 [#allocation10], 4
          %s349 = int_to_ptr.vmem [resolvable:$true] %s348
          %354 = dma.hbm_to_vmem [thread:$0]  %s10, 2048, %s349, [#allocation11], 128, 128, 8
        $region36: #{tpu_custom_call.1} parent=11 // pred_fallthru
          _
        // Predicated region
        $region37: #{tpu_custom_call.1} parent=11 // pred_check
          %p355 = pneg %p276
        $region38: #{tpu_custom_call.1} parent=11 // pred_check_branch
          %357 = sbr.rel (%p355) target = $region40
        $region39: #{tpu_custom_call.1} parent=11 // pred_region
          _
        $region40: #{tpu_custom_call.1} parent=11 // pred_fallthru
          _
      $region12: #{tpu_custom_call.1} parent=5 // pred_fallthru
        _
      %p358 = scmp.lt.s32.totalorder %s35, 2
      // Predicated region
      $region41: #{tpu_custom_call.1} parent=5 // pred_check
        %p359 = pneg %p358
      $region42: #{tpu_custom_call.1} parent=5 // pred_check_branch
        %361 = sbr.rel (%p359) target = $region44
      $region43: #{tpu_custom_call.1} parent=5 // pred_region
        // Predicated region
        $region45: #{tpu_custom_call.1} parent=43 // pred_check
          %p362 = pneg %p55
        $region46: #{tpu_custom_call.1} parent=43 // pred_check_branch
          %364 = sbr.rel (%p362) target = $region48
        $region47: #{tpu_custom_call.1} parent=43 // pred_region
          %s365 = smul.u32 4, %s35
          %p366 = scmp.lt.s32.totalorder %s365, 7
          %s367 = scalar_select %p366, %s365, 7
          %s368 = smul.addr %s367, 16
          %s369 = smul.addr %s368, 8
          %s370 = scalar_lea.vmem %s2, %s369
          %s371 = smul.u32 4, %s35
        $region48: #{tpu_custom_call.1} parent=43 // pred_fallthru
          _
        // Predicated region
        $region49: #{tpu_custom_call.1} parent=43 // pred_check
          %p372 = pneg %p89
        $region50: #{tpu_custom_call.1} parent=43 // pred_check_branch
          %374 = sbr.rel (%p372) target = $region52
        $region51: #{tpu_custom_call.1} parent=43 // pred_region
          %s375 = sand.u32 %s79, 1
          %s376 = scalar_lea.sflag [#allocation6], %s375
          %s377 = sand.u32 %s79, 1
          %s378 = smul.addr %s377, 128
          %s379 = scalar_lea.vmem [#allocation5], %s378
          %s380 = smul.u32 %s35, 4
          %s381 = ssub.s32 %s380, 1
          %p382 = scmp.gt.s32.totalorder %s381, 0
          %s383 = scalar_select %p382, %s381, 0
          %s385 = ssub.s32 2048, 2048
          %386 = vsyncadd %s376, %s385
          %s387 = smul.addr %s383, 16
          %s388 = smul.addr %s387, 128
          %s389 = scalar_lea.hbm %s3, %s388
          %s390 = sshll.u32 %s379, 4
          %s391 = int_to_ptr.vmem [resolvable:$true] %s390
          %396 = dma.hbm_to_vmem [thread:$0]  %s389, 2048, %s391, %s376, 256, 256, 16
        $region52: #{tpu_custom_call.1} parent=43 // pred_fallthru
          _
        // Predicated region
        $region53: #{tpu_custom_call.1} parent=43 // pred_check
          %p397 = pneg %p123
        $region54: #{tpu_custom_call.1} parent=43 // pred_check_branch
          %399 = sbr.rel (%p397) target = $region56
        $region55: #{tpu_custom_call.1} parent=43 // pred_region
          %s400 = sand.u32 %s35, 1
          %s401 = scalar_lea.sflag [#allocation8], %s400
          %s402 = sand.u32 %s113, 1
          %s403 = smul.addr %s402, 128
          %s404 = scalar_lea.vmem [#allocation7], %s403
          %s405 = sadd.s32 %s35, 1
          %s406 = smul.u32 %s405, 4
          %p407 = scmp.lt.s32.totalorder %s406, 7
          %s408 = scalar_select %p407, %s406, 7
          %s410 = ssub.s32 2048, 2048
          %411 = vsyncadd %s401, %s410
          %s412 = smul.addr %s408, 16
          %s413 = smul.addr %s412, 128
          %s414 = scalar_lea.hbm %s4, %s413
          %s415 = sshll.u32 %s404, 4
          %s416 = int_to_ptr.vmem [resolvable:$true] %s415
          %421 = dma.hbm_to_vmem [thread:$0]  %s414, 2048, %s416, %s401, 256, 256, 16
        $region56: #{tpu_custom_call.1} parent=43 // pred_fallthru
          _
      $region44: #{tpu_custom_call.1} parent=5 // pred_fallthru
        _
      %p422 = scmp.le.s32.totalorder 1, %s35
      %p423 = scmp.lt.s32.totalorder %s35, 3
      %p424 = pnand %p422, %p423
      %p425 = pneg %p424
      // Predicated region
      $region57: #{tpu_custom_call.1} parent=5 // pred_check
        _
      $region58: #{tpu_custom_call.1} parent=5 // pred_check_branch
        %427 = sbr.rel (%p424) target = $region60
      $region59: #{tpu_custom_call.1} parent=5 // pred_region
        %s428 = ssub.s32 %s35, 1
        %s429 = sand.u32 %s82, 1
        %s430 = scalar_lea.sflag [#allocation6], %s429
        %s431 = sand.u32 %s82, 1
        %s432 = smul.addr %s431, 128
        %s433 = scalar_lea.vmem [#allocation5], %s432
        // Predicated region
        $region61: #{tpu_custom_call.1} parent=59 // pred_check
          %p434 = pneg %p95
        $region62: #{tpu_custom_call.1} parent=59 // pred_check_branch
          %436 = sbr.rel (%p434) target = $region64
        $region63: #{tpu_custom_call.1} parent=59 // pred_region
          %437 = dma.done %s430, 2048
        $region64: #{tpu_custom_call.1} parent=59 // pred_fallthru
          _
        %s438 = sand.u32 %s40, 1
        %s439 = scalar_lea.sflag [#allocation8], %s438
        %s440 = sand.u32 %s116, 1
        %s441 = smul.addr %s440, 128
        %s442 = scalar_lea.vmem [#allocation7], %s441
        // Predicated region
        $region65: #{tpu_custom_call.1} parent=59 // pred_check
          %p443 = pneg %p129
        $region66: #{tpu_custom_call.1} parent=59 // pred_check_branch
          %445 = sbr.rel (%p443) target = $region68
        $region67: #{tpu_custom_call.1} parent=59 // pred_region
          %446 = dma.done %s439, 2048
        $region68: #{tpu_custom_call.1} parent=59 // pred_fallthru
          _
        // Predicated region
        $region69: #{tpu_custom_call.1} parent=59 // pred_check
          %p447 = pneg %p213
        $region70: #{tpu_custom_call.1} parent=59 // pred_check_branch
          %449 = sbr.rel (%p447) target = $region72
        $region71: #{tpu_custom_call.1} parent=59 // pred_region
          %450 = dma.done [#allocation8], 2048
        $region72: #{tpu_custom_call.1} parent=59 // pred_fallthru
          _
        // Predicated region
        $region73: #{tpu_custom_call.1} parent=59 // pred_check
          %p451 = pneg %p255
        $region74: #{tpu_custom_call.1} parent=59 // pred_check_branch
          %453 = sbr.rel (%p451) target = $region76
        $region75: #{tpu_custom_call.1} parent=59 // pred_region
          %454 = dma.done [#allocation11], 2048
        $region76: #{tpu_custom_call.1} parent=59 // pred_fallthru
          _
        %s455 = smul.u32 4, %s40
        %p456 = scmp.lt.s32.totalorder %s455, 7
        %s457 = scalar_select %p456, %s455, 7
        %s458 = smul.addr %s457, 16
        %s459 = smul.addr %s458, 8
        %s460 = scalar_lea.vmem %s2, %s459
        %p461 = pneg %p61
        %p462 = pneg %p58
        %s463 = sand.u32 %s82, 1
        %s464 = scalar_lea.sflag [#allocation6], %s463
        %s465 = sand.u32 %s82, 1
        %s466 = smul.addr %s465, 128
        %s467 = scalar_lea.vmem [#allocation5], %s466
        %p468 = pneg %p95
        %p469 = pneg %p92
        %s470 = sand.u32 %s40, 1
        %s471 = scalar_lea.sflag [#allocation8], %s470
        %s472 = sand.u32 %s116, 1
        %s473 = smul.addr %s472, 128
        %s474 = scalar_lea.vmem [#allocation7], %s473
        %p475 = pneg %p129
        %p476 = pneg %p126
        %p477 = pneg %p150
        %p478 = pneg %p147
        %p479 = pneg %p171
        %p480 = pneg %p168
        %p481 = pneg %p192
        %p482 = pneg %p189
        %p483 = pneg %p213
        %p484 = pneg %p210
        %p485 = pneg %p234
        %p486 = pneg %p231
        %p487 = pneg %p255
        %p488 = pneg %p252
        %p489 = pneg %p276
        %p490 = pneg %p273
        %p491 = pneg %p302
        %p492 = pneg %p299
        %s493 = smul.u32 4, %s40
        %p494 = scmp.lt.s32.totalorder %s493, 7
        %s495 = scalar_select %p494, %s493, 7
        %s496 = smul.addr %s495, 16
        %s497 = smul.addr %s496, 8
        %s498 = scalar_lea.vmem %s12, %s497
        %s499 = smul.u32 4, %s40
        %p500 = scmp.lt.s32.totalorder %s499, 7
        %s501 = scalar_select %p500, %s499, 7
        %s502 = smul.addr %s501, 16
        %s503 = smul.addr %s502, 8
        %s504 = scalar_lea.vmem %s2, %s503
        %s505 = smul.u32 4, %s40
        %s506 = smul.u32 %s40, 4
        %s507 = ssub.s32 %s506, 1
        %p508 = scmp.gt.s32.totalorder %s507, 0
        %s509 = scalar_select %p508, %s507, 0
        %s510 = sadd.s32 %s40, 1
        %s511 = smul.u32 %s510, 4
        %p512 = scmp.lt.s32.totalorder %s511, 7
        %s513 = scalar_select %p512, %s511, 7
        %s514 = smul.u32 4, %s40
        %p515 = scmp.lt.s32.totalorder %s514, 7
        %s516 = scalar_select %p515, %s514, 7
        %s517 = smul.addr %s516, 16
        %s518 = smul.addr %s517, 8
        %s519 = scalar_lea.vmem %s12, %s518
        %s520 = smul.u32 4, %s40
        %v522 = vld [vmem:[%s5] sm:$0xff]
        %v523 = vld [vmem:[%s5 + $0x8] sm:$0xff]
        %v524 = vld [vmem:[%s5 + $0x10] sm:$0xff]
        %v525 = vld [vmem:[%s5 + $0x18] sm:$0xff]
        %v526 = vld [vmem:[%s5 + $0x20] sm:$0xff]
        %v527 = vld [vmem:[%s5 + $0x28] sm:$0xff]
        %v528 = vld [vmem:[%s5 + $0x30] sm:$0xff]
        %v529 = vld [vmem:[%s5 + $0x38] sm:$0xff]
        %v530 = vld [vmem:[%s5 + $0x40] sm:$0xff]
        %v531 = vld [vmem:[%s5 + $0x48] sm:$0xff]
        %v532 = vld [vmem:[%s5 + $0x50] sm:$0xff]
        %v533 = vld [vmem:[%s5 + $0x58] sm:$0xff]
        %v534 = vld [vmem:[%s5 + $0x60] sm:$0xff]
        %v535 = vld [vmem:[%s5 + $0x68] sm:$0xff]
        %v536 = vld [vmem:[%s5 + $0x70] sm:$0xff]
        %v537 = vld [vmem:[%s5 + $0x78] sm:$0xff]
        %v538 = vld [vmem:[%s5 + $0x80] sm:$0xff]
        %v539 = vld [vmem:[%s5 + $0x88] sm:$0xff]
        %v540 = vld [vmem:[%s5 + $0x90] sm:$0xff]
        %v541 = vld [vmem:[%s5 + $0x98] sm:$0xff]
        %v542 = vld [vmem:[%s5 + $0xa0] sm:$0xff]
        %v543 = vld [vmem:[%s5 + $0xa8] sm:$0xff]
        %v544 = vld [vmem:[%s5 + $0xb0] sm:$0xff]
        %v545 = vld [vmem:[%s5 + $0xb8] sm:$0xff]
        %v546 = vld [vmem:[%s5 + $0xc0] sm:$0xff]
        %v547 = vld [vmem:[%s5 + $0xc8] sm:$0xff]
        %v548 = vld [vmem:[%s5 + $0xd0] sm:$0xff]
        %v549 = vld [vmem:[%s5 + $0xd8] sm:$0xff]
        %v550 = vld [vmem:[%s5 + $0xe0] sm:$0xff]
        %v551 = vld [vmem:[%s5 + $0xe8] sm:$0xff]
        %v552 = vld [vmem:[%s5 + $0xf0] sm:$0xff]
        %v553 = vld [vmem:[%s5 + $0xf8] sm:$0xff]
        %v554 = vld [vmem:[%s504] sm:$0xff]
        %v555 = vld [vmem:[%s504 + $0x8] sm:$0xff]
        %v556 = vld [vmem:[%s504 + $0x10] sm:$0xff]
        %v557 = vld [vmem:[%s504 + $0x18] sm:$0xff]
        %v558 = vld [vmem:[%s504 + $0x20] sm:$0xff]
        %v559 = vld [vmem:[%s504 + $0x28] sm:$0xff]
        %v560 = vld [vmem:[%s504 + $0x30] sm:$0xff]
        %v561 = vld [vmem:[%s504 + $0x38] sm:$0xff]
        %v562 = vld [vmem:[%s504 + $0x40] sm:$0xff]
        %v563 = vld [vmem:[%s504 + $0x48] sm:$0xff]
        %v564 = vld [vmem:[%s504 + $0x50] sm:$0xff]
        %v565 = vld [vmem:[%s504 + $0x58] sm:$0xff]
        %v566 = vld [vmem:[%s504 + $0x60] sm:$0xff]
        %v567 = vld [vmem:[%s504 + $0x68] sm:$0xff]
        %v568 = vld [vmem:[%s504 + $0x70] sm:$0xff]
        %v569 = vld [vmem:[%s504 + $0x78] sm:$0xff]
        %570 = vmatprep.subr.mxu0 0.0
        %571 = vmatpush1.msra.mxu0 %v522
        %572 = vmatprep.subr.mxu0 0.0
        %573 = vmatpush1.msra.mxu0 %v523
        %574 = vmatprep.subr.mxu0 0.0
        %575 = vmatpush1.msra.mxu0 %v524
        %576 = vmatprep.subr.mxu0 0.0
        %577 = vmatpush1.msra.mxu0 %v525
        %578 = vmatprep.subr.mxu0 0.0
        %579 = vmatpush1.msra.mxu0 %v526
        %580 = vmatprep.subr.mxu0 0.0
        %581 = vmatpush1.msra.mxu0 %v527
        %582 = vmatprep.subr.mxu0 0.0
        %583 = vmatpush1.msra.mxu0 %v528
        %584 = vmatprep.subr.mxu0 0.0
        %585 = vmatpush1.msra.mxu0 %v529
        %586 = vmatprep.subr.mxu0 0.0
        %587 = vmatpush1.msra.mxu0 %v530
        %588 = vmatprep.subr.mxu0 0.0
        %589 = vmatpush1.msra.mxu0 %v531
        %590 = vmatprep.subr.mxu0 0.0
        %591 = vmatpush1.msra.mxu0 %v532
        %592 = vmatprep.subr.mxu0 0.0
        %593 = vmatpush1.msra.mxu0 %v533
        %594 = vmatprep.subr.mxu0 0.0
        %595 = vmatpush1.msra.mxu0 %v534
        %596 = vmatprep.subr.mxu0 0.0
        %597 = vmatpush1.msra.mxu0 %v535
        %598 = vmatprep.subr.mxu0 0.0
        %599 = vmatpush1.msra.mxu0 %v536
        %600 = vmatprep.subr.mxu0 0.0
        %601 = vmatpush1.msra.mxu0 %v537
        %602 = vmatprep.subr.mxu0 0.0
        %603 = vmatpush1.msra.mxu0 %v538
        %604 = vmatprep.subr.mxu0 0.0
        %605 = vmatpush1.msra.mxu0 %v539
        %606 = vmatprep.subr.mxu0 0.0
        %607 = vmatpush1.msra.mxu0 %v540
        %608 = vmatprep.subr.mxu0 0.0
        %609 = vmatpush1.msra.mxu0 %v541
        %610 = vmatprep.subr.mxu0 0.0
        %611 = vmatpush1.msra.mxu0 %v542
        %612 = vmatprep.subr.mxu0 0.0
        %613 = vmatpush1.msra.mxu0 %v543
        %614 = vmatprep.subr.mxu0 0.0
        %615 = vmatpush1.msra.mxu0 %v544
        %616 = vmatprep.subr.mxu0 0.0
        %617 = vmatpush1.msra.mxu0 %v545
        %618 = vmatprep.subr.mxu0 0.0
        %619 = vmatpush1.msra.mxu0 %v546
        %620 = vmatprep.subr.mxu0 0.0
        %621 = vmatpush1.msra.mxu0 %v547
        %622 = vmatprep.subr.mxu0 0.0
        %623 = vmatpush1.msra.mxu0 %v548
        %624 = vmatprep.subr.mxu0 0.0
        %625 = vmatpush1.msra.mxu0 %v549
        %626 = vmatprep.subr.mxu0 0.0
        %627 = vmatpush1.msra.mxu0 %v550
        %628 = vmatprep.subr.mxu0 0.0
        %629 = vmatpush1.msra.mxu0 %v551
        %630 = vmatprep.subr.mxu0 0.0
        %631 = vmatpush1.msra.mxu0 %v552
        %632 = vmatprep.subr.mxu0 0.0
        %633 = vmatpush1.msra.mxu0 %v553
        %634 = vmatprep.mubr.f32.mxu0 %v555
        %635 = vmatmul.mubr.f32.gmra.mrb[0].mxu0 %v554
        %v636 = vpop.f32.mrb[0].mxu0
        %v637 = vadd.f32 0.0, %v636
        %v638 = vpop.f32.mrb[0].mxu0
        %639 = vmatprep.mubr.f32.mxu0 %v557
        %640 = vmatmul.mubr.f32.gmra.mrb[0].mxu0 %v556
        %v641 = vpop.f32.mrb[0].mxu0
        %v642 = vadd.f32 0.0, %v641
        %v643 = vpop.f32.mrb[0].mxu0
        %644 = vmatprep.mubr.f32.mxu0 %v559
        %645 = vmatmul.mubr.f32.gmra.mrb[0].mxu0 %v558
        %v646 = vpop.f32.mrb[0].mxu0
        %v647 = vadd.f32 0.0, %v646
        %v648 = vpop.f32.mrb[0].mxu0
        %649 = vmatprep.mubr.f32.mxu0 %v561
        %650 = vmatmul.mubr.f32.gmra.mrb[0].mxu0 %v560
        %v651 = vpop.f32.mrb[0].mxu0
        %v652 = vadd.f32 0.0, %v651
        %v653 = vpop.f32.mrb[0].mxu0
        %654 = vmatprep.mubr.f32.mxu0 %v563
        %655 = vmatmul.mubr.f32.gmra.mrb[0].mxu0 %v562
        %v656 = vpop.f32.mrb[0].mxu0
        %v657 = vadd.f32 0.0, %v656
        %v658 = vpop.f32.mrb[0].mxu0
        %659 = vmatprep.mubr.f32.mxu0 %v565
        %660 = vmatmul.mubr.f32.gmra.mrb[0].mxu0 %v564
        %v661 = vpop.f32.mrb[0].mxu0
        %v662 = vadd.f32 0.0, %v661
        %v663 = vpop.f32.mrb[0].mxu0
        %664 = vmatprep.mubr.f32.mxu0 %v567
        %665 = vmatmul.mubr.f32.gmra.mrb[0].mxu0 %v566
        %v666 = vpop.f32.mrb[0].mxu0
        %v667 = vadd.f32 0.0, %v666
        %v668 = vpop.f32.mrb[0].mxu0
        %669 = vmatprep.mubr.f32.mxu0 %v569
        %670 = vmatmul.mubr.f32.gmra.mrb[0].mxu0 %v568
        %v671 = vpop.f32.mrb[0].mxu0
        %v672 = vadd.f32 0.0, %v671
        %v673 = vpop.f32.mrb[0].mxu0
        %674 = vdwg.mxu0
        %v675 = vpack.c.bf16 %v642, %v637
        %v676 = vpack.c.bf16 %v652, %v647
        %v677 = vpack.c.bf16 %v662, %v657
        %v678 = vpack.c.bf16 %v672, %v667
        %s679 = scalar_lea.vmem %s504, 128
        %v680 = vld [vmem:[%s679] sm:$0xff]
        %v681 = vld [vmem:[%s679 + $0x8] sm:$0xff]
        %v682 = vld [vmem:[%s679 + $0x10] sm:$0xff]
        %v683 = vld [vmem:[%s679 + $0x18] sm:$0xff]
        %v684 = vld [vmem:[%s679 + $0x20] sm:$0xff]
        %v685 = vld [vmem:[%s679 + $0x28] sm:$0xff]
        %v686 = vld [vmem:[%s679 + $0x30] sm:$0xff]
        %v687 = vld [vmem:[%s679 + $0x38] sm:$0xff]
        %v688 = vld [vmem:[%s679 + $0x40] sm:$0xff]
        %v689 = vld [vmem:[%s679 + $0x48] sm:$0xff]
        %v690 = vld [vmem:[%s679 + $0x50] sm:$0xff]
        %v691 = vld [vmem:[%s679 + $0x58] sm:$0xff]
        %v692 = vld [vmem:[%s679 + $0x60] sm:$0xff]
        %v693 = vld [vmem:[%s679 + $0x68] sm:$0xff]
        %v694 = vld [vmem:[%s679 + $0x70] sm:$0xff]
        %v695 = vld [vmem:[%s679 + $0x78] sm:$0xff]
        %696 = vmatprep.subr.mxu0 0.0
        %697 = vmatpush1.msra.mxu0 %v522
        %698 = vmatprep.subr.mxu0 0.0
        %699 = vmatpush1.msra.mxu0 %v523
        %700 = vmatprep.subr.mxu0 0.0
        %701 = vmatpush1.msra.mxu0 %v524
        %702 = vmatprep.subr.mxu0 0.0
        %703 = vmatpush1.msra.mxu0 %v525
        %704 = vmatprep.subr.mxu0 0.0
        %705 = vmatpush1.msra.mxu0 %v526
        %706 = vmatprep.subr.mxu0 0.0
        %707 = vmatpush1.msra.mxu0 %v527
        %708 = vmatprep.subr.mxu0 0.0
        %709 = vmatpush1.msra.mxu0 %v528
        %710 = vmatprep.subr.mxu0 0.0
        %711 = vmatpush1.msra.mxu0 %v529
        %712 = vmatprep.subr.mxu0 0.0
        %713 = vmatpush1.msra.mxu0 %v530
        %714 = vmatprep.subr.mxu0 0.0
        %715 = vmatpush1.msra.mxu0 %v531
        %716 = vmatprep.subr.mxu0 0.0
        %717 = vmatpush1.msra.mxu0 %v532
        %718 = vmatprep.subr.mxu0 0.0
        %719 = vmatpush1.msra.mxu0 %v533
        %720 = vmatprep.subr.mxu0 0.0
        %721 = vmatpush1.msra.mxu0 %v534
        %722 = vmatprep.subr.mxu0 0.0
        %723 = vmatpush1.msra.mxu0 %v535
        %724 = vmatprep.subr.mxu0 0.0
        %725 = vmatpush1.msra.mxu0 %v536
        %726 = vmatprep.subr.mxu0 0.0
        %727 = vmatpush1.msra.mxu0 %v537
        %728 = vmatprep.subr.mxu0 0.0
        %729 = vmatpush1.msra.mxu0 %v538
        %730 = vmatprep.subr.mxu0 0.0
        %731 = vmatpush1.msra.mxu0 %v539
        %732 = vmatprep.subr.mxu0 0.0
        %733 = vmatpush1.msra.mxu0 %v540
        %734 = vmatprep.subr.mxu0 0.0
        %735 = vmatpush1.msra.mxu0 %v541
        %736 = vmatprep.subr.mxu0 0.0
        %737 = vmatpush1.msra.mxu0 %v542
        %738 = vmatprep.subr.mxu0 0.0
        %739 = vmatpush1.msra.mxu0 %v543
        %740 = vmatprep.subr.mxu0 0.0
        %741 = vmatpush1.msra.mxu0 %v544
        %742 = vmatprep.subr.mxu0 0.0
        %743 = vmatpush1.msra.mxu0 %v545
        %744 = vmatprep.subr.mxu0 0.0
        %745 = vmatpush1.msra.mxu0 %v546
        %746 = vmatprep.subr.mxu0 0.0
        %747 = vmatpush1.msra.mxu0 %v547
        %748 = vmatprep.subr.mxu0 0.0
        %749 = vmatpush1.msra.mxu0 %v548
        %750 = vmatprep.subr.mxu0 0.0
        %751 = vmatpush1.msra.mxu0 %v549
        %752 = vmatprep.subr.mxu0 0.0
        %753 = vmatpush1.msra.mxu0 %v550
        %754 = vmatprep.subr.mxu0 0.0
        %755 = vmatpush1.msra.mxu0 %v551
        %756 = vmatprep.subr.mxu0 0.0
        %757 = vmatpush1.msra.mxu0 %v552
        %758 = vmatprep.subr.mxu0 0.0
        %759 = vmatpush1.msra.mxu0 %v553
        %760 = vmatprep.mubr.f32.mxu0 %v681
        %761 = vmatmul.mubr.f32.gmra.mrb[0].mxu0 %v680
        %v762 = vpop.f32.mrb[0].mxu0
        %v763 = vadd.f32 0.0, %v762
        %v764 = vpop.f32.mrb[0].mxu0
        %765 = vmatprep.mubr.f32.mxu0 %v683
        %766 = vmatmul.mubr.f32.gmra.mrb[0].mxu0 %v682
        %v767 = vpop.f32.mrb[0].mxu0
        %v768 = vadd.f32 0.0, %v767
        %v769 = vpop.f32.mrb[0].mxu0
        %770 = vmatprep.mubr.f32.mxu0 %v685
        %771 = vmatmul.mubr.f32.gmra.mrb[0].mxu0 %v684
        %v772 = vpop.f32.mrb[0].mxu0
        %v773 = vadd.f32 0.0, %v772
        %v774 = vpop.f32.mrb[0].mxu0
        %775 = vmatprep.mubr.f32.mxu0 %v687
        %776 = vmatmul.mubr.f32.gmra.mrb[0].mxu0 %v686
        %v777 = vpop.f32.mrb[0].mxu0
        %v778 = vadd.f32 0.0, %v777
        %v779 = vpop.f32.mrb[0].mxu0
        %780 = vmatprep.mubr.f32.mxu0 %v689
        %781 = vmatmul.mubr.f32.gmra.mrb[0].mxu0 %v688
        %v782 = vpop.f32.mrb[0].mxu0
        %v783 = vadd.f32 0.0, %v782
        %v784 = vpop.f32.mrb[0].mxu0
        %785 = vmatprep.mubr.f32.mxu0 %v691
        %786 = vmatmul.mubr.f32.gmra.mrb[0].mxu0 %v690
        %v787 = vpop.f32.mrb[0].mxu0
        %v788 = vadd.f32 0.0, %v787
        %v789 = vpop.f32.mrb[0].mxu0
        %790 = vmatprep.mubr.f32.mxu0 %v693
        %791 = vmatmul.mubr.f32.gmra.mrb[0].mxu0 %v692
        %v792 = vpop.f32.mrb[0].mxu0
        %v793 = vadd.f32 0.0, %v792
        %v794 = vpop.f32.mrb[0].mxu0
        %795 = vmatprep.mubr.f32.mxu0 %v695
        %796 = vmatmul.mubr.f32.gmra.mrb[0].mxu0 %v694
        %v797 = vpop.f32.mrb[0].mxu0
        %v798 = vadd.f32 0.0, %v797
        %v799 = vpop.f32.mrb[0].mxu0
        %800 = vdwg.mxu0
        %v801 = vpack.c.bf16 %v768, %v763
        %v802 = vpack.c.bf16 %v778, %v773
        %v803 = vpack.c.bf16 %v788, %v783
        %v804 = vpack.c.bf16 %v798, %v793
        %s805 = scalar_lea.vmem %s504, 256
        %v806 = vld [vmem:[%s805] sm:$0xff]
        %v807 = vld [vmem:[%s805 + $0x8] sm:$0xff]
        %v808 = vld [vmem:[%s805 + $0x10] sm:$0xff]
        %v809 = vld [vmem:[%s805 + $0x18] sm:$0xff]
        %v810 = vld [vmem:[%s805 + $0x20] sm:$0xff]
        %v811 = vld [vmem:[%s805 + $0x28] sm:$0xff]
        %v812 = vld [vmem:[%s805 + $0x30] sm:$0xff]
        %v813 = vld [vmem:[%s805 + $0x38] sm:$0xff]
        %v814 = vld [vmem:[%s805 + $0x40] sm:$0xff]
        %v815 = vld [vmem:[%s805 + $0x48] sm:$0xff]
        %v816 = vld [vmem:[%s805 + $0x50] sm:$0xff]
        %v817 = vld [vmem:[%s805 + $0x58] sm:$0xff]
        %v818 = vld [vmem:[%s805 + $0x60] sm:$0xff]
        %v819 = vld [vmem:[%s805 + $0x68] sm:$0xff]
        %v820 = vld [vmem:[%s805 + $0x70] sm:$0xff]
        %v821 = vld [vmem:[%s805 + $0x78] sm:$0xff]
        %822 = vmatprep.subr.mxu0 0.0
        %823 = vmatpush1.msra.mxu0 %v522
        %824 = vmatprep.subr.mxu0 0.0
        %825 = vmatpush1.msra.mxu0 %v523
        %826 = vmatprep.subr.mxu0 0.0
        %827 = vmatpush1.msra.mxu0 %v524
        %828 = vmatprep.subr.mxu0 0.0
        %829 = vmatpush1.msra.mxu0 %v525
        %830 = vmatprep.subr.mxu0 0.0
        %831 = vmatpush1.msra.mxu0 %v526
        %832 = vmatprep.subr.mxu0 0.0
        %833 = vmatpush1.msra.mxu0 %v527
        %834 = vmatprep.subr.mxu0 0.0
        %835 = vmatpush1.msra.mxu0 %v528
        %836 = vmatprep.subr.mxu0 0.0
        %837 = vmatpush1.msra.mxu0 %v529
        %838 = vmatprep.subr.mxu0 0.0
        %839 = vmatpush1.msra.mxu0 %v530
        %840 = vmatprep.subr.mxu0 0.0
        %841 = vmatpush1.msra.mxu0 %v531
        %842 = vmatprep.subr.mxu0 0.0
        %843 = vmatpush1.msra.mxu0 %v532
        %844 = vmatprep.subr.mxu0 0.0
        %845 = vmatpush1.msra.mxu0 %v533
        %846 = vmatprep.subr.mxu0 0.0
        %847 = vmatpush1.msra.mxu0 %v534
        %848 = vmatprep.subr.mxu0 0.0
        %849 = vmatpush1.msra.mxu0 %v535
        %850 = vmatprep.subr.mxu0 0.0
        %851 = vmatpush1.msra.mxu0 %v536
        %852 = vmatprep.subr.mxu0 0.0
        %853 = vmatpush1.msra.mxu0 %v537
        %854 = vmatprep.subr.mxu0 0.0
        %855 = vmatpush1.msra.mxu0 %v538
        %856 = vmatprep.subr.mxu0 0.0
        %857 = vmatpush1.msra.mxu0 %v539
        %858 = vmatprep.subr.mxu0 0.0
        %859 = vmatpush1.msra.mxu0 %v540
        %860 = vmatprep.subr.mxu0 0.0
        %861 = vmatpush1.msra.mxu0 %v541
        %862 = vmatprep.subr.mxu0 0.0
        %863 = vmatpush1.msra.mxu0 %v542
        %864 = vmatprep.subr.mxu0 0.0
        %865 = vmatpush1.msra.mxu0 %v543
        %866 = vmatprep.subr.mxu0 0.0
        %867 = vmatpush1.msra.mxu0 %v544
        %868 = vmatprep.subr.mxu0 0.0
        %869 = vmatpush1.msra.mxu0 %v545
        %870 = vmatprep.subr.mxu0 0.0
        %871 = vmatpush1.msra.mxu0 %v546
        %872 = vmatprep.subr.mxu0 0.0
        %873 = vmatpush1.msra.mxu0 %v547
        %874 = vmatprep.subr.mxu0 0.0
        %875 = vmatpush1.msra.mxu0 %v548
        %876 = vmatprep.subr.mxu0 0.0
        %877 = vmatpush1.msra.mxu0 %v549
        %878 = vmatprep.subr.mxu0 0.0
        %879 = vmatpush1.msra.mxu0 %v550
        %880 = vmatprep.subr.mxu0 0.0
        %881 = vmatpush1.msra.mxu0 %v551
        %882 = vmatprep.subr.mxu0 0.0
        %883 = vmatpush1.msra.mxu0 %v552
        %884 = vmatprep.subr.mxu0 0.0
        %885 = vmatpush1.msra.mxu0 %v553
        %886 = vmatprep.mubr.f32.mxu0 %v807
        %887 = vmatmul.mubr.f32.gmra.mrb[0].mxu0 %v806
        %v888 = vpop.f32.mrb[0].mxu0
        %v889 = vadd.f32 0.0, %v888
        %v890 = vpop.f32.mrb[0].mxu0
        %891 = vmatprep.mubr.f32.mxu0 %v809
        %892 = vmatmul.mubr.f32.gmra.mrb[0].mxu0 %v808
        %v893 = vpop.f32.mrb[0].mxu0
        %v894 = vadd.f32 0.0, %v893
        %v895 = vpop.f32.mrb[0].mxu0
        %896 = vmatprep.mubr.f32.mxu0 %v811
        %897 = vmatmul.mubr.f32.gmra.mrb[0].mxu0 %v810
        %v898 = vpop.f32.mrb[0].mxu0
        %v899 = vadd.f32 0.0, %v898
        %v900 = vpop.f32.mrb[0].mxu0
        %901 = vmatprep.mubr.f32.mxu0 %v813
        %902 = vmatmul.mubr.f32.gmra.mrb[0].mxu0 %v812
        %v903 = vpop.f32.mrb[0].mxu0
        %v904 = vadd.f32 0.0, %v903
        %v905 = vpop.f32.mrb[0].mxu0
        %906 = vmatprep.mubr.f32.mxu0 %v815
        %907 = vmatmul.mubr.f32.gmra.mrb[0].mxu0 %v814
        %v908 = vpop.f32.mrb[0].mxu0
        %v909 = vadd.f32 0.0, %v908
        %v910 = vpop.f32.mrb[0].mxu0
        %911 = vmatprep.mubr.f32.mxu0 %v817
        %912 = vmatmul.mubr.f32.gmra.mrb[0].mxu0 %v816
        %v913 = vpop.f32.mrb[0].mxu0
        %v914 = vadd.f32 0.0, %v913
        %v915 = vpop.f32.mrb[0].mxu0
        %916 = vmatprep.mubr.f32.mxu0 %v819
        %917 = vmatmul.mubr.f32.gmra.mrb[0].mxu0 %v818
        %v918 = vpop.f32.mrb[0].mxu0
        %v919 = vadd.f32 0.0, %v918
        %v920 = vpop.f32.mrb[0].mxu0
        %921 = vmatprep.mubr.f32.mxu0 %v821
        %922 = vmatmul.mubr.f32.gmra.mrb[0].mxu0 %v820
        %v923 = vpop.f32.mrb[0].mxu0
        %v924 = vadd.f32 0.0, %v923
        %v925 = vpop.f32.mrb[0].mxu0
        %926 = vdwg.mxu0
        %v927 = vpack.c.bf16 %v894, %v889
        %v928 = vpack.c.bf16 %v904, %v899
        %v929 = vpack.c.bf16 %v914, %v909
        %v930 = vpack.c.bf16 %v924, %v919
        %s931 = scalar_lea.vmem %s504, 384
        %v932 = vld [vmem:[%s931] sm:$0xff]
        %v933 = vld [vmem:[%s931 + $0x8] sm:$0xff]
        %v934 = vld [vmem:[%s931 + $0x10] sm:$0xff]
        %v935 = vld [vmem:[%s931 + $0x18] sm:$0xff]
        %v936 = vld [vmem:[%s931 + $0x20] sm:$0xff]
        %v937 = vld [vmem:[%s931 + $0x28] sm:$0xff]
        %v938 = vld [vmem:[%s931 + $0x30] sm:$0xff]
        %v939 = vld [vmem:[%s931 + $0x38] sm:$0xff]
        %v940 = vld [vmem:[%s931 + $0x40] sm:$0xff]
        %v941 = vld [vmem:[%s931 + $0x48] sm:$0xff]
        %v942 = vld [vmem:[%s931 + $0x50] sm:$0xff]
        %v943 = vld [vmem:[%s931 + $0x58] sm:$0xff]
        %v944 = vld [vmem:[%s931 + $0x60] sm:$0xff]
        %v945 = vld [vmem:[%s931 + $0x68] sm:$0xff]
        %v946 = vld [vmem:[%s931 + $0x70] sm:$0xff]
        %v947 = vld [vmem:[%s931 + $0x78] sm:$0xff]
        %948 = vmatprep.subr.mxu0 0.0
        %949 = vmatpush1.msra.mxu0 %v522
        %950 = vmatprep.subr.mxu0 0.0
        %951 = vmatpush1.msra.mxu0 %v523
        %952 = vmatprep.subr.mxu0 0.0
        %953 = vmatpush1.msra.mxu0 %v524
        %954 = vmatprep.subr.mxu0 0.0
        %955 = vmatpush1.msra.mxu0 %v525
        %956 = vmatprep.subr.mxu0 0.0
        %957 = vmatpush1.msra.mxu0 %v526
        %958 = vmatprep.subr.mxu0 0.0
        %959 = vmatpush1.msra.mxu0 %v527
        %960 = vmatprep.subr.mxu0 0.0
        %961 = vmatpush1.msra.mxu0 %v528
        %962 = vmatprep.subr.mxu0 0.0
        %963 = vmatpush1.msra.mxu0 %v529
        %964 = vmatprep.subr.mxu0 0.0
        %965 = vmatpush1.msra.mxu0 %v530
        %966 = vmatprep.subr.mxu0 0.0
        %967 = vmatpush1.msra.mxu0 %v531
        %968 = vmatprep.subr.mxu0 0.0
        %969 = vmatpush1.msra.mxu0 %v532
        %970 = vmatprep.subr.mxu0 0.0
        %971 = vmatpush1.msra.mxu0 %v533
        %972 = vmatprep.subr.mxu0 0.0
        %973 = vmatpush1.msra.mxu0 %v534
        %974 = vmatprep.subr.mxu0 0.0
        %975 = vmatpush1.msra.mxu0 %v535
        %976 = vmatprep.subr.mxu0 0.0
        %977 = vmatpush1.msra.mxu0 %v536
        %978 = vmatprep.subr.mxu0 0.0
        %979 = vmatpush1.msra.mxu0 %v537
        %980 = vmatprep.subr.mxu0 0.0
        %981 = vmatpush1.msra.mxu0 %v538
        %982 = vmatprep.subr.mxu0 0.0
        %983 = vmatpush1.msra.mxu0 %v539
        %984 = vmatprep.subr.mxu0 0.0
        %985 = vmatpush1.msra.mxu0 %v540
        %986 = vmatprep.subr.mxu0 0.0
        %987 = vmatpush1.msra.mxu0 %v541
        %988 = vmatprep.subr.mxu0 0.0
        %989 = vmatpush1.msra.mxu0 %v542
        %990 = vmatprep.subr.mxu0 0.0
        %991 = vmatpush1.msra.mxu0 %v543
        %992 = vmatprep.subr.mxu0 0.0
        %993 = vmatpush1.msra.mxu0 %v544
        %994 = vmatprep.subr.mxu0 0.0
        %995 = vmatpush1.msra.mxu0 %v545
        %996 = vmatprep.subr.mxu0 0.0
        %997 = vmatpush1.msra.mxu0 %v546
        %998 = vmatprep.subr.mxu0 0.0
        %999 = vmatpush1.msra.mxu0 %v547
        %1000 = vmatprep.subr.mxu0 0.0
        %1001 = vmatpush1.msra.mxu0 %v548
        %1002 = vmatprep.subr.mxu0 0.0
        %1003 = vmatpush1.msra.mxu0 %v549
        %1004 = vmatprep.subr.mxu0 0.0
        %1005 = vmatpush1.msra.mxu0 %v550
        %1006 = vmatprep.subr.mxu0 0.0
        %1007 = vmatpush1.msra.mxu0 %v551
        %1008 = vmatprep.subr.mxu0 0.0
        %1009 = vmatpush1.msra.mxu0 %v552
        %1010 = vmatprep.subr.mxu0 0.0
        %1011 = vmatpush1.msra.mxu0 %v553
        %1012 = vmatprep.mubr.f32.mxu0 %v933
        %1013 = vmatmul.mubr.f32.gmra.mrb[0].mxu0 %v932
        %v1014 = vpop.f32.mrb[0].mxu0
        %v1015 = vadd.f32 0.0, %v1014
        %v1016 = vpop.f32.mrb[0].mxu0
        %1017 = vmatprep.mubr.f32.mxu0 %v935
        %1018 = vmatmul.mubr.f32.gmra.mrb[0].mxu0 %v934
        %v1019 = vpop.f32.mrb[0].mxu0
        %v1020 = vadd.f32 0.0, %v1019
        %v1021 = vpop.f32.mrb[0].mxu0
        %1022 = vmatprep.mubr.f32.mxu0 %v937
        %1023 = vmatmul.mubr.f32.gmra.mrb[0].mxu0 %v936
        %v1024 = vpop.f32.mrb[0].mxu0
        %v1025 = vadd.f32 0.0, %v1024
        %v1026 = vpop.f32.mrb[0].mxu0
        %1027 = vmatprep.mubr.f32.mxu0 %v939
        %1028 = vmatmul.mubr.f32.gmra.mrb[0].mxu0 %v938
        %v1029 = vpop.f32.mrb[0].mxu0
        %v1030 = vadd.f32 0.0, %v1029
        %v1031 = vpop.f32.mrb[0].mxu0
        %1032 = vmatprep.mubr.f32.mxu0 %v941
        %1033 = vmatmul.mubr.f32.gmra.mrb[0].mxu0 %v940
        %v1034 = vpop.f32.mrb[0].mxu0
        %v1035 = vadd.f32 0.0, %v1034
        %v1036 = vpop.f32.mrb[0].mxu0
        %1037 = vmatprep.mubr.f32.mxu0 %v943
        %1038 = vmatmul.mubr.f32.gmra.mrb[0].mxu0 %v942
        %v1039 = vpop.f32.mrb[0].mxu0
        %v1040 = vadd.f32 0.0, %v1039
        %v1041 = vpop.f32.mrb[0].mxu0
        %1042 = vmatprep.mubr.f32.mxu0 %v945
        %1043 = vmatmul.mubr.f32.gmra.mrb[0].mxu0 %v944
        %v1044 = vpop.f32.mrb[0].mxu0
        %v1045 = vadd.f32 0.0, %v1044
        %v1046 = vpop.f32.mrb[0].mxu0
        %1047 = vmatprep.mubr.f32.mxu0 %v947
        %1048 = vmatmul.mubr.f32.gmra.mrb[0].mxu0 %v946
        %v1049 = vpop.f32.mrb[0].mxu0
        %v1050 = vadd.f32 0.0, %v1049
        %v1051 = vpop.f32.mrb[0].mxu0
        %1052 = vdwg.mxu0
        %v1053 = vpack.c.bf16 %v1020, %v1015
        %v1054 = vpack.c.bf16 %v1030, %v1025
        %v1055 = vpack.c.bf16 %v1040, %v1035
        %v1056 = vpack.c.bf16 %v1050, %v1045
        %v1057 = vld [vmem:[%s433] sm:$0xff]
        %v1058 = vld [vmem:[%s433 + $0x8] sm:$0xff]
        %v1059 = vld [vmem:[%s433 + $0x10] sm:$0xff]
        %v1060 = vld [vmem:[%s433 + $0x18] sm:$0xff]
        %v1061 = vld [vmem:[%s433 + $0x20] sm:$0xff]
        %v1062 = vld [vmem:[%s433 + $0x28] sm:$0xff]
        %v1063 = vld [vmem:[%s433 + $0x30] sm:$0xff]
        %v1064 = vld [vmem:[%s433 + $0x38] sm:$0xff]
        %v1065 = vld [vmem:[%s433 + $0x40] sm:$0xff]
        %v1066 = vld [vmem:[%s433 + $0x48] sm:$0xff]
        %v1067 = vld [vmem:[%s433 + $0x50] sm:$0xff]
        %v1068 = vld [vmem:[%s433 + $0x58] sm:$0xff]
        %v1069 = vld [vmem:[%s433 + $0x60] sm:$0xff]
        %v1070 = vld [vmem:[%s433 + $0x68] sm:$0xff]
        %v1071 = vld [vmem:[%s433 + $0x70] sm:$0xff]
        %v1072 = vld [vmem:[%s433 + $0x78] sm:$0xff]
        %1073 = vmatprep.subr.mxu0 0.0
        %1074 = vmatpush1.msra.mxu0 %v522
        %1075 = vmatprep.subr.mxu0 0.0
        %1076 = vmatpush1.msra.mxu0 %v523
        %1077 = vmatprep.subr.mxu0 0.0
        %1078 = vmatpush1.msra.mxu0 %v524
        %1079 = vmatprep.subr.mxu0 0.0
        %1080 = vmatpush1.msra.mxu0 %v525
        %1081 = vmatprep.subr.mxu0 0.0
        %1082 = vmatpush1.msra.mxu0 %v526
        %1083 = vmatprep.subr.mxu0 0.0
        %1084 = vmatpush1.msra.mxu0 %v527
        %1085 = vmatprep.subr.mxu0 0.0
        %1086 = vmatpush1.msra.mxu0 %v528
        %1087 = vmatprep.subr.mxu0 0.0
        %1088 = vmatpush1.msra.mxu0 %v529
        %1089 = vmatprep.subr.mxu0 0.0
        %1090 = vmatpush1.msra.mxu0 %v530
        %1091 = vmatprep.subr.mxu0 0.0
        %1092 = vmatpush1.msra.mxu0 %v531
        %1093 = vmatprep.subr.mxu0 0.0
        %1094 = vmatpush1.msra.mxu0 %v532
        %1095 = vmatprep.subr.mxu0 0.0
        %1096 = vmatpush1.msra.mxu0 %v533
        %1097 = vmatprep.subr.mxu0 0.0
        %1098 = vmatpush1.msra.mxu0 %v534
        %1099 = vmatprep.subr.mxu0 0.0
        %1100 = vmatpush1.msra.mxu0 %v535
        %1101 = vmatprep.subr.mxu0 0.0
        %1102 = vmatpush1.msra.mxu0 %v536
        %1103 = vmatprep.subr.mxu0 0.0
        %1104 = vmatpush1.msra.mxu0 %v537
        %1105 = vmatprep.subr.mxu0 0.0
        %1106 = vmatpush1.msra.mxu0 %v538
        %1107 = vmatprep.subr.mxu0 0.0
        %1108 = vmatpush1.msra.mxu0 %v539
        %1109 = vmatprep.subr.mxu0 0.0
        %1110 = vmatpush1.msra.mxu0 %v540
        %1111 = vmatprep.subr.mxu0 0.0
        %1112 = vmatpush1.msra.mxu0 %v541
        %1113 = vmatprep.subr.mxu0 0.0
        %1114 = vmatpush1.msra.mxu0 %v542
        %1115 = vmatprep.subr.mxu0 0.0
        %1116 = vmatpush1.msra.mxu0 %v543
        %1117 = vmatprep.subr.mxu0 0.0
        %1118 = vmatpush1.msra.mxu0 %v544
        %1119 = vmatprep.subr.mxu0 0.0
        %1120 = vmatpush1.msra.mxu0 %v545
        %1121 = vmatprep.subr.mxu0 0.0
        %1122 = vmatpush1.msra.mxu0 %v546
        %1123 = vmatprep.subr.mxu0 0.0
        %1124 = vmatpush1.msra.mxu0 %v547
        %1125 = vmatprep.subr.mxu0 0.0
        %1126 = vmatpush1.msra.mxu0 %v548
        %1127 = vmatprep.subr.mxu0 0.0
        %1128 = vmatpush1.msra.mxu0 %v549
        %1129 = vmatprep.subr.mxu0 0.0
        %1130 = vmatpush1.msra.mxu0 %v550
        %1131 = vmatprep.subr.mxu0 0.0
        %1132 = vmatpush1.msra.mxu0 %v551
        %1133 = vmatprep.subr.mxu0 0.0
        %1134 = vmatpush1.msra.mxu0 %v552
        %1135 = vmatprep.subr.mxu0 0.0
        %1136 = vmatpush1.msra.mxu0 %v553
        %1137 = vmatprep.mubr.f32.mxu0 %v1058
        %1138 = vmatmul.mubr.f32.gmra.mrb[0].mxu0 %v1057
        %v1139 = vpop.f32.mrb[0].mxu0
        %v1140 = vadd.f32 0.0, %v1139
        %v1141 = vpop.f32.mrb[0].mxu0
        %1142 = vmatprep.mubr.f32.mxu0 %v1060
        %1143 = vmatmul.mubr.f32.gmra.mrb[0].mxu0 %v1059
        %v1144 = vpop.f32.mrb[0].mxu0
        %v1145 = vadd.f32 0.0, %v1144
        %v1146 = vpop.f32.mrb[0].mxu0
        %1147 = vmatprep.mubr.f32.mxu0 %v1062
        %1148 = vmatmul.mubr.f32.gmra.mrb[0].mxu0 %v1061
        %v1149 = vpop.f32.mrb[0].mxu0
        %v1150 = vadd.f32 0.0, %v1149
        %v1151 = vpop.f32.mrb[0].mxu0
        %1152 = vmatprep.mubr.f32.mxu0 %v1064
        %1153 = vmatmul.mubr.f32.gmra.mrb[0].mxu0 %v1063
        %v1154 = vpop.f32.mrb[0].mxu0
        %v1155 = vadd.f32 0.0, %v1154
        %v1156 = vpop.f32.mrb[0].mxu0
        %1157 = vmatprep.mubr.f32.mxu0 %v1066
        %1158 = vmatmul.mubr.f32.gmra.mrb[0].mxu0 %v1065
        %v1159 = vpop.f32.mrb[0].mxu0
        %v1160 = vadd.f32 0.0, %v1159
        %v1161 = vpop.f32.mrb[0].mxu0
        %1162 = vmatprep.mubr.f32.mxu0 %v1068
        %1163 = vmatmul.mubr.f32.gmra.mrb[0].mxu0 %v1067
        %v1164 = vpop.f32.mrb[0].mxu0
        %v1165 = vadd.f32 0.0, %v1164
        %v1166 = vpop.f32.mrb[0].mxu0
        %1167 = vmatprep.mubr.f32.mxu0 %v1070
        %1168 = vmatmul.mubr.f32.gmra.mrb[0].mxu0 %v1069
        %v1169 = vpop.f32.mrb[0].mxu0
        %v1170 = vadd.f32 0.0, %v1169
        %v1171 = vpop.f32.mrb[0].mxu0
        %1172 = vmatprep.mubr.f32.mxu0 %v1072
        %1173 = vmatmul.mubr.f32.gmra.mrb[0].mxu0 %v1071
        %v1174 = vpop.f32.mrb[0].mxu0
        %v1175 = vadd.f32 0.0, %v1174
        %v1176 = vpop.f32.mrb[0].mxu0
        %1177 = vdwg.mxu0
        %v1178 = vpack.c.bf16 %v1145, %v1140
        %v1179 = vpack.c.bf16 %v1155, %v1150
        %v1180 = vpack.c.bf16 %v1165, %v1160
        %v1181 = vpack.c.bf16 %v1175, %v1170
        %v1182 = vld [vmem:[%s442] sm:$0xff]
        %v1183 = vld [vmem:[%s442 + $0x8] sm:$0xff]
        %v1184 = vld [vmem:[%s442 + $0x10] sm:$0xff]
        %v1185 = vld [vmem:[%s442 + $0x18] sm:$0xff]
        %v1186 = vld [vmem:[%s442 + $0x20] sm:$0xff]
        %v1187 = vld [vmem:[%s442 + $0x28] sm:$0xff]
        %v1188 = vld [vmem:[%s442 + $0x30] sm:$0xff]
        %v1189 = vld [vmem:[%s442 + $0x38] sm:$0xff]
        %v1190 = vld [vmem:[%s442 + $0x40] sm:$0xff]
        %v1191 = vld [vmem:[%s442 + $0x48] sm:$0xff]
        %v1192 = vld [vmem:[%s442 + $0x50] sm:$0xff]
        %v1193 = vld [vmem:[%s442 + $0x58] sm:$0xff]
        %v1194 = vld [vmem:[%s442 + $0x60] sm:$0xff]
        %v1195 = vld [vmem:[%s442 + $0x68] sm:$0xff]
        %v1196 = vld [vmem:[%s442 + $0x70] sm:$0xff]
        %v1197 = vld [vmem:[%s442 + $0x78] sm:$0xff]
        %1198 = vmatprep.subr.mxu0 0.0
        %1199 = vmatpush1.msra.mxu0 %v522
        %1200 = vmatprep.subr.mxu0 0.0
        %1201 = vmatpush1.msra.mxu0 %v523
        %1202 = vmatprep.subr.mxu0 0.0
        %1203 = vmatpush1.msra.mxu0 %v524
        %1204 = vmatprep.subr.mxu0 0.0
        %1205 = vmatpush1.msra.mxu0 %v525
        %1206 = vmatprep.subr.mxu0 0.0
        %1207 = vmatpush1.msra.mxu0 %v526
        %1208 = vmatprep.subr.mxu0 0.0
        %1209 = vmatpush1.msra.mxu0 %v527
        %1210 = vmatprep.subr.mxu0 0.0
        %1211 = vmatpush1.msra.mxu0 %v528
        %1212 = vmatprep.subr.mxu0 0.0
        %1213 = vmatpush1.msra.mxu0 %v529
        %1214 = vmatprep.subr.mxu0 0.0
        %1215 = vmatpush1.msra.mxu0 %v530
        %1216 = vmatprep.subr.mxu0 0.0
        %1217 = vmatpush1.msra.mxu0 %v531
        %1218 = vmatprep.subr.mxu0 0.0
        %1219 = vmatpush1.msra.mxu0 %v532
        %1220 = vmatprep.subr.mxu0 0.0
        %1221 = vmatpush1.msra.mxu0 %v533
        %1222 = vmatprep.subr.mxu0 0.0
        %1223 = vmatpush1.msra.mxu0 %v534
        %1224 = vmatprep.subr.mxu0 0.0
        %1225 = vmatpush1.msra.mxu0 %v535
        %1226 = vmatprep.subr.mxu0 0.0
        %1227 = vmatpush1.msra.mxu0 %v536
        %1228 = vmatprep.subr.mxu0 0.0
        %1229 = vmatpush1.msra.mxu0 %v537
        %1230 = vmatprep.subr.mxu0 0.0
        %1231 = vmatpush1.msra.mxu0 %v538
        %1232 = vmatprep.subr.mxu0 0.0
        %1233 = vmatpush1.msra.mxu0 %v539
        %1234 = vmatprep.subr.mxu0 0.0
        %1235 = vmatpush1.msra.mxu0 %v540
        %1236 = vmatprep.subr.mxu0 0.0
        %1237 = vmatpush1.msra.mxu0 %v541
        %1238 = vmatprep.subr.mxu0 0.0
        %1239 = vmatpush1.msra.mxu0 %v542
        %1240 = vmatprep.subr.mxu0 0.0
        %1241 = vmatpush1.msra.mxu0 %v543
        %1242 = vmatprep.subr.mxu0 0.0
        %1243 = vmatpush1.msra.mxu0 %v544
        %1244 = vmatprep.subr.mxu0 0.0
        %1245 = vmatpush1.msra.mxu0 %v545
        %1246 = vmatprep.subr.mxu0 0.0
        %1247 = vmatpush1.msra.mxu0 %v546
        %1248 = vmatprep.subr.mxu0 0.0
        %1249 = vmatpush1.msra.mxu0 %v547
        %1250 = vmatprep.subr.mxu0 0.0
        %1251 = vmatpush1.msra.mxu0 %v548
        %1252 = vmatprep.subr.mxu0 0.0
        %1253 = vmatpush1.msra.mxu0 %v549
        %1254 = vmatprep.subr.mxu0 0.0
        %1255 = vmatpush1.msra.mxu0 %v550
        %1256 = vmatprep.subr.mxu0 0.0
        %1257 = vmatpush1.msra.mxu0 %v551
        %1258 = vmatprep.subr.mxu0 0.0
        %1259 = vmatpush1.msra.mxu0 %v552
        %1260 = vmatprep.subr.mxu0 0.0
        %1261 = vmatpush1.msra.mxu0 %v553
        %1262 = vmatprep.mubr.f32.mxu0 %v1183
        %1263 = vmatmul.mubr.f32.gmra.mrb[0].mxu0 %v1182
        %v1264 = vpop.f32.mrb[0].mxu0
        %v1265 = vadd.f32 0.0, %v1264
        %v1266 = vpop.f32.mrb[0].mxu0
        %1267 = vmatprep.mubr.f32.mxu0 %v1185
        %1268 = vmatmul.mubr.f32.gmra.mrb[0].mxu0 %v1184
        %v1269 = vpop.f32.mrb[0].mxu0
        %v1270 = vadd.f32 0.0, %v1269
        %v1271 = vpop.f32.mrb[0].mxu0
        %1272 = vmatprep.mubr.f32.mxu0 %v1187
        %1273 = vmatmul.mubr.f32.gmra.mrb[0].mxu0 %v1186
        %v1274 = vpop.f32.mrb[0].mxu0
        %v1275 = vadd.f32 0.0, %v1274
        %v1276 = vpop.f32.mrb[0].mxu0
        %1277 = vmatprep.mubr.f32.mxu0 %v1189
        %1278 = vmatmul.mubr.f32.gmra.mrb[0].mxu0 %v1188
        %v1279 = vpop.f32.mrb[0].mxu0
        %v1280 = vadd.f32 0.0, %v1279
        %v1281 = vpop.f32.mrb[0].mxu0
        %1282 = vmatprep.mubr.f32.mxu0 %v1191
        %1283 = vmatmul.mubr.f32.gmra.mrb[0].mxu0 %v1190
        %v1284 = vpop.f32.mrb[0].mxu0
        %v1285 = vadd.f32 0.0, %v1284
        %v1286 = vpop.f32.mrb[0].mxu0
        %1287 = vmatprep.mubr.f32.mxu0 %v1193
        %1288 = vmatmul.mubr.f32.gmra.mrb[0].mxu0 %v1192
        %v1289 = vpop.f32.mrb[0].mxu0
        %v1290 = vadd.f32 0.0, %v1289
        %v1291 = vpop.f32.mrb[0].mxu0
        %1292 = vmatprep.mubr.f32.mxu0 %v1195
        %1293 = vmatmul.mubr.f32.gmra.mrb[0].mxu0 %v1194
        %v1294 = vpop.f32.mrb[0].mxu0
        %v1295 = vadd.f32 0.0, %v1294
        %v1296 = vpop.f32.mrb[0].mxu0
        %1297 = vmatprep.mubr.f32.mxu0 %v1197
        %1298 = vmatmul.mubr.f32.gmra.mrb[0].mxu0 %v1196
        %v1299 = vpop.f32.mrb[0].mxu0
        %v1300 = vadd.f32 0.0, %v1299
        %v1301 = vpop.f32.mrb[0].mxu0
        %1302 = vdwg.mxu0
        %v1303 = vpack.c.bf16 %v1270, %v1265
        %v1304 = vpack.c.bf16 %v1280, %v1275
        %v1305 = vpack.c.bf16 %v1290, %v1285
        %v1306 = vpack.c.bf16 %v1300, %v1295
        %v1307 = vld [vmem:[%s6] sm:$0xf]
        %v1308 = vld [vmem:[%s6 + $0x4] sm:$0xf]
        %v1309 = vld [vmem:[%s6 + $0x8] sm:$0xf]
        %v1310 = vld [vmem:[%s6 + $0xc] sm:$0xf]
        %v1311 = vld [vmem:[%s6 + $0x10] sm:$0xf]
        %v1312 = vld [vmem:[%s6 + $0x14] sm:$0xf]
        %v1313 = vld [vmem:[%s6 + $0x18] sm:$0xf]
        %v1314 = vld [vmem:[%s6 + $0x1c] sm:$0xf]
        %v1315 = vld [vmem:[%s6 + $0x20] sm:$0xf]
        %v1316 = vld [vmem:[%s6 + $0x24] sm:$0xf]
        %v1317 = vld [vmem:[%s6 + $0x28] sm:$0xf]
        %v1318 = vld [vmem:[%s6 + $0x2c] sm:$0xf]
        %v1319 = vld [vmem:[%s6 + $0x30] sm:$0xf]
        %v1320 = vld [vmem:[%s6 + $0x34] sm:$0xf]
        %v1321 = vld [vmem:[%s6 + $0x38] sm:$0xf]
        %v1322 = vld [vmem:[%s6 + $0x3c] sm:$0xf]
        %s1323 = scalar_lea.vmem %s6, 64
        %v1324 = vld [vmem:[%s1323] sm:$0xf]
        %v1325 = vld [vmem:[%s1323 + $0x4] sm:$0xf]
        %v1326 = vld [vmem:[%s1323 + $0x8] sm:$0xf]
        %v1327 = vld [vmem:[%s1323 + $0xc] sm:$0xf]
        %v1328 = vld [vmem:[%s1323 + $0x10] sm:$0xf]
        %v1329 = vld [vmem:[%s1323 + $0x14] sm:$0xf]
        %v1330 = vld [vmem:[%s1323 + $0x18] sm:$0xf]
        %v1331 = vld [vmem:[%s1323 + $0x1c] sm:$0xf]
        %v1332 = vld [vmem:[%s1323 + $0x20] sm:$0xf]
        %v1333 = vld [vmem:[%s1323 + $0x24] sm:$0xf]
        %v1334 = vld [vmem:[%s1323 + $0x28] sm:$0xf]
        %v1335 = vld [vmem:[%s1323 + $0x2c] sm:$0xf]
        %v1336 = vld [vmem:[%s1323 + $0x30] sm:$0xf]
        %v1337 = vld [vmem:[%s1323 + $0x34] sm:$0xf]
        %v1338 = vld [vmem:[%s1323 + $0x38] sm:$0xf]
        %v1339 = vld [vmem:[%s1323 + $0x3c] sm:$0xf]
        %s1340 = scalar_lea.vmem %s6, 128
        %v1341 = vld [vmem:[%s1340] sm:$0xf]
        %v1342 = vld [vmem:[%s1340 + $0x4] sm:$0xf]
        %v1343 = vld [vmem:[%s1340 + $0x8] sm:$0xf]
        %v1344 = vld [vmem:[%s1340 + $0xc] sm:$0xf]
        %v1345 = vld [vmem:[%s1340 + $0x10] sm:$0xf]
        %v1346 = vld [vmem:[%s1340 + $0x14] sm:$0xf]
        %v1347 = vld [vmem:[%s1340 + $0x18] sm:$0xf]
        %v1348 = vld [vmem:[%s1340 + $0x1c] sm:$0xf]
        %v1349 = vld [vmem:[%s1340 + $0x20] sm:$0xf]
        %v1350 = vld [vmem:[%s1340 + $0x24] sm:$0xf]
        %v1351 = vld [vmem:[%s1340 + $0x28] sm:$0xf]
        %v1352 = vld [vmem:[%s1340 + $0x2c] sm:$0xf]
        %v1353 = vld [vmem:[%s1340 + $0x30] sm:$0xf]
        %v1354 = vld [vmem:[%s1340 + $0x34] sm:$0xf]
        %v1355 = vld [vmem:[%s1340 + $0x38] sm:$0xf]
        %v1356 = vld [vmem:[%s1340 + $0x3c] sm:$0xf]
        %s1357 = smul.u32 %s40, 4
        %s1358 = sld [smem:[#allocation3 + %s1357]]
        %s1359 = scvt.s32.f32 %s1358
        %s1360 = sld [smem:[#allocation4 + %s1357]]
        %s1361 = scvt.s32.f32 %s1360
        %v1378 = vunpack.c.l.b16 %v1307
        %v1379 = vunpack.c.l.b16 %v1308
        %v1380 = vunpack.c.l.b16 %v1309
        %v1381 = vunpack.c.l.b16 %v1310
        %v1382 = vunpack.c.l.b16 %v1311
        %v1383 = vunpack.c.l.b16 %v1312
        %v1384 = vunpack.c.l.b16 %v1313
        %v1385 = vunpack.c.l.b16 %v1314
        %v1386 = vunpack.c.l.b16 %v1315
        %v1387 = vunpack.c.l.b16 %v1316
        %v1388 = vunpack.c.l.b16 %v1317
        %v1389 = vunpack.c.l.b16 %v1318
        %v1390 = vunpack.c.l.b16 %v1319
        %v1391 = vunpack.c.l.b16 %v1320
        %v1392 = vunpack.c.l.b16 %v1321
        %v1393 = vunpack.c.l.b16 %v1322
        %v1394 = vpack.c.b16 %v1379, %v1378
        %v1395 = vpack.c.b16 %v1381, %v1380
        %v1396 = vpack.c.b16 %v1383, %v1382
        %v1397 = vpack.c.b16 %v1385, %v1384
        %v1398 = vpack.c.b16 %v1387, %v1386
        %v1399 = vpack.c.b16 %v1389, %v1388
        %v1400 = vpack.c.b16 %v1391, %v1390
        %v1401 = vpack.c.b16 %v1393, %v1392
        %vm1402 = vcmask 523264
        %v1404 = vsel %vm1402, %v1394, 0
        %v1407 = vsel %vm1402, %v1395, 0
        %v1410 = vsel %vm1402, %v1396, 0
        %v1413 = vsel %vm1402, %v1397, 0
        %v1416 = vsel %vm1402, %v1398, 0
        %v1419 = vsel %vm1402, %v1399, 0
        %v1422 = vsel %vm1402, %v1400, 0
        %v1425 = vsel %vm1402, %v1401, 0
        %1427 = vmatprep.subr.bf16.mxu0 0
        %1428 = vmatpush1.bf16.msra.mxu0 %v1178
        %1429 = vmatprep.subr.bf16.mxu0 0
        %1430 = vmatpush1.bf16.msra.mxu0 %v1179
        %1431 = vmatprep.subr.bf16.mxu0 0
        %1432 = vmatpush1.bf16.msra.mxu0 %v1180
        %1433 = vmatprep.subr.bf16.mxu0 0
        %1434 = vmatpush1.bf16.msra.mxu0 %v1181
        %1435 = vmatprep.subr.bf16.mxu0 0
        %1436 = vmatpush1.bf16.msra.mxu0 0
        %1437 = vmatprep.subr.bf16.mxu0 0
        %1438 = vmatpush1.bf16.msra.mxu0 0
        %1439 = vmatprep.subr.bf16.mxu0 0
        %1440 = vmatpush1.bf16.msra.mxu0 0
        %1441 = vmatprep.subr.bf16.mxu0 0
        %1442 = vmatpush1.bf16.msra.mxu0 0
        %1443 = vmatprep.subr.bf16.mxu0 0
        %1444 = vmatpush1.bf16.msra.mxu0 0
        %1445 = vmatprep.subr.bf16.mxu0 0
        %1446 = vmatpush1.bf16.msra.mxu0 0
        %1447 = vmatprep.subr.bf16.mxu0 0
        %1448 = vmatpush1.bf16.msra.mxu0 0
        %1449 = vmatprep.subr.bf16.mxu0 0
        %1450 = vmatpush1.bf16.msra.mxu0 0
        %1451 = vmatprep.subr.bf16.mxu0 0
        %1452 = vmatpush1.bf16.msra.mxu0 0
        %1453 = vmatprep.subr.bf16.mxu0 0
        %1454 = vmatpush1.bf16.msra.mxu0 0
        %1455 = vmatprep.subr.bf16.mxu0 0
        %1456 = vmatpush1.bf16.msra.mxu0 0
        %1457 = vmatprep.subr.bf16.mxu0 0
        %1458 = vmatpush1.bf16.msra.mxu0 0
        %1459 = vmatprep.mubr.bf16.mxu0 0
        %1460 = vmatmul.mubr.bf16.gmra.mrb[0].mxu0 %v1404
        %v1461 = vpop.f32.mrb[0].mxu0
        %v1462 = vadd.f32 0.0, %v1461
        %v1463 = vpop.f32.mrb[0].mxu0
        %v1464 = vpop.f32.mrb[0].mxu0
        %v1465 = vadd.f32 0.0, %v1464
        %v1466 = vpop.f32.mrb[0].mxu0
        %1467 = vmatprep.mubr.bf16.mxu0 0
        %1468 = vmatmul.mubr.bf16.gmra.mrb[0].mxu0 %v1407
        %v1469 = vpop.f32.mrb[0].mxu0
        %v1470 = vadd.f32 0.0, %v1469
        %v1471 = vpop.f32.mrb[0].mxu0
        %v1472 = vpop.f32.mrb[0].mxu0
        %v1473 = vadd.f32 0.0, %v1472
        %v1474 = vpop.f32.mrb[0].mxu0
        %1475 = vmatprep.mubr.bf16.mxu0 0
        %1476 = vmatmul.mubr.bf16.gmra.mrb[0].mxu0 %v1410
        %v1477 = vpop.f32.mrb[0].mxu0
        %v1478 = vadd.f32 0.0, %v1477
        %v1479 = vpop.f32.mrb[0].mxu0
        %v1480 = vpop.f32.mrb[0].mxu0
        %v1481 = vadd.f32 0.0, %v1480
        %v1482 = vpop.f32.mrb[0].mxu0
        %1483 = vmatprep.mubr.bf16.mxu0 0
        %1484 = vmatmul.mubr.bf16.gmra.mrb[0].mxu0 %v1413
        %v1485 = vpop.f32.mrb[0].mxu0
        %v1486 = vadd.f32 0.0, %v1485
        %v1487 = vpop.f32.mrb[0].mxu0
        %v1488 = vpop.f32.mrb[0].mxu0
        %v1489 = vadd.f32 0.0, %v1488
        %v1490 = vpop.f32.mrb[0].mxu0
        %1491 = vmatprep.mubr.bf16.mxu0 0
        %1492 = vmatmul.mubr.bf16.gmra.mrb[0].mxu0 %v1416
        %v1493 = vpop.f32.mrb[0].mxu0
        %v1494 = vadd.f32 0.0, %v1493
        %v1495 = vpop.f32.mrb[0].mxu0
        %v1496 = vpop.f32.mrb[0].mxu0
        %v1497 = vadd.f32 0.0, %v1496
        %v1498 = vpop.f32.mrb[0].mxu0
        %1499 = vmatprep.mubr.bf16.mxu0 0
        %1500 = vmatmul.mubr.bf16.gmra.mrb[0].mxu0 %v1419
        %v1501 = vpop.f32.mrb[0].mxu0
        %v1502 = vadd.f32 0.0, %v1501
        %v1503 = vpop.f32.mrb[0].mxu0
        %v1504 = vpop.f32.mrb[0].mxu0
        %v1505 = vadd.f32 0.0, %v1504
        %v1506 = vpop.f32.mrb[0].mxu0
        %1507 = vmatprep.mubr.bf16.mxu0 0
        %1508 = vmatmul.mubr.bf16.gmra.mrb[0].mxu0 %v1422
        %v1509 = vpop.f32.mrb[0].mxu0
        %v1510 = vadd.f32 0.0, %v1509
        %v1511 = vpop.f32.mrb[0].mxu0
        %v1512 = vpop.f32.mrb[0].mxu0
        %v1513 = vadd.f32 0.0, %v1512
        %v1514 = vpop.f32.mrb[0].mxu0
        %1515 = vmatprep.mubr.bf16.mxu0 0
        %1516 = vmatmul.mubr.bf16.gmra.mrb[0].mxu0 %v1425
        %v1517 = vpop.f32.mrb[0].mxu0
        %v1518 = vadd.f32 0.0, %v1517
        %v1519 = vpop.f32.mrb[0].mxu0
        %v1520 = vpop.f32.mrb[0].mxu0
        %v1521 = vadd.f32 0.0, %v1520
        %v1522 = vpop.f32.mrb[0].mxu0
        %1523 = vdwg.mxu0
        %v1524 = vstv %s1359
        %v1525 = vmul.f32 %v1524, %v1462
        %v1526 = vmul.f32 %v1524, %v1465
        %v1527 = vmul.f32 %v1524, %v1470
        %v1528 = vmul.f32 %v1524, %v1473
        %v1529 = vmul.f32 %v1524, %v1478
        %v1530 = vmul.f32 %v1524, %v1481
        %v1531 = vmul.f32 %v1524, %v1486
        %v1532 = vmul.f32 %v1524, %v1489
        %v1533 = vmul.f32 %v1524, %v1494
        %v1534 = vmul.f32 %v1524, %v1497
        %v1535 = vmul.f32 %v1524, %v1502
        %v1536 = vmul.f32 %v1524, %v1505
        %v1537 = vmul.f32 %v1524, %v1510
        %v1538 = vmul.f32 %v1524, %v1513
        %v1539 = vmul.f32 %v1524, %v1518
        %v1540 = vmul.f32 %v1524, %v1521
        %v1557 = vunpack.c.l.b16 %v1324
        %v1558 = vunpack.c.l.b16 %v1325
        %v1559 = vunpack.c.l.b16 %v1326
        %v1560 = vunpack.c.l.b16 %v1327
        %v1561 = vunpack.c.l.b16 %v1328
        %v1562 = vunpack.c.l.b16 %v1329
        %v1563 = vunpack.c.l.b16 %v1330
        %v1564 = vunpack.c.l.b16 %v1331
        %v1565 = vunpack.c.l.b16 %v1332
        %v1566 = vunpack.c.l.b16 %v1333
        %v1567 = vunpack.c.l.b16 %v1334
        %v1568 = vunpack.c.l.b16 %v1335
        %v1569 = vunpack.c.l.b16 %v1336
        %v1570 = vunpack.c.l.b16 %v1337
        %v1571 = vunpack.c.l.b16 %v1338
        %v1572 = vunpack.c.l.b16 %v1339
        %v1573 = vpack.c.b16 %v1558, %v1557
        %v1574 = vpack.c.b16 %v1560, %v1559
        %v1575 = vpack.c.b16 %v1562, %v1561
        %v1576 = vpack.c.b16 %v1564, %v1563
        %v1577 = vpack.c.b16 %v1566, %v1565
        %v1578 = vpack.c.b16 %v1568, %v1567
        %v1579 = vpack.c.b16 %v1570, %v1569
        %v1580 = vpack.c.b16 %v1572, %v1571
        %v1582 = vsel %vm1402, %v1573, 0
        %v1585 = vsel %vm1402, %v1574, 0
        %v1588 = vsel %vm1402, %v1575, 0
        %v1591 = vsel %vm1402, %v1576, 0
        %v1594 = vsel %vm1402, %v1577, 0
        %v1597 = vsel %vm1402, %v1578, 0
        %v1600 = vsel %vm1402, %v1579, 0
        %v1603 = vsel %vm1402, %v1580, 0
        %1605 = vmatprep.subr.bf16.mxu0 0
        %1606 = vmatpush1.bf16.msra.mxu0 %v675
        %1607 = vmatprep.subr.bf16.mxu0 0
        %1608 = vmatpush1.bf16.msra.mxu0 %v676
        %1609 = vmatprep.subr.bf16.mxu0 0
        %1610 = vmatpush1.bf16.msra.mxu0 %v677
        %1611 = vmatprep.subr.bf16.mxu0 0
        %1612 = vmatpush1.bf16.msra.mxu0 %v678
        %1613 = vmatprep.subr.bf16.mxu0 0
        %1614 = vmatpush1.bf16.msra.mxu0 0
        %1615 = vmatprep.subr.bf16.mxu0 0
        %1616 = vmatpush1.bf16.msra.mxu0 0
        %1617 = vmatprep.subr.bf16.mxu0 0
        %1618 = vmatpush1.bf16.msra.mxu0 0
        %1619 = vmatprep.subr.bf16.mxu0 0
        %1620 = vmatpush1.bf16.msra.mxu0 0
        %1621 = vmatprep.subr.bf16.mxu0 0
        %1622 = vmatpush1.bf16.msra.mxu0 0
        %1623 = vmatprep.subr.bf16.mxu0 0
        %1624 = vmatpush1.bf16.msra.mxu0 0
        %1625 = vmatprep.subr.bf16.mxu0 0
        %1626 = vmatpush1.bf16.msra.mxu0 0
        %1627 = vmatprep.subr.bf16.mxu0 0
        %1628 = vmatpush1.bf16.msra.mxu0 0
        %1629 = vmatprep.subr.bf16.mxu0 0
        %1630 = vmatpush1.bf16.msra.mxu0 0
        %1631 = vmatprep.subr.bf16.mxu0 0
        %1632 = vmatpush1.bf16.msra.mxu0 0
        %1633 = vmatprep.subr.bf16.mxu0 0
        %1634 = vmatpush1.bf16.msra.mxu0 0
        %1635 = vmatprep.subr.bf16.mxu0 0
        %1636 = vmatpush1.bf16.msra.mxu0 0
        %1637 = vmatprep.mubr.bf16.mxu0 0
        %1638 = vmatmul.mubr.bf16.gmra.mrb[0].mxu0 %v1582
        %v1639 = vpop.f32.mrb[0].mxu0
        %v1640 = vadd.f32 %v1525, %v1639
        %v1641 = vpop.f32.mrb[0].mxu0
        %v1642 = vpop.f32.mrb[0].mxu0
        %v1643 = vadd.f32 %v1526, %v1642
        %v1644 = vpop.f32.mrb[0].mxu0
        %1645 = vmatprep.mubr.bf16.mxu0 0
        %1646 = vmatmul.mubr.bf16.gmra.mrb[0].mxu0 %v1585
        %v1647 = vpop.f32.mrb[0].mxu0
        %v1648 = vadd.f32 %v1527, %v1647
        %v1649 = vpop.f32.mrb[0].mxu0
        %v1650 = vpop.f32.mrb[0].mxu0
        %v1651 = vadd.f32 %v1528, %v1650
        %v1652 = vpop.f32.mrb[0].mxu0
        %1653 = vmatprep.mubr.bf16.mxu0 0
        %1654 = vmatmul.mubr.bf16.gmra.mrb[0].mxu0 %v1588
        %v1655 = vpop.f32.mrb[0].mxu0
        %v1656 = vadd.f32 %v1529, %v1655
        %v1657 = vpop.f32.mrb[0].mxu0
        %v1658 = vpop.f32.mrb[0].mxu0
        %v1659 = vadd.f32 %v1530, %v1658
        %v1660 = vpop.f32.mrb[0].mxu0
        %1661 = vmatprep.mubr.bf16.mxu0 0
        %1662 = vmatmul.mubr.bf16.gmra.mrb[0].mxu0 %v1591
        %v1663 = vpop.f32.mrb[0].mxu0
        %v1664 = vadd.f32 %v1531, %v1663
        %v1665 = vpop.f32.mrb[0].mxu0
        %v1666 = vpop.f32.mrb[0].mxu0
        %v1667 = vadd.f32 %v1532, %v1666
        %v1668 = vpop.f32.mrb[0].mxu0
        %1669 = vmatprep.mubr.bf16.mxu0 0
        %1670 = vmatmul.mubr.bf16.gmra.mrb[0].mxu0 %v1594
        %v1671 = vpop.f32.mrb[0].mxu0
        %v1672 = vadd.f32 %v1533, %v1671
        %v1673 = vpop.f32.mrb[0].mxu0
        %v1674 = vpop.f32.mrb[0].mxu0
        %v1675 = vadd.f32 %v1534, %v1674
        %v1676 = vpop.f32.mrb[0].mxu0
        %1677 = vmatprep.mubr.bf16.mxu0 0
        %1678 = vmatmul.mubr.bf16.gmra.mrb[0].mxu0 %v1597
        %v1679 = vpop.f32.mrb[0].mxu0
        %v1680 = vadd.f32 %v1535, %v1679
        %v1681 = vpop.f32.mrb[0].mxu0
        %v1682 = vpop.f32.mrb[0].mxu0
        %v1683 = vadd.f32 %v1536, %v1682
        %v1684 = vpop.f32.mrb[0].mxu0
        %1685 = vmatprep.mubr.bf16.mxu0 0
        %1686 = vmatmul.mubr.bf16.gmra.mrb[0].mxu0 %v1600
        %v1687 = vpop.f32.mrb[0].mxu0
        %v1688 = vadd.f32 %v1537, %v1687
        %v1689 = vpop.f32.mrb[0].mxu0
        %v1690 = vpop.f32.mrb[0].mxu0
        %v1691 = vadd.f32 %v1538, %v1690
        %v1692 = vpop.f32.mrb[0].mxu0
        %1693 = vmatprep.mubr.bf16.mxu0 0
        %1694 = vmatmul.mubr.bf16.gmra.mrb[0].mxu0 %v1603
        %v1695 = vpop.f32.mrb[0].mxu0
        %v1696 = vadd.f32 %v1539, %v1695
        %v1697 = vpop.f32.mrb[0].mxu0
        %v1698 = vpop.f32.mrb[0].mxu0
        %v1699 = vadd.f32 %v1540, %v1698
        %v1700 = vpop.f32.mrb[0].mxu0
        %1701 = vdwg.mxu0
        %v1718 = vunpack.c.l.b16 %v1341
        %v1719 = vunpack.c.l.b16 %v1342
        %v1720 = vunpack.c.l.b16 %v1343
        %v1721 = vunpack.c.l.b16 %v1344
        %v1722 = vunpack.c.l.b16 %v1345
        %v1723 = vunpack.c.l.b16 %v1346
        %v1724 = vunpack.c.l.b16 %v1347
        %v1725 = vunpack.c.l.b16 %v1348
        %v1726 = vunpack.c.l.b16 %v1349
        %v1727 = vunpack.c.l.b16 %v1350
        %v1728 = vunpack.c.l.b16 %v1351
        %v1729 = vunpack.c.l.b16 %v1352
        %v1730 = vunpack.c.l.b16 %v1353
        %v1731 = vunpack.c.l.b16 %v1354
        %v1732 = vunpack.c.l.b16 %v1355
        %v1733 = vunpack.c.l.b16 %v1356
        %v1734 = vpack.c.b16 %v1719, %v1718
        %v1735 = vpack.c.b16 %v1721, %v1720
        %v1736 = vpack.c.b16 %v1723, %v1722
        %v1737 = vpack.c.b16 %v1725, %v1724
        %v1738 = vpack.c.b16 %v1727, %v1726
        %v1739 = vpack.c.b16 %v1729, %v1728
        %v1740 = vpack.c.b16 %v1731, %v1730
        %v1741 = vpack.c.b16 %v1733, %v1732
        %v1743 = vsel %vm1402, %v1734, 0
        %v1746 = vsel %vm1402, %v1735, 0
        %v1749 = vsel %vm1402, %v1736, 0
        %v1752 = vsel %vm1402, %v1737, 0
        %v1755 = vsel %vm1402, %v1738, 0
        %v1758 = vsel %vm1402, %v1739, 0
        %v1761 = vsel %vm1402, %v1740, 0
        %v1764 = vsel %vm1402, %v1741, 0
        %1766 = vmatprep.subr.bf16.mxu0 0
        %1767 = vmatpush1.bf16.msra.mxu0 %v801
        %1768 = vmatprep.subr.bf16.mxu0 0
        %1769 = vmatpush1.bf16.msra.mxu0 %v802
        %1770 = vmatprep.subr.bf16.mxu0 0
        %1771 = vmatpush1.bf16.msra.mxu0 %v803
        %1772 = vmatprep.subr.bf16.mxu0 0
        %1773 = vmatpush1.bf16.msra.mxu0 %v804
        %1774 = vmatprep.subr.bf16.mxu0 0
        %1775 = vmatpush1.bf16.msra.mxu0 0
        %1776 = vmatprep.subr.bf16.mxu0 0
        %1777 = vmatpush1.bf16.msra.mxu0 0
        %1778 = vmatprep.subr.bf16.mxu0 0
        %1779 = vmatpush1.bf16.msra.mxu0 0
        %1780 = vmatprep.subr.bf16.mxu0 0
        %1781 = vmatpush1.bf16.msra.mxu0 0
        %1782 = vmatprep.subr.bf16.mxu0 0
        %1783 = vmatpush1.bf16.msra.mxu0 0
        %1784 = vmatprep.subr.bf16.mxu0 0
        %1785 = vmatpush1.bf16.msra.mxu0 0
        %1786 = vmatprep.subr.bf16.mxu0 0
        %1787 = vmatpush1.bf16.msra.mxu0 0
        %1788 = vmatprep.subr.bf16.mxu0 0
        %1789 = vmatpush1.bf16.msra.mxu0 0
        %1790 = vmatprep.subr.bf16.mxu0 0
        %1791 = vmatpush1.bf16.msra.mxu0 0
        %1792 = vmatprep.subr.bf16.mxu0 0
        %1793 = vmatpush1.bf16.msra.mxu0 0
        %1794 = vmatprep.subr.bf16.mxu0 0
        %1795 = vmatpush1.bf16.msra.mxu0 0
        %1796 = vmatprep.subr.bf16.mxu0 0
        %1797 = vmatpush1.bf16.msra.mxu0 0
        %1798 = vmatprep.mubr.bf16.mxu0 0
        %1799 = vmatmul.mubr.bf16.gmra.mrb[0].mxu0 %v1743
        %v1800 = vpop.f32.mrb[0].mxu0
        %v1801 = vadd.f32 0.0, %v1800
        %v1802 = vpop.f32.mrb[0].mxu0
        %v1803 = vpop.f32.mrb[0].mxu0
        %v1804 = vadd.f32 0.0, %v1803
        %v1805 = vpop.f32.mrb[0].mxu0
        %1806 = vmatprep.mubr.bf16.mxu0 0
        %1807 = vmatmul.mubr.bf16.gmra.mrb[0].mxu0 %v1746
        %v1808 = vpop.f32.mrb[0].mxu0
        %v1809 = vadd.f32 0.0, %v1808
        %v1810 = vpop.f32.mrb[0].mxu0
        %v1811 = vpop.f32.mrb[0].mxu0
        %v1812 = vadd.f32 0.0, %v1811
        %v1813 = vpop.f32.mrb[0].mxu0
        %1814 = vmatprep.mubr.bf16.mxu0 0
        %1815 = vmatmul.mubr.bf16.gmra.mrb[0].mxu0 %v1749
        %v1816 = vpop.f32.mrb[0].mxu0
        %v1817 = vadd.f32 0.0, %v1816
        %v1818 = vpop.f32.mrb[0].mxu0
        %v1819 = vpop.f32.mrb[0].mxu0
        %v1820 = vadd.f32 0.0, %v1819
        %v1821 = vpop.f32.mrb[0].mxu0
        %1822 = vmatprep.mubr.bf16.mxu0 0
        %1823 = vmatmul.mubr.bf16.gmra.mrb[0].mxu0 %v1752
        %v1824 = vpop.f32.mrb[0].mxu0
        %v1825 = vadd.f32 0.0, %v1824
        %v1826 = vpop.f32.mrb[0].mxu0
        %v1827 = vpop.f32.mrb[0].mxu0
        %v1828 = vadd.f32 0.0, %v1827
        %v1829 = vpop.f32.mrb[0].mxu0
        %1830 = vmatprep.mubr.bf16.mxu0 0
        %1831 = vmatmul.mubr.bf16.gmra.mrb[0].mxu0 %v1755
        %v1832 = vpop.f32.mrb[0].mxu0
        %v1833 = vadd.f32 0.0, %v1832
        %v1834 = vpop.f32.mrb[0].mxu0
        %v1835 = vpop.f32.mrb[0].mxu0
        %v1836 = vadd.f32 0.0, %v1835
        %v1837 = vpop.f32.mrb[0].mxu0
        %1838 = vmatprep.mubr.bf16.mxu0 0
        %1839 = vmatmul.mubr.bf16.gmra.mrb[0].mxu0 %v1758
        %v1840 = vpop.f32.mrb[0].mxu0
        %v1841 = vadd.f32 0.0, %v1840
        %v1842 = vpop.f32.mrb[0].mxu0
        %v1843 = vpop.f32.mrb[0].mxu0
        %v1844 = vadd.f32 0.0, %v1843
        %v1845 = vpop.f32.mrb[0].mxu0
        %1846 = vmatprep.mubr.bf16.mxu0 0
        %1847 = vmatmul.mubr.bf16.gmra.mrb[0].mxu0 %v1761
        %v1848 = vpop.f32.mrb[0].mxu0
        %v1849 = vadd.f32 0.0, %v1848
        %v1850 = vpop.f32.mrb[0].mxu0
        %v1851 = vpop.f32.mrb[0].mxu0
        %v1852 = vadd.f32 0.0, %v1851
        %v1853 = vpop.f32.mrb[0].mxu0
        %1854 = vmatprep.mubr.bf16.mxu0 0
        %1855 = vmatmul.mubr.bf16.gmra.mrb[0].mxu0 %v1764
        %v1856 = vpop.f32.mrb[0].mxu0
        %v1857 = vadd.f32 0.0, %v1856
        %v1858 = vpop.f32.mrb[0].mxu0
        %v1859 = vpop.f32.mrb[0].mxu0
        %v1860 = vadd.f32 0.0, %v1859
        %v1861 = vpop.f32.mrb[0].mxu0
        %1862 = vdwg.mxu0
        %v1863 = vstv %s1361
        %v1864 = vmul.f32 %v1863, %v1801
        %v1865 = vmul.f32 %v1863, %v1804
        %v1866 = vmul.f32 %v1863, %v1809
        %v1867 = vmul.f32 %v1863, %v1812
        %v1868 = vmul.f32 %v1863, %v1817
        %v1869 = vmul.f32 %v1863, %v1820
        %v1870 = vmul.f32 %v1863, %v1825
        %v1871 = vmul.f32 %v1863, %v1828
        %v1872 = vmul.f32 %v1863, %v1833
        %v1873 = vmul.f32 %v1863, %v1836
        %v1874 = vmul.f32 %v1863, %v1841
        %v1875 = vmul.f32 %v1863, %v1844
        %v1876 = vmul.f32 %v1863, %v1849
        %v1877 = vmul.f32 %v1863, %v1852
        %v1878 = vmul.f32 %v1863, %v1857
        %v1879 = vmul.f32 %v1863, %v1860
        %v1880 = vadd.f32 %v1640, %v1864
        %v1881 = vadd.f32 %v1643, %v1865
        %v1882 = vadd.f32 %v1648, %v1866
        %v1883 = vadd.f32 %v1651, %v1867
        %v1884 = vadd.f32 %v1656, %v1868
        %v1885 = vadd.f32 %v1659, %v1869
        %v1886 = vadd.f32 %v1664, %v1870
        %v1887 = vadd.f32 %v1667, %v1871
        %v1888 = vadd.f32 %v1672, %v1872
        %v1889 = vadd.f32 %v1675, %v1873
        %v1890 = vadd.f32 %v1680, %v1874
        %v1891 = vadd.f32 %v1683, %v1875
        %v1892 = vadd.f32 %v1688, %v1876
        %v1893 = vadd.f32 %v1691, %v1877
        %v1894 = vadd.f32 %v1696, %v1878
        %v1895 = vadd.f32 %v1699, %v1879
        %v1896 = vld [vmem:[%s7] sm:$0xff]
        %v1897 = vld [vmem:[%s7 + $0x8] sm:$0xff]
        %v1898 = vld [vmem:[%s7 + $0x10] sm:$0xff]
        %v1899 = vld [vmem:[%s7 + $0x18] sm:$0xff]
        %v1900 = vld [vmem:[%s7 + $0x20] sm:$0xff]
        %v1901 = vld [vmem:[%s7 + $0x28] sm:$0xff]
        %v1902 = vld [vmem:[%s7 + $0x30] sm:$0xff]
        %v1903 = vld [vmem:[%s7 + $0x38] sm:$0xff]
        %v1904 = vld [vmem:[%s7 + $0x40] sm:$0xff]
        %v1905 = vld [vmem:[%s7 + $0x48] sm:$0xff]
        %v1906 = vld [vmem:[%s7 + $0x50] sm:$0xff]
        %v1907 = vld [vmem:[%s7 + $0x58] sm:$0xff]
        %v1908 = vld [vmem:[%s7 + $0x60] sm:$0xff]
        %v1909 = vld [vmem:[%s7 + $0x68] sm:$0xff]
        %v1910 = vld [vmem:[%s7 + $0x70] sm:$0xff]
        %v1911 = vld [vmem:[%s7 + $0x78] sm:$0xff]
        %1913 = vset.pattern.permute.xlu0 0
        %1914 = vperm.xlu0 %1913, %v1896
        %v1915 = vpop.permute.xlu0 %1914
        %1918 = vset.pattern.permute.xlu0 0
        %1919 = vperm.xlu0 %1918, %v1897
        %v1920 = vpop.permute.xlu0 %1919
        %1923 = vset.pattern.permute.xlu0 0
        %1924 = vperm.xlu0 %1923, %v1898
        %v1925 = vpop.permute.xlu0 %1924
        %1928 = vset.pattern.permute.xlu0 0
        %1929 = vperm.xlu0 %1928, %v1899
        %v1930 = vpop.permute.xlu0 %1929
        %1933 = vset.pattern.permute.xlu0 0
        %1934 = vperm.xlu0 %1933, %v1900
        %v1935 = vpop.permute.xlu0 %1934
        %1938 = vset.pattern.permute.xlu0 0
        %1939 = vperm.xlu0 %1938, %v1901
        %v1940 = vpop.permute.xlu0 %1939
        %1943 = vset.pattern.permute.xlu0 0
        %1944 = vperm.xlu0 %1943, %v1902
        %v1945 = vpop.permute.xlu0 %1944
        %1948 = vset.pattern.permute.xlu0 0
        %1949 = vperm.xlu0 %1948, %v1903
        %v1950 = vpop.permute.xlu0 %1949
        %1953 = vset.pattern.permute.xlu0 0
        %1954 = vperm.xlu0 %1953, %v1904
        %v1955 = vpop.permute.xlu0 %1954
        %1958 = vset.pattern.permute.xlu0 0
        %1959 = vperm.xlu0 %1958, %v1905
        %v1960 = vpop.permute.xlu0 %1959
        %1963 = vset.pattern.permute.xlu0 0
        %1964 = vperm.xlu0 %1963, %v1906
        %v1965 = vpop.permute.xlu0 %1964
        %1968 = vset.pattern.permute.xlu0 0
        %1969 = vperm.xlu0 %1968, %v1907
        %v1970 = vpop.permute.xlu0 %1969
        %1973 = vset.pattern.permute.xlu0 0
        %1974 = vperm.xlu0 %1973, %v1908
        %v1975 = vpop.permute.xlu0 %1974
        %1978 = vset.pattern.permute.xlu0 0
        %1979 = vperm.xlu0 %1978, %v1909
        %v1980 = vpop.permute.xlu0 %1979
        %1983 = vset.pattern.permute.xlu0 0
        %1984 = vperm.xlu0 %1983, %v1910
        %v1985 = vpop.permute.xlu0 %1984
        %1988 = vset.pattern.permute.xlu0 0
        %1989 = vperm.xlu0 %1988, %v1911
        %v1990 = vpop.permute.xlu0 %1989
        %v1992 = vadd.f32 %v1880, %v1915
        %v1993 = vadd.f32 %v1881, %v1920
        %v1994 = vadd.f32 %v1882, %v1925
        %v1995 = vadd.f32 %v1883, %v1930
        %v1996 = vadd.f32 %v1884, %v1935
        %v1997 = vadd.f32 %v1885, %v1940
        %v1998 = vadd.f32 %v1886, %v1945
        %v1999 = vadd.f32 %v1887, %v1950
        %v2000 = vadd.f32 %v1888, %v1955
        %v2001 = vadd.f32 %v1889, %v1960
        %v2002 = vadd.f32 %v1890, %v1965
        %v2003 = vadd.f32 %v1891, %v1970
        %v2004 = vadd.f32 %v1892, %v1975
        %v2005 = vadd.f32 %v1893, %v1980
        %v2006 = vadd.f32 %v1894, %v1985
        %v2007 = vadd.f32 %v1895, %v1990
        %v2008 = vsel %vm1402, %v1992, 0.0
        %2009 = vadd.xlane.f32.xlu0 %v2008
        %v2010 = vpop.xlane.xlu0 %2009
        %v2011 = vsel %vm1402, %v1993, 0.0
        %2012 = vadd.xlane.f32.xlu0 %v2011
        %v2013 = vpop.xlane.xlu0 %2012
        %v2014 = vsel %vm1402, %v1994, 0.0
        %2015 = vadd.xlane.f32.xlu0 %v2014
        %v2016 = vpop.xlane.xlu0 %2015
        %v2017 = vsel %vm1402, %v1995, 0.0
        %2018 = vadd.xlane.f32.xlu0 %v2017
        %v2019 = vpop.xlane.xlu0 %2018
        %v2020 = vsel %vm1402, %v1996, 0.0
        %2021 = vadd.xlane.f32.xlu0 %v2020
        %v2022 = vpop.xlane.xlu0 %2021
        %v2023 = vsel %vm1402, %v1997, 0.0
        %2024 = vadd.xlane.f32.xlu0 %v2023
        %v2025 = vpop.xlane.xlu0 %2024
        %v2026 = vsel %vm1402, %v1998, 0.0
        %2027 = vadd.xlane.f32.xlu0 %v2026
        %v2028 = vpop.xlane.xlu0 %2027
        %v2029 = vsel %vm1402, %v1999, 0.0
        %2030 = vadd.xlane.f32.xlu0 %v2029
        %v2031 = vpop.xlane.xlu0 %2030
        %v2032 = vsel %vm1402, %v2000, 0.0
        %2033 = vadd.xlane.f32.xlu0 %v2032
        %v2034 = vpop.xlane.xlu0 %2033
        %v2035 = vsel %vm1402, %v2001, 0.0
        %2036 = vadd.xlane.f32.xlu0 %v2035
        %v2037 = vpop.xlane.xlu0 %2036
        %v2038 = vsel %vm1402, %v2002, 0.0
        %2039 = vadd.xlane.f32.xlu0 %v2038
        %v2040 = vpop.xlane.xlu0 %2039
        %v2041 = vsel %vm1402, %v2003, 0.0
        %2042 = vadd.xlane.f32.xlu0 %v2041
        %v2043 = vpop.xlane.xlu0 %2042
        %v2044 = vsel %vm1402, %v2004, 0.0
        %2045 = vadd.xlane.f32.xlu0 %v2044
        %v2046 = vpop.xlane.xlu0 %2045
        %v2047 = vsel %vm1402, %v2005, 0.0
        %2048 = vadd.xlane.f32.xlu0 %v2047
        %v2049 = vpop.xlane.xlu0 %2048
        %v2050 = vsel %vm1402, %v2006, 0.0
        %2051 = vadd.xlane.f32.xlu0 %v2050
        %v2052 = vpop.xlane.xlu0 %2051
        %v2053 = vsel %vm1402, %v2007, 0.0
        %2054 = vadd.xlane.f32.xlu0 %v2053
        %v2055 = vpop.xlane.xlu0 %2054
        %v2056 = vrcp.pop 64.0
        %v2057 = vmul.f32 %v2010, %v2056
        %v2058 = vmul.f32 %v2013, %v2056
        %v2059 = vmul.f32 %v2016, %v2056
        %v2060 = vmul.f32 %v2019, %v2056
        %v2061 = vmul.f32 %v2022, %v2056
        %v2062 = vmul.f32 %v2025, %v2056
        %v2063 = vmul.f32 %v2028, %v2056
        %v2064 = vmul.f32 %v2031, %v2056
        %v2065 = vmul.f32 %v2034, %v2056
        %v2066 = vmul.f32 %v2037, %v2056
        %v2067 = vmul.f32 %v2040, %v2056
        %v2068 = vmul.f32 %v2043, %v2056
        %v2069 = vmul.f32 %v2046, %v2056
        %v2070 = vmul.f32 %v2049, %v2056
        %v2071 = vmul.f32 %v2052, %v2056
        %v2072 = vmul.f32 %v2055, %v2056
        %v2073 = vld [vmem:[#allocation9] sm:$0xff]
        %v2074 = vld [vmem:[#allocation9 + $0x8] sm:$0xff]
        %v2075 = vld [vmem:[#allocation9 + $0x10] sm:$0xff]
        %v2076 = vld [vmem:[#allocation9 + $0x18] sm:$0xff]
        %v2077 = vld [vmem:[#allocation9 + $0x20] sm:$0xff]
        %v2078 = vld [vmem:[#allocation9 + $0x28] sm:$0xff]
        %v2079 = vld [vmem:[#allocation9 + $0x30] sm:$0xff]
        %v2080 = vld [vmem:[#allocation9 + $0x38] sm:$0xff]
        %v2081 = vld [vmem:[#allocation9 + $0x40] sm:$0xff]
        %v2082 = vld [vmem:[#allocation9 + $0x48] sm:$0xff]
        %v2083 = vld [vmem:[#allocation9 + $0x50] sm:$0xff]
        %v2084 = vld [vmem:[#allocation9 + $0x58] sm:$0xff]
        %v2085 = vld [vmem:[#allocation9 + $0x60] sm:$0xff]
        %v2086 = vld [vmem:[#allocation9 + $0x68] sm:$0xff]
        %v2087 = vld [vmem:[#allocation9 + $0x70] sm:$0xff]
        %v2088 = vld [vmem:[#allocation9 + $0x78] sm:$0xff]
        %v2089 = vld [vmem:[%s9] sm:$0xff]
        %v2090 = vld [vmem:[%s9 + $0x8] sm:$0xff]
        %v2091 = vld [vmem:[%s9 + $0x10] sm:$0xff]
        %v2092 = vld [vmem:[%s9 + $0x18] sm:$0xff]
        %v2093 = vld [vmem:[%s9 + $0x20] sm:$0xff]
        %v2094 = vld [vmem:[%s9 + $0x28] sm:$0xff]
        %v2095 = vld [vmem:[%s9 + $0x30] sm:$0xff]
        %v2096 = vld [vmem:[%s9 + $0x38] sm:$0xff]
        %v2097 = vld [vmem:[%s9 + $0x40] sm:$0xff]
        %v2098 = vld [vmem:[%s9 + $0x48] sm:$0xff]
        %v2099 = vld [vmem:[%s9 + $0x50] sm:$0xff]
        %v2100 = vld [vmem:[%s9 + $0x58] sm:$0xff]
        %v2101 = vld [vmem:[%s9 + $0x60] sm:$0xff]
        %v2102 = vld [vmem:[%s9 + $0x68] sm:$0xff]
        %v2103 = vld [vmem:[%s9 + $0x70] sm:$0xff]
        %v2104 = vld [vmem:[%s9 + $0x78] sm:$0xff]
        %2105 = vmatprep.subr.mxu0 0.0
        %2106 = vmatpush1.msra.mxu0 %v2057
        %2107 = vmatprep.subr.mxu0 0.0
        %2108 = vmatpush1.msra.mxu0 %v2058
        %2109 = vmatprep.subr.mxu0 0.0
        %2110 = vmatpush1.msra.mxu0 %v2059
        %2111 = vmatprep.subr.mxu0 0.0
        %2112 = vmatpush1.msra.mxu0 %v2060
        %2113 = vmatprep.subr.mxu0 0.0
        %2114 = vmatpush1.msra.mxu0 %v2061
        %2115 = vmatprep.subr.mxu0 0.0
        %2116 = vmatpush1.msra.mxu0 %v2062
        %2117 = vmatprep.subr.mxu0 0.0
        %2118 = vmatpush1.msra.mxu0 %v2063
        %2119 = vmatprep.subr.mxu0 0.0
        %2120 = vmatpush1.msra.mxu0 %v2064
        %2121 = vmatprep.subr.mxu0 0.0
        %2122 = vmatpush1.msra.mxu0 %v2065
        %2123 = vmatprep.subr.mxu0 0.0
        %2124 = vmatpush1.msra.mxu0 %v2066
        %2125 = vmatprep.subr.mxu0 0.0
        %2126 = vmatpush1.msra.mxu0 %v2067
        %2127 = vmatprep.subr.mxu0 0.0
        %2128 = vmatpush1.msra.mxu0 %v2068
        %2129 = vmatprep.subr.mxu0 0.0
        %2130 = vmatpush1.msra.mxu0 %v2069
        %2131 = vmatprep.subr.mxu0 0.0
        %2132 = vmatpush1.msra.mxu0 %v2070
        %2133 = vmatprep.subr.mxu0 0.0
        %2134 = vmatpush1.msra.mxu0 %v2071
        %2135 = vmatprep.subr.mxu0 0.0
        %2136 = vmatpush1.msra.mxu0 %v2072
        %2137 = vmatprep.subr.mxu0 0.0
        %2138 = vmatpush1.msra.mxu0 0.0
        %2139 = vmatprep.subr.mxu0 0.0
        %2140 = vmatpush1.msra.mxu0 0.0
        %2141 = vmatprep.subr.mxu0 0.0
        %2142 = vmatpush1.msra.mxu0 0.0
        %2143 = vmatprep.subr.mxu0 0.0
        %2144 = vmatpush1.msra.mxu0 0.0
        %2145 = vmatprep.subr.mxu0 0.0
        %2146 = vmatpush1.msra.mxu0 0.0
        %2147 = vmatprep.subr.mxu0 0.0
        %2148 = vmatpush1.msra.mxu0 0.0
        %2149 = vmatprep.subr.mxu0 0.0
        %2150 = vmatpush1.msra.mxu0 0.0
        %2151 = vmatprep.subr.mxu0 0.0
        %2152 = vmatpush1.msra.mxu0 0.0
        %2153 = vmatprep.subr.mxu0 0.0
        %2154 = vmatpush1.msra.mxu0 0.0
        %2155 = vmatprep.subr.mxu0 0.0
        %2156 = vmatpush1.msra.mxu0 0.0
        %2157 = vmatprep.subr.mxu0 0.0
        %2158 = vmatpush1.msra.mxu0 0.0
        %2159 = vmatprep.subr.mxu0 0.0
        %2160 = vmatpush1.msra.mxu0 0.0
        %2161 = vmatprep.subr.mxu0 0.0
        %2162 = vmatpush1.msra.mxu0 0.0
        %2163 = vmatprep.subr.mxu0 0.0
        %2164 = vmatpush1.msra.mxu0 0.0
        %2165 = vmatprep.subr.mxu0 0.0
        %2166 = vmatpush1.msra.mxu0 0.0
        %2167 = vmatprep.subr.mxu0 0.0
        %2168 = vmatpush1.msra.mxu0 0.0
        %2169 = vmatprep.mubr.f32.mxu0 0.0
        %2170 = vmatmul.mubr.f32.gmra.mrb[0].mxu0 %v2073
        %v2171 = vpop.f32.mrb[0].mxu0
        %v2172 = vadd.f32 %v2089, %v2171
        %v2173 = vpop.f32.mrb[0].mxu0
        %2174 = vmatprep.mubr.f32.mxu0 0.0
        %2175 = vmatmul.mubr.f32.gmra.mrb[0].mxu0 %v2074
        %v2176 = vpop.f32.mrb[0].mxu0
        %v2177 = vadd.f32 %v2090, %v2176
        %v2178 = vpop.f32.mrb[0].mxu0
        %2179 = vmatprep.mubr.f32.mxu0 0.0
        %2180 = vmatmul.mubr.f32.gmra.mrb[0].mxu0 %v2075
        %v2181 = vpop.f32.mrb[0].mxu0
        %v2182 = vadd.f32 %v2091, %v2181
        %v2183 = vpop.f32.mrb[0].mxu0
        %2184 = vmatprep.mubr.f32.mxu0 0.0
        %2185 = vmatmul.mubr.f32.gmra.mrb[0].mxu0 %v2076
        %v2186 = vpop.f32.mrb[0].mxu0
        %v2187 = vadd.f32 %v2092, %v2186
        %v2188 = vpop.f32.mrb[0].mxu0
        %2189 = vmatprep.mubr.f32.mxu0 0.0
        %2190 = vmatmul.mubr.f32.gmra.mrb[0].mxu0 %v2077
        %v2191 = vpop.f32.mrb[0].mxu0
        %v2192 = vadd.f32 %v2093, %v2191
        %v2193 = vpop.f32.mrb[0].mxu0
        %2194 = vmatprep.mubr.f32.mxu0 0.0
        %2195 = vmatmul.mubr.f32.gmra.mrb[0].mxu0 %v2078
        %v2196 = vpop.f32.mrb[0].mxu0
        %v2197 = vadd.f32 %v2094, %v2196
        %v2198 = vpop.f32.mrb[0].mxu0
        %2199 = vmatprep.mubr.f32.mxu0 0.0
        %2200 = vmatmul.mubr.f32.gmra.mrb[0].mxu0 %v2079
        %v2201 = vpop.f32.mrb[0].mxu0
        %v2202 = vadd.f32 %v2095, %v2201
        %v2203 = vpop.f32.mrb[0].mxu0
        %2204 = vmatprep.mubr.f32.mxu0 0.0
        %2205 = vmatmul.mubr.f32.gmra.mrb[0].mxu0 %v2080
        %v2206 = vpop.f32.mrb[0].mxu0
        %v2207 = vadd.f32 %v2096, %v2206
        %v2208 = vpop.f32.mrb[0].mxu0
        %2209 = vmatprep.mubr.f32.mxu0 0.0
        %2210 = vmatmul.mubr.f32.gmra.mrb[0].mxu0 %v2081
        %v2211 = vpop.f32.mrb[0].mxu0
        %v2212 = vadd.f32 %v2097, %v2211
        %v2213 = vpop.f32.mrb[0].mxu0
        %2214 = vmatprep.mubr.f32.mxu0 0.0
        %2215 = vmatmul.mubr.f32.gmra.mrb[0].mxu0 %v2082
        %v2216 = vpop.f32.mrb[0].mxu0
        %v2217 = vadd.f32 %v2098, %v2216
        %v2218 = vpop.f32.mrb[0].mxu0
        %2219 = vmatprep.mubr.f32.mxu0 0.0
        %2220 = vmatmul.mubr.f32.gmra.mrb[0].mxu0 %v2083
        %v2221 = vpop.f32.mrb[0].mxu0
        %v2222 = vadd.f32 %v2099, %v2221
        %v2223 = vpop.f32.mrb[0].mxu0
        %2224 = vmatprep.mubr.f32.mxu0 0.0
        %2225 = vmatmul.mubr.f32.gmra.mrb[0].mxu0 %v2084
        %v2226 = vpop.f32.mrb[0].mxu0
        %v2227 = vadd.f32 %v2100, %v2226
        %v2228 = vpop.f32.mrb[0].mxu0
        %2229 = vmatprep.mubr.f32.mxu0 0.0
        %2230 = vmatmul.mubr.f32.gmra.mrb[0].mxu0 %v2085
        %v2231 = vpop.f32.mrb[0].mxu0
        %v2232 = vadd.f32 %v2101, %v2231
        %v2233 = vpop.f32.mrb[0].mxu0
        %2234 = vmatprep.mubr.f32.mxu0 0.0
        %2235 = vmatmul.mubr.f32.gmra.mrb[0].mxu0 %v2086
        %v2236 = vpop.f32.mrb[0].mxu0
        %v2237 = vadd.f32 %v2102, %v2236
        %v2238 = vpop.f32.mrb[0].mxu0
        %2239 = vmatprep.mubr.f32.mxu0 0.0
        %2240 = vmatmul.mubr.f32.gmra.mrb[0].mxu0 %v2087
        %v2241 = vpop.f32.mrb[0].mxu0
        %v2242 = vadd.f32 %v2103, %v2241
        %v2243 = vpop.f32.mrb[0].mxu0
        %2244 = vmatprep.mubr.f32.mxu0 0.0
        %2245 = vmatmul.mubr.f32.gmra.mrb[0].mxu0 %v2088
        %v2246 = vpop.f32.mrb[0].mxu0
        %v2247 = vadd.f32 %v2104, %v2246
        %v2248 = vpop.f32.mrb[0].mxu0
        %2249 = vdwg.mxu0
        %v2250 = vmax.f32 %v2172, 0.0
        %v2251 = vmax.f32 %v2177, 0.0
        %v2252 = vmax.f32 %v2182, 0.0
        %v2253 = vmax.f32 %v2187, 0.0
        %v2254 = vmax.f32 %v2192, 0.0
        %v2255 = vmax.f32 %v2197, 0.0
        %v2256 = vmax.f32 %v2202, 0.0
        %v2257 = vmax.f32 %v2207, 0.0
        %v2258 = vmax.f32 %v2212, 0.0
        %v2259 = vmax.f32 %v2217, 0.0
        %v2260 = vmax.f32 %v2222, 0.0
        %v2261 = vmax.f32 %v2227, 0.0
        %v2262 = vmax.f32 %v2232, 0.0
        %v2263 = vmax.f32 %v2237, 0.0
        %v2264 = vmax.f32 %v2242, 0.0
        %v2265 = vmax.f32 %v2247, 0.0
        %v2266 = vld [vmem:[#allocation10] sm:$0xff]
        %v2267 = vld [vmem:[#allocation10 + $0x8] sm:$0xff]
        %v2268 = vld [vmem:[#allocation10 + $0x10] sm:$0xff]
        %v2269 = vld [vmem:[#allocation10 + $0x18] sm:$0xff]
        %v2270 = vld [vmem:[#allocation10 + $0x20] sm:$0xff]
        %v2271 = vld [vmem:[#allocation10 + $0x28] sm:$0xff]
        %v2272 = vld [vmem:[#allocation10 + $0x30] sm:$0xff]
        %v2273 = vld [vmem:[#allocation10 + $0x38] sm:$0xff]
        %v2274 = vld [vmem:[#allocation10 + $0x40] sm:$0xff]
        %v2275 = vld [vmem:[#allocation10 + $0x48] sm:$0xff]
        %v2276 = vld [vmem:[#allocation10 + $0x50] sm:$0xff]
        %v2277 = vld [vmem:[#allocation10 + $0x58] sm:$0xff]
        %v2278 = vld [vmem:[#allocation10 + $0x60] sm:$0xff]
        %v2279 = vld [vmem:[#allocation10 + $0x68] sm:$0xff]
        %v2280 = vld [vmem:[#allocation10 + $0x70] sm:$0xff]
        %v2281 = vld [vmem:[#allocation10 + $0x78] sm:$0xff]
        %v2282 = vld [vmem:[%s11] sm:$0xff]
        %v2283 = vld [vmem:[%s11 + $0x8] sm:$0xff]
        %v2284 = vld [vmem:[%s11 + $0x10] sm:$0xff]
        %v2285 = vld [vmem:[%s11 + $0x18] sm:$0xff]
        %v2286 = vld [vmem:[%s11 + $0x20] sm:$0xff]
        %v2287 = vld [vmem:[%s11 + $0x28] sm:$0xff]
        %v2288 = vld [vmem:[%s11 + $0x30] sm:$0xff]
        %v2289 = vld [vmem:[%s11 + $0x38] sm:$0xff]
        %v2290 = vld [vmem:[%s11 + $0x40] sm:$0xff]
        %v2291 = vld [vmem:[%s11 + $0x48] sm:$0xff]
        %v2292 = vld [vmem:[%s11 + $0x50] sm:$0xff]
        %v2293 = vld [vmem:[%s11 + $0x58] sm:$0xff]
        %v2294 = vld [vmem:[%s11 + $0x60] sm:$0xff]
        %v2295 = vld [vmem:[%s11 + $0x68] sm:$0xff]
        %v2296 = vld [vmem:[%s11 + $0x70] sm:$0xff]
        %v2297 = vld [vmem:[%s11 + $0x78] sm:$0xff]
        %2298 = vmatprep.subr.mxu0 0.0
        %2299 = vmatpush1.msra.mxu0 %v2250
        %2300 = vmatprep.subr.mxu0 0.0
        %2301 = vmatpush1.msra.mxu0 %v2251
        %2302 = vmatprep.subr.mxu0 0.0
        %2303 = vmatpush1.msra.mxu0 %v2252
        %2304 = vmatprep.subr.mxu0 0.0
        %2305 = vmatpush1.msra.mxu0 %v2253
        %2306 = vmatprep.subr.mxu0 0.0
        %2307 = vmatpush1.msra.mxu0 %v2254
        %2308 = vmatprep.subr.mxu0 0.0
        %2309 = vmatpush1.msra.mxu0 %v2255
        %2310 = vmatprep.subr.mxu0 0.0
        %2311 = vmatpush1.msra.mxu0 %v2256
        %2312 = vmatprep.subr.mxu0 0.0
        %2313 = vmatpush1.msra.mxu0 %v2257
        %2314 = vmatprep.subr.mxu0 0.0
        %2315 = vmatpush1.msra.mxu0 %v2258
        %2316 = vmatprep.subr.mxu0 0.0
        %2317 = vmatpush1.msra.mxu0 %v2259
        %2318 = vmatprep.subr.mxu0 0.0
        %2319 = vmatpush1.msra.mxu0 %v2260
        %2320 = vmatprep.subr.mxu0 0.0
        %2321 = vmatpush1.msra.mxu0 %v2261
        %2322 = vmatprep.subr.mxu0 0.0
        %2323 = vmatpush1.msra.mxu0 %v2262
        %2324 = vmatprep.subr.mxu0 0.0
        %2325 = vmatpush1.msra.mxu0 %v2263
        %2326 = vmatprep.subr.mxu0 0.0
        %2327 = vmatpush1.msra.mxu0 %v2264
        %2328 = vmatprep.subr.mxu0 0.0
        %2329 = vmatpush1.msra.mxu0 %v2265
        %2330 = vmatprep.subr.mxu0 0.0
        %2331 = vmatpush1.msra.mxu0 0.0
        %2332 = vmatprep.subr.mxu0 0.0
        %2333 = vmatpush1.msra.mxu0 0.0
        %2334 = vmatprep.subr.mxu0 0.0
        %2335 = vmatpush1.msra.mxu0 0.0
        %2336 = vmatprep.subr.mxu0 0.0
        %2337 = vmatpush1.msra.mxu0 0.0
        %2338 = vmatprep.subr.mxu0 0.0
        %2339 = vmatpush1.msra.mxu0 0.0
        %2340 = vmatprep.subr.mxu0 0.0
        %2341 = vmatpush1.msra.mxu0 0.0
        %2342 = vmatprep.subr.mxu0 0.0
        %2343 = vmatpush1.msra.mxu0 0.0
        %2344 = vmatprep.subr.mxu0 0.0
        %2345 = vmatpush1.msra.mxu0 0.0
        %2346 = vmatprep.subr.mxu0 0.0
        %2347 = vmatpush1.msra.mxu0 0.0
        %2348 = vmatprep.subr.mxu0 0.0
        %2349 = vmatpush1.msra.mxu0 0.0
        %2350 = vmatprep.subr.mxu0 0.0
        %2351 = vmatpush1.msra.mxu0 0.0
        %2352 = vmatprep.subr.mxu0 0.0
        %2353 = vmatpush1.msra.mxu0 0.0
        %2354 = vmatprep.subr.mxu0 0.0
        %2355 = vmatpush1.msra.mxu0 0.0
        %2356 = vmatprep.subr.mxu0 0.0
        %2357 = vmatpush1.msra.mxu0 0.0
        %2358 = vmatprep.subr.mxu0 0.0
        %2359 = vmatpush1.msra.mxu0 0.0
        %2360 = vmatprep.subr.mxu0 0.0
        %2361 = vmatpush1.msra.mxu0 0.0
        %2362 = vmatprep.mubr.f32.mxu0 0.0
        %2363 = vmatmul.mubr.f32.gmra.mrb[0].mxu0 %v2266
        %v2364 = vpop.f32.mrb[0].mxu0
        %v2365 = vadd.f32 %v2282, %v2364
        %v2366 = vpop.f32.mrb[0].mxu0
        %2367 = vmatprep.mubr.f32.mxu0 0.0
        %2368 = vmatmul.mubr.f32.gmra.mrb[0].mxu0 %v2267
        %v2369 = vpop.f32.mrb[0].mxu0
        %v2370 = vadd.f32 %v2283, %v2369
        %v2371 = vpop.f32.mrb[0].mxu0
        %2372 = vmatprep.mubr.f32.mxu0 0.0
        %2373 = vmatmul.mubr.f32.gmra.mrb[0].mxu0 %v2268
        %v2374 = vpop.f32.mrb[0].mxu0
        %v2375 = vadd.f32 %v2284, %v2374
        %v2376 = vpop.f32.mrb[0].mxu0
        %2377 = vmatprep.mubr.f32.mxu0 0.0
        %2378 = vmatmul.mubr.f32.gmra.mrb[0].mxu0 %v2269
        %v2379 = vpop.f32.mrb[0].mxu0
        %v2380 = vadd.f32 %v2285, %v2379
        %v2381 = vpop.f32.mrb[0].mxu0
        %2382 = vmatprep.mubr.f32.mxu0 0.0
        %2383 = vmatmul.mubr.f32.gmra.mrb[0].mxu0 %v2270
        %v2384 = vpop.f32.mrb[0].mxu0
        %v2385 = vadd.f32 %v2286, %v2384
        %v2386 = vpop.f32.mrb[0].mxu0
        %2387 = vmatprep.mubr.f32.mxu0 0.0
        %2388 = vmatmul.mubr.f32.gmra.mrb[0].mxu0 %v2271
        %v2389 = vpop.f32.mrb[0].mxu0
        %v2390 = vadd.f32 %v2287, %v2389
        %v2391 = vpop.f32.mrb[0].mxu0
        %2392 = vmatprep.mubr.f32.mxu0 0.0
        %2393 = vmatmul.mubr.f32.gmra.mrb[0].mxu0 %v2272
        %v2394 = vpop.f32.mrb[0].mxu0
        %v2395 = vadd.f32 %v2288, %v2394
        %v2396 = vpop.f32.mrb[0].mxu0
        %2397 = vmatprep.mubr.f32.mxu0 0.0
        %2398 = vmatmul.mubr.f32.gmra.mrb[0].mxu0 %v2273
        %v2399 = vpop.f32.mrb[0].mxu0
        %v2400 = vadd.f32 %v2289, %v2399
        %v2401 = vpop.f32.mrb[0].mxu0
        %2402 = vmatprep.mubr.f32.mxu0 0.0
        %2403 = vmatmul.mubr.f32.gmra.mrb[0].mxu0 %v2274
        %v2404 = vpop.f32.mrb[0].mxu0
        %v2405 = vadd.f32 %v2290, %v2404
        %v2406 = vpop.f32.mrb[0].mxu0
        %2407 = vmatprep.mubr.f32.mxu0 0.0
        %2408 = vmatmul.mubr.f32.gmra.mrb[0].mxu0 %v2275
        %v2409 = vpop.f32.mrb[0].mxu0
        %v2410 = vadd.f32 %v2291, %v2409
        %v2411 = vpop.f32.mrb[0].mxu0
        %2412 = vmatprep.mubr.f32.mxu0 0.0
        %2413 = vmatmul.mubr.f32.gmra.mrb[0].mxu0 %v2276
        %v2414 = vpop.f32.mrb[0].mxu0
        %v2415 = vadd.f32 %v2292, %v2414
        %v2416 = vpop.f32.mrb[0].mxu0
        %2417 = vmatprep.mubr.f32.mxu0 0.0
        %2418 = vmatmul.mubr.f32.gmra.mrb[0].mxu0 %v2277
        %v2419 = vpop.f32.mrb[0].mxu0
        %v2420 = vadd.f32 %v2293, %v2419
        %v2421 = vpop.f32.mrb[0].mxu0
        %2422 = vmatprep.mubr.f32.mxu0 0.0
        %2423 = vmatmul.mubr.f32.gmra.mrb[0].mxu0 %v2278
        %v2424 = vpop.f32.mrb[0].mxu0
        %v2425 = vadd.f32 %v2294, %v2424
        %v2426 = vpop.f32.mrb[0].mxu0
        %2427 = vmatprep.mubr.f32.mxu0 0.0
        %2428 = vmatmul.mubr.f32.gmra.mrb[0].mxu0 %v2279
        %v2429 = vpop.f32.mrb[0].mxu0
        %v2430 = vadd.f32 %v2295, %v2429
        %v2431 = vpop.f32.mrb[0].mxu0
        %2432 = vmatprep.mubr.f32.mxu0 0.0
        %2433 = vmatmul.mubr.f32.gmra.mrb[0].mxu0 %v2280
        %v2434 = vpop.f32.mrb[0].mxu0
        %v2435 = vadd.f32 %v2296, %v2434
        %v2436 = vpop.f32.mrb[0].mxu0
        %2437 = vmatprep.mubr.f32.mxu0 0.0
        %2438 = vmatmul.mubr.f32.gmra.mrb[0].mxu0 %v2281
        %v2439 = vpop.f32.mrb[0].mxu0
        %v2440 = vadd.f32 %v2297, %v2439
        %v2441 = vpop.f32.mrb[0].mxu0
        %2442 = vdwg.mxu0
        %v2443 = vsub.f32 0.0, %v2365
        %v2444 = vsub.f32 0.0, %v2370
        %v2445 = vsub.f32 0.0, %v2375
        %v2446 = vsub.f32 0.0, %v2380
        %v2447 = vsub.f32 0.0, %v2385
        %v2448 = vsub.f32 0.0, %v2390
        %v2449 = vsub.f32 0.0, %v2395
        %v2450 = vsub.f32 0.0, %v2400
        %v2451 = vsub.f32 0.0, %v2405
        %v2452 = vsub.f32 0.0, %v2410
        %v2453 = vsub.f32 0.0, %v2415
        %v2454 = vsub.f32 0.0, %v2420
        %v2455 = vsub.f32 0.0, %v2425
        %v2456 = vsub.f32 0.0, %v2430
        %v2457 = vsub.f32 0.0, %v2435
        %v2458 = vsub.f32 0.0, %v2440
        %v2459 = vmul.f32 %v2443, 1.442695
        %v2460 = vpow.pop %v2459
        %v2461 = vmul.f32 %v2444, 1.442695
        %v2462 = vpow.pop %v2461
        %v2463 = vmul.f32 %v2445, 1.442695
        %v2464 = vpow.pop %v2463
        %v2465 = vmul.f32 %v2446, 1.442695
        %v2466 = vpow.pop %v2465
        %v2467 = vmul.f32 %v2447, 1.442695
        %v2468 = vpow.pop %v2467
        %v2469 = vmul.f32 %v2448, 1.442695
        %v2470 = vpow.pop %v2469
        %v2471 = vmul.f32 %v2449, 1.442695
        %v2472 = vpow.pop %v2471
        %v2473 = vmul.f32 %v2450, 1.442695
        %v2474 = vpow.pop %v2473
        %v2475 = vmul.f32 %v2451, 1.442695
        %v2476 = vpow.pop %v2475
        %v2477 = vmul.f32 %v2452, 1.442695
        %v2478 = vpow.pop %v2477
        %v2479 = vmul.f32 %v2453, 1.442695
        %v2480 = vpow.pop %v2479
        %v2481 = vmul.f32 %v2454, 1.442695
        %v2482 = vpow.pop %v2481
        %v2483 = vmul.f32 %v2455, 1.442695
        %v2484 = vpow.pop %v2483
        %v2485 = vmul.f32 %v2456, 1.442695
        %v2486 = vpow.pop %v2485
        %v2487 = vmul.f32 %v2457, 1.442695
        %v2488 = vpow.pop %v2487
        %v2489 = vmul.f32 %v2458, 1.442695
        %v2490 = vpow.pop %v2489
        %v2491 = vadd.f32 %v2460, 1.0
        %v2492 = vadd.f32 %v2462, 1.0
        %v2493 = vadd.f32 %v2464, 1.0
        %v2494 = vadd.f32 %v2466, 1.0
        %v2495 = vadd.f32 %v2468, 1.0
        %v2496 = vadd.f32 %v2470, 1.0
        %v2497 = vadd.f32 %v2472, 1.0
        %v2498 = vadd.f32 %v2474, 1.0
        %v2499 = vadd.f32 %v2476, 1.0
        %v2500 = vadd.f32 %v2478, 1.0
        %v2501 = vadd.f32 %v2480, 1.0
        %v2502 = vadd.f32 %v2482, 1.0
        %v2503 = vadd.f32 %v2484, 1.0
        %v2504 = vadd.f32 %v2486, 1.0
        %v2505 = vadd.f32 %v2488, 1.0
        %v2506 = vadd.f32 %v2490, 1.0
        %v2507 = vrcp.pop %v2491
        %v2508 = vrcp.pop %v2492
        %v2509 = vrcp.pop %v2493
        %v2510 = vrcp.pop %v2494
        %v2511 = vrcp.pop %v2495
        %v2512 = vrcp.pop %v2496
        %v2513 = vrcp.pop %v2497
        %v2514 = vrcp.pop %v2498
        %v2515 = vrcp.pop %v2499
        %v2516 = vrcp.pop %v2500
        %v2517 = vrcp.pop %v2501
        %v2518 = vrcp.pop %v2502
        %v2519 = vrcp.pop %v2503
        %v2520 = vrcp.pop %v2504
        %v2521 = vrcp.pop %v2505
        %v2522 = vrcp.pop %v2506
        %2524 = vset.pattern.permute.xlu0 0
        %2525 = vperm.xlu0 %2524, %v2507
        %v2526 = vpop.permute.xlu0 %2525
        %2529 = vset.pattern.permute.xlu0 0
        %2530 = vperm.xlu0 %2529, %v2508
        %v2531 = vpop.permute.xlu0 %2530
        %2534 = vset.pattern.permute.xlu0 0
        %2535 = vperm.xlu0 %2534, %v2509
        %v2536 = vpop.permute.xlu0 %2535
        %2539 = vset.pattern.permute.xlu0 0
        %2540 = vperm.xlu0 %2539, %v2510
        %v2541 = vpop.permute.xlu0 %2540
        %2544 = vset.pattern.permute.xlu0 0
        %2545 = vperm.xlu0 %2544, %v2511
        %v2546 = vpop.permute.xlu0 %2545
        %2549 = vset.pattern.permute.xlu0 0
        %2550 = vperm.xlu0 %2549, %v2512
        %v2551 = vpop.permute.xlu0 %2550
        %2554 = vset.pattern.permute.xlu0 0
        %2555 = vperm.xlu0 %2554, %v2513
        %v2556 = vpop.permute.xlu0 %2555
        %2559 = vset.pattern.permute.xlu0 0
        %2560 = vperm.xlu0 %2559, %v2514
        %v2561 = vpop.permute.xlu0 %2560
        %2564 = vset.pattern.permute.xlu0 0
        %2565 = vperm.xlu0 %2564, %v2515
        %v2566 = vpop.permute.xlu0 %2565
        %2569 = vset.pattern.permute.xlu0 0
        %2570 = vperm.xlu0 %2569, %v2516
        %v2571 = vpop.permute.xlu0 %2570
        %2574 = vset.pattern.permute.xlu0 0
        %2575 = vperm.xlu0 %2574, %v2517
        %v2576 = vpop.permute.xlu0 %2575
        %2579 = vset.pattern.permute.xlu0 0
        %2580 = vperm.xlu0 %2579, %v2518
        %v2581 = vpop.permute.xlu0 %2580
        %2584 = vset.pattern.permute.xlu0 0
        %2585 = vperm.xlu0 %2584, %v2519
        %v2586 = vpop.permute.xlu0 %2585
        %2589 = vset.pattern.permute.xlu0 0
        %2590 = vperm.xlu0 %2589, %v2520
        %v2591 = vpop.permute.xlu0 %2590
        %2594 = vset.pattern.permute.xlu0 0
        %2595 = vperm.xlu0 %2594, %v2521
        %v2596 = vpop.permute.xlu0 %2595
        %2599 = vset.pattern.permute.xlu0 0
        %2600 = vperm.xlu0 %2599, %v2522
        %v2601 = vpop.permute.xlu0 %2600
        %v2603 = vmul.f32 %v1992, %v2526
        %v2604 = vmul.f32 %v1993, %v2531
        %v2605 = vmul.f32 %v1994, %v2536
        %v2606 = vmul.f32 %v1995, %v2541
        %v2607 = vmul.f32 %v1996, %v2546
        %v2608 = vmul.f32 %v1997, %v2551
        %v2609 = vmul.f32 %v1998, %v2556
        %v2610 = vmul.f32 %v1999, %v2561
        %v2611 = vmul.f32 %v2000, %v2566
        %v2612 = vmul.f32 %v2001, %v2571
        %v2613 = vmul.f32 %v2002, %v2576
        %v2614 = vmul.f32 %v2003, %v2581
        %v2615 = vmul.f32 %v2004, %v2586
        %v2616 = vmul.f32 %v2005, %v2591
        %v2617 = vmul.f32 %v2006, %v2596
        %v2618 = vmul.f32 %v2007, %v2601
        %2619 = vst.msk [vmem:[%s519] sm:$0xff] %vm1402, %v2603
        %2620 = vst.msk [vmem:[%s519 + $0x8] sm:$0xff] %vm1402, %v2604
        %2621 = vst.msk [vmem:[%s519 + $0x10] sm:$0xff] %vm1402, %v2605
        %2622 = vst.msk [vmem:[%s519 + $0x18] sm:$0xff] %vm1402, %v2606
        %2623 = vst.msk [vmem:[%s519 + $0x20] sm:$0xff] %vm1402, %v2607
        %2624 = vst.msk [vmem:[%s519 + $0x28] sm:$0xff] %vm1402, %v2608
        %2625 = vst.msk [vmem:[%s519 + $0x30] sm:$0xff] %vm1402, %v2609
        %2626 = vst.msk [vmem:[%s519 + $0x38] sm:$0xff] %vm1402, %v2610
        %2627 = vst.msk [vmem:[%s519 + $0x40] sm:$0xff] %vm1402, %v2611
        %2628 = vst.msk [vmem:[%s519 + $0x48] sm:$0xff] %vm1402, %v2612
        %2629 = vst.msk [vmem:[%s519 + $0x50] sm:$0xff] %vm1402, %v2613
        %2630 = vst.msk [vmem:[%s519 + $0x58] sm:$0xff] %vm1402, %v2614
        %2631 = vst.msk [vmem:[%s519 + $0x60] sm:$0xff] %vm1402, %v2615
        %2632 = vst.msk [vmem:[%s519 + $0x68] sm:$0xff] %vm1402, %v2616
        %2633 = vst.msk [vmem:[%s519 + $0x70] sm:$0xff] %vm1402, %v2617
        %2634 = vst.msk [vmem:[%s519 + $0x78] sm:$0xff] %vm1402, %v2618
        %s2635 = sadd.s32 %s1357, 1
        %s2636 = sld [smem:[#allocation3 + %s2635]]
        %s2637 = scvt.s32.f32 %s2636
        %s2638 = sld [smem:[#allocation4 + %s2635]]
        %s2639 = scvt.s32.f32 %s2638
        %2640 = vmatprep.subr.bf16.mxu0 0
        %2641 = vmatpush1.bf16.msra.mxu0 %v675
        %2642 = vmatprep.subr.bf16.mxu0 0
        %2643 = vmatpush1.bf16.msra.mxu0 %v676
        %2644 = vmatprep.subr.bf16.mxu0 0
        %2645 = vmatpush1.bf16.msra.mxu0 %v677
        %2646 = vmatprep.subr.bf16.mxu0 0
        %2647 = vmatpush1.bf16.msra.mxu0 %v678
        %2648 = vmatprep.subr.bf16.mxu0 0
        %2649 = vmatpush1.bf16.msra.mxu0 0
        %2650 = vmatprep.subr.bf16.mxu0 0
        %2651 = vmatpush1.bf16.msra.mxu0 0
        %2652 = vmatprep.subr.bf16.mxu0 0
        %2653 = vmatpush1.bf16.msra.mxu0 0
        %2654 = vmatprep.subr.bf16.mxu0 0
        %2655 = vmatpush1.bf16.msra.mxu0 0
        %2656 = vmatprep.subr.bf16.mxu0 0
        %2657 = vmatpush1.bf16.msra.mxu0 0
        %2658 = vmatprep.subr.bf16.mxu0 0
        %2659 = vmatpush1.bf16.msra.mxu0 0
        %2660 = vmatprep.subr.bf16.mxu0 0
        %2661 = vmatpush1.bf16.msra.mxu0 0
        %2662 = vmatprep.subr.bf16.mxu0 0
        %2663 = vmatpush1.bf16.msra.mxu0 0
        %2664 = vmatprep.subr.bf16.mxu0 0
        %2665 = vmatpush1.bf16.msra.mxu0 0
        %2666 = vmatprep.subr.bf16.mxu0 0
        %2667 = vmatpush1.bf16.msra.mxu0 0
        %2668 = vmatprep.subr.bf16.mxu0 0
        %2669 = vmatpush1.bf16.msra.mxu0 0
        %2670 = vmatprep.subr.bf16.mxu0 0
        %2671 = vmatpush1.bf16.msra.mxu0 0
        %2672 = vmatprep.mubr.bf16.mxu0 0
        %2673 = vmatmul.mubr.bf16.gmra.mrb[0].mxu0 %v1404
        %v2674 = vpop.f32.mrb[0].mxu0
        %v2675 = vadd.f32 0.0, %v2674
        %v2676 = vpop.f32.mrb[0].mxu0
        %v2677 = vpop.f32.mrb[0].mxu0
        %v2678 = vadd.f32 0.0, %v2677
        %v2679 = vpop.f32.mrb[0].mxu0
        %2680 = vmatprep.mubr.bf16.mxu0 0
        %2681 = vmatmul.mubr.bf16.gmra.mrb[0].mxu0 %v1407
        %v2682 = vpop.f32.mrb[0].mxu0
        %v2683 = vadd.f32 0.0, %v2682
        %v2684 = vpop.f32.mrb[0].mxu0
        %v2685 = vpop.f32.mrb[0].mxu0
        %v2686 = vadd.f32 0.0, %v2685
        %v2687 = vpop.f32.mrb[0].mxu0
        %2688 = vmatprep.mubr.bf16.mxu0 0
        %2689 = vmatmul.mubr.bf16.gmra.mrb[0].mxu0 %v1410
        %v2690 = vpop.f32.mrb[0].mxu0
        %v2691 = vadd.f32 0.0, %v2690
        %v2692 = vpop.f32.mrb[0].mxu0
        %v2693 = vpop.f32.mrb[0].mxu0
        %v2694 = vadd.f32 0.0, %v2693
        %v2695 = vpop.f32.mrb[0].mxu0
        %2696 = vmatprep.mubr.bf16.mxu0 0
        %2697 = vmatmul.mubr.bf16.gmra.mrb[0].mxu0 %v1413
        %v2698 = vpop.f32.mrb[0].mxu0
        %v2699 = vadd.f32 0.0, %v2698
        %v2700 = vpop.f32.mrb[0].mxu0
        %v2701 = vpop.f32.mrb[0].mxu0
        %v2702 = vadd.f32 0.0, %v2701
        %v2703 = vpop.f32.mrb[0].mxu0
        %2704 = vmatprep.mubr.bf16.mxu0 0
        %2705 = vmatmul.mubr.bf16.gmra.mrb[0].mxu0 %v1416
        %v2706 = vpop.f32.mrb[0].mxu0
        %v2707 = vadd.f32 0.0, %v2706
        %v2708 = vpop.f32.mrb[0].mxu0
        %v2709 = vpop.f32.mrb[0].mxu0
        %v2710 = vadd.f32 0.0, %v2709
        %v2711 = vpop.f32.mrb[0].mxu0
        %2712 = vmatprep.mubr.bf16.mxu0 0
        %2713 = vmatmul.mubr.bf16.gmra.mrb[0].mxu0 %v1419
        %v2714 = vpop.f32.mrb[0].mxu0
        %v2715 = vadd.f32 0.0, %v2714
        %v2716 = vpop.f32.mrb[0].mxu0
        %v2717 = vpop.f32.mrb[0].mxu0
        %v2718 = vadd.f32 0.0, %v2717
        %v2719 = vpop.f32.mrb[0].mxu0
        %2720 = vmatprep.mubr.bf16.mxu0 0
        %2721 = vmatmul.mubr.bf16.gmra.mrb[0].mxu0 %v1422
        %v2722 = vpop.f32.mrb[0].mxu0
        %v2723 = vadd.f32 0.0, %v2722
        %v2724 = vpop.f32.mrb[0].mxu0
        %v2725 = vpop.f32.mrb[0].mxu0
        %v2726 = vadd.f32 0.0, %v2725
        %v2727 = vpop.f32.mrb[0].mxu0
        %2728 = vmatprep.mubr.bf16.mxu0 0
        %2729 = vmatmul.mubr.bf16.gmra.mrb[0].mxu0 %v1425
        %v2730 = vpop.f32.mrb[0].mxu0
        %v2731 = vadd.f32 0.0, %v2730
        %v2732 = vpop.f32.mrb[0].mxu0
        %v2733 = vpop.f32.mrb[0].mxu0
        %v2734 = vadd.f32 0.0, %v2733
        %v2735 = vpop.f32.mrb[0].mxu0
        %2736 = vdwg.mxu0
        %v2737 = vstv %s2637
        %v2738 = vmul.f32 %v2737, %v2675
        %v2739 = vmul.f32 %v2737, %v2678
        %v2740 = vmul.f32 %v2737, %v2683
        %v2741 = vmul.f32 %v2737, %v2686
        %v2742 = vmul.f32 %v2737, %v2691
        %v2743 = vmul.f32 %v2737, %v2694
        %v2744 = vmul.f32 %v2737, %v2699
        %v2745 = vmul.f32 %v2737, %v2702
        %v2746 = vmul.f32 %v2737, %v2707
        %v2747 = vmul.f32 %v2737, %v2710
        %v2748 = vmul.f32 %v2737, %v2715
        %v2749 = vmul.f32 %v2737, %v2718
        %v2750 = vmul.f32 %v2737, %v2723
        %v2751 = vmul.f32 %v2737, %v2726
        %v2752 = vmul.f32 %v2737, %v2731
        %v2753 = vmul.f32 %v2737, %v2734
        %2754 = vmatprep.subr.bf16.mxu0 0
        %2755 = vmatpush1.bf16.msra.mxu0 %v801
        %2756 = vmatprep.subr.bf16.mxu0 0
        %2757 = vmatpush1.bf16.msra.mxu0 %v802
        %2758 = vmatprep.subr.bf16.mxu0 0
        %2759 = vmatpush1.bf16.msra.mxu0 %v803
        %2760 = vmatprep.subr.bf16.mxu0 0
        %2761 = vmatpush1.bf16.msra.mxu0 %v804
        %2762 = vmatprep.subr.bf16.mxu0 0
        %2763 = vmatpush1.bf16.msra.mxu0 0
        %2764 = vmatprep.subr.bf16.mxu0 0
        %2765 = vmatpush1.bf16.msra.mxu0 0
        %2766 = vmatprep.subr.bf16.mxu0 0
        %2767 = vmatpush1.bf16.msra.mxu0 0
        %2768 = vmatprep.subr.bf16.mxu0 0
        %2769 = vmatpush1.bf16.msra.mxu0 0
        %2770 = vmatprep.subr.bf16.mxu0 0
        %2771 = vmatpush1.bf16.msra.mxu0 0
        %2772 = vmatprep.subr.bf16.mxu0 0
        %2773 = vmatpush1.bf16.msra.mxu0 0
        %2774 = vmatprep.subr.bf16.mxu0 0
        %2775 = vmatpush1.bf16.msra.mxu0 0
        %2776 = vmatprep.subr.bf16.mxu0 0
        %2777 = vmatpush1.bf16.msra.mxu0 0
        %2778 = vmatprep.subr.bf16.mxu0 0
        %2779 = vmatpush1.bf16.msra.mxu0 0
        %2780 = vmatprep.subr.bf16.mxu0 0
        %2781 = vmatpush1.bf16.msra.mxu0 0
        %2782 = vmatprep.subr.bf16.mxu0 0
        %2783 = vmatpush1.bf16.msra.mxu0 0
        %2784 = vmatprep.subr.bf16.mxu0 0
        %2785 = vmatpush1.bf16.msra.mxu0 0
        %2786 = vmatprep.mubr.bf16.mxu0 0
        %2787 = vmatmul.mubr.bf16.gmra.mrb[0].mxu0 %v1582
        %v2788 = vpop.f32.mrb[0].mxu0
        %v2789 = vadd.f32 %v2738, %v2788
        %v2790 = vpop.f32.mrb[0].mxu0
        %v2791 = vpop.f32.mrb[0].mxu0
        %v2792 = vadd.f32 %v2739, %v2791
        %v2793 = vpop.f32.mrb[0].mxu0
        %2794 = vmatprep.mubr.bf16.mxu0 0
        %2795 = vmatmul.mubr.bf16.gmra.mrb[0].mxu0 %v1585
        %v2796 = vpop.f32.mrb[0].mxu0
        %v2797 = vadd.f32 %v2740, %v2796
        %v2798 = vpop.f32.mrb[0].mxu0
        %v2799 = vpop.f32.mrb[0].mxu0
        %v2800 = vadd.f32 %v2741, %v2799
        %v2801 = vpop.f32.mrb[0].mxu0
        %2802 = vmatprep.mubr.bf16.mxu0 0
        %2803 = vmatmul.mubr.bf16.gmra.mrb[0].mxu0 %v1588
        %v2804 = vpop.f32.mrb[0].mxu0
        %v2805 = vadd.f32 %v2742, %v2804
        %v2806 = vpop.f32.mrb[0].mxu0
        %v2807 = vpop.f32.mrb[0].mxu0
        %v2808 = vadd.f32 %v2743, %v2807
        %v2809 = vpop.f32.mrb[0].mxu0
        %2810 = vmatprep.mubr.bf16.mxu0 0
        %2811 = vmatmul.mubr.bf16.gmra.mrb[0].mxu0 %v1591
        %v2812 = vpop.f32.mrb[0].mxu0
        %v2813 = vadd.f32 %v2744, %v2812
        %v2814 = vpop.f32.mrb[0].mxu0
        %v2815 = vpop.f32.mrb[0].mxu0
        %v2816 = vadd.f32 %v2745, %v2815
        %v2817 = vpop.f32.mrb[0].mxu0
        %2818 = vmatprep.mubr.bf16.mxu0 0
        %2819 = vmatmul.mubr.bf16.gmra.mrb[0].mxu0 %v1594
        %v2820 = vpop.f32.mrb[0].mxu0
        %v2821 = vadd.f32 %v2746, %v2820
        %v2822 = vpop.f32.mrb[0].mxu0
        %v2823 = vpop.f32.mrb[0].mxu0
        %v2824 = vadd.f32 %v2747, %v2823
        %v2825 = vpop.f32.mrb[0].mxu0
        %2826 = vmatprep.mubr.bf16.mxu0 0
        %2827 = vmatmul.mubr.bf16.gmra.mrb[0].mxu0 %v1597
        %v2828 = vpop.f32.mrb[0].mxu0
        %v2829 = vadd.f32 %v2748, %v2828
        %v2830 = vpop.f32.mrb[0].mxu0
        %v2831 = vpop.f32.mrb[0].mxu0
        %v2832 = vadd.f32 %v2749, %v2831
        %v2833 = vpop.f32.mrb[0].mxu0
        %2834 = vmatprep.mubr.bf16.mxu0 0
        %2835 = vmatmul.mubr.bf16.gmra.mrb[0].mxu0 %v1600
        %v2836 = vpop.f32.mrb[0].mxu0
        %v2837 = vadd.f32 %v2750, %v2836
        %v2838 = vpop.f32.mrb[0].mxu0
        %v2839 = vpop.f32.mrb[0].mxu0
        %v2840 = vadd.f32 %v2751, %v2839
        %v2841 = vpop.f32.mrb[0].mxu0
        %2842 = vmatprep.mubr.bf16.mxu0 0
        %2843 = vmatmul.mubr.bf16.gmra.mrb[0].mxu0 %v1603
        %v2844 = vpop.f32.mrb[0].mxu0
        %v2845 = vadd.f32 %v2752, %v2844
        %v2846 = vpop.f32.mrb[0].mxu0
        %v2847 = vpop.f32.mrb[0].mxu0
        %v2848 = vadd.f32 %v2753, %v2847
        %v2849 = vpop.f32.mrb[0].mxu0
        %2850 = vdwg.mxu0
        %2851 = vmatprep.subr.bf16.mxu0 0
        %2852 = vmatpush1.bf16.msra.mxu0 %v927
        %2853 = vmatprep.subr.bf16.mxu0 0
        %2854 = vmatpush1.bf16.msra.mxu0 %v928
        %2855 = vmatprep.subr.bf16.mxu0 0
        %2856 = vmatpush1.bf16.msra.mxu0 %v929
        %2857 = vmatprep.subr.bf16.mxu0 0
        %2858 = vmatpush1.bf16.msra.mxu0 %v930
        %2859 = vmatprep.subr.bf16.mxu0 0
        %2860 = vmatpush1.bf16.msra.mxu0 0
        %2861 = vmatprep.subr.bf16.mxu0 0
        %2862 = vmatpush1.bf16.msra.mxu0 0
        %2863 = vmatprep.subr.bf16.mxu0 0
        %2864 = vmatpush1.bf16.msra.mxu0 0
        %2865 = vmatprep.subr.bf16.mxu0 0
        %2866 = vmatpush1.bf16.msra.mxu0 0
        %2867 = vmatprep.subr.bf16.mxu0 0
        %2868 = vmatpush1.bf16.msra.mxu0 0
        %2869 = vmatprep.subr.bf16.mxu0 0
        %2870 = vmatpush1.bf16.msra.mxu0 0
        %2871 = vmatprep.subr.bf16.mxu0 0
        %2872 = vmatpush1.bf16.msra.mxu0 0
        %2873 = vmatprep.subr.bf16.mxu0 0
        %2874 = vmatpush1.bf16.msra.mxu0 0
        %2875 = vmatprep.subr.bf16.mxu0 0
        %2876 = vmatpush1.bf16.msra.mxu0 0
        %2877 = vmatprep.subr.bf16.mxu0 0
        %2878 = vmatpush1.bf16.msra.mxu0 0
        %2879 = vmatprep.subr.bf16.mxu0 0
        %2880 = vmatpush1.bf16.msra.mxu0 0
        %2881 = vmatprep.subr.bf16.mxu0 0
        %2882 = vmatpush1.bf16.msra.mxu0 0
        %2883 = vmatprep.mubr.bf16.mxu0 0
        %2884 = vmatmul.mubr.bf16.gmra.mrb[0].mxu0 %v1743
        %v2885 = vpop.f32.mrb[0].mxu0
        %v2886 = vadd.f32 0.0, %v2885
        %v2887 = vpop.f32.mrb[0].mxu0
        %v2888 = vpop.f32.mrb[0].mxu0
        %v2889 = vadd.f32 0.0, %v2888
        %v2890 = vpop.f32.mrb[0].mxu0
        %2891 = vmatprep.mubr.bf16.mxu0 0
        %2892 = vmatmul.mubr.bf16.gmra.mrb[0].mxu0 %v1746
        %v2893 = vpop.f32.mrb[0].mxu0
        %v2894 = vadd.f32 0.0, %v2893
        %v2895 = vpop.f32.mrb[0].mxu0
        %v2896 = vpop.f32.mrb[0].mxu0
        %v2897 = vadd.f32 0.0, %v2896
        %v2898 = vpop.f32.mrb[0].mxu0
        %2899 = vmatprep.mubr.bf16.mxu0 0
        %2900 = vmatmul.mubr.bf16.gmra.mrb[0].mxu0 %v1749
        %v2901 = vpop.f32.mrb[0].mxu0
        %v2902 = vadd.f32 0.0, %v2901
        %v2903 = vpop.f32.mrb[0].mxu0
        %v2904 = vpop.f32.mrb[0].mxu0
        %v2905 = vadd.f32 0.0, %v2904
        %v2906 = vpop.f32.mrb[0].mxu0
        %2907 = vmatprep.mubr.bf16.mxu0 0
        %2908 = vmatmul.mubr.bf16.gmra.mrb[0].mxu0 %v1752
        %v2909 = vpop.f32.mrb[0].mxu0
        %v2910 = vadd.f32 0.0, %v2909
        %v2911 = vpop.f32.mrb[0].mxu0
        %v2912 = vpop.f32.mrb[0].mxu0
        %v2913 = vadd.f32 0.0, %v2912
        %v2914 = vpop.f32.mrb[0].mxu0
        %2915 = vmatprep.mubr.bf16.mxu0 0
        %2916 = vmatmul.mubr.bf16.gmra.mrb[0].mxu0 %v1755
        %v2917 = vpop.f32.mrb[0].mxu0
        %v2918 = vadd.f32 0.0, %v2917
        %v2919 = vpop.f32.mrb[0].mxu0
        %v2920 = vpop.f32.mrb[0].mxu0
        %v2921 = vadd.f32 0.0, %v2920
        %v2922 = vpop.f32.mrb[0].mxu0
        %2923 = vmatprep.mubr.bf16.mxu0 0
        %2924 = vmatmul.mubr.bf16.gmra.mrb[0].mxu0 %v1758
        %v2925 = vpop.f32.mrb[0].mxu0
        %v2926 = vadd.f32 0.0, %v2925
        %v2927 = vpop.f32.mrb[0].mxu0
        %v2928 = vpop.f32.mrb[0].mxu0
        %v2929 = vadd.f32 0.0, %v2928
        %v2930 = vpop.f32.mrb[0].mxu0
        %2931 = vmatprep.mubr.bf16.mxu0 0
        %2932 = vmatmul.mubr.bf16.gmra.mrb[0].mxu0 %v1761
        %v2933 = vpop.f32.mrb[0].mxu0
        %v2934 = vadd.f32 0.0, %v2933
        %v2935 = vpop.f32.mrb[0].mxu0
        %v2936 = vpop.f32.mrb[0].mxu0
        %v2937 = vadd.f32 0.0, %v2936
        %v2938 = vpop.f32.mrb[0].mxu0
        %2939 = vmatprep.mubr.bf16.mxu0 0
        %2940 = vmatmul.mubr.bf16.gmra.mrb[0].mxu0 %v1764
        %v2941 = vpop.f32.mrb[0].mxu0
        %v2942 = vadd.f32 0.0, %v2941
        %v2943 = vpop.f32.mrb[0].mxu0
        %v2944 = vpop.f32.mrb[0].mxu0
        %v2945 = vadd.f32 0.0, %v2944
        %v2946 = vpop.f32.mrb[0].mxu0
        %2947 = vdwg.mxu0
        %v2948 = vstv %s2639
        %v2949 = vmul.f32 %v2948, %v2886
        %v2950 = vmul.f32 %v2948, %v2889
        %v2951 = vmul.f32 %v2948, %v2894
        %v2952 = vmul.f32 %v2948, %v2897
        %v2953 = vmul.f32 %v2948, %v2902
        %v2954 = vmul.f32 %v2948, %v2905
        %v2955 = vmul.f32 %v2948, %v2910
        %v2956 = vmul.f32 %v2948, %v2913
        %v2957 = vmul.f32 %v2948, %v2918
        %v2958 = vmul.f32 %v2948, %v2921
        %v2959 = vmul.f32 %v2948, %v2926
        %v2960 = vmul.f32 %v2948, %v2929
        %v2961 = vmul.f32 %v2948, %v2934
        %v2962 = vmul.f32 %v2948, %v2937
        %v2963 = vmul.f32 %v2948, %v2942
        %v2964 = vmul.f32 %v2948, %v2945
        %v2965 = vadd.f32 %v2789, %v2949
        %v2966 = vadd.f32 %v2792, %v2950
        %v2967 = vadd.f32 %v2797, %v2951
        %v2968 = vadd.f32 %v2800, %v2952
        %v2969 = vadd.f32 %v2805, %v2953
        %v2970 = vadd.f32 %v2808, %v2954
        %v2971 = vadd.f32 %v2813, %v2955
        %v2972 = vadd.f32 %v2816, %v2956
        %v2973 = vadd.f32 %v2821, %v2957
        %v2974 = vadd.f32 %v2824, %v2958
        %v2975 = vadd.f32 %v2829, %v2959
        %v2976 = vadd.f32 %v2832, %v2960
        %v2977 = vadd.f32 %v2837, %v2961
        %v2978 = vadd.f32 %v2840, %v2962
        %v2979 = vadd.f32 %v2845, %v2963
        %v2980 = vadd.f32 %v2848, %v2964
        %v2981 = vld [vmem:[%s7] sm:$0xff]
        %v2982 = vld [vmem:[%s7 + $0x8] sm:$0xff]
        %v2983 = vld [vmem:[%s7 + $0x10] sm:$0xff]
        %v2984 = vld [vmem:[%s7 + $0x18] sm:$0xff]
        %v2985 = vld [vmem:[%s7 + $0x20] sm:$0xff]
        %v2986 = vld [vmem:[%s7 + $0x28] sm:$0xff]
        %v2987 = vld [vmem:[%s7 + $0x30] sm:$0xff]
        %v2988 = vld [vmem:[%s7 + $0x38] sm:$0xff]
        %v2989 = vld [vmem:[%s7 + $0x40] sm:$0xff]
        %v2990 = vld [vmem:[%s7 + $0x48] sm:$0xff]
        %v2991 = vld [vmem:[%s7 + $0x50] sm:$0xff]
        %v2992 = vld [vmem:[%s7 + $0x58] sm:$0xff]
        %v2993 = vld [vmem:[%s7 + $0x60] sm:$0xff]
        %v2994 = vld [vmem:[%s7 + $0x68] sm:$0xff]
        %v2995 = vld [vmem:[%s7 + $0x70] sm:$0xff]
        %v2996 = vld [vmem:[%s7 + $0x78] sm:$0xff]
        %2998 = vset.pattern.permute.xlu0 0
        %2999 = vperm.xlu0 %2998, %v2981
        %v3000 = vpop.permute.xlu0 %2999
        %3003 = vset.pattern.permute.xlu0 0
        %3004 = vperm.xlu0 %3003, %v2982
        %v3005 = vpop.permute.xlu0 %3004
        %3008 = vset.pattern.permute.xlu0 0
        %3009 = vperm.xlu0 %3008, %v2983
        %v3010 = vpop.permute.xlu0 %3009
        %3013 = vset.pattern.permute.xlu0 0
        %3014 = vperm.xlu0 %3013, %v2984
        %v3015 = vpop.permute.xlu0 %3014
        %3018 = vset.pattern.permute.xlu0 0
        %3019 = vperm.xlu0 %3018, %v2985
        %v3020 = vpop.permute.xlu0 %3019
        %3023 = vset.pattern.permute.xlu0 0
        %3024 = vperm.xlu0 %3023, %v2986
        %v3025 = vpop.permute.xlu0 %3024
        %3028 = vset.pattern.permute.xlu0 0
        %3029 = vperm.xlu0 %3028, %v2987
        %v3030 = vpop.permute.xlu0 %3029
        %3033 = vset.pattern.permute.xlu0 0
        %3034 = vperm.xlu0 %3033, %v2988
        %v3035 = vpop.permute.xlu0 %3034
        %3038 = vset.pattern.permute.xlu0 0
        %3039 = vperm.xlu0 %3038, %v2989
        %v3040 = vpop.permute.xlu0 %3039
        %3043 = vset.pattern.permute.xlu0 0
        %3044 = vperm.xlu0 %3043, %v2990
        %v3045 = vpop.permute.xlu0 %3044
        %3048 = vset.pattern.permute.xlu0 0
        %3049 = vperm.xlu0 %3048, %v2991
        %v3050 = vpop.permute.xlu0 %3049
        %3053 = vset.pattern.permute.xlu0 0
        %3054 = vperm.xlu0 %3053, %v2992
        %v3055 = vpop.permute.xlu0 %3054
        %3058 = vset.pattern.permute.xlu0 0
        %3059 = vperm.xlu0 %3058, %v2993
        %v3060 = vpop.permute.xlu0 %3059
        %3063 = vset.pattern.permute.xlu0 0
        %3064 = vperm.xlu0 %3063, %v2994
        %v3065 = vpop.permute.xlu0 %3064
        %3068 = vset.pattern.permute.xlu0 0
        %3069 = vperm.xlu0 %3068, %v2995
        %v3070 = vpop.permute.xlu0 %3069
        %3073 = vset.pattern.permute.xlu0 0
        %3074 = vperm.xlu0 %3073, %v2996
        %v3075 = vpop.permute.xlu0 %3074
        %v3077 = vadd.f32 %v2965, %v3000
        %v3078 = vadd.f32 %v2966, %v3005
        %v3079 = vadd.f32 %v2967, %v3010
        %v3080 = vadd.f32 %v2968, %v3015
        %v3081 = vadd.f32 %v2969, %v3020
        %v3082 = vadd.f32 %v2970, %v3025
        %v3083 = vadd.f32 %v2971, %v3030
        %v3084 = vadd.f32 %v2972, %v3035
        %v3085 = vadd.f32 %v2973, %v3040
        %v3086 = vadd.f32 %v2974, %v3045
        %v3087 = vadd.f32 %v2975, %v3050
        %v3088 = vadd.f32 %v2976, %v3055
        %v3089 = vadd.f32 %v2977, %v3060
        %v3090 = vadd.f32 %v2978, %v3065
        %v3091 = vadd.f32 %v2979, %v3070
        %v3092 = vadd.f32 %v2980, %v3075
        %v3093 = vsel %vm1402, %v3077, 0.0
        %3094 = vadd.xlane.f32.xlu0 %v3093
        %v3095 = vpop.xlane.xlu0 %3094
        %v3096 = vsel %vm1402, %v3078, 0.0
        %3097 = vadd.xlane.f32.xlu0 %v3096
        %v3098 = vpop.xlane.xlu0 %3097
        %v3099 = vsel %vm1402, %v3079, 0.0
        %3100 = vadd.xlane.f32.xlu0 %v3099
        %v3101 = vpop.xlane.xlu0 %3100
        %v3102 = vsel %vm1402, %v3080, 0.0
        %3103 = vadd.xlane.f32.xlu0 %v3102
        %v3104 = vpop.xlane.xlu0 %3103
        %v3105 = vsel %vm1402, %v3081, 0.0
        %3106 = vadd.xlane.f32.xlu0 %v3105
        %v3107 = vpop.xlane.xlu0 %3106
        %v3108 = vsel %vm1402, %v3082, 0.0
        %3109 = vadd.xlane.f32.xlu0 %v3108
        %v3110 = vpop.xlane.xlu0 %3109
        %v3111 = vsel %vm1402, %v3083, 0.0
        %3112 = vadd.xlane.f32.xlu0 %v3111
        %v3113 = vpop.xlane.xlu0 %3112
        %v3114 = vsel %vm1402, %v3084, 0.0
        %3115 = vadd.xlane.f32.xlu0 %v3114
        %v3116 = vpop.xlane.xlu0 %3115
        %v3117 = vsel %vm1402, %v3085, 0.0
        %3118 = vadd.xlane.f32.xlu0 %v3117
        %v3119 = vpop.xlane.xlu0 %3118
        %v3120 = vsel %vm1402, %v3086, 0.0
        %3121 = vadd.xlane.f32.xlu0 %v3120
        %v3122 = vpop.xlane.xlu0 %3121
        %v3123 = vsel %vm1402, %v3087, 0.0
        %3124 = vadd.xlane.f32.xlu0 %v3123
        %v3125 = vpop.xlane.xlu0 %3124
        %v3126 = vsel %vm1402, %v3088, 0.0
        %3127 = vadd.xlane.f32.xlu0 %v3126
        %v3128 = vpop.xlane.xlu0 %3127
        %v3129 = vsel %vm1402, %v3089, 0.0
        %3130 = vadd.xlane.f32.xlu0 %v3129
        %v3131 = vpop.xlane.xlu0 %3130
        %v3132 = vsel %vm1402, %v3090, 0.0
        %3133 = vadd.xlane.f32.xlu0 %v3132
        %v3134 = vpop.xlane.xlu0 %3133
        %v3135 = vsel %vm1402, %v3091, 0.0
        %3136 = vadd.xlane.f32.xlu0 %v3135
        %v3137 = vpop.xlane.xlu0 %3136
        %v3138 = vsel %vm1402, %v3092, 0.0
        %3139 = vadd.xlane.f32.xlu0 %v3138
        %v3140 = vpop.xlane.xlu0 %3139
        %v3141 = vmul.f32 %v3095, %v2056
        %v3142 = vmul.f32 %v3098, %v2056
        %v3143 = vmul.f32 %v3101, %v2056
        %v3144 = vmul.f32 %v3104, %v2056
        %v3145 = vmul.f32 %v3107, %v2056
        %v3146 = vmul.f32 %v3110, %v2056
        %v3147 = vmul.f32 %v3113, %v2056
        %v3148 = vmul.f32 %v3116, %v2056
        %v3149 = vmul.f32 %v3119, %v2056
        %v3150 = vmul.f32 %v3122, %v2056
        %v3151 = vmul.f32 %v3125, %v2056
        %v3152 = vmul.f32 %v3128, %v2056
        %v3153 = vmul.f32 %v3131, %v2056
        %v3154 = vmul.f32 %v3134, %v2056
        %v3155 = vmul.f32 %v3137, %v2056
        %v3156 = vmul.f32 %v3140, %v2056
        %v3157 = vld [vmem:[#allocation9] sm:$0xff]
        %v3158 = vld [vmem:[#allocation9 + $0x8] sm:$0xff]
        %v3159 = vld [vmem:[#allocation9 + $0x10] sm:$0xff]
        %v3160 = vld [vmem:[#allocation9 + $0x18] sm:$0xff]
        %v3161 = vld [vmem:[#allocation9 + $0x20] sm:$0xff]
        %v3162 = vld [vmem:[#allocation9 + $0x28] sm:$0xff]
        %v3163 = vld [vmem:[#allocation9 + $0x30] sm:$0xff]
        %v3164 = vld [vmem:[#allocation9 + $0x38] sm:$0xff]
        %v3165 = vld [vmem:[#allocation9 + $0x40] sm:$0xff]
        %v3166 = vld [vmem:[#allocation9 + $0x48] sm:$0xff]
        %v3167 = vld [vmem:[#allocation9 + $0x50] sm:$0xff]
        %v3168 = vld [vmem:[#allocation9 + $0x58] sm:$0xff]
        %v3169 = vld [vmem:[#allocation9 + $0x60] sm:$0xff]
        %v3170 = vld [vmem:[#allocation9 + $0x68] sm:$0xff]
        %v3171 = vld [vmem:[#allocation9 + $0x70] sm:$0xff]
        %v3172 = vld [vmem:[#allocation9 + $0x78] sm:$0xff]
        %v3173 = vld [vmem:[%s9] sm:$0xff]
        %v3174 = vld [vmem:[%s9 + $0x8] sm:$0xff]
        %v3175 = vld [vmem:[%s9 + $0x10] sm:$0xff]
        %v3176 = vld [vmem:[%s9 + $0x18] sm:$0xff]
        %v3177 = vld [vmem:[%s9 + $0x20] sm:$0xff]
        %v3178 = vld [vmem:[%s9 + $0x28] sm:$0xff]
        %v3179 = vld [vmem:[%s9 + $0x30] sm:$0xff]
        %v3180 = vld [vmem:[%s9 + $0x38] sm:$0xff]
        %v3181 = vld [vmem:[%s9 + $0x40] sm:$0xff]
        %v3182 = vld [vmem:[%s9 + $0x48] sm:$0xff]
        %v3183 = vld [vmem:[%s9 + $0x50] sm:$0xff]
        %v3184 = vld [vmem:[%s9 + $0x58] sm:$0xff]
        %v3185 = vld [vmem:[%s9 + $0x60] sm:$0xff]
        %v3186 = vld [vmem:[%s9 + $0x68] sm:$0xff]
        %v3187 = vld [vmem:[%s9 + $0x70] sm:$0xff]
        %v3188 = vld [vmem:[%s9 + $0x78] sm:$0xff]
        %3189 = vmatprep.subr.mxu0 0.0
        %3190 = vmatpush1.msra.mxu0 %v3141
        %3191 = vmatprep.subr.mxu0 0.0
        %3192 = vmatpush1.msra.mxu0 %v3142
        %3193 = vmatprep.subr.mxu0 0.0
        %3194 = vmatpush1.msra.mxu0 %v3143
        %3195 = vmatprep.subr.mxu0 0.0
        %3196 = vmatpush1.msra.mxu0 %v3144
        %3197 = vmatprep.subr.mxu0 0.0
        %3198 = vmatpush1.msra.mxu0 %v3145
        %3199 = vmatprep.subr.mxu0 0.0
        %3200 = vmatpush1.msra.mxu0 %v3146
        %3201 = vmatprep.subr.mxu0 0.0
        %3202 = vmatpush1.msra.mxu0 %v3147
        %3203 = vmatprep.subr.mxu0 0.0
        %3204 = vmatpush1.msra.mxu0 %v3148
        %3205 = vmatprep.subr.mxu0 0.0
        %3206 = vmatpush1.msra.mxu0 %v3149
        %3207 = vmatprep.subr.mxu0 0.0
        %3208 = vmatpush1.msra.mxu0 %v3150
        %3209 = vmatprep.subr.mxu0 0.0
        %3210 = vmatpush1.msra.mxu0 %v3151
        %3211 = vmatprep.subr.mxu0 0.0
        %3212 = vmatpush1.msra.mxu0 %v3152
        %3213 = vmatprep.subr.mxu0 0.0
        %3214 = vmatpush1.msra.mxu0 %v3153
        %3215 = vmatprep.subr.mxu0 0.0
        %3216 = vmatpush1.msra.mxu0 %v3154
        %3217 = vmatprep.subr.mxu0 0.0
        %3218 = vmatpush1.msra.mxu0 %v3155
        %3219 = vmatprep.subr.mxu0 0.0
        %3220 = vmatpush1.msra.mxu0 %v3156
        %3221 = vmatprep.subr.mxu0 0.0
        %3222 = vmatpush1.msra.mxu0 0.0
        %3223 = vmatprep.subr.mxu0 0.0
        %3224 = vmatpush1.msra.mxu0 0.0
        %3225 = vmatprep.subr.mxu0 0.0
        %3226 = vmatpush1.msra.mxu0 0.0
        %3227 = vmatprep.subr.mxu0 0.0
        %3228 = vmatpush1.msra.mxu0 0.0
        %3229 = vmatprep.subr.mxu0 0.0
        %3230 = vmatpush1.msra.mxu0 0.0
        %3231 = vmatprep.subr.mxu0 0.0
        %3232 = vmatpush1.msra.mxu0 0.0
        %3233 = vmatprep.subr.mxu0 0.0
        %3234 = vmatpush1.msra.mxu0 0.0
        %3235 = vmatprep.subr.mxu0 0.0
        %3236 = vmatpush1.msra.mxu0 0.0
        %3237 = vmatprep.subr.mxu0 0.0
        %3238 = vmatpush1.msra.mxu0 0.0
        %3239 = vmatprep.subr.mxu0 0.0
        %3240 = vmatpush1.msra.mxu0 0.0
        %3241 = vmatprep.subr.mxu0 0.0
        %3242 = vmatpush1.msra.mxu0 0.0
        %3243 = vmatprep.subr.mxu0 0.0
        %3244 = vmatpush1.msra.mxu0 0.0
        %3245 = vmatprep.subr.mxu0 0.0
        %3246 = vmatpush1.msra.mxu0 0.0
        %3247 = vmatprep.subr.mxu0 0.0
        %3248 = vmatpush1.msra.mxu0 0.0
        %3249 = vmatprep.subr.mxu0 0.0
        %3250 = vmatpush1.msra.mxu0 0.0
        %3251 = vmatprep.subr.mxu0 0.0
        %3252 = vmatpush1.msra.mxu0 0.0
        %3253 = vmatprep.mubr.f32.mxu0 0.0
        %3254 = vmatmul.mubr.f32.gmra.mrb[0].mxu0 %v3157
        %v3255 = vpop.f32.mrb[0].mxu0
        %v3256 = vadd.f32 %v3173, %v3255
        %v3257 = vpop.f32.mrb[0].mxu0
        %3258 = vmatprep.mubr.f32.mxu0 0.0
        %3259 = vmatmul.mubr.f32.gmra.mrb[0].mxu0 %v3158
        %v3260 = vpop.f32.mrb[0].mxu0
        %v3261 = vadd.f32 %v3174, %v3260
        %v3262 = vpop.f32.mrb[0].mxu0
        %3263 = vmatprep.mubr.f32.mxu0 0.0
        %3264 = vmatmul.mubr.f32.gmra.mrb[0].mxu0 %v3159
        %v3265 = vpop.f32.mrb[0].mxu0
        %v3266 = vadd.f32 %v3175, %v3265
        %v3267 = vpop.f32.mrb[0].mxu0
        %3268 = vmatprep.mubr.f32.mxu0 0.0
        %3269 = vmatmul.mubr.f32.gmra.mrb[0].mxu0 %v3160
        %v3270 = vpop.f32.mrb[0].mxu0
        %v3271 = vadd.f32 %v3176, %v3270
        %v3272 = vpop.f32.mrb[0].mxu0
        %3273 = vmatprep.mubr.f32.mxu0 0.0
        %3274 = vmatmul.mubr.f32.gmra.mrb[0].mxu0 %v3161
        %v3275 = vpop.f32.mrb[0].mxu0
        %v3276 = vadd.f32 %v3177, %v3275
        %v3277 = vpop.f32.mrb[0].mxu0
        %3278 = vmatprep.mubr.f32.mxu0 0.0
        %3279 = vmatmul.mubr.f32.gmra.mrb[0].mxu0 %v3162
        %v3280 = vpop.f32.mrb[0].mxu0
        %v3281 = vadd.f32 %v3178, %v3280
        %v3282 = vpop.f32.mrb[0].mxu0
        %3283 = vmatprep.mubr.f32.mxu0 0.0
        %3284 = vmatmul.mubr.f32.gmra.mrb[0].mxu0 %v3163
        %v3285 = vpop.f32.mrb[0].mxu0
        %v3286 = vadd.f32 %v3179, %v3285
        %v3287 = vpop.f32.mrb[0].mxu0
        %3288 = vmatprep.mubr.f32.mxu0 0.0
        %3289 = vmatmul.mubr.f32.gmra.mrb[0].mxu0 %v3164
        %v3290 = vpop.f32.mrb[0].mxu0
        %v3291 = vadd.f32 %v3180, %v3290
        %v3292 = vpop.f32.mrb[0].mxu0
        %3293 = vmatprep.mubr.f32.mxu0 0.0
        %3294 = vmatmul.mubr.f32.gmra.mrb[0].mxu0 %v3165
        %v3295 = vpop.f32.mrb[0].mxu0
        %v3296 = vadd.f32 %v3181, %v3295
        %v3297 = vpop.f32.mrb[0].mxu0
        %3298 = vmatprep.mubr.f32.mxu0 0.0
        %3299 = vmatmul.mubr.f32.gmra.mrb[0].mxu0 %v3166
        %v3300 = vpop.f32.mrb[0].mxu0
        %v3301 = vadd.f32 %v3182, %v3300
        %v3302 = vpop.f32.mrb[0].mxu0
        %3303 = vmatprep.mubr.f32.mxu0 0.0
        %3304 = vmatmul.mubr.f32.gmra.mrb[0].mxu0 %v3167
        %v3305 = vpop.f32.mrb[0].mxu0
        %v3306 = vadd.f32 %v3183, %v3305
        %v3307 = vpop.f32.mrb[0].mxu0
        %3308 = vmatprep.mubr.f32.mxu0 0.0
        %3309 = vmatmul.mubr.f32.gmra.mrb[0].mxu0 %v3168
        %v3310 = vpop.f32.mrb[0].mxu0
        %v3311 = vadd.f32 %v3184, %v3310
        %v3312 = vpop.f32.mrb[0].mxu0
        %3313 = vmatprep.mubr.f32.mxu0 0.0
        %3314 = vmatmul.mubr.f32.gmra.mrb[0].mxu0 %v3169
        %v3315 = vpop.f32.mrb[0].mxu0
        %v3316 = vadd.f32 %v3185, %v3315
        %v3317 = vpop.f32.mrb[0].mxu0
        %3318 = vmatprep.mubr.f32.mxu0 0.0
        %3319 = vmatmul.mubr.f32.gmra.mrb[0].mxu0 %v3170
        %v3320 = vpop.f32.mrb[0].mxu0
        %v3321 = vadd.f32 %v3186, %v3320
        %v3322 = vpop.f32.mrb[0].mxu0
        %3323 = vmatprep.mubr.f32.mxu0 0.0
        %3324 = vmatmul.mubr.f32.gmra.mrb[0].mxu0 %v3171
        %v3325 = vpop.f32.mrb[0].mxu0
        %v3326 = vadd.f32 %v3187, %v3325
        %v3327 = vpop.f32.mrb[0].mxu0
        %3328 = vmatprep.mubr.f32.mxu0 0.0
        %3329 = vmatmul.mubr.f32.gmra.mrb[0].mxu0 %v3172
        %v3330 = vpop.f32.mrb[0].mxu0
        %v3331 = vadd.f32 %v3188, %v3330
        %v3332 = vpop.f32.mrb[0].mxu0
        %3333 = vdwg.mxu0
        %v3334 = vmax.f32 %v3256, 0.0
        %v3335 = vmax.f32 %v3261, 0.0
        %v3336 = vmax.f32 %v3266, 0.0
        %v3337 = vmax.f32 %v3271, 0.0
        %v3338 = vmax.f32 %v3276, 0.0
        %v3339 = vmax.f32 %v3281, 0.0
        %v3340 = vmax.f32 %v3286, 0.0
        %v3341 = vmax.f32 %v3291, 0.0
        %v3342 = vmax.f32 %v3296, 0.0
        %v3343 = vmax.f32 %v3301, 0.0
        %v3344 = vmax.f32 %v3306, 0.0
        %v3345 = vmax.f32 %v3311, 0.0
        %v3346 = vmax.f32 %v3316, 0.0
        %v3347 = vmax.f32 %v3321, 0.0
        %v3348 = vmax.f32 %v3326, 0.0
        %v3349 = vmax.f32 %v3331, 0.0
        %v3350 = vld [vmem:[#allocation10] sm:$0xff]
        %v3351 = vld [vmem:[#allocation10 + $0x8] sm:$0xff]
        %v3352 = vld [vmem:[#allocation10 + $0x10] sm:$0xff]
        %v3353 = vld [vmem:[#allocation10 + $0x18] sm:$0xff]
        %v3354 = vld [vmem:[#allocation10 + $0x20] sm:$0xff]
        %v3355 = vld [vmem:[#allocation10 + $0x28] sm:$0xff]
        %v3356 = vld [vmem:[#allocation10 + $0x30] sm:$0xff]
        %v3357 = vld [vmem:[#allocation10 + $0x38] sm:$0xff]
        %v3358 = vld [vmem:[#allocation10 + $0x40] sm:$0xff]
        %v3359 = vld [vmem:[#allocation10 + $0x48] sm:$0xff]
        %v3360 = vld [vmem:[#allocation10 + $0x50] sm:$0xff]
        %v3361 = vld [vmem:[#allocation10 + $0x58] sm:$0xff]
        %v3362 = vld [vmem:[#allocation10 + $0x60] sm:$0xff]
        %v3363 = vld [vmem:[#allocation10 + $0x68] sm:$0xff]
        %v3364 = vld [vmem:[#allocation10 + $0x70] sm:$0xff]
        %v3365 = vld [vmem:[#allocation10 + $0x78] sm:$0xff]
        %v3366 = vld [vmem:[%s11] sm:$0xff]
        %v3367 = vld [vmem:[%s11 + $0x8] sm:$0xff]
        %v3368 = vld [vmem:[%s11 + $0x10] sm:$0xff]
        %v3369 = vld [vmem:[%s11 + $0x18] sm:$0xff]
        %v3370 = vld [vmem:[%s11 + $0x20] sm:$0xff]
        %v3371 = vld [vmem:[%s11 + $0x28] sm:$0xff]
        %v3372 = vld [vmem:[%s11 + $0x30] sm:$0xff]
        %v3373 = vld [vmem:[%s11 + $0x38] sm:$0xff]
        %v3374 = vld [vmem:[%s11 + $0x40] sm:$0xff]
        %v3375 = vld [vmem:[%s11 + $0x48] sm:$0xff]
        %v3376 = vld [vmem:[%s11 + $0x50] sm:$0xff]
        %v3377 = vld [vmem:[%s11 + $0x58] sm:$0xff]
        %v3378 = vld [vmem:[%s11 + $0x60] sm:$0xff]
        %v3379 = vld [vmem:[%s11 + $0x68] sm:$0xff]
        %v3380 = vld [vmem:[%s11 + $0x70] sm:$0xff]
        %v3381 = vld [vmem:[%s11 + $0x78] sm:$0xff]
        %3382 = vmatprep.subr.mxu0 0.0
        %3383 = vmatpush1.msra.mxu0 %v3334
        %3384 = vmatprep.subr.mxu0 0.0
        %3385 = vmatpush1.msra.mxu0 %v3335
        %3386 = vmatprep.subr.mxu0 0.0
        %3387 = vmatpush1.msra.mxu0 %v3336
        %3388 = vmatprep.subr.mxu0 0.0
        %3389 = vmatpush1.msra.mxu0 %v3337
        %3390 = vmatprep.subr.mxu0 0.0
        %3391 = vmatpush1.msra.mxu0 %v3338
        %3392 = vmatprep.subr.mxu0 0.0
        %3393 = vmatpush1.msra.mxu0 %v3339
        %3394 = vmatprep.subr.mxu0 0.0
        %3395 = vmatpush1.msra.mxu0 %v3340
        %3396 = vmatprep.subr.mxu0 0.0
        %3397 = vmatpush1.msra.mxu0 %v3341
        %3398 = vmatprep.subr.mxu0 0.0
        %3399 = vmatpush1.msra.mxu0 %v3342
        %3400 = vmatprep.subr.mxu0 0.0
        %3401 = vmatpush1.msra.mxu0 %v3343
        %3402 = vmatprep.subr.mxu0 0.0
        %3403 = vmatpush1.msra.mxu0 %v3344
        %3404 = vmatprep.subr.mxu0 0.0
        %3405 = vmatpush1.msra.mxu0 %v3345
        %3406 = vmatprep.subr.mxu0 0.0
        %3407 = vmatpush1.msra.mxu0 %v3346
        %3408 = vmatprep.subr.mxu0 0.0
        %3409 = vmatpush1.msra.mxu0 %v3347
        %3410 = vmatprep.subr.mxu0 0.0
        %3411 = vmatpush1.msra.mxu0 %v3348
        %3412 = vmatprep.subr.mxu0 0.0
        %3413 = vmatpush1.msra.mxu0 %v3349
        %3414 = vmatprep.subr.mxu0 0.0
        %3415 = vmatpush1.msra.mxu0 0.0
        %3416 = vmatprep.subr.mxu0 0.0
        %3417 = vmatpush1.msra.mxu0 0.0
        %3418 = vmatprep.subr.mxu0 0.0
        %3419 = vmatpush1.msra.mxu0 0.0
        %3420 = vmatprep.subr.mxu0 0.0
        %3421 = vmatpush1.msra.mxu0 0.0
        %3422 = vmatprep.subr.mxu0 0.0
        %3423 = vmatpush1.msra.mxu0 0.0
        %3424 = vmatprep.subr.mxu0 0.0
        %3425 = vmatpush1.msra.mxu0 0.0
        %3426 = vmatprep.subr.mxu0 0.0
        %3427 = vmatpush1.msra.mxu0 0.0
        %3428 = vmatprep.subr.mxu0 0.0
        %3429 = vmatpush1.msra.mxu0 0.0
        %3430 = vmatprep.subr.mxu0 0.0
        %3431 = vmatpush1.msra.mxu0 0.0
        %3432 = vmatprep.subr.mxu0 0.0
        %3433 = vmatpush1.msra.mxu0 0.0
        %3434 = vmatprep.subr.mxu0 0.0
        %3435 = vmatpush1.msra.mxu0 0.0
        %3436 = vmatprep.subr.mxu0 0.0
        %3437 = vmatpush1.msra.mxu0 0.0
        %3438 = vmatprep.subr.mxu0 0.0
        %3439 = vmatpush1.msra.mxu0 0.0
        %3440 = vmatprep.subr.mxu0 0.0
        %3441 = vmatpush1.msra.mxu0 0.0
        %3442 = vmatprep.subr.mxu0 0.0
        %3443 = vmatpush1.msra.mxu0 0.0
        %3444 = vmatprep.subr.mxu0 0.0
        %3445 = vmatpush1.msra.mxu0 0.0
        %3446 = vmatprep.mubr.f32.mxu0 0.0
        %3447 = vmatmul.mubr.f32.gmra.mrb[0].mxu0 %v3350
        %v3448 = vpop.f32.mrb[0].mxu0
        %v3449 = vadd.f32 %v3366, %v3448
        %v3450 = vpop.f32.mrb[0].mxu0
        %3451 = vmatprep.mubr.f32.mxu0 0.0
        %3452 = vmatmul.mubr.f32.gmra.mrb[0].mxu0 %v3351
        %v3453 = vpop.f32.mrb[0].mxu0
        %v3454 = vadd.f32 %v3367, %v3453
        %v3455 = vpop.f32.mrb[0].mxu0
        %3456 = vmatprep.mubr.f32.mxu0 0.0
        %3457 = vmatmul.mubr.f32.gmra.mrb[0].mxu0 %v3352
        %v3458 = vpop.f32.mrb[0].mxu0
        %v3459 = vadd.f32 %v3368, %v3458
        %v3460 = vpop.f32.mrb[0].mxu0
        %3461 = vmatprep.mubr.f32.mxu0 0.0
        %3462 = vmatmul.mubr.f32.gmra.mrb[0].mxu0 %v3353
        %v3463 = vpop.f32.mrb[0].mxu0
        %v3464 = vadd.f32 %v3369, %v3463
        %v3465 = vpop.f32.mrb[0].mxu0
        %3466 = vmatprep.mubr.f32.mxu0 0.0
        %3467 = vmatmul.mubr.f32.gmra.mrb[0].mxu0 %v3354
        %v3468 = vpop.f32.mrb[0].mxu0
        %v3469 = vadd.f32 %v3370, %v3468
        %v3470 = vpop.f32.mrb[0].mxu0
        %3471 = vmatprep.mubr.f32.mxu0 0.0
        %3472 = vmatmul.mubr.f32.gmra.mrb[0].mxu0 %v3355
        %v3473 = vpop.f32.mrb[0].mxu0
        %v3474 = vadd.f32 %v3371, %v3473
        %v3475 = vpop.f32.mrb[0].mxu0
        %3476 = vmatprep.mubr.f32.mxu0 0.0
        %3477 = vmatmul.mubr.f32.gmra.mrb[0].mxu0 %v3356
        %v3478 = vpop.f32.mrb[0].mxu0
        %v3479 = vadd.f32 %v3372, %v3478
        %v3480 = vpop.f32.mrb[0].mxu0
        %3481 = vmatprep.mubr.f32.mxu0 0.0
        %3482 = vmatmul.mubr.f32.gmra.mrb[0].mxu0 %v3357
        %v3483 = vpop.f32.mrb[0].mxu0
        %v3484 = vadd.f32 %v3373, %v3483
        %v3485 = vpop.f32.mrb[0].mxu0
        %3486 = vmatprep.mubr.f32.mxu0 0.0
        %3487 = vmatmul.mubr.f32.gmra.mrb[0].mxu0 %v3358
        %v3488 = vpop.f32.mrb[0].mxu0
        %v3489 = vadd.f32 %v3374, %v3488
        %v3490 = vpop.f32.mrb[0].mxu0
        %3491 = vmatprep.mubr.f32.mxu0 0.0
        %3492 = vmatmul.mubr.f32.gmra.mrb[0].mxu0 %v3359
        %v3493 = vpop.f32.mrb[0].mxu0
        %v3494 = vadd.f32 %v3375, %v3493
        %v3495 = vpop.f32.mrb[0].mxu0
        %3496 = vmatprep.mubr.f32.mxu0 0.0
        %3497 = vmatmul.mubr.f32.gmra.mrb[0].mxu0 %v3360
        %v3498 = vpop.f32.mrb[0].mxu0
        %v3499 = vadd.f32 %v3376, %v3498
        %v3500 = vpop.f32.mrb[0].mxu0
        %3501 = vmatprep.mubr.f32.mxu0 0.0
        %3502 = vmatmul.mubr.f32.gmra.mrb[0].mxu0 %v3361
        %v3503 = vpop.f32.mrb[0].mxu0
        %v3504 = vadd.f32 %v3377, %v3503
        %v3505 = vpop.f32.mrb[0].mxu0
        %3506 = vmatprep.mubr.f32.mxu0 0.0
        %3507 = vmatmul.mubr.f32.gmra.mrb[0].mxu0 %v3362
        %v3508 = vpop.f32.mrb[0].mxu0
        %v3509 = vadd.f32 %v3378, %v3508
        %v3510 = vpop.f32.mrb[0].mxu0
        %3511 = vmatprep.mubr.f32.mxu0 0.0
        %3512 = vmatmul.mubr.f32.gmra.mrb[0].mxu0 %v3363
        %v3513 = vpop.f32.mrb[0].mxu0
        %v3514 = vadd.f32 %v3379, %v3513
        %v3515 = vpop.f32.mrb[0].mxu0
        %3516 = vmatprep.mubr.f32.mxu0 0.0
        %3517 = vmatmul.mubr.f32.gmra.mrb[0].mxu0 %v3364
        %v3518 = vpop.f32.mrb[0].mxu0
        %v3519 = vadd.f32 %v3380, %v3518
        %v3520 = vpop.f32.mrb[0].mxu0
        %3521 = vmatprep.mubr.f32.mxu0 0.0
        %3522 = vmatmul.mubr.f32.gmra.mrb[0].mxu0 %v3365
        %v3523 = vpop.f32.mrb[0].mxu0
        %v3524 = vadd.f32 %v3381, %v3523
        %v3525 = vpop.f32.mrb[0].mxu0
        %3526 = vdwg.mxu0
        %v3527 = vsub.f32 0.0, %v3449
        %v3528 = vsub.f32 0.0, %v3454
        %v3529 = vsub.f32 0.0, %v3459
        %v3530 = vsub.f32 0.0, %v3464
        %v3531 = vsub.f32 0.0, %v3469
        %v3532 = vsub.f32 0.0, %v3474
        %v3533 = vsub.f32 0.0, %v3479
        %v3534 = vsub.f32 0.0, %v3484
        %v3535 = vsub.f32 0.0, %v3489
        %v3536 = vsub.f32 0.0, %v3494
        %v3537 = vsub.f32 0.0, %v3499
        %v3538 = vsub.f32 0.0, %v3504
        %v3539 = vsub.f32 0.0, %v3509
        %v3540 = vsub.f32 0.0, %v3514
        %v3541 = vsub.f32 0.0, %v3519
        %v3542 = vsub.f32 0.0, %v3524
        %v3543 = vmul.f32 %v3527, 1.442695
        %v3544 = vpow.pop %v3543
        %v3545 = vmul.f32 %v3528, 1.442695
        %v3546 = vpow.pop %v3545
        %v3547 = vmul.f32 %v3529, 1.442695
        %v3548 = vpow.pop %v3547
        %v3549 = vmul.f32 %v3530, 1.442695
        %v3550 = vpow.pop %v3549
        %v3551 = vmul.f32 %v3531, 1.442695
        %v3552 = vpow.pop %v3551
        %v3553 = vmul.f32 %v3532, 1.442695
        %v3554 = vpow.pop %v3553
        %v3555 = vmul.f32 %v3533, 1.442695
        %v3556 = vpow.pop %v3555
        %v3557 = vmul.f32 %v3534, 1.442695
        %v3558 = vpow.pop %v3557
        %v3559 = vmul.f32 %v3535, 1.442695
        %v3560 = vpow.pop %v3559
        %v3561 = vmul.f32 %v3536, 1.442695
        %v3562 = vpow.pop %v3561
        %v3563 = vmul.f32 %v3537, 1.442695
        %v3564 = vpow.pop %v3563
        %v3565 = vmul.f32 %v3538, 1.442695
        %v3566 = vpow.pop %v3565
        %v3567 = vmul.f32 %v3539, 1.442695
        %v3568 = vpow.pop %v3567
        %v3569 = vmul.f32 %v3540, 1.442695
        %v3570 = vpow.pop %v3569
        %v3571 = vmul.f32 %v3541, 1.442695
        %v3572 = vpow.pop %v3571
        %v3573 = vmul.f32 %v3542, 1.442695
        %v3574 = vpow.pop %v3573
        %v3575 = vadd.f32 %v3544, 1.0
        %v3576 = vadd.f32 %v3546, 1.0
        %v3577 = vadd.f32 %v3548, 1.0
        %v3578 = vadd.f32 %v3550, 1.0
        %v3579 = vadd.f32 %v3552, 1.0
        %v3580 = vadd.f32 %v3554, 1.0
        %v3581 = vadd.f32 %v3556, 1.0
        %v3582 = vadd.f32 %v3558, 1.0
        %v3583 = vadd.f32 %v3560, 1.0
        %v3584 = vadd.f32 %v3562, 1.0
        %v3585 = vadd.f32 %v3564, 1.0
        %v3586 = vadd.f32 %v3566, 1.0
        %v3587 = vadd.f32 %v3568, 1.0
        %v3588 = vadd.f32 %v3570, 1.0
        %v3589 = vadd.f32 %v3572, 1.0
        %v3590 = vadd.f32 %v3574, 1.0
        %v3591 = vrcp.pop %v3575
        %v3592 = vrcp.pop %v3576
        %v3593 = vrcp.pop %v3577
        %v3594 = vrcp.pop %v3578
        %v3595 = vrcp.pop %v3579
        %v3596 = vrcp.pop %v3580
        %v3597 = vrcp.pop %v3581
        %v3598 = vrcp.pop %v3582
        %v3599 = vrcp.pop %v3583
        %v3600 = vrcp.pop %v3584
        %v3601 = vrcp.pop %v3585
        %v3602 = vrcp.pop %v3586
        %v3603 = vrcp.pop %v3587
        %v3604 = vrcp.pop %v3588
        %v3605 = vrcp.pop %v3589
        %v3606 = vrcp.pop %v3590
        %3608 = vset.pattern.permute.xlu0 0
        %3609 = vperm.xlu0 %3608, %v3591
        %v3610 = vpop.permute.xlu0 %3609
        %3613 = vset.pattern.permute.xlu0 0
        %3614 = vperm.xlu0 %3613, %v3592
        %v3615 = vpop.permute.xlu0 %3614
        %3618 = vset.pattern.permute.xlu0 0
        %3619 = vperm.xlu0 %3618, %v3593
        %v3620 = vpop.permute.xlu0 %3619
        %3623 = vset.pattern.permute.xlu0 0
        %3624 = vperm.xlu0 %3623, %v3594
        %v3625 = vpop.permute.xlu0 %3624
        %3628 = vset.pattern.permute.xlu0 0
        %3629 = vperm.xlu0 %3628, %v3595
        %v3630 = vpop.permute.xlu0 %3629
        %3633 = vset.pattern.permute.xlu0 0
        %3634 = vperm.xlu0 %3633, %v3596
        %v3635 = vpop.permute.xlu0 %3634
        %3638 = vset.pattern.permute.xlu0 0
        %3639 = vperm.xlu0 %3638, %v3597
        %v3640 = vpop.permute.xlu0 %3639
        %3643 = vset.pattern.permute.xlu0 0
        %3644 = vperm.xlu0 %3643, %v3598
        %v3645 = vpop.permute.xlu0 %3644
        %3648 = vset.pattern.permute.xlu0 0
        %3649 = vperm.xlu0 %3648, %v3599
        %v3650 = vpop.permute.xlu0 %3649
        %3653 = vset.pattern.permute.xlu0 0
        %3654 = vperm.xlu0 %3653, %v3600
        %v3655 = vpop.permute.xlu0 %3654
        %3658 = vset.pattern.permute.xlu0 0
        %3659 = vperm.xlu0 %3658, %v3601
        %v3660 = vpop.permute.xlu0 %3659
        %3663 = vset.pattern.permute.xlu0 0
        %3664 = vperm.xlu0 %3663, %v3602
        %v3665 = vpop.permute.xlu0 %3664
        %3668 = vset.pattern.permute.xlu0 0
        %3669 = vperm.xlu0 %3668, %v3603
        %v3670 = vpop.permute.xlu0 %3669
        %3673 = vset.pattern.permute.xlu0 0
        %3674 = vperm.xlu0 %3673, %v3604
        %v3675 = vpop.permute.xlu0 %3674
        %3678 = vset.pattern.permute.xlu0 0
        %3679 = vperm.xlu0 %3678, %v3605
        %v3680 = vpop.permute.xlu0 %3679
        %3683 = vset.pattern.permute.xlu0 0
        %3684 = vperm.xlu0 %3683, %v3606
        %v3685 = vpop.permute.xlu0 %3684
        %v3687 = vmul.f32 %v3077, %v3610
        %v3688 = vmul.f32 %v3078, %v3615
        %v3689 = vmul.f32 %v3079, %v3620
        %v3690 = vmul.f32 %v3080, %v3625
        %v3691 = vmul.f32 %v3081, %v3630
        %v3692 = vmul.f32 %v3082, %v3635
        %v3693 = vmul.f32 %v3083, %v3640
        %v3694 = vmul.f32 %v3084, %v3645
        %v3695 = vmul.f32 %v3085, %v3650
        %v3696 = vmul.f32 %v3086, %v3655
        %v3697 = vmul.f32 %v3087, %v3660
        %v3698 = vmul.f32 %v3088, %v3665
        %v3699 = vmul.f32 %v3089, %v3670
        %v3700 = vmul.f32 %v3090, %v3675
        %v3701 = vmul.f32 %v3091, %v3680
        %v3702 = vmul.f32 %v3092, %v3685
        %s3703 = scalar_lea.vmem %s519, 128
        %3704 = vst.msk [vmem:[%s3703] sm:$0xff] %vm1402, %v3687
        %3705 = vst.msk [vmem:[%s3703 + $0x8] sm:$0xff] %vm1402, %v3688
        %3706 = vst.msk [vmem:[%s3703 + $0x10] sm:$0xff] %vm1402, %v3689
        %3707 = vst.msk [vmem:[%s3703 + $0x18] sm:$0xff] %vm1402, %v3690
        %3708 = vst.msk [vmem:[%s3703 + $0x20] sm:$0xff] %vm1402, %v3691
        %3709 = vst.msk [vmem:[%s3703 + $0x28] sm:$0xff] %vm1402, %v3692
        %3710 = vst.msk [vmem:[%s3703 + $0x30] sm:$0xff] %vm1402, %v3693
        %3711 = vst.msk [vmem:[%s3703 + $0x38] sm:$0xff] %vm1402, %v3694
        %3712 = vst.msk [vmem:[%s3703 + $0x40] sm:$0xff] %vm1402, %v3695
        %3713 = vst.msk [vmem:[%s3703 + $0x48] sm:$0xff] %vm1402, %v3696
        %3714 = vst.msk [vmem:[%s3703 + $0x50] sm:$0xff] %vm1402, %v3697
        %3715 = vst.msk [vmem:[%s3703 + $0x58] sm:$0xff] %vm1402, %v3698
        %3716 = vst.msk [vmem:[%s3703 + $0x60] sm:$0xff] %vm1402, %v3699
        %3717 = vst.msk [vmem:[%s3703 + $0x68] sm:$0xff] %vm1402, %v3700
        %3718 = vst.msk [vmem:[%s3703 + $0x70] sm:$0xff] %vm1402, %v3701
        %3719 = vst.msk [vmem:[%s3703 + $0x78] sm:$0xff] %vm1402, %v3702
        %s3720 = sadd.s32 %s1357, 2
        %s3721 = sld [smem:[#allocation3 + %s3720]]
        %s3722 = scvt.s32.f32 %s3721
        %s3723 = sld [smem:[#allocation4 + %s3720]]
        %s3724 = scvt.s32.f32 %s3723
        %3725 = vmatprep.subr.bf16.mxu0 0
        %3726 = vmatpush1.bf16.msra.mxu0 %v801
        %3727 = vmatprep.subr.bf16.mxu0 0
        %3728 = vmatpush1.bf16.msra.mxu0 %v802
        %3729 = vmatprep.subr.bf16.mxu0 0
        %3730 = vmatpush1.bf16.msra.mxu0 %v803
        %3731 = vmatprep.subr.bf16.mxu0 0
        %3732 = vmatpush1.bf16.msra.mxu0 %v804
        %3733 = vmatprep.subr.bf16.mxu0 0
        %3734 = vmatpush1.bf16.msra.mxu0 0
        %3735 = vmatprep.subr.bf16.mxu0 0
        %3736 = vmatpush1.bf16.msra.mxu0 0
        %3737 = vmatprep.subr.bf16.mxu0 0
        %3738 = vmatpush1.bf16.msra.mxu0 0
        %3739 = vmatprep.subr.bf16.mxu0 0
        %3740 = vmatpush1.bf16.msra.mxu0 0
        %3741 = vmatprep.subr.bf16.mxu0 0
        %3742 = vmatpush1.bf16.msra.mxu0 0
        %3743 = vmatprep.subr.bf16.mxu0 0
        %3744 = vmatpush1.bf16.msra.mxu0 0
        %3745 = vmatprep.subr.bf16.mxu0 0
        %3746 = vmatpush1.bf16.msra.mxu0 0
        %3747 = vmatprep.subr.bf16.mxu0 0
        %3748 = vmatpush1.bf16.msra.mxu0 0
        %3749 = vmatprep.subr.bf16.mxu0 0
        %3750 = vmatpush1.bf16.msra.mxu0 0
        %3751 = vmatprep.subr.bf16.mxu0 0
        %3752 = vmatpush1.bf16.msra.mxu0 0
        %3753 = vmatprep.subr.bf16.mxu0 0
        %3754 = vmatpush1.bf16.msra.mxu0 0
        %3755 = vmatprep.subr.bf16.mxu0 0
        %3756 = vmatpush1.bf16.msra.mxu0 0
        %3757 = vmatprep.mubr.bf16.mxu0 0
        %3758 = vmatmul.mubr.bf16.gmra.mrb[0].mxu0 %v1404
        %v3759 = vpop.f32.mrb[0].mxu0
        %v3760 = vadd.f32 0.0, %v3759
        %v3761 = vpop.f32.mrb[0].mxu0
        %v3762 = vpop.f32.mrb[0].mxu0
        %v3763 = vadd.f32 0.0, %v3762
        %v3764 = vpop.f32.mrb[0].mxu0
        %3765 = vmatprep.mubr.bf16.mxu0 0
        %3766 = vmatmul.mubr.bf16.gmra.mrb[0].mxu0 %v1407
        %v3767 = vpop.f32.mrb[0].mxu0
        %v3768 = vadd.f32 0.0, %v3767
        %v3769 = vpop.f32.mrb[0].mxu0
        %v3770 = vpop.f32.mrb[0].mxu0
        %v3771 = vadd.f32 0.0, %v3770
        %v3772 = vpop.f32.mrb[0].mxu0
        %3773 = vmatprep.mubr.bf16.mxu0 0
        %3774 = vmatmul.mubr.bf16.gmra.mrb[0].mxu0 %v1410
        %v3775 = vpop.f32.mrb[0].mxu0
        %v3776 = vadd.f32 0.0, %v3775
        %v3777 = vpop.f32.mrb[0].mxu0
        %v3778 = vpop.f32.mrb[0].mxu0
        %v3779 = vadd.f32 0.0, %v3778
        %v3780 = vpop.f32.mrb[0].mxu0
        %3781 = vmatprep.mubr.bf16.mxu0 0
        %3782 = vmatmul.mubr.bf16.gmra.mrb[0].mxu0 %v1413
        %v3783 = vpop.f32.mrb[0].mxu0
        %v3784 = vadd.f32 0.0, %v3783
        %v3785 = vpop.f32.mrb[0].mxu0
        %v3786 = vpop.f32.mrb[0].mxu0
        %v3787 = vadd.f32 0.0, %v3786
        %v3788 = vpop.f32.mrb[0].mxu0
        %3789 = vmatprep.mubr.bf16.mxu0 0
        %3790 = vmatmul.mubr.bf16.gmra.mrb[0].mxu0 %v1416
        %v3791 = vpop.f32.mrb[0].mxu0
        %v3792 = vadd.f32 0.0, %v3791
        %v3793 = vpop.f32.mrb[0].mxu0
        %v3794 = vpop.f32.mrb[0].mxu0
        %v3795 = vadd.f32 0.0, %v3794
        %v3796 = vpop.f32.mrb[0].mxu0
        %3797 = vmatprep.mubr.bf16.mxu0 0
        %3798 = vmatmul.mubr.bf16.gmra.mrb[0].mxu0 %v1419
        %v3799 = vpop.f32.mrb[0].mxu0
        %v3800 = vadd.f32 0.0, %v3799
        %v3801 = vpop.f32.mrb[0].mxu0
        %v3802 = vpop.f32.mrb[0].mxu0
        %v3803 = vadd.f32 0.0, %v3802
        %v3804 = vpop.f32.mrb[0].mxu0
        %3805 = vmatprep.mubr.bf16.mxu0 0
        %3806 = vmatmul.mubr.bf16.gmra.mrb[0].mxu0 %v1422
        %v3807 = vpop.f32.mrb[0].mxu0
        %v3808 = vadd.f32 0.0, %v3807
        %v3809 = vpop.f32.mrb[0].mxu0
        %v3810 = vpop.f32.mrb[0].mxu0
        %v3811 = vadd.f32 0.0, %v3810
        %v3812 = vpop.f32.mrb[0].mxu0
        %3813 = vmatprep.mubr.bf16.mxu0 0
        %3814 = vmatmul.mubr.bf16.gmra.mrb[0].mxu0 %v1425
        %v3815 = vpop.f32.mrb[0].mxu0
        %v3816 = vadd.f32 0.0, %v3815
        %v3817 = vpop.f32.mrb[0].mxu0
        %v3818 = vpop.f32.mrb[0].mxu0
        %v3819 = vadd.f32 0.0, %v3818
        %v3820 = vpop.f32.mrb[0].mxu0
        %3821 = vdwg.mxu0
        %v3822 = vstv %s3722
        %v3823 = vmul.f32 %v3822, %v3760
        %v3824 = vmul.f32 %v3822, %v3763
        %v3825 = vmul.f32 %v3822, %v3768
        %v3826 = vmul.f32 %v3822, %v3771
        %v3827 = vmul.f32 %v3822, %v3776
        %v3828 = vmul.f32 %v3822, %v3779
        %v3829 = vmul.f32 %v3822, %v3784
        %v3830 = vmul.f32 %v3822, %v3787
        %v3831 = vmul.f32 %v3822, %v3792
        %v3832 = vmul.f32 %v3822, %v3795
        %v3833 = vmul.f32 %v3822, %v3800
        %v3834 = vmul.f32 %v3822, %v3803
        %v3835 = vmul.f32 %v3822, %v3808
        %v3836 = vmul.f32 %v3822, %v3811
        %v3837 = vmul.f32 %v3822, %v3816
        %v3838 = vmul.f32 %v3822, %v3819
        %3839 = vmatprep.subr.bf16.mxu0 0
        %3840 = vmatpush1.bf16.msra.mxu0 %v927
        %3841 = vmatprep.subr.bf16.mxu0 0
        %3842 = vmatpush1.bf16.msra.mxu0 %v928
        %3843 = vmatprep.subr.bf16.mxu0 0
        %3844 = vmatpush1.bf16.msra.mxu0 %v929
        %3845 = vmatprep.subr.bf16.mxu0 0
        %3846 = vmatpush1.bf16.msra.mxu0 %v930
        %3847 = vmatprep.subr.bf16.mxu0 0
        %3848 = vmatpush1.bf16.msra.mxu0 0
        %3849 = vmatprep.subr.bf16.mxu0 0
        %3850 = vmatpush1.bf16.msra.mxu0 0
        %3851 = vmatprep.subr.bf16.mxu0 0
        %3852 = vmatpush1.bf16.msra.mxu0 0
        %3853 = vmatprep.subr.bf16.mxu0 0
        %3854 = vmatpush1.bf16.msra.mxu0 0
        %3855 = vmatprep.subr.bf16.mxu0 0
        %3856 = vmatpush1.bf16.msra.mxu0 0
        %3857 = vmatprep.subr.bf16.mxu0 0
        %3858 = vmatpush1.bf16.msra.mxu0 0
        %3859 = vmatprep.subr.bf16.mxu0 0
        %3860 = vmatpush1.bf16.msra.mxu0 0
        %3861 = vmatprep.subr.bf16.mxu0 0
        %3862 = vmatpush1.bf16.msra.mxu0 0
        %3863 = vmatprep.subr.bf16.mxu0 0
        %3864 = vmatpush1.bf16.msra.mxu0 0
        %3865 = vmatprep.subr.bf16.mxu0 0
        %3866 = vmatpush1.bf16.msra.mxu0 0
        %3867 = vmatprep.subr.bf16.mxu0 0
        %3868 = vmatpush1.bf16.msra.mxu0 0
        %3869 = vmatprep.subr.bf16.mxu0 0
        %3870 = vmatpush1.bf16.msra.mxu0 0
        %3871 = vmatprep.mubr.bf16.mxu0 0
        %3872 = vmatmul.mubr.bf16.gmra.mrb[0].mxu0 %v1582
        %v3873 = vpop.f32.mrb[0].mxu0
        %v3874 = vadd.f32 %v3823, %v3873
        %v3875 = vpop.f32.mrb[0].mxu0
        %v3876 = vpop.f32.mrb[0].mxu0
        %v3877 = vadd.f32 %v3824, %v3876
        %v3878 = vpop.f32.mrb[0].mxu0
        %3879 = vmatprep.mubr.bf16.mxu0 0
        %3880 = vmatmul.mubr.bf16.gmra.mrb[0].mxu0 %v1585
        %v3881 = vpop.f32.mrb[0].mxu0
        %v3882 = vadd.f32 %v3825, %v3881
        %v3883 = vpop.f32.mrb[0].mxu0
        %v3884 = vpop.f32.mrb[0].mxu0
        %v3885 = vadd.f32 %v3826, %v3884
        %v3886 = vpop.f32.mrb[0].mxu0
        %3887 = vmatprep.mubr.bf16.mxu0 0
        %3888 = vmatmul.mubr.bf16.gmra.mrb[0].mxu0 %v1588
        %v3889 = vpop.f32.mrb[0].mxu0
        %v3890 = vadd.f32 %v3827, %v3889
        %v3891 = vpop.f32.mrb[0].mxu0
        %v3892 = vpop.f32.mrb[0].mxu0
        %v3893 = vadd.f32 %v3828, %v3892
        %v3894 = vpop.f32.mrb[0].mxu0
        %3895 = vmatprep.mubr.bf16.mxu0 0
        %3896 = vmatmul.mubr.bf16.gmra.mrb[0].mxu0 %v1591
        %v3897 = vpop.f32.mrb[0].mxu0
        %v3898 = vadd.f32 %v3829, %v3897
        %v3899 = vpop.f32.mrb[0].mxu0
        %v3900 = vpop.f32.mrb[0].mxu0
        %v3901 = vadd.f32 %v3830, %v3900
        %v3902 = vpop.f32.mrb[0].mxu0
        %3903 = vmatprep.mubr.bf16.mxu0 0
        %3904 = vmatmul.mubr.bf16.gmra.mrb[0].mxu0 %v1594
        %v3905 = vpop.f32.mrb[0].mxu0
        %v3906 = vadd.f32 %v3831, %v3905
        %v3907 = vpop.f32.mrb[0].mxu0
        %v3908 = vpop.f32.mrb[0].mxu0
        %v3909 = vadd.f32 %v3832, %v3908
        %v3910 = vpop.f32.mrb[0].mxu0
        %3911 = vmatprep.mubr.bf16.mxu0 0
        %3912 = vmatmul.mubr.bf16.gmra.mrb[0].mxu0 %v1597
        %v3913 = vpop.f32.mrb[0].mxu0
        %v3914 = vadd.f32 %v3833, %v3913
        %v3915 = vpop.f32.mrb[0].mxu0
        %v3916 = vpop.f32.mrb[0].mxu0
        %v3917 = vadd.f32 %v3834, %v3916
        %v3918 = vpop.f32.mrb[0].mxu0
        %3919 = vmatprep.mubr.bf16.mxu0 0
        %3920 = vmatmul.mubr.bf16.gmra.mrb[0].mxu0 %v1600
        %v3921 = vpop.f32.mrb[0].mxu0
        %v3922 = vadd.f32 %v3835, %v3921
        %v3923 = vpop.f32.mrb[0].mxu0
        %v3924 = vpop.f32.mrb[0].mxu0
        %v3925 = vadd.f32 %v3836, %v3924
        %v3926 = vpop.f32.mrb[0].mxu0
        %3927 = vmatprep.mubr.bf16.mxu0 0
        %3928 = vmatmul.mubr.bf16.gmra.mrb[0].mxu0 %v1603
        %v3929 = vpop.f32.mrb[0].mxu0
        %v3930 = vadd.f32 %v3837, %v3929
        %v3931 = vpop.f32.mrb[0].mxu0
        %v3932 = vpop.f32.mrb[0].mxu0
        %v3933 = vadd.f32 %v3838, %v3932
        %v3934 = vpop.f32.mrb[0].mxu0
        %3935 = vdwg.mxu0
        %3936 = vmatprep.subr.bf16.mxu0 0
        %3937 = vmatpush1.bf16.msra.mxu0 %v1053
        %3938 = vmatprep.subr.bf16.mxu0 0
        %3939 = vmatpush1.bf16.msra.mxu0 %v1054
        %3940 = vmatprep.subr.bf16.mxu0 0
        %3941 = vmatpush1.bf16.msra.mxu0 %v1055
        %3942 = vmatprep.subr.bf16.mxu0 0
        %3943 = vmatpush1.bf16.msra.mxu0 %v1056
        %3944 = vmatprep.subr.bf16.mxu0 0
        %3945 = vmatpush1.bf16.msra.mxu0 0
        %3946 = vmatprep.subr.bf16.mxu0 0
        %3947 = vmatpush1.bf16.msra.mxu0 0
        %3948 = vmatprep.subr.bf16.mxu0 0
        %3949 = vmatpush1.bf16.msra.mxu0 0
        %3950 = vmatprep.subr.bf16.mxu0 0
        %3951 = vmatpush1.bf16.msra.mxu0 0
        %3952 = vmatprep.subr.bf16.mxu0 0
        %3953 = vmatpush1.bf16.msra.mxu0 0
        %3954 = vmatprep.subr.bf16.mxu0 0
        %3955 = vmatpush1.bf16.msra.mxu0 0
        %3956 = vmatprep.subr.bf16.mxu0 0
        %3957 = vmatpush1.bf16.msra.mxu0 0
        %3958 = vmatprep.subr.bf16.mxu0 0
        %3959 = vmatpush1.bf16.msra.mxu0 0
        %3960 = vmatprep.subr.bf16.mxu0 0
        %3961 = vmatpush1.bf16.msra.mxu0 0
        %3962 = vmatprep.subr.bf16.mxu0 0
        %3963 = vmatpush1.bf16.msra.mxu0 0
        %3964 = vmatprep.subr.bf16.mxu0 0
        %3965 = vmatpush1.bf16.msra.mxu0 0
        %3966 = vmatprep.subr.bf16.mxu0 0
        %3967 = vmatpush1.bf16.msra.mxu0 0
        %3968 = vmatprep.mubr.bf16.mxu0 0
        %3969 = vmatmul.mubr.bf16.gmra.mrb[0].mxu0 %v1743
        %v3970 = vpop.f32.mrb[0].mxu0
        %v3971 = vadd.f32 0.0, %v3970
        %v3972 = vpop.f32.mrb[0].mxu0
        %v3973 = vpop.f32.mrb[0].mxu0
        %v3974 = vadd.f32 0.0, %v3973
        %v3975 = vpop.f32.mrb[0].mxu0
        %3976 = vmatprep.mubr.bf16.mxu0 0
        %3977 = vmatmul.mubr.bf16.gmra.mrb[0].mxu0 %v1746
        %v3978 = vpop.f32.mrb[0].mxu0
        %v3979 = vadd.f32 0.0, %v3978
        %v3980 = vpop.f32.mrb[0].mxu0
        %v3981 = vpop.f32.mrb[0].mxu0
        %v3982 = vadd.f32 0.0, %v3981
        %v3983 = vpop.f32.mrb[0].mxu0
        %3984 = vmatprep.mubr.bf16.mxu0 0
        %3985 = vmatmul.mubr.bf16.gmra.mrb[0].mxu0 %v1749
        %v3986 = vpop.f32.mrb[0].mxu0
        %v3987 = vadd.f32 0.0, %v3986
        %v3988 = vpop.f32.mrb[0].mxu0
        %v3989 = vpop.f32.mrb[0].mxu0
        %v3990 = vadd.f32 0.0, %v3989
        %v3991 = vpop.f32.mrb[0].mxu0
        %3992 = vmatprep.mubr.bf16.mxu0 0
        %3993 = vmatmul.mubr.bf16.gmra.mrb[0].mxu0 %v1752
        %v3994 = vpop.f32.mrb[0].mxu0
        %v3995 = vadd.f32 0.0, %v3994
        %v3996 = vpop.f32.mrb[0].mxu0
        %v3997 = vpop.f32.mrb[0].mxu0
        %v3998 = vadd.f32 0.0, %v3997
        %v3999 = vpop.f32.mrb[0].mxu0
        %4000 = vmatprep.mubr.bf16.mxu0 0
        %4001 = vmatmul.mubr.bf16.gmra.mrb[0].mxu0 %v1755
        %v4002 = vpop.f32.mrb[0].mxu0
        %v4003 = vadd.f32 0.0, %v4002
        %v4004 = vpop.f32.mrb[0].mxu0
        %v4005 = vpop.f32.mrb[0].mxu0
        %v4006 = vadd.f32 0.0, %v4005
        %v4007 = vpop.f32.mrb[0].mxu0
        %4008 = vmatprep.mubr.bf16.mxu0 0
        %4009 = vmatmul.mubr.bf16.gmra.mrb[0].mxu0 %v1758
        %v4010 = vpop.f32.mrb[0].mxu0
        %v4011 = vadd.f32 0.0, %v4010
        %v4012 = vpop.f32.mrb[0].mxu0
        %v4013 = vpop.f32.mrb[0].mxu0
        %v4014 = vadd.f32 0.0, %v4013
        %v4015 = vpop.f32.mrb[0].mxu0
        %4016 = vmatprep.mubr.bf16.mxu0 0
        %4017 = vmatmul.mubr.bf16.gmra.mrb[0].mxu0 %v1761
        %v4018 = vpop.f32.mrb[0].mxu0
        %v4019 = vadd.f32 0.0, %v4018
        %v4020 = vpop.f32.mrb[0].mxu0
        %v4021 = vpop.f32.mrb[0].mxu0
        %v4022 = vadd.f32 0.0, %v4021
        %v4023 = vpop.f32.mrb[0].mxu0
        %4024 = vmatprep.mubr.bf16.mxu0 0
        %4025 = vmatmul.mubr.bf16.gmra.mrb[0].mxu0 %v1764
        %v4026 = vpop.f32.mrb[0].mxu0
        %v4027 = vadd.f32 0.0, %v4026
        %v4028 = vpop.f32.mrb[0].mxu0
        %v4029 = vpop.f32.mrb[0].mxu0
        %v4030 = vadd.f32 0.0, %v4029
        %v4031 = vpop.f32.mrb[0].mxu0
        %4032 = vdwg.mxu0
        %v4033 = vstv %s3724
        %v4034 = vmul.f32 %v4033, %v3971
        %v4035 = vmul.f32 %v4033, %v3974
        %v4036 = vmul.f32 %v4033, %v3979
        %v4037 = vmul.f32 %v4033, %v3982
        %v4038 = vmul.f32 %v4033, %v3987
        %v4039 = vmul.f32 %v4033, %v3990
        %v4040 = vmul.f32 %v4033, %v3995
        %v4041 = vmul.f32 %v4033, %v3998
        %v4042 = vmul.f32 %v4033, %v4003
        %v4043 = vmul.f32 %v4033, %v4006
        %v4044 = vmul.f32 %v4033, %v4011
        %v4045 = vmul.f32 %v4033, %v4014
        %v4046 = vmul.f32 %v4033, %v4019
        %v4047 = vmul.f32 %v4033, %v4022
        %v4048 = vmul.f32 %v4033, %v4027
        %v4049 = vmul.f32 %v4033, %v4030
        %v4050 = vadd.f32 %v3874, %v4034
        %v4051 = vadd.f32 %v3877, %v4035
        %v4052 = vadd.f32 %v3882, %v4036
        %v4053 = vadd.f32 %v3885, %v4037
        %v4054 = vadd.f32 %v3890, %v4038
        %v4055 = vadd.f32 %v3893, %v4039
        %v4056 = vadd.f32 %v3898, %v4040
        %v4057 = vadd.f32 %v3901, %v4041
        %v4058 = vadd.f32 %v3906, %v4042
        %v4059 = vadd.f32 %v3909, %v4043
        %v4060 = vadd.f32 %v3914, %v4044
        %v4061 = vadd.f32 %v3917, %v4045
        %v4062 = vadd.f32 %v3922, %v4046
        %v4063 = vadd.f32 %v3925, %v4047
        %v4064 = vadd.f32 %v3930, %v4048
        %v4065 = vadd.f32 %v3933, %v4049
        %v4066 = vld [vmem:[%s7] sm:$0xff]
        %v4067 = vld [vmem:[%s7 + $0x8] sm:$0xff]
        %v4068 = vld [vmem:[%s7 + $0x10] sm:$0xff]
        %v4069 = vld [vmem:[%s7 + $0x18] sm:$0xff]
        %v4070 = vld [vmem:[%s7 + $0x20] sm:$0xff]
        %v4071 = vld [vmem:[%s7 + $0x28] sm:$0xff]
        %v4072 = vld [vmem:[%s7 + $0x30] sm:$0xff]
        %v4073 = vld [vmem:[%s7 + $0x38] sm:$0xff]
        %v4074 = vld [vmem:[%s7 + $0x40] sm:$0xff]
        %v4075 = vld [vmem:[%s7 + $0x48] sm:$0xff]
        %v4076 = vld [vmem:[%s7 + $0x50] sm:$0xff]
        %v4077 = vld [vmem:[%s7 + $0x58] sm:$0xff]
        %v4078 = vld [vmem:[%s7 + $0x60] sm:$0xff]
        %v4079 = vld [vmem:[%s7 + $0x68] sm:$0xff]
        %v4080 = vld [vmem:[%s7 + $0x70] sm:$0xff]
        %v4081 = vld [vmem:[%s7 + $0x78] sm:$0xff]
        %4083 = vset.pattern.permute.xlu0 0
        %4084 = vperm.xlu0 %4083, %v4066
        %v4085 = vpop.permute.xlu0 %4084
        %4088 = vset.pattern.permute.xlu0 0
        %4089 = vperm.xlu0 %4088, %v4067
        %v4090 = vpop.permute.xlu0 %4089
        %4093 = vset.pattern.permute.xlu0 0
        %4094 = vperm.xlu0 %4093, %v4068
        %v4095 = vpop.permute.xlu0 %4094
        %4098 = vset.pattern.permute.xlu0 0
        %4099 = vperm.xlu0 %4098, %v4069
        %v4100 = vpop.permute.xlu0 %4099
        %4103 = vset.pattern.permute.xlu0 0
        %4104 = vperm.xlu0 %4103, %v4070
        %v4105 = vpop.permute.xlu0 %4104
        %4108 = vset.pattern.permute.xlu0 0
        %4109 = vperm.xlu0 %4108, %v4071
        %v4110 = vpop.permute.xlu0 %4109
        %4113 = vset.pattern.permute.xlu0 0
        %4114 = vperm.xlu0 %4113, %v4072
        %v4115 = vpop.permute.xlu0 %4114
        %4118 = vset.pattern.permute.xlu0 0
        %4119 = vperm.xlu0 %4118, %v4073
        %v4120 = vpop.permute.xlu0 %4119
        %4123 = vset.pattern.permute.xlu0 0
        %4124 = vperm.xlu0 %4123, %v4074
        %v4125 = vpop.permute.xlu0 %4124
        %4128 = vset.pattern.permute.xlu0 0
        %4129 = vperm.xlu0 %4128, %v4075
        %v4130 = vpop.permute.xlu0 %4129
        %4133 = vset.pattern.permute.xlu0 0
        %4134 = vperm.xlu0 %4133, %v4076
        %v4135 = vpop.permute.xlu0 %4134
        %4138 = vset.pattern.permute.xlu0 0
        %4139 = vperm.xlu0 %4138, %v4077
        %v4140 = vpop.permute.xlu0 %4139
        %4143 = vset.pattern.permute.xlu0 0
        %4144 = vperm.xlu0 %4143, %v4078
        %v4145 = vpop.permute.xlu0 %4144
        %4148 = vset.pattern.permute.xlu0 0
        %4149 = vperm.xlu0 %4148, %v4079
        %v4150 = vpop.permute.xlu0 %4149
        %4153 = vset.pattern.permute.xlu0 0
        %4154 = vperm.xlu0 %4153, %v4080
        %v4155 = vpop.permute.xlu0 %4154
        %4158 = vset.pattern.permute.xlu0 0
        %4159 = vperm.xlu0 %4158, %v4081
        %v4160 = vpop.permute.xlu0 %4159
        %v4162 = vadd.f32 %v4050, %v4085
        %v4163 = vadd.f32 %v4051, %v4090
        %v4164 = vadd.f32 %v4052, %v4095
        %v4165 = vadd.f32 %v4053, %v4100
        %v4166 = vadd.f32 %v4054, %v4105
        %v4167 = vadd.f32 %v4055, %v4110
        %v4168 = vadd.f32 %v4056, %v4115
        %v4169 = vadd.f32 %v4057, %v4120
        %v4170 = vadd.f32 %v4058, %v4125
        %v4171 = vadd.f32 %v4059, %v4130
        %v4172 = vadd.f32 %v4060, %v4135
        %v4173 = vadd.f32 %v4061, %v4140
        %v4174 = vadd.f32 %v4062, %v4145
        %v4175 = vadd.f32 %v4063, %v4150
        %v4176 = vadd.f32 %v4064, %v4155
        %v4177 = vadd.f32 %v4065, %v4160
        %v4178 = vsel %vm1402, %v4162, 0.0
        %4179 = vadd.xlane.f32.xlu0 %v4178
        %v4180 = vpop.xlane.xlu0 %4179
        %v4181 = vsel %vm1402, %v4163, 0.0
        %4182 = vadd.xlane.f32.xlu0 %v4181
        %v4183 = vpop.xlane.xlu0 %4182
        %v4184 = vsel %vm1402, %v4164, 0.0
        %4185 = vadd.xlane.f32.xlu0 %v4184
        %v4186 = vpop.xlane.xlu0 %4185
        %v4187 = vsel %vm1402, %v4165, 0.0
        %4188 = vadd.xlane.f32.xlu0 %v4187
        %v4189 = vpop.xlane.xlu0 %4188
        %v4190 = vsel %vm1402, %v4166, 0.0
        %4191 = vadd.xlane.f32.xlu0 %v4190
        %v4192 = vpop.xlane.xlu0 %4191
        %v4193 = vsel %vm1402, %v4167, 0.0
        %4194 = vadd.xlane.f32.xlu0 %v4193
        %v4195 = vpop.xlane.xlu0 %4194
        %v4196 = vsel %vm1402, %v4168, 0.0
        %4197 = vadd.xlane.f32.xlu0 %v4196
        %v4198 = vpop.xlane.xlu0 %4197
        %v4199 = vsel %vm1402, %v4169, 0.0
        %4200 = vadd.xlane.f32.xlu0 %v4199
        %v4201 = vpop.xlane.xlu0 %4200
        %v4202 = vsel %vm1402, %v4170, 0.0
        %4203 = vadd.xlane.f32.xlu0 %v4202
        %v4204 = vpop.xlane.xlu0 %4203
        %v4205 = vsel %vm1402, %v4171, 0.0
        %4206 = vadd.xlane.f32.xlu0 %v4205
        %v4207 = vpop.xlane.xlu0 %4206
        %v4208 = vsel %vm1402, %v4172, 0.0
        %4209 = vadd.xlane.f32.xlu0 %v4208
        %v4210 = vpop.xlane.xlu0 %4209
        %v4211 = vsel %vm1402, %v4173, 0.0
        %4212 = vadd.xlane.f32.xlu0 %v4211
        %v4213 = vpop.xlane.xlu0 %4212
        %v4214 = vsel %vm1402, %v4174, 0.0
        %4215 = vadd.xlane.f32.xlu0 %v4214
        %v4216 = vpop.xlane.xlu0 %4215
        %v4217 = vsel %vm1402, %v4175, 0.0
        %4218 = vadd.xlane.f32.xlu0 %v4217
        %v4219 = vpop.xlane.xlu0 %4218
        %v4220 = vsel %vm1402, %v4176, 0.0
        %4221 = vadd.xlane.f32.xlu0 %v4220
        %v4222 = vpop.xlane.xlu0 %4221
        %v4223 = vsel %vm1402, %v4177, 0.0
        %4224 = vadd.xlane.f32.xlu0 %v4223
        %v4225 = vpop.xlane.xlu0 %4224
        %v4226 = vmul.f32 %v4180, %v2056
        %v4227 = vmul.f32 %v4183, %v2056
        %v4228 = vmul.f32 %v4186, %v2056
        %v4229 = vmul.f32 %v4189, %v2056
        %v4230 = vmul.f32 %v4192, %v2056
        %v4231 = vmul.f32 %v4195, %v2056
        %v4232 = vmul.f32 %v4198, %v2056
        %v4233 = vmul.f32 %v4201, %v2056
        %v4234 = vmul.f32 %v4204, %v2056
        %v4235 = vmul.f32 %v4207, %v2056
        %v4236 = vmul.f32 %v4210, %v2056
        %v4237 = vmul.f32 %v4213, %v2056
        %v4238 = vmul.f32 %v4216, %v2056
        %v4239 = vmul.f32 %v4219, %v2056
        %v4240 = vmul.f32 %v4222, %v2056
        %v4241 = vmul.f32 %v4225, %v2056
        %v4242 = vld [vmem:[#allocation9] sm:$0xff]
        %v4243 = vld [vmem:[#allocation9 + $0x8] sm:$0xff]
        %v4244 = vld [vmem:[#allocation9 + $0x10] sm:$0xff]
        %v4245 = vld [vmem:[#allocation9 + $0x18] sm:$0xff]
        %v4246 = vld [vmem:[#allocation9 + $0x20] sm:$0xff]
        %v4247 = vld [vmem:[#allocation9 + $0x28] sm:$0xff]
        %v4248 = vld [vmem:[#allocation9 + $0x30] sm:$0xff]
        %v4249 = vld [vmem:[#allocation9 + $0x38] sm:$0xff]
        %v4250 = vld [vmem:[#allocation9 + $0x40] sm:$0xff]
        %v4251 = vld [vmem:[#allocation9 + $0x48] sm:$0xff]
        %v4252 = vld [vmem:[#allocation9 + $0x50] sm:$0xff]
        %v4253 = vld [vmem:[#allocation9 + $0x58] sm:$0xff]
        %v4254 = vld [vmem:[#allocation9 + $0x60] sm:$0xff]
        %v4255 = vld [vmem:[#allocation9 + $0x68] sm:$0xff]
        %v4256 = vld [vmem:[#allocation9 + $0x70] sm:$0xff]
        %v4257 = vld [vmem:[#allocation9 + $0x78] sm:$0xff]
        %v4258 = vld [vmem:[%s9] sm:$0xff]
        %v4259 = vld [vmem:[%s9 + $0x8] sm:$0xff]
        %v4260 = vld [vmem:[%s9 + $0x10] sm:$0xff]
        %v4261 = vld [vmem:[%s9 + $0x18] sm:$0xff]
        %v4262 = vld [vmem:[%s9 + $0x20] sm:$0xff]
        %v4263 = vld [vmem:[%s9 + $0x28] sm:$0xff]
        %v4264 = vld [vmem:[%s9 + $0x30] sm:$0xff]
        %v4265 = vld [vmem:[%s9 + $0x38] sm:$0xff]
        %v4266 = vld [vmem:[%s9 + $0x40] sm:$0xff]
        %v4267 = vld [vmem:[%s9 + $0x48] sm:$0xff]
        %v4268 = vld [vmem:[%s9 + $0x50] sm:$0xff]
        %v4269 = vld [vmem:[%s9 + $0x58] sm:$0xff]
        %v4270 = vld [vmem:[%s9 + $0x60] sm:$0xff]
        %v4271 = vld [vmem:[%s9 + $0x68] sm:$0xff]
        %v4272 = vld [vmem:[%s9 + $0x70] sm:$0xff]
        %v4273 = vld [vmem:[%s9 + $0x78] sm:$0xff]
        %4274 = vmatprep.subr.mxu0 0.0
        %4275 = vmatpush1.msra.mxu0 %v4226
        %4276 = vmatprep.subr.mxu0 0.0
        %4277 = vmatpush1.msra.mxu0 %v4227
        %4278 = vmatprep.subr.mxu0 0.0
        %4279 = vmatpush1.msra.mxu0 %v4228
        %4280 = vmatprep.subr.mxu0 0.0
        %4281 = vmatpush1.msra.mxu0 %v4229
        %4282 = vmatprep.subr.mxu0 0.0
        %4283 = vmatpush1.msra.mxu0 %v4230
        %4284 = vmatprep.subr.mxu0 0.0
        %4285 = vmatpush1.msra.mxu0 %v4231
        %4286 = vmatprep.subr.mxu0 0.0
        %4287 = vmatpush1.msra.mxu0 %v4232
        %4288 = vmatprep.subr.mxu0 0.0
        %4289 = vmatpush1.msra.mxu0 %v4233
        %4290 = vmatprep.subr.mxu0 0.0
        %4291 = vmatpush1.msra.mxu0 %v4234
        %4292 = vmatprep.subr.mxu0 0.0
        %4293 = vmatpush1.msra.mxu0 %v4235
        %4294 = vmatprep.subr.mxu0 0.0
        %4295 = vmatpush1.msra.mxu0 %v4236
        %4296 = vmatprep.subr.mxu0 0.0
        %4297 = vmatpush1.msra.mxu0 %v4237
        %4298 = vmatprep.subr.mxu0 0.0
        %4299 = vmatpush1.msra.mxu0 %v4238
        %4300 = vmatprep.subr.mxu0 0.0
        %4301 = vmatpush1.msra.mxu0 %v4239
        %4302 = vmatprep.subr.mxu0 0.0
        %4303 = vmatpush1.msra.mxu0 %v4240
        %4304 = vmatprep.subr.mxu0 0.0
        %4305 = vmatpush1.msra.mxu0 %v4241
        %4306 = vmatprep.subr.mxu0 0.0
        %4307 = vmatpush1.msra.mxu0 0.0
        %4308 = vmatprep.subr.mxu0 0.0
        %4309 = vmatpush1.msra.mxu0 0.0
        %4310 = vmatprep.subr.mxu0 0.0
        %4311 = vmatpush1.msra.mxu0 0.0
        %4312 = vmatprep.subr.mxu0 0.0
        %4313 = vmatpush1.msra.mxu0 0.0
        %4314 = vmatprep.subr.mxu0 0.0
        %4315 = vmatpush1.msra.mxu0 0.0
        %4316 = vmatprep.subr.mxu0 0.0
        %4317 = vmatpush1.msra.mxu0 0.0
        %4318 = vmatprep.subr.mxu0 0.0
        %4319 = vmatpush1.msra.mxu0 0.0
        %4320 = vmatprep.subr.mxu0 0.0
        %4321 = vmatpush1.msra.mxu0 0.0
        %4322 = vmatprep.subr.mxu0 0.0
        %4323 = vmatpush1.msra.mxu0 0.0
        %4324 = vmatprep.subr.mxu0 0.0
        %4325 = vmatpush1.msra.mxu0 0.0
        %4326 = vmatprep.subr.mxu0 0.0
        %4327 = vmatpush1.msra.mxu0 0.0
        %4328 = vmatprep.subr.mxu0 0.0
        %4329 = vmatpush1.msra.mxu0 0.0
        %4330 = vmatprep.subr.mxu0 0.0
        %4331 = vmatpush1.msra.mxu0 0.0
        %4332 = vmatprep.subr.mxu0 0.0
        %4333 = vmatpush1.msra.mxu0 0.0
        %4334 = vmatprep.subr.mxu0 0.0
        %4335 = vmatpush1.msra.mxu0 0.0
        %4336 = vmatprep.subr.mxu0 0.0
        %4337 = vmatpush1.msra.mxu0 0.0
        %4338 = vmatprep.mubr.f32.mxu0 0.0
        %4339 = vmatmul.mubr.f32.gmra.mrb[0].mxu0 %v4242
        %v4340 = vpop.f32.mrb[0].mxu0
        %v4341 = vadd.f32 %v4258, %v4340
        %v4342 = vpop.f32.mrb[0].mxu0
        %4343 = vmatprep.mubr.f32.mxu0 0.0
        %4344 = vmatmul.mubr.f32.gmra.mrb[0].mxu0 %v4243
        %v4345 = vpop.f32.mrb[0].mxu0
        %v4346 = vadd.f32 %v4259, %v4345
        %v4347 = vpop.f32.mrb[0].mxu0
        %4348 = vmatprep.mubr.f32.mxu0 0.0
        %4349 = vmatmul.mubr.f32.gmra.mrb[0].mxu0 %v4244
        %v4350 = vpop.f32.mrb[0].mxu0
        %v4351 = vadd.f32 %v4260, %v4350
        %v4352 = vpop.f32.mrb[0].mxu0
        %4353 = vmatprep.mubr.f32.mxu0 0.0
        %4354 = vmatmul.mubr.f32.gmra.mrb[0].mxu0 %v4245
        %v4355 = vpop.f32.mrb[0].mxu0
        %v4356 = vadd.f32 %v4261, %v4355
        %v4357 = vpop.f32.mrb[0].mxu0
        %4358 = vmatprep.mubr.f32.mxu0 0.0
        %4359 = vmatmul.mubr.f32.gmra.mrb[0].mxu0 %v4246
        %v4360 = vpop.f32.mrb[0].mxu0
        %v4361 = vadd.f32 %v4262, %v4360
        %v4362 = vpop.f32.mrb[0].mxu0
        %4363 = vmatprep.mubr.f32.mxu0 0.0
        %4364 = vmatmul.mubr.f32.gmra.mrb[0].mxu0 %v4247
        %v4365 = vpop.f32.mrb[0].mxu0
        %v4366 = vadd.f32 %v4263, %v4365
        %v4367 = vpop.f32.mrb[0].mxu0
        %4368 = vmatprep.mubr.f32.mxu0 0.0
        %4369 = vmatmul.mubr.f32.gmra.mrb[0].mxu0 %v4248
        %v4370 = vpop.f32.mrb[0].mxu0
        %v4371 = vadd.f32 %v4264, %v4370
        %v4372 = vpop.f32.mrb[0].mxu0
        %4373 = vmatprep.mubr.f32.mxu0 0.0
        %4374 = vmatmul.mubr.f32.gmra.mrb[0].mxu0 %v4249
        %v4375 = vpop.f32.mrb[0].mxu0
        %v4376 = vadd.f32 %v4265, %v4375
        %v4377 = vpop.f32.mrb[0].mxu0
        %4378 = vmatprep.mubr.f32.mxu0 0.0
        %4379 = vmatmul.mubr.f32.gmra.mrb[0].mxu0 %v4250
        %v4380 = vpop.f32.mrb[0].mxu0
        %v4381 = vadd.f32 %v4266, %v4380
        %v4382 = vpop.f32.mrb[0].mxu0
        %4383 = vmatprep.mubr.f32.mxu0 0.0
        %4384 = vmatmul.mubr.f32.gmra.mrb[0].mxu0 %v4251
        %v4385 = vpop.f32.mrb[0].mxu0
        %v4386 = vadd.f32 %v4267, %v4385
        %v4387 = vpop.f32.mrb[0].mxu0
        %4388 = vmatprep.mubr.f32.mxu0 0.0
        %4389 = vmatmul.mubr.f32.gmra.mrb[0].mxu0 %v4252
        %v4390 = vpop.f32.mrb[0].mxu0
        %v4391 = vadd.f32 %v4268, %v4390
        %v4392 = vpop.f32.mrb[0].mxu0
        %4393 = vmatprep.mubr.f32.mxu0 0.0
        %4394 = vmatmul.mubr.f32.gmra.mrb[0].mxu0 %v4253
        %v4395 = vpop.f32.mrb[0].mxu0
        %v4396 = vadd.f32 %v4269, %v4395
        %v4397 = vpop.f32.mrb[0].mxu0
        %4398 = vmatprep.mubr.f32.mxu0 0.0
        %4399 = vmatmul.mubr.f32.gmra.mrb[0].mxu0 %v4254
        %v4400 = vpop.f32.mrb[0].mxu0
        %v4401 = vadd.f32 %v4270, %v4400
        %v4402 = vpop.f32.mrb[0].mxu0
        %4403 = vmatprep.mubr.f32.mxu0 0.0
        %4404 = vmatmul.mubr.f32.gmra.mrb[0].mxu0 %v4255
        %v4405 = vpop.f32.mrb[0].mxu0
        %v4406 = vadd.f32 %v4271, %v4405
        %v4407 = vpop.f32.mrb[0].mxu0
        %4408 = vmatprep.mubr.f32.mxu0 0.0
        %4409 = vmatmul.mubr.f32.gmra.mrb[0].mxu0 %v4256
        %v4410 = vpop.f32.mrb[0].mxu0
        %v4411 = vadd.f32 %v4272, %v4410
        %v4412 = vpop.f32.mrb[0].mxu0
        %4413 = vmatprep.mubr.f32.mxu0 0.0
        %4414 = vmatmul.mubr.f32.gmra.mrb[0].mxu0 %v4257
        %v4415 = vpop.f32.mrb[0].mxu0
        %v4416 = vadd.f32 %v4273, %v4415
        %v4417 = vpop.f32.mrb[0].mxu0
        %4418 = vdwg.mxu0
        %v4419 = vmax.f32 %v4341, 0.0
        %v4420 = vmax.f32 %v4346, 0.0
        %v4421 = vmax.f32 %v4351, 0.0
        %v4422 = vmax.f32 %v4356, 0.0
        %v4423 = vmax.f32 %v4361, 0.0
        %v4424 = vmax.f32 %v4366, 0.0
        %v4425 = vmax.f32 %v4371, 0.0
        %v4426 = vmax.f32 %v4376, 0.0
        %v4427 = vmax.f32 %v4381, 0.0
        %v4428 = vmax.f32 %v4386, 0.0
        %v4429 = vmax.f32 %v4391, 0.0
        %v4430 = vmax.f32 %v4396, 0.0
        %v4431 = vmax.f32 %v4401, 0.0
        %v4432 = vmax.f32 %v4406, 0.0
        %v4433 = vmax.f32 %v4411, 0.0
        %v4434 = vmax.f32 %v4416, 0.0
        %v4435 = vld [vmem:[#allocation10] sm:$0xff]
        %v4436 = vld [vmem:[#allocation10 + $0x8] sm:$0xff]
        %v4437 = vld [vmem:[#allocation10 + $0x10] sm:$0xff]
        %v4438 = vld [vmem:[#allocation10 + $0x18] sm:$0xff]
        %v4439 = vld [vmem:[#allocation10 + $0x20] sm:$0xff]
        %v4440 = vld [vmem:[#allocation10 + $0x28] sm:$0xff]
        %v4441 = vld [vmem:[#allocation10 + $0x30] sm:$0xff]
        %v4442 = vld [vmem:[#allocation10 + $0x38] sm:$0xff]
        %v4443 = vld [vmem:[#allocation10 + $0x40] sm:$0xff]
        %v4444 = vld [vmem:[#allocation10 + $0x48] sm:$0xff]
        %v4445 = vld [vmem:[#allocation10 + $0x50] sm:$0xff]
        %v4446 = vld [vmem:[#allocation10 + $0x58] sm:$0xff]
        %v4447 = vld [vmem:[#allocation10 + $0x60] sm:$0xff]
        %v4448 = vld [vmem:[#allocation10 + $0x68] sm:$0xff]
        %v4449 = vld [vmem:[#allocation10 + $0x70] sm:$0xff]
        %v4450 = vld [vmem:[#allocation10 + $0x78] sm:$0xff]
        %v4451 = vld [vmem:[%s11] sm:$0xff]
        %v4452 = vld [vmem:[%s11 + $0x8] sm:$0xff]
        %v4453 = vld [vmem:[%s11 + $0x10] sm:$0xff]
        %v4454 = vld [vmem:[%s11 + $0x18] sm:$0xff]
        %v4455 = vld [vmem:[%s11 + $0x20] sm:$0xff]
        %v4456 = vld [vmem:[%s11 + $0x28] sm:$0xff]
        %v4457 = vld [vmem:[%s11 + $0x30] sm:$0xff]
        %v4458 = vld [vmem:[%s11 + $0x38] sm:$0xff]
        %v4459 = vld [vmem:[%s11 + $0x40] sm:$0xff]
        %v4460 = vld [vmem:[%s11 + $0x48] sm:$0xff]
        %v4461 = vld [vmem:[%s11 + $0x50] sm:$0xff]
        %v4462 = vld [vmem:[%s11 + $0x58] sm:$0xff]
        %v4463 = vld [vmem:[%s11 + $0x60] sm:$0xff]
        %v4464 = vld [vmem:[%s11 + $0x68] sm:$0xff]
        %v4465 = vld [vmem:[%s11 + $0x70] sm:$0xff]
        %v4466 = vld [vmem:[%s11 + $0x78] sm:$0xff]
        %4467 = vmatprep.subr.mxu0 0.0
        %4468 = vmatpush1.msra.mxu0 %v4419
        %4469 = vmatprep.subr.mxu0 0.0
        %4470 = vmatpush1.msra.mxu0 %v4420
        %4471 = vmatprep.subr.mxu0 0.0
        %4472 = vmatpush1.msra.mxu0 %v4421
        %4473 = vmatprep.subr.mxu0 0.0
        %4474 = vmatpush1.msra.mxu0 %v4422
        %4475 = vmatprep.subr.mxu0 0.0
        %4476 = vmatpush1.msra.mxu0 %v4423
        %4477 = vmatprep.subr.mxu0 0.0
        %4478 = vmatpush1.msra.mxu0 %v4424
        %4479 = vmatprep.subr.mxu0 0.0
        %4480 = vmatpush1.msra.mxu0 %v4425
        %4481 = vmatprep.subr.mxu0 0.0
        %4482 = vmatpush1.msra.mxu0 %v4426
        %4483 = vmatprep.subr.mxu0 0.0
        %4484 = vmatpush1.msra.mxu0 %v4427
        %4485 = vmatprep.subr.mxu0 0.0
        %4486 = vmatpush1.msra.mxu0 %v4428
        %4487 = vmatprep.subr.mxu0 0.0
        %4488 = vmatpush1.msra.mxu0 %v4429
        %4489 = vmatprep.subr.mxu0 0.0
        %4490 = vmatpush1.msra.mxu0 %v4430
        %4491 = vmatprep.subr.mxu0 0.0
        %4492 = vmatpush1.msra.mxu0 %v4431
        %4493 = vmatprep.subr.mxu0 0.0
        %4494 = vmatpush1.msra.mxu0 %v4432
        %4495 = vmatprep.subr.mxu0 0.0
        %4496 = vmatpush1.msra.mxu0 %v4433
        %4497 = vmatprep.subr.mxu0 0.0
        %4498 = vmatpush1.msra.mxu0 %v4434
        %4499 = vmatprep.subr.mxu0 0.0
        %4500 = vmatpush1.msra.mxu0 0.0
        %4501 = vmatprep.subr.mxu0 0.0
        %4502 = vmatpush1.msra.mxu0 0.0
        %4503 = vmatprep.subr.mxu0 0.0
        %4504 = vmatpush1.msra.mxu0 0.0
        %4505 = vmatprep.subr.mxu0 0.0
        %4506 = vmatpush1.msra.mxu0 0.0
        %4507 = vmatprep.subr.mxu0 0.0
        %4508 = vmatpush1.msra.mxu0 0.0
        %4509 = vmatprep.subr.mxu0 0.0
        %4510 = vmatpush1.msra.mxu0 0.0
        %4511 = vmatprep.subr.mxu0 0.0
        %4512 = vmatpush1.msra.mxu0 0.0
        %4513 = vmatprep.subr.mxu0 0.0
        %4514 = vmatpush1.msra.mxu0 0.0
        %4515 = vmatprep.subr.mxu0 0.0
        %4516 = vmatpush1.msra.mxu0 0.0
        %4517 = vmatprep.subr.mxu0 0.0
        %4518 = vmatpush1.msra.mxu0 0.0
        %4519 = vmatprep.subr.mxu0 0.0
        %4520 = vmatpush1.msra.mxu0 0.0
        %4521 = vmatprep.subr.mxu0 0.0
        %4522 = vmatpush1.msra.mxu0 0.0
        %4523 = vmatprep.subr.mxu0 0.0
        %4524 = vmatpush1.msra.mxu0 0.0
        %4525 = vmatprep.subr.mxu0 0.0
        %4526 = vmatpush1.msra.mxu0 0.0
        %4527 = vmatprep.subr.mxu0 0.0
        %4528 = vmatpush1.msra.mxu0 0.0
        %4529 = vmatprep.subr.mxu0 0.0
        %4530 = vmatpush1.msra.mxu0 0.0
        %4531 = vmatprep.mubr.f32.mxu0 0.0
        %4532 = vmatmul.mubr.f32.gmra.mrb[0].mxu0 %v4435
        %v4533 = vpop.f32.mrb[0].mxu0
        %v4534 = vadd.f32 %v4451, %v4533
        %v4535 = vpop.f32.mrb[0].mxu0
        %4536 = vmatprep.mubr.f32.mxu0 0.0
        %4537 = vmatmul.mubr.f32.gmra.mrb[0].mxu0 %v4436
        %v4538 = vpop.f32.mrb[0].mxu0
        %v4539 = vadd.f32 %v4452, %v4538
        %v4540 = vpop.f32.mrb[0].mxu0
        %4541 = vmatprep.mubr.f32.mxu0 0.0
        %4542 = vmatmul.mubr.f32.gmra.mrb[0].mxu0 %v4437
        %v4543 = vpop.f32.mrb[0].mxu0
        %v4544 = vadd.f32 %v4453, %v4543
        %v4545 = vpop.f32.mrb[0].mxu0
        %4546 = vmatprep.mubr.f32.mxu0 0.0
        %4547 = vmatmul.mubr.f32.gmra.mrb[0].mxu0 %v4438
        %v4548 = vpop.f32.mrb[0].mxu0
        %v4549 = vadd.f32 %v4454, %v4548
        %v4550 = vpop.f32.mrb[0].mxu0
        %4551 = vmatprep.mubr.f32.mxu0 0.0
        %4552 = vmatmul.mubr.f32.gmra.mrb[0].mxu0 %v4439
        %v4553 = vpop.f32.mrb[0].mxu0
        %v4554 = vadd.f32 %v4455, %v4553
        %v4555 = vpop.f32.mrb[0].mxu0
        %4556 = vmatprep.mubr.f32.mxu0 0.0
        %4557 = vmatmul.mubr.f32.gmra.mrb[0].mxu0 %v4440
        %v4558 = vpop.f32.mrb[0].mxu0
        %v4559 = vadd.f32 %v4456, %v4558
        %v4560 = vpop.f32.mrb[0].mxu0
        %4561 = vmatprep.mubr.f32.mxu0 0.0
        %4562 = vmatmul.mubr.f32.gmra.mrb[0].mxu0 %v4441
        %v4563 = vpop.f32.mrb[0].mxu0
        %v4564 = vadd.f32 %v4457, %v4563
        %v4565 = vpop.f32.mrb[0].mxu0
        %4566 = vmatprep.mubr.f32.mxu0 0.0
        %4567 = vmatmul.mubr.f32.gmra.mrb[0].mxu0 %v4442
        %v4568 = vpop.f32.mrb[0].mxu0
        %v4569 = vadd.f32 %v4458, %v4568
        %v4570 = vpop.f32.mrb[0].mxu0
        %4571 = vmatprep.mubr.f32.mxu0 0.0
        %4572 = vmatmul.mubr.f32.gmra.mrb[0].mxu0 %v4443
        %v4573 = vpop.f32.mrb[0].mxu0
        %v4574 = vadd.f32 %v4459, %v4573
        %v4575 = vpop.f32.mrb[0].mxu0
        %4576 = vmatprep.mubr.f32.mxu0 0.0
        %4577 = vmatmul.mubr.f32.gmra.mrb[0].mxu0 %v4444
        %v4578 = vpop.f32.mrb[0].mxu0
        %v4579 = vadd.f32 %v4460, %v4578
        %v4580 = vpop.f32.mrb[0].mxu0
        %4581 = vmatprep.mubr.f32.mxu0 0.0
        %4582 = vmatmul.mubr.f32.gmra.mrb[0].mxu0 %v4445
        %v4583 = vpop.f32.mrb[0].mxu0
        %v4584 = vadd.f32 %v4461, %v4583
        %v4585 = vpop.f32.mrb[0].mxu0
        %4586 = vmatprep.mubr.f32.mxu0 0.0
        %4587 = vmatmul.mubr.f32.gmra.mrb[0].mxu0 %v4446
        %v4588 = vpop.f32.mrb[0].mxu0
        %v4589 = vadd.f32 %v4462, %v4588
        %v4590 = vpop.f32.mrb[0].mxu0
        %4591 = vmatprep.mubr.f32.mxu0 0.0
        %4592 = vmatmul.mubr.f32.gmra.mrb[0].mxu0 %v4447
        %v4593 = vpop.f32.mrb[0].mxu0
        %v4594 = vadd.f32 %v4463, %v4593
        %v4595 = vpop.f32.mrb[0].mxu0
        %4596 = vmatprep.mubr.f32.mxu0 0.0
        %4597 = vmatmul.mubr.f32.gmra.mrb[0].mxu0 %v4448
        %v4598 = vpop.f32.mrb[0].mxu0
        %v4599 = vadd.f32 %v4464, %v4598
        %v4600 = vpop.f32.mrb[0].mxu0
        %4601 = vmatprep.mubr.f32.mxu0 0.0
        %4602 = vmatmul.mubr.f32.gmra.mrb[0].mxu0 %v4449
        %v4603 = vpop.f32.mrb[0].mxu0
        %v4604 = vadd.f32 %v4465, %v4603
        %v4605 = vpop.f32.mrb[0].mxu0
        %4606 = vmatprep.mubr.f32.mxu0 0.0
        %4607 = vmatmul.mubr.f32.gmra.mrb[0].mxu0 %v4450
        %v4608 = vpop.f32.mrb[0].mxu0
        %v4609 = vadd.f32 %v4466, %v4608
        %v4610 = vpop.f32.mrb[0].mxu0
        %4611 = vdwg.mxu0
        %v4612 = vsub.f32 0.0, %v4534
        %v4613 = vsub.f32 0.0, %v4539
        %v4614 = vsub.f32 0.0, %v4544
        %v4615 = vsub.f32 0.0, %v4549
        %v4616 = vsub.f32 0.0, %v4554
        %v4617 = vsub.f32 0.0, %v4559
        %v4618 = vsub.f32 0.0, %v4564
        %v4619 = vsub.f32 0.0, %v4569
        %v4620 = vsub.f32 0.0, %v4574
        %v4621 = vsub.f32 0.0, %v4579
        %v4622 = vsub.f32 0.0, %v4584
        %v4623 = vsub.f32 0.0, %v4589
        %v4624 = vsub.f32 0.0, %v4594
        %v4625 = vsub.f32 0.0, %v4599
        %v4626 = vsub.f32 0.0, %v4604
        %v4627 = vsub.f32 0.0, %v4609
        %v4628 = vmul.f32 %v4612, 1.442695
        %v4629 = vpow.pop %v4628
        %v4630 = vmul.f32 %v4613, 1.442695
        %v4631 = vpow.pop %v4630
        %v4632 = vmul.f32 %v4614, 1.442695
        %v4633 = vpow.pop %v4632
        %v4634 = vmul.f32 %v4615, 1.442695
        %v4635 = vpow.pop %v4634
        %v4636 = vmul.f32 %v4616, 1.442695
        %v4637 = vpow.pop %v4636
        %v4638 = vmul.f32 %v4617, 1.442695
        %v4639 = vpow.pop %v4638
        %v4640 = vmul.f32 %v4618, 1.442695
        %v4641 = vpow.pop %v4640
        %v4642 = vmul.f32 %v4619, 1.442695
        %v4643 = vpow.pop %v4642
        %v4644 = vmul.f32 %v4620, 1.442695
        %v4645 = vpow.pop %v4644
        %v4646 = vmul.f32 %v4621, 1.442695
        %v4647 = vpow.pop %v4646
        %v4648 = vmul.f32 %v4622, 1.442695
        %v4649 = vpow.pop %v4648
        %v4650 = vmul.f32 %v4623, 1.442695
        %v4651 = vpow.pop %v4650
        %v4652 = vmul.f32 %v4624, 1.442695
        %v4653 = vpow.pop %v4652
        %v4654 = vmul.f32 %v4625, 1.442695
        %v4655 = vpow.pop %v4654
        %v4656 = vmul.f32 %v4626, 1.442695
        %v4657 = vpow.pop %v4656
        %v4658 = vmul.f32 %v4627, 1.442695
        %v4659 = vpow.pop %v4658
        %v4660 = vadd.f32 %v4629, 1.0
        %v4661 = vadd.f32 %v4631, 1.0
        %v4662 = vadd.f32 %v4633, 1.0
        %v4663 = vadd.f32 %v4635, 1.0
        %v4664 = vadd.f32 %v4637, 1.0
        %v4665 = vadd.f32 %v4639, 1.0
        %v4666 = vadd.f32 %v4641, 1.0
        %v4667 = vadd.f32 %v4643, 1.0
        %v4668 = vadd.f32 %v4645, 1.0
        %v4669 = vadd.f32 %v4647, 1.0
        %v4670 = vadd.f32 %v4649, 1.0
        %v4671 = vadd.f32 %v4651, 1.0
        %v4672 = vadd.f32 %v4653, 1.0
        %v4673 = vadd.f32 %v4655, 1.0
        %v4674 = vadd.f32 %v4657, 1.0
        %v4675 = vadd.f32 %v4659, 1.0
        %v4676 = vrcp.pop %v4660
        %v4677 = vrcp.pop %v4661
        %v4678 = vrcp.pop %v4662
        %v4679 = vrcp.pop %v4663
        %v4680 = vrcp.pop %v4664
        %v4681 = vrcp.pop %v4665
        %v4682 = vrcp.pop %v4666
        %v4683 = vrcp.pop %v4667
        %v4684 = vrcp.pop %v4668
        %v4685 = vrcp.pop %v4669
        %v4686 = vrcp.pop %v4670
        %v4687 = vrcp.pop %v4671
        %v4688 = vrcp.pop %v4672
        %v4689 = vrcp.pop %v4673
        %v4690 = vrcp.pop %v4674
        %v4691 = vrcp.pop %v4675
        %4693 = vset.pattern.permute.xlu0 0
        %4694 = vperm.xlu0 %4693, %v4676
        %v4695 = vpop.permute.xlu0 %4694
        %4698 = vset.pattern.permute.xlu0 0
        %4699 = vperm.xlu0 %4698, %v4677
        %v4700 = vpop.permute.xlu0 %4699
        %4703 = vset.pattern.permute.xlu0 0
        %4704 = vperm.xlu0 %4703, %v4678
        %v4705 = vpop.permute.xlu0 %4704
        %4708 = vset.pattern.permute.xlu0 0
        %4709 = vperm.xlu0 %4708, %v4679
        %v4710 = vpop.permute.xlu0 %4709
        %4713 = vset.pattern.permute.xlu0 0
        %4714 = vperm.xlu0 %4713, %v4680
        %v4715 = vpop.permute.xlu0 %4714
        %4718 = vset.pattern.permute.xlu0 0
        %4719 = vperm.xlu0 %4718, %v4681
        %v4720 = vpop.permute.xlu0 %4719
        %4723 = vset.pattern.permute.xlu0 0
        %4724 = vperm.xlu0 %4723, %v4682
        %v4725 = vpop.permute.xlu0 %4724
        %4728 = vset.pattern.permute.xlu0 0
        %4729 = vperm.xlu0 %4728, %v4683
        %v4730 = vpop.permute.xlu0 %4729
        %4733 = vset.pattern.permute.xlu0 0
        %4734 = vperm.xlu0 %4733, %v4684
        %v4735 = vpop.permute.xlu0 %4734
        %4738 = vset.pattern.permute.xlu0 0
        %4739 = vperm.xlu0 %4738, %v4685
        %v4740 = vpop.permute.xlu0 %4739
        %4743 = vset.pattern.permute.xlu0 0
        %4744 = vperm.xlu0 %4743, %v4686
        %v4745 = vpop.permute.xlu0 %4744
        %4748 = vset.pattern.permute.xlu0 0
        %4749 = vperm.xlu0 %4748, %v4687
        %v4750 = vpop.permute.xlu0 %4749
        %4753 = vset.pattern.permute.xlu0 0
        %4754 = vperm.xlu0 %4753, %v4688
        %v4755 = vpop.permute.xlu0 %4754
        %4758 = vset.pattern.permute.xlu0 0
        %4759 = vperm.xlu0 %4758, %v4689
        %v4760 = vpop.permute.xlu0 %4759
        %4763 = vset.pattern.permute.xlu0 0
        %4764 = vperm.xlu0 %4763, %v4690
        %v4765 = vpop.permute.xlu0 %4764
        %4768 = vset.pattern.permute.xlu0 0
        %4769 = vperm.xlu0 %4768, %v4691
        %v4770 = vpop.permute.xlu0 %4769
        %v4772 = vmul.f32 %v4162, %v4695
        %v4773 = vmul.f32 %v4163, %v4700
        %v4774 = vmul.f32 %v4164, %v4705
        %v4775 = vmul.f32 %v4165, %v4710
        %v4776 = vmul.f32 %v4166, %v4715
        %v4777 = vmul.f32 %v4167, %v4720
        %v4778 = vmul.f32 %v4168, %v4725
        %v4779 = vmul.f32 %v4169, %v4730
        %v4780 = vmul.f32 %v4170, %v4735
        %v4781 = vmul.f32 %v4171, %v4740
        %v4782 = vmul.f32 %v4172, %v4745
        %v4783 = vmul.f32 %v4173, %v4750
        %v4784 = vmul.f32 %v4174, %v4755
        %v4785 = vmul.f32 %v4175, %v4760
        %v4786 = vmul.f32 %v4176, %v4765
        %v4787 = vmul.f32 %v4177, %v4770
        %s4788 = scalar_lea.vmem %s519, 256
        %4789 = vst.msk [vmem:[%s4788] sm:$0xff] %vm1402, %v4772
        %4790 = vst.msk [vmem:[%s4788 + $0x8] sm:$0xff] %vm1402, %v4773
        %4791 = vst.msk [vmem:[%s4788 + $0x10] sm:$0xff] %vm1402, %v4774
        %4792 = vst.msk [vmem:[%s4788 + $0x18] sm:$0xff] %vm1402, %v4775
        %4793 = vst.msk [vmem:[%s4788 + $0x20] sm:$0xff] %vm1402, %v4776
        %4794 = vst.msk [vmem:[%s4788 + $0x28] sm:$0xff] %vm1402, %v4777
        %4795 = vst.msk [vmem:[%s4788 + $0x30] sm:$0xff] %vm1402, %v4778
        %4796 = vst.msk [vmem:[%s4788 + $0x38] sm:$0xff] %vm1402, %v4779
        %4797 = vst.msk [vmem:[%s4788 + $0x40] sm:$0xff] %vm1402, %v4780
        %4798 = vst.msk [vmem:[%s4788 + $0x48] sm:$0xff] %vm1402, %v4781
        %4799 = vst.msk [vmem:[%s4788 + $0x50] sm:$0xff] %vm1402, %v4782
        %4800 = vst.msk [vmem:[%s4788 + $0x58] sm:$0xff] %vm1402, %v4783
        %4801 = vst.msk [vmem:[%s4788 + $0x60] sm:$0xff] %vm1402, %v4784
        %4802 = vst.msk [vmem:[%s4788 + $0x68] sm:$0xff] %vm1402, %v4785
        %4803 = vst.msk [vmem:[%s4788 + $0x70] sm:$0xff] %vm1402, %v4786
        %4804 = vst.msk [vmem:[%s4788 + $0x78] sm:$0xff] %vm1402, %v4787
        %s4805 = sadd.s32 %s1357, 3
        %s4806 = sld [smem:[#allocation3 + %s4805]]
        %s4807 = scvt.s32.f32 %s4806
        %s4808 = sld [smem:[#allocation4 + %s4805]]
        %s4809 = scvt.s32.f32 %s4808
        %4810 = vmatprep.subr.bf16.mxu0 0
        %4811 = vmatpush1.bf16.msra.mxu0 %v927
        %4812 = vmatprep.subr.bf16.mxu0 0
        %4813 = vmatpush1.bf16.msra.mxu0 %v928
        %4814 = vmatprep.subr.bf16.mxu0 0
        %4815 = vmatpush1.bf16.msra.mxu0 %v929
        %4816 = vmatprep.subr.bf16.mxu0 0
        %4817 = vmatpush1.bf16.msra.mxu0 %v930
        %4818 = vmatprep.subr.bf16.mxu0 0
        %4819 = vmatpush1.bf16.msra.mxu0 0
        %4820 = vmatprep.subr.bf16.mxu0 0
        %4821 = vmatpush1.bf16.msra.mxu0 0
        %4822 = vmatprep.subr.bf16.mxu0 0
        %4823 = vmatpush1.bf16.msra.mxu0 0
        %4824 = vmatprep.subr.bf16.mxu0 0
        %4825 = vmatpush1.bf16.msra.mxu0 0
        %4826 = vmatprep.subr.bf16.mxu0 0
        %4827 = vmatpush1.bf16.msra.mxu0 0
        %4828 = vmatprep.subr.bf16.mxu0 0
        %4829 = vmatpush1.bf16.msra.mxu0 0
        %4830 = vmatprep.subr.bf16.mxu0 0
        %4831 = vmatpush1.bf16.msra.mxu0 0
        %4832 = vmatprep.subr.bf16.mxu0 0
        %4833 = vmatpush1.bf16.msra.mxu0 0
        %4834 = vmatprep.subr.bf16.mxu0 0
        %4835 = vmatpush1.bf16.msra.mxu0 0
        %4836 = vmatprep.subr.bf16.mxu0 0
        %4837 = vmatpush1.bf16.msra.mxu0 0
        %4838 = vmatprep.subr.bf16.mxu0 0
        %4839 = vmatpush1.bf16.msra.mxu0 0
        %4840 = vmatprep.subr.bf16.mxu0 0
        %4841 = vmatpush1.bf16.msra.mxu0 0
        %4842 = vmatprep.mubr.bf16.mxu0 0
        %4843 = vmatmul.mubr.bf16.gmra.mrb[0].mxu0 %v1404
        %v4844 = vpop.f32.mrb[0].mxu0
        %v4845 = vadd.f32 0.0, %v4844
        %v4846 = vpop.f32.mrb[0].mxu0
        %v4847 = vpop.f32.mrb[0].mxu0
        %v4848 = vadd.f32 0.0, %v4847
        %v4849 = vpop.f32.mrb[0].mxu0
        %4850 = vmatprep.mubr.bf16.mxu0 0
        %4851 = vmatmul.mubr.bf16.gmra.mrb[0].mxu0 %v1407
        %v4852 = vpop.f32.mrb[0].mxu0
        %v4853 = vadd.f32 0.0, %v4852
        %v4854 = vpop.f32.mrb[0].mxu0
        %v4855 = vpop.f32.mrb[0].mxu0
        %v4856 = vadd.f32 0.0, %v4855
        %v4857 = vpop.f32.mrb[0].mxu0
        %4858 = vmatprep.mubr.bf16.mxu0 0
        %4859 = vmatmul.mubr.bf16.gmra.mrb[0].mxu0 %v1410
        %v4860 = vpop.f32.mrb[0].mxu0
        %v4861 = vadd.f32 0.0, %v4860
        %v4862 = vpop.f32.mrb[0].mxu0
        %v4863 = vpop.f32.mrb[0].mxu0
        %v4864 = vadd.f32 0.0, %v4863
        %v4865 = vpop.f32.mrb[0].mxu0
        %4866 = vmatprep.mubr.bf16.mxu0 0
        %4867 = vmatmul.mubr.bf16.gmra.mrb[0].mxu0 %v1413
        %v4868 = vpop.f32.mrb[0].mxu0
        %v4869 = vadd.f32 0.0, %v4868
        %v4870 = vpop.f32.mrb[0].mxu0
        %v4871 = vpop.f32.mrb[0].mxu0
        %v4872 = vadd.f32 0.0, %v4871
        %v4873 = vpop.f32.mrb[0].mxu0
        %4874 = vmatprep.mubr.bf16.mxu0 0
        %4875 = vmatmul.mubr.bf16.gmra.mrb[0].mxu0 %v1416
        %v4876 = vpop.f32.mrb[0].mxu0
        %v4877 = vadd.f32 0.0, %v4876
        %v4878 = vpop.f32.mrb[0].mxu0
        %v4879 = vpop.f32.mrb[0].mxu0
        %v4880 = vadd.f32 0.0, %v4879
        %v4881 = vpop.f32.mrb[0].mxu0
        %4882 = vmatprep.mubr.bf16.mxu0 0
        %4883 = vmatmul.mubr.bf16.gmra.mrb[0].mxu0 %v1419
        %v4884 = vpop.f32.mrb[0].mxu0
        %v4885 = vadd.f32 0.0, %v4884
        %v4886 = vpop.f32.mrb[0].mxu0
        %v4887 = vpop.f32.mrb[0].mxu0
        %v4888 = vadd.f32 0.0, %v4887
        %v4889 = vpop.f32.mrb[0].mxu0
        %4890 = vmatprep.mubr.bf16.mxu0 0
        %4891 = vmatmul.mubr.bf16.gmra.mrb[0].mxu0 %v1422
        %v4892 = vpop.f32.mrb[0].mxu0
        %v4893 = vadd.f32 0.0, %v4892
        %v4894 = vpop.f32.mrb[0].mxu0
        %v4895 = vpop.f32.mrb[0].mxu0
        %v4896 = vadd.f32 0.0, %v4895
        %v4897 = vpop.f32.mrb[0].mxu0
        %4898 = vmatprep.mubr.bf16.mxu0 0
        %4899 = vmatmul.mubr.bf16.gmra.mrb[0].mxu0 %v1425
        %v4900 = vpop.f32.mrb[0].mxu0
        %v4901 = vadd.f32 0.0, %v4900
        %v4902 = vpop.f32.mrb[0].mxu0
        %v4903 = vpop.f32.mrb[0].mxu0
        %v4904 = vadd.f32 0.0, %v4903
        %v4905 = vpop.f32.mrb[0].mxu0
        %4906 = vdwg.mxu0
        %v4907 = vstv %s4807
        %v4908 = vmul.f32 %v4907, %v4845
        %v4909 = vmul.f32 %v4907, %v4848
        %v4910 = vmul.f32 %v4907, %v4853
        %v4911 = vmul.f32 %v4907, %v4856
        %v4912 = vmul.f32 %v4907, %v4861
        %v4913 = vmul.f32 %v4907, %v4864
        %v4914 = vmul.f32 %v4907, %v4869
        %v4915 = vmul.f32 %v4907, %v4872
        %v4916 = vmul.f32 %v4907, %v4877
        %v4917 = vmul.f32 %v4907, %v4880
        %v4918 = vmul.f32 %v4907, %v4885
        %v4919 = vmul.f32 %v4907, %v4888
        %v4920 = vmul.f32 %v4907, %v4893
        %v4921 = vmul.f32 %v4907, %v4896
        %v4922 = vmul.f32 %v4907, %v4901
        %v4923 = vmul.f32 %v4907, %v4904
        %4924 = vmatprep.subr.bf16.mxu0 0
        %4925 = vmatpush1.bf16.msra.mxu0 %v1053
        %4926 = vmatprep.subr.bf16.mxu0 0
        %4927 = vmatpush1.bf16.msra.mxu0 %v1054
        %4928 = vmatprep.subr.bf16.mxu0 0
        %4929 = vmatpush1.bf16.msra.mxu0 %v1055
        %4930 = vmatprep.subr.bf16.mxu0 0
        %4931 = vmatpush1.bf16.msra.mxu0 %v1056
        %4932 = vmatprep.subr.bf16.mxu0 0
        %4933 = vmatpush1.bf16.msra.mxu0 0
        %4934 = vmatprep.subr.bf16.mxu0 0
        %4935 = vmatpush1.bf16.msra.mxu0 0
        %4936 = vmatprep.subr.bf16.mxu0 0
        %4937 = vmatpush1.bf16.msra.mxu0 0
        %4938 = vmatprep.subr.bf16.mxu0 0
        %4939 = vmatpush1.bf16.msra.mxu0 0
        %4940 = vmatprep.subr.bf16.mxu0 0
        %4941 = vmatpush1.bf16.msra.mxu0 0
        %4942 = vmatprep.subr.bf16.mxu0 0
        %4943 = vmatpush1.bf16.msra.mxu0 0
        %4944 = vmatprep.subr.bf16.mxu0 0
        %4945 = vmatpush1.bf16.msra.mxu0 0
        %4946 = vmatprep.subr.bf16.mxu0 0
        %4947 = vmatpush1.bf16.msra.mxu0 0
        %4948 = vmatprep.subr.bf16.mxu0 0
        %4949 = vmatpush1.bf16.msra.mxu0 0
        %4950 = vmatprep.subr.bf16.mxu0 0
        %4951 = vmatpush1.bf16.msra.mxu0 0
        %4952 = vmatprep.subr.bf16.mxu0 0
        %4953 = vmatpush1.bf16.msra.mxu0 0
        %4954 = vmatprep.subr.bf16.mxu0 0
        %4955 = vmatpush1.bf16.msra.mxu0 0
        %4956 = vmatprep.mubr.bf16.mxu0 0
        %4957 = vmatmul.mubr.bf16.gmra.mrb[0].mxu0 %v1582
        %v4958 = vpop.f32.mrb[0].mxu0
        %v4959 = vadd.f32 %v4908, %v4958
        %v4960 = vpop.f32.mrb[0].mxu0
        %v4961 = vpop.f32.mrb[0].mxu0
        %v4962 = vadd.f32 %v4909, %v4961
        %v4963 = vpop.f32.mrb[0].mxu0
        %4964 = vmatprep.mubr.bf16.mxu0 0
        %4965 = vmatmul.mubr.bf16.gmra.mrb[0].mxu0 %v1585
        %v4966 = vpop.f32.mrb[0].mxu0
        %v4967 = vadd.f32 %v4910, %v4966
        %v4968 = vpop.f32.mrb[0].mxu0
        %v4969 = vpop.f32.mrb[0].mxu0
        %v4970 = vadd.f32 %v4911, %v4969
        %v4971 = vpop.f32.mrb[0].mxu0
        %4972 = vmatprep.mubr.bf16.mxu0 0
        %4973 = vmatmul.mubr.bf16.gmra.mrb[0].mxu0 %v1588
        %v4974 = vpop.f32.mrb[0].mxu0
        %v4975 = vadd.f32 %v4912, %v4974
        %v4976 = vpop.f32.mrb[0].mxu0
        %v4977 = vpop.f32.mrb[0].mxu0
        %v4978 = vadd.f32 %v4913, %v4977
        %v4979 = vpop.f32.mrb[0].mxu0
        %4980 = vmatprep.mubr.bf16.mxu0 0
        %4981 = vmatmul.mubr.bf16.gmra.mrb[0].mxu0 %v1591
        %v4982 = vpop.f32.mrb[0].mxu0
        %v4983 = vadd.f32 %v4914, %v4982
        %v4984 = vpop.f32.mrb[0].mxu0
        %v4985 = vpop.f32.mrb[0].mxu0
        %v4986 = vadd.f32 %v4915, %v4985
        %v4987 = vpop.f32.mrb[0].mxu0
        %4988 = vmatprep.mubr.bf16.mxu0 0
        %4989 = vmatmul.mubr.bf16.gmra.mrb[0].mxu0 %v1594
        %v4990 = vpop.f32.mrb[0].mxu0
        %v4991 = vadd.f32 %v4916, %v4990
        %v4992 = vpop.f32.mrb[0].mxu0
        %v4993 = vpop.f32.mrb[0].mxu0
        %v4994 = vadd.f32 %v4917, %v4993
        %v4995 = vpop.f32.mrb[0].mxu0
        %4996 = vmatprep.mubr.bf16.mxu0 0
        %4997 = vmatmul.mubr.bf16.gmra.mrb[0].mxu0 %v1597
        %v4998 = vpop.f32.mrb[0].mxu0
        %v4999 = vadd.f32 %v4918, %v4998
        %v5000 = vpop.f32.mrb[0].mxu0
        %v5001 = vpop.f32.mrb[0].mxu0
        %v5002 = vadd.f32 %v4919, %v5001
        %v5003 = vpop.f32.mrb[0].mxu0
        %5004 = vmatprep.mubr.bf16.mxu0 0
        %5005 = vmatmul.mubr.bf16.gmra.mrb[0].mxu0 %v1600
        %v5006 = vpop.f32.mrb[0].mxu0
        %v5007 = vadd.f32 %v4920, %v5006
        %v5008 = vpop.f32.mrb[0].mxu0
        %v5009 = vpop.f32.mrb[0].mxu0
        %v5010 = vadd.f32 %v4921, %v5009
        %v5011 = vpop.f32.mrb[0].mxu0
        %5012 = vmatprep.mubr.bf16.mxu0 0
        %5013 = vmatmul.mubr.bf16.gmra.mrb[0].mxu0 %v1603
        %v5014 = vpop.f32.mrb[0].mxu0
        %v5015 = vadd.f32 %v4922, %v5014
        %v5016 = vpop.f32.mrb[0].mxu0
        %v5017 = vpop.f32.mrb[0].mxu0
        %v5018 = vadd.f32 %v4923, %v5017
        %v5019 = vpop.f32.mrb[0].mxu0
        %5020 = vdwg.mxu0
        %5021 = vmatprep.subr.bf16.mxu0 0
        %5022 = vmatpush1.bf16.msra.mxu0 %v1303
        %5023 = vmatprep.subr.bf16.mxu0 0
        %5024 = vmatpush1.bf16.msra.mxu0 %v1304
        %5025 = vmatprep.subr.bf16.mxu0 0
        %5026 = vmatpush1.bf16.msra.mxu0 %v1305
        %5027 = vmatprep.subr.bf16.mxu0 0
        %5028 = vmatpush1.bf16.msra.mxu0 %v1306
        %5029 = vmatprep.subr.bf16.mxu0 0
        %5030 = vmatpush1.bf16.msra.mxu0 0
        %5031 = vmatprep.subr.bf16.mxu0 0
        %5032 = vmatpush1.bf16.msra.mxu0 0
        %5033 = vmatprep.subr.bf16.mxu0 0
        %5034 = vmatpush1.bf16.msra.mxu0 0
        %5035 = vmatprep.subr.bf16.mxu0 0
        %5036 = vmatpush1.bf16.msra.mxu0 0
        %5037 = vmatprep.subr.bf16.mxu0 0
        %5038 = vmatpush1.bf16.msra.mxu0 0
        %5039 = vmatprep.subr.bf16.mxu0 0
        %5040 = vmatpush1.bf16.msra.mxu0 0
        %5041 = vmatprep.subr.bf16.mxu0 0
        %5042 = vmatpush1.bf16.msra.mxu0 0
        %5043 = vmatprep.subr.bf16.mxu0 0
        %5044 = vmatpush1.bf16.msra.mxu0 0
        %5045 = vmatprep.subr.bf16.mxu0 0
        %5046 = vmatpush1.bf16.msra.mxu0 0
        %5047 = vmatprep.subr.bf16.mxu0 0
        %5048 = vmatpush1.bf16.msra.mxu0 0
        %5049 = vmatprep.subr.bf16.mxu0 0
        %5050 = vmatpush1.bf16.msra.mxu0 0
        %5051 = vmatprep.subr.bf16.mxu0 0
        %5052 = vmatpush1.bf16.msra.mxu0 0
        %5053 = vmatprep.mubr.bf16.mxu0 0
        %5054 = vmatmul.mubr.bf16.gmra.mrb[0].mxu0 %v1743
        %v5055 = vpop.f32.mrb[0].mxu0
        %v5056 = vadd.f32 0.0, %v5055
        %v5057 = vpop.f32.mrb[0].mxu0
        %v5058 = vpop.f32.mrb[0].mxu0
        %v5059 = vadd.f32 0.0, %v5058
        %v5060 = vpop.f32.mrb[0].mxu0
        %5061 = vmatprep.mubr.bf16.mxu0 0
        %5062 = vmatmul.mubr.bf16.gmra.mrb[0].mxu0 %v1746
        %v5063 = vpop.f32.mrb[0].mxu0
        %v5064 = vadd.f32 0.0, %v5063
        %v5065 = vpop.f32.mrb[0].mxu0
        %v5066 = vpop.f32.mrb[0].mxu0
        %v5067 = vadd.f32 0.0, %v5066
        %v5068 = vpop.f32.mrb[0].mxu0
        %5069 = vmatprep.mubr.bf16.mxu0 0
        %5070 = vmatmul.mubr.bf16.gmra.mrb[0].mxu0 %v1749
        %v5071 = vpop.f32.mrb[0].mxu0
        %v5072 = vadd.f32 0.0, %v5071
        %v5073 = vpop.f32.mrb[0].mxu0
        %v5074 = vpop.f32.mrb[0].mxu0
        %v5075 = vadd.f32 0.0, %v5074
        %v5076 = vpop.f32.mrb[0].mxu0
        %5077 = vmatprep.mubr.bf16.mxu0 0
        %5078 = vmatmul.mubr.bf16.gmra.mrb[0].mxu0 %v1752
        %v5079 = vpop.f32.mrb[0].mxu0
        %v5080 = vadd.f32 0.0, %v5079
        %v5081 = vpop.f32.mrb[0].mxu0
        %v5082 = vpop.f32.mrb[0].mxu0
        %v5083 = vadd.f32 0.0, %v5082
        %v5084 = vpop.f32.mrb[0].mxu0
        %5085 = vmatprep.mubr.bf16.mxu0 0
        %5086 = vmatmul.mubr.bf16.gmra.mrb[0].mxu0 %v1755
        %v5087 = vpop.f32.mrb[0].mxu0
        %v5088 = vadd.f32 0.0, %v5087
        %v5089 = vpop.f32.mrb[0].mxu0
        %v5090 = vpop.f32.mrb[0].mxu0
        %v5091 = vadd.f32 0.0, %v5090
        %v5092 = vpop.f32.mrb[0].mxu0
        %5093 = vmatprep.mubr.bf16.mxu0 0
        %5094 = vmatmul.mubr.bf16.gmra.mrb[0].mxu0 %v1758
        %v5095 = vpop.f32.mrb[0].mxu0
        %v5096 = vadd.f32 0.0, %v5095
        %v5097 = vpop.f32.mrb[0].mxu0
        %v5098 = vpop.f32.mrb[0].mxu0
        %v5099 = vadd.f32 0.0, %v5098
        %v5100 = vpop.f32.mrb[0].mxu0
        %5101 = vmatprep.mubr.bf16.mxu0 0
        %5102 = vmatmul.mubr.bf16.gmra.mrb[0].mxu0 %v1761
        %v5103 = vpop.f32.mrb[0].mxu0
        %v5104 = vadd.f32 0.0, %v5103
        %v5105 = vpop.f32.mrb[0].mxu0
        %v5106 = vpop.f32.mrb[0].mxu0
        %v5107 = vadd.f32 0.0, %v5106
        %v5108 = vpop.f32.mrb[0].mxu0
        %5109 = vmatprep.mubr.bf16.mxu0 0
        %5110 = vmatmul.mubr.bf16.gmra.mrb[0].mxu0 %v1764
        %v5111 = vpop.f32.mrb[0].mxu0
        %v5112 = vadd.f32 0.0, %v5111
        %v5113 = vpop.f32.mrb[0].mxu0
        %v5114 = vpop.f32.mrb[0].mxu0
        %v5115 = vadd.f32 0.0, %v5114
        %v5116 = vpop.f32.mrb[0].mxu0
        %5117 = vdwg.mxu0
        %v5118 = vstv %s4809
        %v5119 = vmul.f32 %v5118, %v5056
        %v5120 = vmul.f32 %v5118, %v5059
        %v5121 = vmul.f32 %v5118, %v5064
        %v5122 = vmul.f32 %v5118, %v5067
        %v5123 = vmul.f32 %v5118, %v5072
        %v5124 = vmul.f32 %v5118, %v5075
        %v5125 = vmul.f32 %v5118, %v5080
        %v5126 = vmul.f32 %v5118, %v5083
        %v5127 = vmul.f32 %v5118, %v5088
        %v5128 = vmul.f32 %v5118, %v5091
        %v5129 = vmul.f32 %v5118, %v5096
        %v5130 = vmul.f32 %v5118, %v5099
        %v5131 = vmul.f32 %v5118, %v5104
        %v5132 = vmul.f32 %v5118, %v5107
        %v5133 = vmul.f32 %v5118, %v5112
        %v5134 = vmul.f32 %v5118, %v5115
        %v5135 = vadd.f32 %v4959, %v5119
        %v5136 = vadd.f32 %v4962, %v5120
        %v5137 = vadd.f32 %v4967, %v5121
        %v5138 = vadd.f32 %v4970, %v5122
        %v5139 = vadd.f32 %v4975, %v5123
        %v5140 = vadd.f32 %v4978, %v5124
        %v5141 = vadd.f32 %v4983, %v5125
        %v5142 = vadd.f32 %v4986, %v5126
        %v5143 = vadd.f32 %v4991, %v5127
        %v5144 = vadd.f32 %v4994, %v5128
        %v5145 = vadd.f32 %v4999, %v5129
        %v5146 = vadd.f32 %v5002, %v5130
        %v5147 = vadd.f32 %v5007, %v5131
        %v5148 = vadd.f32 %v5010, %v5132
        %v5149 = vadd.f32 %v5015, %v5133
        %v5150 = vadd.f32 %v5018, %v5134
        %v5151 = vld [vmem:[%s7] sm:$0xff]
        %v5152 = vld [vmem:[%s7 + $0x8] sm:$0xff]
        %v5153 = vld [vmem:[%s7 + $0x10] sm:$0xff]
        %v5154 = vld [vmem:[%s7 + $0x18] sm:$0xff]
        %v5155 = vld [vmem:[%s7 + $0x20] sm:$0xff]
        %v5156 = vld [vmem:[%s7 + $0x28] sm:$0xff]
        %v5157 = vld [vmem:[%s7 + $0x30] sm:$0xff]
        %v5158 = vld [vmem:[%s7 + $0x38] sm:$0xff]
        %v5159 = vld [vmem:[%s7 + $0x40] sm:$0xff]
        %v5160 = vld [vmem:[%s7 + $0x48] sm:$0xff]
        %v5161 = vld [vmem:[%s7 + $0x50] sm:$0xff]
        %v5162 = vld [vmem:[%s7 + $0x58] sm:$0xff]
        %v5163 = vld [vmem:[%s7 + $0x60] sm:$0xff]
        %v5164 = vld [vmem:[%s7 + $0x68] sm:$0xff]
        %v5165 = vld [vmem:[%s7 + $0x70] sm:$0xff]
        %v5166 = vld [vmem:[%s7 + $0x78] sm:$0xff]
        %5168 = vset.pattern.permute.xlu0 0
        %5169 = vperm.xlu0 %5168, %v5151
        %v5170 = vpop.permute.xlu0 %5169
        %5173 = vset.pattern.permute.xlu0 0
        %5174 = vperm.xlu0 %5173, %v5152
        %v5175 = vpop.permute.xlu0 %5174
        %5178 = vset.pattern.permute.xlu0 0
        %5179 = vperm.xlu0 %5178, %v5153
        %v5180 = vpop.permute.xlu0 %5179
        %5183 = vset.pattern.permute.xlu0 0
        %5184 = vperm.xlu0 %5183, %v5154
        %v5185 = vpop.permute.xlu0 %5184
        %5188 = vset.pattern.permute.xlu0 0
        %5189 = vperm.xlu0 %5188, %v5155
        %v5190 = vpop.permute.xlu0 %5189
        %5193 = vset.pattern.permute.xlu0 0
        %5194 = vperm.xlu0 %5193, %v5156
        %v5195 = vpop.permute.xlu0 %5194
        %5198 = vset.pattern.permute.xlu0 0
        %5199 = vperm.xlu0 %5198, %v5157
        %v5200 = vpop.permute.xlu0 %5199
        %5203 = vset.pattern.permute.xlu0 0
        %5204 = vperm.xlu0 %5203, %v5158
        %v5205 = vpop.permute.xlu0 %5204
        %5208 = vset.pattern.permute.xlu0 0
        %5209 = vperm.xlu0 %5208, %v5159
        %v5210 = vpop.permute.xlu0 %5209
        %5213 = vset.pattern.permute.xlu0 0
        %5214 = vperm.xlu0 %5213, %v5160
        %v5215 = vpop.permute.xlu0 %5214
        %5218 = vset.pattern.permute.xlu0 0
        %5219 = vperm.xlu0 %5218, %v5161
        %v5220 = vpop.permute.xlu0 %5219
        %5223 = vset.pattern.permute.xlu0 0
        %5224 = vperm.xlu0 %5223, %v5162
        %v5225 = vpop.permute.xlu0 %5224
        %5228 = vset.pattern.permute.xlu0 0
        %5229 = vperm.xlu0 %5228, %v5163
        %v5230 = vpop.permute.xlu0 %5229
        %5233 = vset.pattern.permute.xlu0 0
        %5234 = vperm.xlu0 %5233, %v5164
        %v5235 = vpop.permute.xlu0 %5234
        %5238 = vset.pattern.permute.xlu0 0
        %5239 = vperm.xlu0 %5238, %v5165
        %v5240 = vpop.permute.xlu0 %5239
        %5243 = vset.pattern.permute.xlu0 0
        %5244 = vperm.xlu0 %5243, %v5166
        %v5245 = vpop.permute.xlu0 %5244
        %v5247 = vadd.f32 %v5135, %v5170
        %v5248 = vadd.f32 %v5136, %v5175
        %v5249 = vadd.f32 %v5137, %v5180
        %v5250 = vadd.f32 %v5138, %v5185
        %v5251 = vadd.f32 %v5139, %v5190
        %v5252 = vadd.f32 %v5140, %v5195
        %v5253 = vadd.f32 %v5141, %v5200
        %v5254 = vadd.f32 %v5142, %v5205
        %v5255 = vadd.f32 %v5143, %v5210
        %v5256 = vadd.f32 %v5144, %v5215
        %v5257 = vadd.f32 %v5145, %v5220
        %v5258 = vadd.f32 %v5146, %v5225
        %v5259 = vadd.f32 %v5147, %v5230
        %v5260 = vadd.f32 %v5148, %v5235
        %v5261 = vadd.f32 %v5149, %v5240
        %v5262 = vadd.f32 %v5150, %v5245
        %v5263 = vsel %vm1402, %v5247, 0.0
        %5264 = vadd.xlane.f32.xlu0 %v5263
        %v5265 = vpop.xlane.xlu0 %5264
        %v5266 = vsel %vm1402, %v5248, 0.0
        %5267 = vadd.xlane.f32.xlu0 %v5266
        %v5268 = vpop.xlane.xlu0 %5267
        %v5269 = vsel %vm1402, %v5249, 0.0
        %5270 = vadd.xlane.f32.xlu0 %v5269
        %v5271 = vpop.xlane.xlu0 %5270
        %v5272 = vsel %vm1402, %v5250, 0.0
        %5273 = vadd.xlane.f32.xlu0 %v5272
        %v5274 = vpop.xlane.xlu0 %5273
        %v5275 = vsel %vm1402, %v5251, 0.0
        %5276 = vadd.xlane.f32.xlu0 %v5275
        %v5277 = vpop.xlane.xlu0 %5276
        %v5278 = vsel %vm1402, %v5252, 0.0
        %5279 = vadd.xlane.f32.xlu0 %v5278
        %v5280 = vpop.xlane.xlu0 %5279
        %v5281 = vsel %vm1402, %v5253, 0.0
        %5282 = vadd.xlane.f32.xlu0 %v5281
        %v5283 = vpop.xlane.xlu0 %5282
        %v5284 = vsel %vm1402, %v5254, 0.0
        %5285 = vadd.xlane.f32.xlu0 %v5284
        %v5286 = vpop.xlane.xlu0 %5285
        %v5287 = vsel %vm1402, %v5255, 0.0
        %5288 = vadd.xlane.f32.xlu0 %v5287
        %v5289 = vpop.xlane.xlu0 %5288
        %v5290 = vsel %vm1402, %v5256, 0.0
        %5291 = vadd.xlane.f32.xlu0 %v5290
        %v5292 = vpop.xlane.xlu0 %5291
        %v5293 = vsel %vm1402, %v5257, 0.0
        %5294 = vadd.xlane.f32.xlu0 %v5293
        %v5295 = vpop.xlane.xlu0 %5294
        %v5296 = vsel %vm1402, %v5258, 0.0
        %5297 = vadd.xlane.f32.xlu0 %v5296
        %v5298 = vpop.xlane.xlu0 %5297
        %v5299 = vsel %vm1402, %v5259, 0.0
        %5300 = vadd.xlane.f32.xlu0 %v5299
        %v5301 = vpop.xlane.xlu0 %5300
        %v5302 = vsel %vm1402, %v5260, 0.0
        %5303 = vadd.xlane.f32.xlu0 %v5302
        %v5304 = vpop.xlane.xlu0 %5303
        %v5305 = vsel %vm1402, %v5261, 0.0
        %5306 = vadd.xlane.f32.xlu0 %v5305
        %v5307 = vpop.xlane.xlu0 %5306
        %v5308 = vsel %vm1402, %v5262, 0.0
        %5309 = vadd.xlane.f32.xlu0 %v5308
        %v5310 = vpop.xlane.xlu0 %5309
        %v5311 = vmul.f32 %v5265, %v2056
        %v5312 = vmul.f32 %v5268, %v2056
        %v5313 = vmul.f32 %v5271, %v2056
        %v5314 = vmul.f32 %v5274, %v2056
        %v5315 = vmul.f32 %v5277, %v2056
        %v5316 = vmul.f32 %v5280, %v2056
        %v5317 = vmul.f32 %v5283, %v2056
        %v5318 = vmul.f32 %v5286, %v2056
        %v5319 = vmul.f32 %v5289, %v2056
        %v5320 = vmul.f32 %v5292, %v2056
        %v5321 = vmul.f32 %v5295, %v2056
        %v5322 = vmul.f32 %v5298, %v2056
        %v5323 = vmul.f32 %v5301, %v2056
        %v5324 = vmul.f32 %v5304, %v2056
        %v5325 = vmul.f32 %v5307, %v2056
        %v5326 = vmul.f32 %v5310, %v2056
        %v5327 = vld [vmem:[#allocation9] sm:$0xff]
        %v5328 = vld [vmem:[#allocation9 + $0x8] sm:$0xff]
        %v5329 = vld [vmem:[#allocation9 + $0x10] sm:$0xff]
        %v5330 = vld [vmem:[#allocation9 + $0x18] sm:$0xff]
        %v5331 = vld [vmem:[#allocation9 + $0x20] sm:$0xff]
        %v5332 = vld [vmem:[#allocation9 + $0x28] sm:$0xff]
        %v5333 = vld [vmem:[#allocation9 + $0x30] sm:$0xff]
        %v5334 = vld [vmem:[#allocation9 + $0x38] sm:$0xff]
        %v5335 = vld [vmem:[#allocation9 + $0x40] sm:$0xff]
        %v5336 = vld [vmem:[#allocation9 + $0x48] sm:$0xff]
        %v5337 = vld [vmem:[#allocation9 + $0x50] sm:$0xff]
        %v5338 = vld [vmem:[#allocation9 + $0x58] sm:$0xff]
        %v5339 = vld [vmem:[#allocation9 + $0x60] sm:$0xff]
        %v5340 = vld [vmem:[#allocation9 + $0x68] sm:$0xff]
        %v5341 = vld [vmem:[#allocation9 + $0x70] sm:$0xff]
        %v5342 = vld [vmem:[#allocation9 + $0x78] sm:$0xff]
        %v5343 = vld [vmem:[%s9] sm:$0xff]
        %v5344 = vld [vmem:[%s9 + $0x8] sm:$0xff]
        %v5345 = vld [vmem:[%s9 + $0x10] sm:$0xff]
        %v5346 = vld [vmem:[%s9 + $0x18] sm:$0xff]
        %v5347 = vld [vmem:[%s9 + $0x20] sm:$0xff]
        %v5348 = vld [vmem:[%s9 + $0x28] sm:$0xff]
        %v5349 = vld [vmem:[%s9 + $0x30] sm:$0xff]
        %v5350 = vld [vmem:[%s9 + $0x38] sm:$0xff]
        %v5351 = vld [vmem:[%s9 + $0x40] sm:$0xff]
        %v5352 = vld [vmem:[%s9 + $0x48] sm:$0xff]
        %v5353 = vld [vmem:[%s9 + $0x50] sm:$0xff]
        %v5354 = vld [vmem:[%s9 + $0x58] sm:$0xff]
        %v5355 = vld [vmem:[%s9 + $0x60] sm:$0xff]
        %v5356 = vld [vmem:[%s9 + $0x68] sm:$0xff]
        %v5357 = vld [vmem:[%s9 + $0x70] sm:$0xff]
        %v5358 = vld [vmem:[%s9 + $0x78] sm:$0xff]
        %5359 = vmatprep.subr.mxu0 0.0
        %5360 = vmatpush1.msra.mxu0 %v5311
        %5361 = vmatprep.subr.mxu0 0.0
        %5362 = vmatpush1.msra.mxu0 %v5312
        %5363 = vmatprep.subr.mxu0 0.0
        %5364 = vmatpush1.msra.mxu0 %v5313
        %5365 = vmatprep.subr.mxu0 0.0
        %5366 = vmatpush1.msra.mxu0 %v5314
        %5367 = vmatprep.subr.mxu0 0.0
        %5368 = vmatpush1.msra.mxu0 %v5315
        %5369 = vmatprep.subr.mxu0 0.0
        %5370 = vmatpush1.msra.mxu0 %v5316
        %5371 = vmatprep.subr.mxu0 0.0
        %5372 = vmatpush1.msra.mxu0 %v5317
        %5373 = vmatprep.subr.mxu0 0.0
        %5374 = vmatpush1.msra.mxu0 %v5318
        %5375 = vmatprep.subr.mxu0 0.0
        %5376 = vmatpush1.msra.mxu0 %v5319
        %5377 = vmatprep.subr.mxu0 0.0
        %5378 = vmatpush1.msra.mxu0 %v5320
        %5379 = vmatprep.subr.mxu0 0.0
        %5380 = vmatpush1.msra.mxu0 %v5321
        %5381 = vmatprep.subr.mxu0 0.0
        %5382 = vmatpush1.msra.mxu0 %v5322
        %5383 = vmatprep.subr.mxu0 0.0
        %5384 = vmatpush1.msra.mxu0 %v5323
        %5385 = vmatprep.subr.mxu0 0.0
        %5386 = vmatpush1.msra.mxu0 %v5324
        %5387 = vmatprep.subr.mxu0 0.0
        %5388 = vmatpush1.msra.mxu0 %v5325
        %5389 = vmatprep.subr.mxu0 0.0
        %5390 = vmatpush1.msra.mxu0 %v5326
        %5391 = vmatprep.subr.mxu0 0.0
        %5392 = vmatpush1.msra.mxu0 0.0
        %5393 = vmatprep.subr.mxu0 0.0
        %5394 = vmatpush1.msra.mxu0 0.0
        %5395 = vmatprep.subr.mxu0 0.0
        %5396 = vmatpush1.msra.mxu0 0.0
        %5397 = vmatprep.subr.mxu0 0.0
        %5398 = vmatpush1.msra.mxu0 0.0
        %5399 = vmatprep.subr.mxu0 0.0
        %5400 = vmatpush1.msra.mxu0 0.0
        %5401 = vmatprep.subr.mxu0 0.0
        %5402 = vmatpush1.msra.mxu0 0.0
        %5403 = vmatprep.subr.mxu0 0.0
        %5404 = vmatpush1.msra.mxu0 0.0
        %5405 = vmatprep.subr.mxu0 0.0
        %5406 = vmatpush1.msra.mxu0 0.0
        %5407 = vmatprep.subr.mxu0 0.0
        %5408 = vmatpush1.msra.mxu0 0.0
        %5409 = vmatprep.subr.mxu0 0.0
        %5410 = vmatpush1.msra.mxu0 0.0
        %5411 = vmatprep.subr.mxu0 0.0
        %5412 = vmatpush1.msra.mxu0 0.0
        %5413 = vmatprep.subr.mxu0 0.0
        %5414 = vmatpush1.msra.mxu0 0.0
        %5415 = vmatprep.subr.mxu0 0.0
        %5416 = vmatpush1.msra.mxu0 0.0
        %5417 = vmatprep.subr.mxu0 0.0
        %5418 = vmatpush1.msra.mxu0 0.0
        %5419 = vmatprep.subr.mxu0 0.0
        %5420 = vmatpush1.msra.mxu0 0.0
        %5421 = vmatprep.subr.mxu0 0.0
        %5422 = vmatpush1.msra.mxu0 0.0
        %5423 = vmatprep.mubr.f32.mxu0 0.0
        %5424 = vmatmul.mubr.f32.gmra.mrb[0].mxu0 %v5327
        %v5425 = vpop.f32.mrb[0].mxu0
        %v5426 = vadd.f32 %v5343, %v5425
        %v5427 = vpop.f32.mrb[0].mxu0
        %5428 = vmatprep.mubr.f32.mxu0 0.0
        %5429 = vmatmul.mubr.f32.gmra.mrb[0].mxu0 %v5328
        %v5430 = vpop.f32.mrb[0].mxu0
        %v5431 = vadd.f32 %v5344, %v5430
        %v5432 = vpop.f32.mrb[0].mxu0
        %5433 = vmatprep.mubr.f32.mxu0 0.0
        %5434 = vmatmul.mubr.f32.gmra.mrb[0].mxu0 %v5329
        %v5435 = vpop.f32.mrb[0].mxu0
        %v5436 = vadd.f32 %v5345, %v5435
        %v5437 = vpop.f32.mrb[0].mxu0
        %5438 = vmatprep.mubr.f32.mxu0 0.0
        %5439 = vmatmul.mubr.f32.gmra.mrb[0].mxu0 %v5330
        %v5440 = vpop.f32.mrb[0].mxu0
        %v5441 = vadd.f32 %v5346, %v5440
        %v5442 = vpop.f32.mrb[0].mxu0
        %5443 = vmatprep.mubr.f32.mxu0 0.0
        %5444 = vmatmul.mubr.f32.gmra.mrb[0].mxu0 %v5331
        %v5445 = vpop.f32.mrb[0].mxu0
        %v5446 = vadd.f32 %v5347, %v5445
        %v5447 = vpop.f32.mrb[0].mxu0
        %5448 = vmatprep.mubr.f32.mxu0 0.0
        %5449 = vmatmul.mubr.f32.gmra.mrb[0].mxu0 %v5332
        %v5450 = vpop.f32.mrb[0].mxu0
        %v5451 = vadd.f32 %v5348, %v5450
        %v5452 = vpop.f32.mrb[0].mxu0
        %5453 = vmatprep.mubr.f32.mxu0 0.0
        %5454 = vmatmul.mubr.f32.gmra.mrb[0].mxu0 %v5333
        %v5455 = vpop.f32.mrb[0].mxu0
        %v5456 = vadd.f32 %v5349, %v5455
        %v5457 = vpop.f32.mrb[0].mxu0
        %5458 = vmatprep.mubr.f32.mxu0 0.0
        %5459 = vmatmul.mubr.f32.gmra.mrb[0].mxu0 %v5334
        %v5460 = vpop.f32.mrb[0].mxu0
        %v5461 = vadd.f32 %v5350, %v5460
        %v5462 = vpop.f32.mrb[0].mxu0
        %5463 = vmatprep.mubr.f32.mxu0 0.0
        %5464 = vmatmul.mubr.f32.gmra.mrb[0].mxu0 %v5335
        %v5465 = vpop.f32.mrb[0].mxu0
        %v5466 = vadd.f32 %v5351, %v5465
        %v5467 = vpop.f32.mrb[0].mxu0
        %5468 = vmatprep.mubr.f32.mxu0 0.0
        %5469 = vmatmul.mubr.f32.gmra.mrb[0].mxu0 %v5336
        %v5470 = vpop.f32.mrb[0].mxu0
        %v5471 = vadd.f32 %v5352, %v5470
        %v5472 = vpop.f32.mrb[0].mxu0
        %5473 = vmatprep.mubr.f32.mxu0 0.0
        %5474 = vmatmul.mubr.f32.gmra.mrb[0].mxu0 %v5337
        %v5475 = vpop.f32.mrb[0].mxu0
        %v5476 = vadd.f32 %v5353, %v5475
        %v5477 = vpop.f32.mrb[0].mxu0
        %5478 = vmatprep.mubr.f32.mxu0 0.0
        %5479 = vmatmul.mubr.f32.gmra.mrb[0].mxu0 %v5338
        %v5480 = vpop.f32.mrb[0].mxu0
        %v5481 = vadd.f32 %v5354, %v5480
        %v5482 = vpop.f32.mrb[0].mxu0
        %5483 = vmatprep.mubr.f32.mxu0 0.0
        %5484 = vmatmul.mubr.f32.gmra.mrb[0].mxu0 %v5339
        %v5485 = vpop.f32.mrb[0].mxu0
        %v5486 = vadd.f32 %v5355, %v5485
        %v5487 = vpop.f32.mrb[0].mxu0
        %5488 = vmatprep.mubr.f32.mxu0 0.0
        %5489 = vmatmul.mubr.f32.gmra.mrb[0].mxu0 %v5340
        %v5490 = vpop.f32.mrb[0].mxu0
        %v5491 = vadd.f32 %v5356, %v5490
        %v5492 = vpop.f32.mrb[0].mxu0
        %5493 = vmatprep.mubr.f32.mxu0 0.0
        %5494 = vmatmul.mubr.f32.gmra.mrb[0].mxu0 %v5341
        %v5495 = vpop.f32.mrb[0].mxu0
        %v5496 = vadd.f32 %v5357, %v5495
        %v5497 = vpop.f32.mrb[0].mxu0
        %5498 = vmatprep.mubr.f32.mxu0 0.0
        %5499 = vmatmul.mubr.f32.gmra.mrb[0].mxu0 %v5342
        %v5500 = vpop.f32.mrb[0].mxu0
        %v5501 = vadd.f32 %v5358, %v5500
        %v5502 = vpop.f32.mrb[0].mxu0
        %5503 = vdwg.mxu0
        %v5504 = vmax.f32 %v5426, 0.0
        %v5505 = vmax.f32 %v5431, 0.0
        %v5506 = vmax.f32 %v5436, 0.0
        %v5507 = vmax.f32 %v5441, 0.0
        %v5508 = vmax.f32 %v5446, 0.0
        %v5509 = vmax.f32 %v5451, 0.0
        %v5510 = vmax.f32 %v5456, 0.0
        %v5511 = vmax.f32 %v5461, 0.0
        %v5512 = vmax.f32 %v5466, 0.0
        %v5513 = vmax.f32 %v5471, 0.0
        %v5514 = vmax.f32 %v5476, 0.0
        %v5515 = vmax.f32 %v5481, 0.0
        %v5516 = vmax.f32 %v5486, 0.0
        %v5517 = vmax.f32 %v5491, 0.0
        %v5518 = vmax.f32 %v5496, 0.0
        %v5519 = vmax.f32 %v5501, 0.0
        %v5520 = vld [vmem:[#allocation10] sm:$0xff]
        %v5521 = vld [vmem:[#allocation10 + $0x8] sm:$0xff]
        %v5522 = vld [vmem:[#allocation10 + $0x10] sm:$0xff]
        %v5523 = vld [vmem:[#allocation10 + $0x18] sm:$0xff]
        %v5524 = vld [vmem:[#allocation10 + $0x20] sm:$0xff]
        %v5525 = vld [vmem:[#allocation10 + $0x28] sm:$0xff]
        %v5526 = vld [vmem:[#allocation10 + $0x30] sm:$0xff]
        %v5527 = vld [vmem:[#allocation10 + $0x38] sm:$0xff]
        %v5528 = vld [vmem:[#allocation10 + $0x40] sm:$0xff]
        %v5529 = vld [vmem:[#allocation10 + $0x48] sm:$0xff]
        %v5530 = vld [vmem:[#allocation10 + $0x50] sm:$0xff]
        %v5531 = vld [vmem:[#allocation10 + $0x58] sm:$0xff]
        %v5532 = vld [vmem:[#allocation10 + $0x60] sm:$0xff]
        %v5533 = vld [vmem:[#allocation10 + $0x68] sm:$0xff]
        %v5534 = vld [vmem:[#allocation10 + $0x70] sm:$0xff]
        %v5535 = vld [vmem:[#allocation10 + $0x78] sm:$0xff]
        %v5536 = vld [vmem:[%s11] sm:$0xff]
        %v5537 = vld [vmem:[%s11 + $0x8] sm:$0xff]
        %v5538 = vld [vmem:[%s11 + $0x10] sm:$0xff]
        %v5539 = vld [vmem:[%s11 + $0x18] sm:$0xff]
        %v5540 = vld [vmem:[%s11 + $0x20] sm:$0xff]
        %v5541 = vld [vmem:[%s11 + $0x28] sm:$0xff]
        %v5542 = vld [vmem:[%s11 + $0x30] sm:$0xff]
        %v5543 = vld [vmem:[%s11 + $0x38] sm:$0xff]
        %v5544 = vld [vmem:[%s11 + $0x40] sm:$0xff]
        %v5545 = vld [vmem:[%s11 + $0x48] sm:$0xff]
        %v5546 = vld [vmem:[%s11 + $0x50] sm:$0xff]
        %v5547 = vld [vmem:[%s11 + $0x58] sm:$0xff]
        %v5548 = vld [vmem:[%s11 + $0x60] sm:$0xff]
        %v5549 = vld [vmem:[%s11 + $0x68] sm:$0xff]
        %v5550 = vld [vmem:[%s11 + $0x70] sm:$0xff]
        %v5551 = vld [vmem:[%s11 + $0x78] sm:$0xff]
        %5552 = vmatprep.subr.mxu0 0.0
        %5553 = vmatpush1.msra.mxu0 %v5504
        %5554 = vmatprep.subr.mxu0 0.0
        %5555 = vmatpush1.msra.mxu0 %v5505
        %5556 = vmatprep.subr.mxu0 0.0
        %5557 = vmatpush1.msra.mxu0 %v5506
        %5558 = vmatprep.subr.mxu0 0.0
        %5559 = vmatpush1.msra.mxu0 %v5507
        %5560 = vmatprep.subr.mxu0 0.0
        %5561 = vmatpush1.msra.mxu0 %v5508
        %5562 = vmatprep.subr.mxu0 0.0
        %5563 = vmatpush1.msra.mxu0 %v5509
        %5564 = vmatprep.subr.mxu0 0.0
        %5565 = vmatpush1.msra.mxu0 %v5510
        %5566 = vmatprep.subr.mxu0 0.0
        %5567 = vmatpush1.msra.mxu0 %v5511
        %5568 = vmatprep.subr.mxu0 0.0
        %5569 = vmatpush1.msra.mxu0 %v5512
        %5570 = vmatprep.subr.mxu0 0.0
        %5571 = vmatpush1.msra.mxu0 %v5513
        %5572 = vmatprep.subr.mxu0 0.0
        %5573 = vmatpush1.msra.mxu0 %v5514
        %5574 = vmatprep.subr.mxu0 0.0
        %5575 = vmatpush1.msra.mxu0 %v5515
        %5576 = vmatprep.subr.mxu0 0.0
        %5577 = vmatpush1.msra.mxu0 %v5516
        %5578 = vmatprep.subr.mxu0 0.0
        %5579 = vmatpush1.msra.mxu0 %v5517
        %5580 = vmatprep.subr.mxu0 0.0
        %5581 = vmatpush1.msra.mxu0 %v5518
        %5582 = vmatprep.subr.mxu0 0.0
        %5583 = vmatpush1.msra.mxu0 %v5519
        %5584 = vmatprep.subr.mxu0 0.0
        %5585 = vmatpush1.msra.mxu0 0.0
        %5586 = vmatprep.subr.mxu0 0.0
        %5587 = vmatpush1.msra.mxu0 0.0
        %5588 = vmatprep.subr.mxu0 0.0
        %5589 = vmatpush1.msra.mxu0 0.0
        %5590 = vmatprep.subr.mxu0 0.0
        %5591 = vmatpush1.msra.mxu0 0.0
        %5592 = vmatprep.subr.mxu0 0.0
        %5593 = vmatpush1.msra.mxu0 0.0
        %5594 = vmatprep.subr.mxu0 0.0
        %5595 = vmatpush1.msra.mxu0 0.0
        %5596 = vmatprep.subr.mxu0 0.0
        %5597 = vmatpush1.msra.mxu0 0.0
        %5598 = vmatprep.subr.mxu0 0.0
        %5599 = vmatpush1.msra.mxu0 0.0
        %5600 = vmatprep.subr.mxu0 0.0
        %5601 = vmatpush1.msra.mxu0 0.0
        %5602 = vmatprep.subr.mxu0 0.0
        %5603 = vmatpush1.msra.mxu0 0.0
        %5604 = vmatprep.subr.mxu0 0.0
        %5605 = vmatpush1.msra.mxu0 0.0
        %5606 = vmatprep.subr.mxu0 0.0
        %5607 = vmatpush1.msra.mxu0 0.0
        %5608 = vmatprep.subr.mxu0 0.0
        %5609 = vmatpush1.msra.mxu0 0.0
        %5610 = vmatprep.subr.mxu0 0.0
        %5611 = vmatpush1.msra.mxu0 0.0
        %5612 = vmatprep.subr.mxu0 0.0
        %5613 = vmatpush1.msra.mxu0 0.0
        %5614 = vmatprep.subr.mxu0 0.0
        %5615 = vmatpush1.msra.mxu0 0.0
        %5616 = vmatprep.mubr.f32.mxu0 0.0
        %5617 = vmatmul.mubr.f32.gmra.mrb[0].mxu0 %v5520
        %v5618 = vpop.f32.mrb[0].mxu0
        %v5619 = vadd.f32 %v5536, %v5618
        %v5620 = vpop.f32.mrb[0].mxu0
        %5621 = vmatprep.mubr.f32.mxu0 0.0
        %5622 = vmatmul.mubr.f32.gmra.mrb[0].mxu0 %v5521
        %v5623 = vpop.f32.mrb[0].mxu0
        %v5624 = vadd.f32 %v5537, %v5623
        %v5625 = vpop.f32.mrb[0].mxu0
        %5626 = vmatprep.mubr.f32.mxu0 0.0
        %5627 = vmatmul.mubr.f32.gmra.mrb[0].mxu0 %v5522
        %v5628 = vpop.f32.mrb[0].mxu0
        %v5629 = vadd.f32 %v5538, %v5628
        %v5630 = vpop.f32.mrb[0].mxu0
        %5631 = vmatprep.mubr.f32.mxu0 0.0
        %5632 = vmatmul.mubr.f32.gmra.mrb[0].mxu0 %v5523
        %v5633 = vpop.f32.mrb[0].mxu0
        %v5634 = vadd.f32 %v5539, %v5633
        %v5635 = vpop.f32.mrb[0].mxu0
        %5636 = vmatprep.mubr.f32.mxu0 0.0
        %5637 = vmatmul.mubr.f32.gmra.mrb[0].mxu0 %v5524
        %v5638 = vpop.f32.mrb[0].mxu0
        %v5639 = vadd.f32 %v5540, %v5638
        %v5640 = vpop.f32.mrb[0].mxu0
        %5641 = vmatprep.mubr.f32.mxu0 0.0
        %5642 = vmatmul.mubr.f32.gmra.mrb[0].mxu0 %v5525
        %v5643 = vpop.f32.mrb[0].mxu0
        %v5644 = vadd.f32 %v5541, %v5643
        %v5645 = vpop.f32.mrb[0].mxu0
        %5646 = vmatprep.mubr.f32.mxu0 0.0
        %5647 = vmatmul.mubr.f32.gmra.mrb[0].mxu0 %v5526
        %v5648 = vpop.f32.mrb[0].mxu0
        %v5649 = vadd.f32 %v5542, %v5648
        %v5650 = vpop.f32.mrb[0].mxu0
        %5651 = vmatprep.mubr.f32.mxu0 0.0
        %5652 = vmatmul.mubr.f32.gmra.mrb[0].mxu0 %v5527
        %v5653 = vpop.f32.mrb[0].mxu0
        %v5654 = vadd.f32 %v5543, %v5653
        %v5655 = vpop.f32.mrb[0].mxu0
        %5656 = vmatprep.mubr.f32.mxu0 0.0
        %5657 = vmatmul.mubr.f32.gmra.mrb[0].mxu0 %v5528
        %v5658 = vpop.f32.mrb[0].mxu0
        %v5659 = vadd.f32 %v5544, %v5658
        %v5660 = vpop.f32.mrb[0].mxu0
        %5661 = vmatprep.mubr.f32.mxu0 0.0
        %5662 = vmatmul.mubr.f32.gmra.mrb[0].mxu0 %v5529
        %v5663 = vpop.f32.mrb[0].mxu0
        %v5664 = vadd.f32 %v5545, %v5663
        %v5665 = vpop.f32.mrb[0].mxu0
        %5666 = vmatprep.mubr.f32.mxu0 0.0
        %5667 = vmatmul.mubr.f32.gmra.mrb[0].mxu0 %v5530
        %v5668 = vpop.f32.mrb[0].mxu0
        %v5669 = vadd.f32 %v5546, %v5668
        %v5670 = vpop.f32.mrb[0].mxu0
        %5671 = vmatprep.mubr.f32.mxu0 0.0
        %5672 = vmatmul.mubr.f32.gmra.mrb[0].mxu0 %v5531
        %v5673 = vpop.f32.mrb[0].mxu0
        %v5674 = vadd.f32 %v5547, %v5673
        %v5675 = vpop.f32.mrb[0].mxu0
        %5676 = vmatprep.mubr.f32.mxu0 0.0
        %5677 = vmatmul.mubr.f32.gmra.mrb[0].mxu0 %v5532
        %v5678 = vpop.f32.mrb[0].mxu0
        %v5679 = vadd.f32 %v5548, %v5678
        %v5680 = vpop.f32.mrb[0].mxu0
        %5681 = vmatprep.mubr.f32.mxu0 0.0
        %5682 = vmatmul.mubr.f32.gmra.mrb[0].mxu0 %v5533
        %v5683 = vpop.f32.mrb[0].mxu0
        %v5684 = vadd.f32 %v5549, %v5683
        %v5685 = vpop.f32.mrb[0].mxu0
        %5686 = vmatprep.mubr.f32.mxu0 0.0
        %5687 = vmatmul.mubr.f32.gmra.mrb[0].mxu0 %v5534
        %v5688 = vpop.f32.mrb[0].mxu0
        %v5689 = vadd.f32 %v5550, %v5688
        %v5690 = vpop.f32.mrb[0].mxu0
        %5691 = vmatprep.mubr.f32.mxu0 0.0
        %5692 = vmatmul.mubr.f32.gmra.mrb[0].mxu0 %v5535
        %v5693 = vpop.f32.mrb[0].mxu0
        %v5694 = vadd.f32 %v5551, %v5693
        %v5695 = vpop.f32.mrb[0].mxu0
        %5696 = vdwg.mxu0
        %v5697 = vsub.f32 0.0, %v5619
        %v5698 = vsub.f32 0.0, %v5624
        %v5699 = vsub.f32 0.0, %v5629
        %v5700 = vsub.f32 0.0, %v5634
        %v5701 = vsub.f32 0.0, %v5639
        %v5702 = vsub.f32 0.0, %v5644
        %v5703 = vsub.f32 0.0, %v5649
        %v5704 = vsub.f32 0.0, %v5654
        %v5705 = vsub.f32 0.0, %v5659
        %v5706 = vsub.f32 0.0, %v5664
        %v5707 = vsub.f32 0.0, %v5669
        %v5708 = vsub.f32 0.0, %v5674
        %v5709 = vsub.f32 0.0, %v5679
        %v5710 = vsub.f32 0.0, %v5684
        %v5711 = vsub.f32 0.0, %v5689
        %v5712 = vsub.f32 0.0, %v5694
        %v5713 = vmul.f32 %v5697, 1.442695
        %v5714 = vpow.pop %v5713
        %v5715 = vmul.f32 %v5698, 1.442695
        %v5716 = vpow.pop %v5715
        %v5717 = vmul.f32 %v5699, 1.442695
        %v5718 = vpow.pop %v5717
        %v5719 = vmul.f32 %v5700, 1.442695
        %v5720 = vpow.pop %v5719
        %v5721 = vmul.f32 %v5701, 1.442695
        %v5722 = vpow.pop %v5721
        %v5723 = vmul.f32 %v5702, 1.442695
        %v5724 = vpow.pop %v5723
        %v5725 = vmul.f32 %v5703, 1.442695
        %v5726 = vpow.pop %v5725
        %v5727 = vmul.f32 %v5704, 1.442695
        %v5728 = vpow.pop %v5727
        %v5729 = vmul.f32 %v5705, 1.442695
        %v5730 = vpow.pop %v5729
        %v5731 = vmul.f32 %v5706, 1.442695
        %v5732 = vpow.pop %v5731
        %v5733 = vmul.f32 %v5707, 1.442695
        %v5734 = vpow.pop %v5733
        %v5735 = vmul.f32 %v5708, 1.442695
        %v5736 = vpow.pop %v5735
        %v5737 = vmul.f32 %v5709, 1.442695
        %v5738 = vpow.pop %v5737
        %v5739 = vmul.f32 %v5710, 1.442695
        %v5740 = vpow.pop %v5739
        %v5741 = vmul.f32 %v5711, 1.442695
        %v5742 = vpow.pop %v5741
        %v5743 = vmul.f32 %v5712, 1.442695
        %v5744 = vpow.pop %v5743
        %v5745 = vadd.f32 %v5714, 1.0
        %v5746 = vadd.f32 %v5716, 1.0
        %v5747 = vadd.f32 %v5718, 1.0
        %v5748 = vadd.f32 %v5720, 1.0
        %v5749 = vadd.f32 %v5722, 1.0
        %v5750 = vadd.f32 %v5724, 1.0
        %v5751 = vadd.f32 %v5726, 1.0
        %v5752 = vadd.f32 %v5728, 1.0
        %v5753 = vadd.f32 %v5730, 1.0
        %v5754 = vadd.f32 %v5732, 1.0
        %v5755 = vadd.f32 %v5734, 1.0
        %v5756 = vadd.f32 %v5736, 1.0
        %v5757 = vadd.f32 %v5738, 1.0
        %v5758 = vadd.f32 %v5740, 1.0
        %v5759 = vadd.f32 %v5742, 1.0
        %v5760 = vadd.f32 %v5744, 1.0
        %v5761 = vrcp.pop %v5745
        %v5762 = vrcp.pop %v5746
        %v5763 = vrcp.pop %v5747
        %v5764 = vrcp.pop %v5748
        %v5765 = vrcp.pop %v5749
        %v5766 = vrcp.pop %v5750
        %v5767 = vrcp.pop %v5751
        %v5768 = vrcp.pop %v5752
        %v5769 = vrcp.pop %v5753
        %v5770 = vrcp.pop %v5754
        %v5771 = vrcp.pop %v5755
        %v5772 = vrcp.pop %v5756
        %v5773 = vrcp.pop %v5757
        %v5774 = vrcp.pop %v5758
        %v5775 = vrcp.pop %v5759
        %v5776 = vrcp.pop %v5760
        %5778 = vset.pattern.permute.xlu0 0
        %5779 = vperm.xlu0 %5778, %v5761
        %v5780 = vpop.permute.xlu0 %5779
        %5783 = vset.pattern.permute.xlu0 0
        %5784 = vperm.xlu0 %5783, %v5762
        %v5785 = vpop.permute.xlu0 %5784
        %5788 = vset.pattern.permute.xlu0 0
        %5789 = vperm.xlu0 %5788, %v5763
        %v5790 = vpop.permute.xlu0 %5789
        %5793 = vset.pattern.permute.xlu0 0
        %5794 = vperm.xlu0 %5793, %v5764
        %v5795 = vpop.permute.xlu0 %5794
        %5798 = vset.pattern.permute.xlu0 0
        %5799 = vperm.xlu0 %5798, %v5765
        %v5800 = vpop.permute.xlu0 %5799
        %5803 = vset.pattern.permute.xlu0 0
        %5804 = vperm.xlu0 %5803, %v5766
        %v5805 = vpop.permute.xlu0 %5804
        %5808 = vset.pattern.permute.xlu0 0
        %5809 = vperm.xlu0 %5808, %v5767
        %v5810 = vpop.permute.xlu0 %5809
        %5813 = vset.pattern.permute.xlu0 0
        %5814 = vperm.xlu0 %5813, %v5768
        %v5815 = vpop.permute.xlu0 %5814
        %5818 = vset.pattern.permute.xlu0 0
        %5819 = vperm.xlu0 %5818, %v5769
        %v5820 = vpop.permute.xlu0 %5819
        %5823 = vset.pattern.permute.xlu0 0
        %5824 = vperm.xlu0 %5823, %v5770
        %v5825 = vpop.permute.xlu0 %5824
        %5828 = vset.pattern.permute.xlu0 0
        %5829 = vperm.xlu0 %5828, %v5771
        %v5830 = vpop.permute.xlu0 %5829
        %5833 = vset.pattern.permute.xlu0 0
        %5834 = vperm.xlu0 %5833, %v5772
        %v5835 = vpop.permute.xlu0 %5834
        %5838 = vset.pattern.permute.xlu0 0
        %5839 = vperm.xlu0 %5838, %v5773
        %v5840 = vpop.permute.xlu0 %5839
        %5843 = vset.pattern.permute.xlu0 0
        %5844 = vperm.xlu0 %5843, %v5774
        %v5845 = vpop.permute.xlu0 %5844
        %5848 = vset.pattern.permute.xlu0 0
        %5849 = vperm.xlu0 %5848, %v5775
        %v5850 = vpop.permute.xlu0 %5849
        %5853 = vset.pattern.permute.xlu0 0
        %5854 = vperm.xlu0 %5853, %v5776
        %v5855 = vpop.permute.xlu0 %5854
        %v5857 = vmul.f32 %v5247, %v5780
        %v5858 = vmul.f32 %v5248, %v5785
        %v5859 = vmul.f32 %v5249, %v5790
        %v5860 = vmul.f32 %v5250, %v5795
        %v5861 = vmul.f32 %v5251, %v5800
        %v5862 = vmul.f32 %v5252, %v5805
        %v5863 = vmul.f32 %v5253, %v5810
        %v5864 = vmul.f32 %v5254, %v5815
        %v5865 = vmul.f32 %v5255, %v5820
        %v5866 = vmul.f32 %v5256, %v5825
        %v5867 = vmul.f32 %v5257, %v5830
        %v5868 = vmul.f32 %v5258, %v5835
        %v5869 = vmul.f32 %v5259, %v5840
        %v5870 = vmul.f32 %v5260, %v5845
        %v5871 = vmul.f32 %v5261, %v5850
        %v5872 = vmul.f32 %v5262, %v5855
        %s5873 = scalar_lea.vmem %s519, 384
        %5874 = vst.msk [vmem:[%s5873] sm:$0xff] %vm1402, %v5857
        %5875 = vst.msk [vmem:[%s5873 + $0x8] sm:$0xff] %vm1402, %v5858
        %5876 = vst.msk [vmem:[%s5873 + $0x10] sm:$0xff] %vm1402, %v5859
        %5877 = vst.msk [vmem:[%s5873 + $0x18] sm:$0xff] %vm1402, %v5860
        %5878 = vst.msk [vmem:[%s5873 + $0x20] sm:$0xff] %vm1402, %v5861
        %5879 = vst.msk [vmem:[%s5873 + $0x28] sm:$0xff] %vm1402, %v5862
        %5880 = vst.msk [vmem:[%s5873 + $0x30] sm:$0xff] %vm1402, %v5863
        %5881 = vst.msk [vmem:[%s5873 + $0x38] sm:$0xff] %vm1402, %v5864
        %5882 = vst.msk [vmem:[%s5873 + $0x40] sm:$0xff] %vm1402, %v5865
        %5883 = vst.msk [vmem:[%s5873 + $0x48] sm:$0xff] %vm1402, %v5866
        %5884 = vst.msk [vmem:[%s5873 + $0x50] sm:$0xff] %vm1402, %v5867
        %5885 = vst.msk [vmem:[%s5873 + $0x58] sm:$0xff] %vm1402, %v5868
        %5886 = vst.msk [vmem:[%s5873 + $0x60] sm:$0xff] %vm1402, %v5869
        %5887 = vst.msk [vmem:[%s5873 + $0x68] sm:$0xff] %vm1402, %v5870
        %5888 = vst.msk [vmem:[%s5873 + $0x70] sm:$0xff] %vm1402, %v5871
        %5889 = vst.msk [vmem:[%s5873 + $0x78] sm:$0xff] %vm1402, %v5872
        %s5890 = smul.u32 4, %s40
        %p5891 = scmp.lt.s32.totalorder %s5890, 7
        %s5892 = scalar_select %p5891, %s5890, 7
        %s5893 = smul.addr %s5892, 16
        %s5894 = smul.addr %s5893, 8
        %s5895 = scalar_lea.vmem %s12, %s5894
        // Predicated region
        $region77: #{tpu_custom_call.1} parent=59 // pred_check
          %p5896 = pneg %p299
        $region78: #{tpu_custom_call.1} parent=59 // pred_check_branch
          %5898 = sbr.rel (%p5896) target = $region80
        $region79: #{tpu_custom_call.1} parent=59 // pred_region
          %s5899 = smul.u32 4, %s40
        $region80: #{tpu_custom_call.1} parent=59 // pred_fallthru
          _
      $region60: #{tpu_custom_call.1} parent=5 // pred_fallthru
        _
      %p5900 = scmp.le.s32.totalorder 2, %s35
      // Predicated region
      $region81: #{tpu_custom_call.1} parent=5 // pred_check
        %p5901 = pneg %p5900
      $region82: #{tpu_custom_call.1} parent=5 // pred_check_branch
        %5903 = sbr.rel (%p5901) target = $region84
      $region83: #{tpu_custom_call.1} parent=5 // pred_region
        %s5904 = ssub.s32 %s35, 2
        // Predicated region
        $region85: #{tpu_custom_call.1} parent=83 // pred_check
          %p5905 = pneg %p305
        $region86: #{tpu_custom_call.1} parent=83 // pred_check_branch
          %5907 = sbr.rel (%p5905) target = $region88
        $region87: #{tpu_custom_call.1} parent=83 // pred_region
          %s5908 = smul.u32 4, %s41
          %p5909 = scmp.lt.s32.totalorder %s5908, 7
          %s5910 = scalar_select %p5909, %s5908, 7
          %s5911 = smul.addr %s5910, 16
          %s5912 = smul.addr %s5911, 8
          %s5913 = scalar_lea.vmem %s12, %s5912
        $region88: #{tpu_custom_call.1} parent=83 // pred_fallthru
          _
      $region84: #{tpu_custom_call.1} parent=5 // pred_fallthru
        _
    $region6: #{tpu_custom_call.1} parent=1 // loop_footer
      %s39 = sadd.s32 1, %s35
    $region7: #{tpu_custom_call.1} parent=1 // loop_footer_branch
      %34 = sbr.rel target = $region3
    $region8: #{tpu_custom_call.1} parent=1 // loop_exit
      _
    %5914 = vsyncpa [#allocation6], 1
    %s5915 = scalar_lea.sflag [#allocation6], 1
    %5916 = vsyncpa %s5915, 1
    %5917 = vsyncpa [#allocation8], 1
    %s5918 = scalar_lea.sflag [#allocation8], 1
    %5919 = vsyncpa %s5918, 1
    %5920 = vsyncpa [#allocation11], 1

</llo_original>
